<compile_context>
chip_gen: v5e
topology: v5e:2x2
jax: 0.10.0
libtpu: 0.0.40
codegen_flags: <defaults>
</compile_context>

<pallas_src>
import jax
import jax.numpy as jnp
from jax import lax
from jax.experimental import pallas as pl
from jax.experimental.pallas import tpu as pltpu

EPS = 1e-5
LANE = 128


def _round_up(x, m):
    return (x + m - 1) // m * m


def _pad2d(a, rows, cols):
    return jnp.pad(a, ((0, rows - a.shape[0]), (0, cols - a.shape[1])))


def _pad_vec(v):
    return jnp.pad(v, (0, LANE - v.shape[0])).reshape(1, LANE)


def _oihw_to_colmat(w):
    # (Cout, Cin, kh, kw) -> (kh*kw*Cin, Cout), tap-major to match im2col order.
    Cout, Cin, kh, kw = w.shape
    return jnp.transpose(w, (2, 3, 1, 0)).reshape(kh * kw * Cin, Cout)


def _w2_taps(w):
    # (Cout, Cin, 3, 3) -> (9, 128, 128): one lane-padded (Cin, Cout) matrix per tap.
    Cout, Cin, _, _ = w.shape
    taps = [jnp.pad(w[:, :, dy, dx].T, ((0, LANE - Cin), (0, LANE - Cout)))
            for dy in range(3) for dx in range(3)]
    return jnp.stack(taps, axis=0)


def _im2col_padded_grid(x_nhwc, s):
    # 3x3 conv, padding=1, stride s.  One patch row per position of the halo'd
    # output grid (Ho+2, Wo+2); halo rows hold junk and are masked in-kernel.
    N, H, W, C = x_nhwc.shape
    Ho = (H + 2 - 3) // s + 1
    Wo = (W + 2 - 3) // s + 1
    Hp, Wp = Ho + 2, Wo + 2
    pad_lo = s + 1
    xp = jnp.pad(x_nhwc, ((0, 0),
                          (pad_lo, (Ho + 1) * s + 3 - H - pad_lo),
                          (pad_lo, (Wo + 1) * s + 3 - W - pad_lo),
                          (0, 0)))
    cols = [xp[:, dy:dy + (Hp - 1) * s + 1:s, dx:dx + (Wp - 1) * s + 1:s, :]
            for dy in range(3) for dx in range(3)]
    return jnp.concatenate(cols, axis=-1).reshape(N * Hp * Wp, 9 * C)


# ---------------------------------------------------------------------------
# Fused Pallas kernel
# ---------------------------------------------------------------------------
def _make_fused_kernel(Wp, R, LPAD, n_valid, use_proj):
    inv_cnt = 1.0 / float(n_valid)

    def _bn_scale_shift(y, maskf, g, beta):
        # One-pass masked batch stats over the valid rows (global over N*H*W).
        ym = y * maskf
        s1 = jnp.sum(ym, axis=0, keepdims=True)
        s2 = jnp.sum(ym * y, axis=0, keepdims=True)
        mean = s1 * inv_cnt
        var = s2 * inv_cnt - mean * mean
        scale = g * lax.rsqrt(var + EPS)
        return scale, beta - mean * scale

    def kernel(*refs):
        if use_proj:
            (p1_ref, m_ref, w1_ref, g1_ref, bt1_ref, w2_ref, g2_ref, bt2_ref,
             xs_ref, w3_ref, b3_ref, o_ref, y1p_ref) = refs
        else:
            (p1_ref, m_ref, w1_ref, g1_ref, bt1_ref, w2_ref, g2_ref, bt2_ref,
             res_ref, o_ref, y1p_ref) = refs

        maskf = m_ref[...]                                      # (R, 1)

        # conv1 (im2col matmul) + folded BN1 scale/shift + ReLU.  No bias add:
        # it is cancelled by the BN mean subtraction.
        y = jnp.dot(p1_ref[...], w1_ref[...],
                    preferred_element_type=jnp.float32)         # (R, 128)
        sc1, sh1 = _bn_scale_shift(y, maskf, g1_ref[...], bt1_ref[...])
        y1 = jnp.maximum(y * sc1 + sh1, 0.0) * maskf            # zero the halo ring

        # Stage y1 in VMEM (halo'd flat layout; margins stay zero).
        y1p_ref[...] = jnp.zeros_like(y1p_ref)
        y1p_ref[pl.ds(LPAD, R), :] = y1.astype(y1p_ref.dtype)

        # conv2 as 9 shifted-row matmuls over the VMEM-resident y1
        # (no HBM round-trip of y1, no 9x im2col duplication).
        acc = None
        for t in range(9):
            dy, dx = t // 3, t % 3
            off = LPAD + (dy - 1) * Wp + (dx - 1)
            part = jnp.dot(y1p_ref[pl.ds(off, R), :], w2_ref[t],
                           preferred_element_type=jnp.float32)
            acc = part if acc is None else acc + part

        sc2, sh2 = _bn_scale_shift(acc, maskf, g2_ref[...], bt2_ref[...])

        if use_proj:
            # 1x1 projection shortcut (kept as its own dot: fusing it into the
            # conv2 contraction would corrupt bn2's batch statistics).
            ident = jnp.dot(xs_ref[...], w3_ref[...],
                            preferred_element_type=jnp.float32) + b3_ref[...]
        else:
            ident = res_ref[...]

        o_ref[...] = jnp.maximum(acc * sc2 + sh2 + ident, 0.0)

    return kernel


# ---------------------------------------------------------------------------
# Wrapper: layout conversion, lane/halo padding, pallas_call
# ---------------------------------------------------------------------------
def residual_forward(x_nchw, params, use_1x1conv=False, strides=1,
                     mxu_dtype=jnp.float32):
    N, Cin, H, W = x_nchw.shape
    Cout = params["w1"].shape[0]
    assert Cin <= LANE and Cout <= LANE, "single-lane-block channels only"
    x = jnp.transpose(x_nchw, (0, 2, 3, 1)).astype(jnp.float32)     # NHWC

    Ho = (H + 2 - 3) // strides + 1
    Wo = (W + 2 - 3) // strides + 1
    Hp, Wp = Ho + 2, Wo + 2
    R0 = N * Hp * Wp                      # rows of the halo'd flat grid
    R = _round_up(R0, 8)
    LPAD = _round_up(Wp + 1, 8)           # aligned zero margin for shifted reads
    R_ext = _round_up(LPAD + R + Wp + 1, 8)
    K1p = _round_up(9 * Cin, LANE)

    # conv1 im2col over the halo'd output grid; lane-pad K, row-pad to 8.
    p1 = _pad2d(_im2col_padded_grid(x, strides), R, K1p).astype(mxu_dtype)
    w1 = _pad2d(_oihw_to_colmat(params["w1"]), K1p, LANE).astype(mxu_dtype)
    w2 = _w2_taps(params["w2"]).astype(mxu_dtype)                   # (9,128,128)
    g1, bt1 = _pad_vec(params["g1"]), _pad_vec(params["beta1"])
    g2, bt2 = _pad_vec(params["g2"]), _pad_vec(params["beta2"])

    # Row-validity mask of the halo'd grid (interior rows = real outputs).
    r = jnp.arange(R)
    pi, pj = (r // Wp) % Hp, r % Wp
    valid = (r < R0) & (pi >= 1) & (pi <= Ho) & (pj >= 1) & (pj <= Wo)
    maskf = valid.astype(jnp.float32).reshape(R, 1)

    if use_1x1conv:
        xs = jnp.pad(x[:, ::strides, ::strides, :],
                     ((0, 0), (1, 1), (1, 1), (0, LANE - Cin)))
        xs = _pad2d(xs.reshape(R0, LANE), R, LANE).astype(mxu_dtype)
        w3 = _pad2d(params["w3"].reshape(Cout, Cin).T, LANE, LANE).astype(mxu_dtype)
        b3 = _pad_vec(params["b3"])
        args = (p1, maskf, w1, g1, bt1, w2, g2, bt2, xs, w3, b3)
    else:
        res = jnp.pad(x, ((0, 0), (1, 1), (1, 1), (0, LANE - Cin)))
        res = _pad2d(res.reshape(R0, LANE), R, LANE)
        args = (p1, maskf, w1, g1, bt1, w2, g2, bt2, res)

    kernel = _make_fused_kernel(Wp, R, LPAD, N * Ho * Wo, use_1x1conv)
    out2d = pl.pallas_call(
        kernel,
        out_shape=jax.ShapeDtypeStruct((R, LANE), jnp.float32),
        in_specs=[pl.BlockSpec(memory_space=pltpu.MemorySpace.VMEM)] * len(args),
        out_specs=pl.BlockSpec(memory_space=pltpu.MemorySpace.VMEM),
        scratch_shapes=[pltpu.VMEM((R_ext, LANE), mxu_dtype)],
        compiler_params=pltpu.CompilerParams(vmem_limit_bytes=48 * 1024 * 1024),
    )(*args)

    out = out2d.reshape(N, Hp, Wp, LANE)[:, 1:Ho + 1, 1:Wo + 1, :Cout]
    return jnp.transpose(out, (0, 3, 1, 2))


# ---------------------------------------------------------------------------
# Deterministic synthetic parameters (shapes from Residual.__init__)
# ---------------------------------------------------------------------------
def init_params(key, in_channels, out_channels, use_1x1conv):
    keys = jax.random.split(key, 6)
    params = {
        "w1": 0.1 * jax.random.normal(keys[0], (out_channels, in_channels, 3, 3), jnp.float32),
        "b1": 0.05 * jax.random.normal(keys[1], (out_channels,), jnp.float32),
        "w2": 0.1 * jax.random.normal(keys[2], (out_channels, out_channels, 3, 3), jnp.float32),
        "b2": 0.05 * jax.random.normal(keys[3], (out_channels,), jnp.float32),
        "g1": jnp.ones((out_channels,), jnp.float32),
        "beta1": jnp.zeros((out_channels,), jnp.float32),
        "g2": jnp.ones((out_channels,), jnp.float32),
        "beta2": jnp.zeros((out_channels,), jnp.float32),
    }
    if use_1x1conv:
        params["w3"] = 0.1 * jax.random.normal(keys[4], (out_channels, in_channels, 1, 1), jnp.float32)
        params["b3"] = 0.05 * jax.random.normal(keys[5], (out_channels,), jnp.float32)
    return params


# Pure-JAX reference (mirrors the PyTorch forward, incl. conv biases).
def residual_reference(x, params, use_1x1conv=False, strides=1):
    def conv(x, w, b, stride, pad):
        y = lax.conv_general_dilated(
            x, w, window_strides=(stride, stride),
            padding=((pad, pad), (pad, pad)),
            dimension_numbers=("NCHW", "OIHW", "NCHW"))
        return y + b[None, :, None, None]

    def bn(y, g, bt):
        mean = jnp.mean(y, axis=(0, 2, 3), keepdims=True)
        var = jnp.mean((y - mean) ** 2, axis=(0, 2, 3), keepdims=True)
        return (g[None, :, None, None] * (y - mean) * lax.rsqrt(var + EPS)
                + bt[None, :, None, None])

    y = jax.nn.relu(bn(conv(x, params["w1"], params["b1"], strides, 1),
                       params["g1"], params["beta1"]))
    y = bn(conv(y, params["w2"], params["b2"], 1, 1), params["g2"], params["beta2"])
    sc = conv(x, params["w3"], params["b3"], strides, 0) if use_1x1conv else x
    return jax.nn.relu(y + sc)


if __name__ == "__main__":
    key = jax.random.PRNGKey(0)
    kx, kp1, kp2 = jax.random.split(key, 3)

    # Config 1: Residual(4, 4) -- identity shortcut, stride 1.
    x = jax.random.normal(kx, (2, 4, 16, 16), jnp.float32)
    params1 = init_params(kp1, 4, 4, use_1x1conv=False)
    out1 = jax.block_until_ready(
        residual_forward(x, params1, use_1x1conv=False, strides=1))
    ref1 = residual_reference(x, params1, use_1x1conv=False, strides=1)
    assert out1.shape == (2, 4, 16, 16)
    assert float(jnp.max(jnp.abs(out1 - ref1))) < 1e-3

    # Config 2: Residual(4, 8, use_1x1conv=True, strides=2) -- projected shortcut.
    params2 = init_params(kp2, 4, 8, use_1x1conv=True)
    out2 = jax.block_until_ready(
        residual_forward(x, params2, use_1x1conv=True, strides=2))
    ref2 = residual_reference(x, params2, use_1x1conv=True, strides=2)
    assert out2.shape == (2, 8, 8, 8)
    assert float(jnp.max(jnp.abs(out2 - ref2))) < 1e-3

    print("KERNEL_OK")
</pallas_src>

<mosaic_0001>
module attributes {stable_mosaic.version = 11 : i64} {
  func.func @kernel(%arg0: memref<648x128xf32, #tpu.memory_space<vmem>>, %arg1: memref<648x1xf32, #tpu.memory_space<vmem>>, %arg2: memref<128x128xf32, #tpu.memory_space<vmem>>, %arg3: memref<1x128xf32, #tpu.memory_space<vmem>>, %arg4: memref<1x128xf32, #tpu.memory_space<vmem>>, %arg5: memref<9x128x128xf32, #tpu.memory_space<vmem>>, %arg6: memref<1x128xf32, #tpu.memory_space<vmem>>, %arg7: memref<1x128xf32, #tpu.memory_space<vmem>>, %arg8: memref<648x128xf32, #tpu.memory_space<vmem>>, %arg9: memref<648x128xf32, #tpu.memory_space<vmem>>, %arg10: memref<696x128xf32, #tpu.memory_space<vmem>>) attributes {dimension_semantics = [], scalar_prefetch = 0 : i64, scratch_operands = 1 : i64, tpu.core_type = #tpu.core_type<tc>} {
    %c0 = arith.constant 0 : index
    %c0_0 = arith.constant 0 : index
    %0 = vector.load %arg1[%c0, %c0_0] : memref<648x1xf32, #tpu.memory_space<vmem>>, vector<648x1xf32>
    %c0_1 = arith.constant 0 : index
    %c0_2 = arith.constant 0 : index
    %1 = vector.load %arg0[%c0_1, %c0_2] : memref<648x128xf32, #tpu.memory_space<vmem>>, vector<648x128xf32>
    %c0_3 = arith.constant 0 : index
    %c0_4 = arith.constant 0 : index
    %2 = vector.load %arg2[%c0_3, %c0_4] : memref<128x128xf32, #tpu.memory_space<vmem>>, vector<128x128xf32>
    %cst = arith.constant dense<0.000000e+00> : vector<648x128xf32>
    %3 = tpu.matmul %1, %2, %cst {dimension_numbers = #tpu.dot_dimension_numbers<[1], [0], [0], [1], [0, 0, 1, 1], [], []>} : vector<648x128xf32>, vector<128x128xf32>, vector<648x128xf32> -> vector<648x128xf32>
    %c0_5 = arith.constant 0 : index
    %c0_6 = arith.constant 0 : index
    %4 = vector.load %arg3[%c0_5, %c0_6] : memref<1x128xf32, #tpu.memory_space<vmem>>, vector<1x128xf32>
    %c0_7 = arith.constant 0 : index
    %c0_8 = arith.constant 0 : index
    %5 = vector.load %arg4[%c0_7, %c0_8] : memref<1x128xf32, #tpu.memory_space<vmem>>, vector<1x128xf32>
    %6 = vector.broadcast %0 : vector<648x1xf32> to vector<648x128xf32>
    %7 = arith.mulf %3, %6 : vector<648x128xf32>
    %cst_9 = arith.constant dense<0.000000e+00> : vector<128xf32>
    %8 = vector.multi_reduction <add>, %7, %cst_9 [0] : vector<648x128xf32> to vector<128xf32>
    %9 = vector.shape_cast %8 : vector<128xf32> to vector<1x128xf32>
    %10 = arith.mulf %7, %3 : vector<648x128xf32>
    %cst_10 = arith.constant dense<0.000000e+00> : vector<128xf32>
    %11 = vector.multi_reduction <add>, %10, %cst_10 [0] : vector<648x128xf32> to vector<128xf32>
    %12 = vector.shape_cast %11 : vector<128xf32> to vector<1x128xf32>
    %cst_11 = arith.constant 0.001953125 : f32
    %13 = vector.broadcast %cst_11 : f32 to vector<1x128xf32>
    %14 = arith.mulf %9, %13 : vector<1x128xf32>
    %cst_12 = arith.constant 0.001953125 : f32
    %15 = vector.broadcast %cst_12 : f32 to vector<1x128xf32>
    %16 = arith.mulf %12, %15 : vector<1x128xf32>
    %17 = arith.mulf %14, %14 : vector<1x128xf32>
    %18 = arith.subf %16, %17 : vector<1x128xf32>
    %cst_13 = arith.constant 9.99999974E-6 : f32
    %19 = vector.broadcast %cst_13 : f32 to vector<1x128xf32>
    %20 = arith.addf %18, %19 : vector<1x128xf32>
    %21 = math.rsqrt %20 : vector<1x128xf32>
    %22 = arith.mulf %4, %21 : vector<1x128xf32>
    %23 = arith.mulf %14, %22 : vector<1x128xf32>
    %24 = arith.subf %5, %23 : vector<1x128xf32>
    %25 = vector.broadcast %22 : vector<1x128xf32> to vector<648x128xf32>
    %26 = arith.mulf %3, %25 : vector<648x128xf32>
    %27 = vector.broadcast %24 : vector<1x128xf32> to vector<648x128xf32>
    %28 = arith.addf %26, %27 : vector<648x128xf32>
    %cst_14 = arith.constant 0.000000e+00 : f32
    %29 = vector.broadcast %cst_14 : f32 to vector<648x128xf32>
    %30 = arith.maximumf %28, %29 : vector<648x128xf32>
    %31 = vector.broadcast %0 : vector<648x1xf32> to vector<648x128xf32>
    %32 = arith.mulf %30, %31 : vector<648x128xf32>
    %cst_15 = arith.constant 0.000000e+00 : f32
    %33 = vector.broadcast %cst_15 : f32 to vector<696x128xf32>
    %c0_16 = arith.constant 0 : index
    %c0_17 = arith.constant 0 : index
    %34 = vector.load %arg10[%c0_16, %c0_17] : memref<696x128xf32, #tpu.memory_space<vmem>>, vector<696x128xf32>
    tpu.vector_store %arg10[%c0_16, %c0_17], %33 {strides = array<i32>} : memref<696x128xf32, #tpu.memory_space<vmem>>, vector<696x128xf32>,
    %c24 = arith.constant 24 : index
    %c0_18 = arith.constant 0 : index
    %35 = vector.load %arg10[%c24, %c0_18] : memref<696x128xf32, #tpu.memory_space<vmem>>, vector<648x128xf32>
    tpu.vector_store %arg10[%c24, %c0_18], %32 {strides = array<i32>} : memref<696x128xf32, #tpu.memory_space<vmem>>, vector<648x128xf32>,
    %c5 = arith.constant 5 : index
    %c0_19 = arith.constant 0 : index
    %36 = vector.load %arg10[%c5, %c0_19] : memref<696x128xf32, #tpu.memory_space<vmem>>, vector<648x128xf32>
    %c0_20 = arith.constant 0 : index
    %c0_21 = arith.constant 0 : index
    %c0_22 = arith.constant 0 : index
    %37 = vector.load %arg5[%c0_20, %c0_21, %c0_22] : memref<9x128x128xf32, #tpu.memory_space<vmem>>, vector<1x128x128xf32>
    %38 = vector.shape_cast %37 : vector<1x128x128xf32> to vector<128x128xf32>
    %cst_23 = arith.constant dense<0.000000e+00> : vector<648x128xf32>
    %39 = tpu.matmul %36, %38, %cst_23 {dimension_numbers = #tpu.dot_dimension_numbers<[1], [0], [0], [1], [0, 0, 1, 1], [], []>} : vector<648x128xf32>, vector<128x128xf32>, vector<648x128xf32> -> vector<648x128xf32>
    %c6 = arith.constant 6 : index
    %c0_24 = arith.constant 0 : index
    %40 = vector.load %arg10[%c6, %c0_24] : memref<696x128xf32, #tpu.memory_space<vmem>>, vector<648x128xf32>
    %c1 = arith.constant 1 : index
    %c0_25 = arith.constant 0 : index
    %c0_26 = arith.constant 0 : index
    %41 = vector.load %arg5[%c1, %c0_25, %c0_26] : memref<9x128x128xf32, #tpu.memory_space<vmem>>, vector<1x128x128xf32>
    %42 = vector.shape_cast %41 : vector<1x128x128xf32> to vector<128x128xf32>
    %cst_27 = arith.constant dense<0.000000e+00> : vector<648x128xf32>
    %43 = tpu.matmul %40, %42, %cst_27 {dimension_numbers = #tpu.dot_dimension_numbers<[1], [0], [0], [1], [0, 0, 1, 1], [], []>} : vector<648x128xf32>, vector<128x128xf32>, vector<648x128xf32> -> vector<648x128xf32>
    %44 = arith.addf %39, %43 : vector<648x128xf32>
    %c7 = arith.constant 7 : index
    %c0_28 = arith.constant 0 : index
    %45 = vector.load %arg10[%c7, %c0_28] : memref<696x128xf32, #tpu.memory_space<vmem>>, vector<648x128xf32>
    %c2 = arith.constant 2 : index
    %c0_29 = arith.constant 0 : index
    %c0_30 = arith.constant 0 : index
    %46 = vector.load %arg5[%c2, %c0_29, %c0_30] : memref<9x128x128xf32, #tpu.memory_space<vmem>>, vector<1x128x128xf32>
    %47 = vector.shape_cast %46 : vector<1x128x128xf32> to vector<128x128xf32>
    %cst_31 = arith.constant dense<0.000000e+00> : vector<648x128xf32>
    %48 = tpu.matmul %45, %47, %cst_31 {dimension_numbers = #tpu.dot_dimension_numbers<[1], [0], [0], [1], [0, 0, 1, 1], [], []>} : vector<648x128xf32>, vector<128x128xf32>, vector<648x128xf32> -> vector<648x128xf32>
    %49 = arith.addf %44, %48 : vector<648x128xf32>
    %c23 = arith.constant 23 : index
    %c0_32 = arith.constant 0 : index
    %50 = vector.load %arg10[%c23, %c0_32] : memref<696x128xf32, #tpu.memory_space<vmem>>, vector<648x128xf32>
    %c3 = arith.constant 3 : index
    %c0_33 = arith.constant 0 : index
    %c0_34 = arith.constant 0 : index
    %51 = vector.load %arg5[%c3, %c0_33, %c0_34] : memref<9x128x128xf32, #tpu.memory_space<vmem>>, vector<1x128x128xf32>
    %52 = vector.shape_cast %51 : vector<1x128x128xf32> to vector<128x128xf32>
    %cst_35 = arith.constant dense<0.000000e+00> : vector<648x128xf32>
    %53 = tpu.matmul %50, %52, %cst_35 {dimension_numbers = #tpu.dot_dimension_numbers<[1], [0], [0], [1], [0, 0, 1, 1], [], []>} : vector<648x128xf32>, vector<128x128xf32>, vector<648x128xf32> -> vector<648x128xf32>
    %54 = arith.addf %49, %53 : vector<648x128xf32>
    %c24_36 = arith.constant 24 : index
    %c0_37 = arith.constant 0 : index
    %55 = vector.load %arg10[%c24_36, %c0_37] : memref<696x128xf32, #tpu.memory_space<vmem>>, vector<648x128xf32>
    %c4 = arith.constant 4 : index
    %c0_38 = arith.constant 0 : index
    %c0_39 = arith.constant 0 : index
    %56 = vector.load %arg5[%c4, %c0_38, %c0_39] : memref<9x128x128xf32, #tpu.memory_space<vmem>>, vector<1x128x128xf32>
    %57 = vector.shape_cast %56 : vector<1x128x128xf32> to vector<128x128xf32>
    %cst_40 = arith.constant dense<0.000000e+00> : vector<648x128xf32>
    %58 = tpu.matmul %55, %57, %cst_40 {dimension_numbers = #tpu.dot_dimension_numbers<[1], [0], [0], [1], [0, 0, 1, 1], [], []>} : vector<648x128xf32>, vector<128x128xf32>, vector<648x128xf32> -> vector<648x128xf32>
    %59 = arith.addf %54, %58 : vector<648x128xf32>
    %c25 = arith.constant 25 : index
    %c0_41 = arith.constant 0 : index
    %60 = vector.load %arg10[%c25, %c0_41] : memref<696x128xf32, #tpu.memory_space<vmem>>, vector<648x128xf32>
    %c5_42 = arith.constant 5 : index
    %c0_43 = arith.constant 0 : index
    %c0_44 = arith.constant 0 : index
    %61 = vector.load %arg5[%c5_42, %c0_43, %c0_44] : memref<9x128x128xf32, #tpu.memory_space<vmem>>, vector<1x128x128xf32>
    %62 = vector.shape_cast %61 : vector<1x128x128xf32> to vector<128x128xf32>
    %cst_45 = arith.constant dense<0.000000e+00> : vector<648x128xf32>
    %63 = tpu.matmul %60, %62, %cst_45 {dimension_numbers = #tpu.dot_dimension_numbers<[1], [0], [0], [1], [0, 0, 1, 1], [], []>} : vector<648x128xf32>, vector<128x128xf32>, vector<648x128xf32> -> vector<648x128xf32>
    %64 = arith.addf %59, %63 : vector<648x128xf32>
    %c41 = arith.constant 41 : index
    %c0_46 = arith.constant 0 : index
    %65 = vector.load %arg10[%c41, %c0_46] : memref<696x128xf32, #tpu.memory_space<vmem>>, vector<648x128xf32>
    %c6_47 = arith.constant 6 : index
    %c0_48 = arith.constant 0 : index
    %c0_49 = arith.constant 0 : index
    %66 = vector.load %arg5[%c6_47, %c0_48, %c0_49] : memref<9x128x128xf32, #tpu.memory_space<vmem>>, vector<1x128x128xf32>
    %67 = vector.shape_cast %66 : vector<1x128x128xf32> to vector<128x128xf32>
    %cst_50 = arith.constant dense<0.000000e+00> : vector<648x128xf32>
    %68 = tpu.matmul %65, %67, %cst_50 {dimension_numbers = #tpu.dot_dimension_numbers<[1], [0], [0], [1], [0, 0, 1, 1], [], []>} : vector<648x128xf32>, vector<128x128xf32>, vector<648x128xf32> -> vector<648x128xf32>
    %69 = arith.addf %64, %68 : vector<648x128xf32>
    %c42 = arith.constant 42 : index
    %c0_51 = arith.constant 0 : index
    %70 = vector.load %arg10[%c42, %c0_51] : memref<696x128xf32, #tpu.memory_space<vmem>>, vector<648x128xf32>
    %c7_52 = arith.constant 7 : index
    %c0_53 = arith.constant 0 : index
    %c0_54 = arith.constant 0 : index
    %71 = vector.load %arg5[%c7_52, %c0_53, %c0_54] : memref<9x128x128xf32, #tpu.memory_space<vmem>>, vector<1x128x128xf32>
    %72 = vector.shape_cast %71 : vector<1x128x128xf32> to vector<128x128xf32>
    %cst_55 = arith.constant dense<0.000000e+00> : vector<648x128xf32>
    %73 = tpu.matmul %70, %72, %cst_55 {dimension_numbers = #tpu.dot_dimension_numbers<[1], [0], [0], [1], [0, 0, 1, 1], [], []>} : vector<648x128xf32>, vector<128x128xf32>, vector<648x128xf32> -> vector<648x128xf32>
    %74 = arith.addf %69, %73 : vector<648x128xf32>
    %c43 = arith.constant 43 : index
    %c0_56 = arith.constant 0 : index
    %75 = vector.load %arg10[%c43, %c0_56] : memref<696x128xf32, #tpu.memory_space<vmem>>, vector<648x128xf32>
    %c8 = arith.constant 8 : index
    %c0_57 = arith.constant 0 : index
    %c0_58 = arith.constant 0 : index
    %76 = vector.load %arg5[%c8, %c0_57, %c0_58] : memref<9x128x128xf32, #tpu.memory_space<vmem>>, vector<1x128x128xf32>
    %77 = vector.shape_cast %76 : vector<1x128x128xf32> to vector<128x128xf32>
    %cst_59 = arith.constant dense<0.000000e+00> : vector<648x128xf32>
    %78 = tpu.matmul %75, %77, %cst_59 {dimension_numbers = #tpu.dot_dimension_numbers<[1], [0], [0], [1], [0, 0, 1, 1], [], []>} : vector<648x128xf32>, vector<128x128xf32>, vector<648x128xf32> -> vector<648x128xf32>
    %79 = arith.addf %74, %78 : vector<648x128xf32>
    %c0_60 = arith.constant 0 : index
    %c0_61 = arith.constant 0 : index
    %80 = vector.load %arg6[%c0_60, %c0_61] : memref<1x128xf32, #tpu.memory_space<vmem>>, vector<1x128xf32>
    %c0_62 = arith.constant 0 : index
    %c0_63 = arith.constant 0 : index
    %81 = vector.load %arg7[%c0_62, %c0_63] : memref<1x128xf32, #tpu.memory_space<vmem>>, vector<1x128xf32>
    %82 = vector.broadcast %0 : vector<648x1xf32> to vector<648x128xf32>
    %83 = arith.mulf %79, %82 : vector<648x128xf32>
    %cst_64 = arith.constant dense<0.000000e+00> : vector<128xf32>
    %84 = vector.multi_reduction <add>, %83, %cst_64 [0] : vector<648x128xf32> to vector<128xf32>
    %85 = vector.shape_cast %84 : vector<128xf32> to vector<1x128xf32>
    %86 = arith.mulf %83, %79 : vector<648x128xf32>
    %cst_65 = arith.constant dense<0.000000e+00> : vector<128xf32>
    %87 = vector.multi_reduction <add>, %86, %cst_65 [0] : vector<648x128xf32> to vector<128xf32>
    %88 = vector.shape_cast %87 : vector<128xf32> to vector<1x128xf32>
    %cst_66 = arith.constant 0.001953125 : f32
    %89 = vector.broadcast %cst_66 : f32 to vector<1x128xf32>
    %90 = arith.mulf %85, %89 : vector<1x128xf32>
    %cst_67 = arith.constant 0.001953125 : f32
    %91 = vector.broadcast %cst_67 : f32 to vector<1x128xf32>
    %92 = arith.mulf %88, %91 : vector<1x128xf32>
    %93 = arith.mulf %90, %90 : vector<1x128xf32>
    %94 = arith.subf %92, %93 : vector<1x128xf32>
    %cst_68 = arith.constant 9.99999974E-6 : f32
    %95 = vector.broadcast %cst_68 : f32 to vector<1x128xf32>
    %96 = arith.addf %94, %95 : vector<1x128xf32>
    %97 = math.rsqrt %96 : vector<1x128xf32>
    %98 = arith.mulf %80, %97 : vector<1x128xf32>
    %99 = arith.mulf %90, %98 : vector<1x128xf32>
    %100 = arith.subf %81, %99 : vector<1x128xf32>
    %c0_69 = arith.constant 0 : index
    %c0_70 = arith.constant 0 : index
    %101 = vector.load %arg8[%c0_69, %c0_70] : memref<648x128xf32, #tpu.memory_space<vmem>>, vector<648x128xf32>
    %102 = vector.broadcast %98 : vector<1x128xf32> to vector<648x128xf32>
    %103 = arith.mulf %79, %102 : vector<648x128xf32>
    %104 = vector.broadcast %100 : vector<1x128xf32> to vector<648x128xf32>
    %105 = arith.addf %103, %104 : vector<648x128xf32>
    %106 = arith.addf %105, %101 : vector<648x128xf32>
    %cst_71 = arith.constant 0.000000e+00 : f32
    %107 = vector.broadcast %cst_71 : f32 to vector<648x128xf32>
    %108 = arith.maximumf %106, %107 : vector<648x128xf32>
    %c0_72 = arith.constant 0 : index
    %c0_73 = arith.constant 0 : index
    %109 = vector.load %arg9[%c0_72, %c0_73] : memref<648x128xf32, #tpu.memory_space<vmem>>, vector<648x128xf32>
    tpu.vector_store %arg9[%c0_72, %c0_73], %108 {strides = array<i32>} : memref<648x128xf32, #tpu.memory_space<vmem>>, vector<648x128xf32>,
    return
  }
}

</mosaic_0001>

<llo_original>
// kernel: tpu_custom_call.1
$region0: #{tpu_custom_call.1}
  #allocation0 [shape = 'u32[]', space=smem, size = 0x4, offset = 0x4, fixed_abs, tag = 'smem constant byte address 0x4 - core index']
  #allocation1 [shape = 'u32[72,128]{1,0:T(1,128)}', space=vmem, size = 0x9000, scoped, tag = 'internal scratch']
  #allocation2 [shape = 'f32[696,128]{1,0:T(8,128)}', space=vmem, size = 0x57000, scoped, tag = 'scratch operand']
  %s0 = inlined_call_operand.vmem [shape: f32[648,128], index: 0, kind: input, shape index: {}]
  %s1 = inlined_call_operand.vmem [shape: f32[648,1], index: 1, kind: input, shape index: {}]
  %s2 = inlined_call_operand.hbm [shape: f32[128,128], index: 2, kind: input, shape index: {}]
  %s3 = inlined_call_operand.vmem [shape: f32[1,128], index: 3, kind: input, shape index: {}]
  %s4 = inlined_call_operand.vmem [shape: f32[1,128], index: 4, kind: input, shape index: {}]
  %s5 = inlined_call_operand.hbm [shape: f32[9,128,128], index: 5, kind: input, shape index: {}]
  %s6 = inlined_call_operand.vmem [shape: f32[1,128], index: 6, kind: input, shape index: {}]
  %s7 = inlined_call_operand.vmem [shape: f32[1,128], index: 7, kind: input, shape index: {}]
  %s8 = inlined_call_operand.hbm [shape: f32[648,128], index: 8, kind: input, shape index: {}]
  %s9 = inlined_call_operand.hbm [shape: f32[648,128], index: 9, kind: output, shape index: {}]
  %s10 = sld [smem:[#allocation0]]
  $region58: #{tpu_custom_call.1} parent=0
    _
  %s12 = ssub.s32 1, %s10
  %s13 = scalar_select 0, %s12, %s10
  $region1: #{tpu_custom_call.1} parent=0
    #allocation3 [shape = 'u8[65536]{0}', space=vmem, size = 0x10000, scoped, tag = 'input window, operand 2, single buffered']
    #allocation4 [shape = 's32[1]{0}', space=sflag, size = 0x4, scoped, tag = 'scoped memory for tpu_custom_call.1']
    #allocation5 [shape = 's32[1]{0}', space=sflag, size = 0x4, scoped, tag = 'scoped memory for tpu_custom_call.1']
    #allocation6 [shape = 'u8[589824]{0}', space=vmem, size = 0x90000, scoped, tag = 'input window, operand 5, single buffered']
    #allocation7 [shape = 's32[1]{0}', space=sflag, size = 0x4, scoped, tag = 'scoped memory for tpu_custom_call.1']
    #allocation8 [shape = 'u8[331776]{0}', space=vmem, size = 0x51000, scoped, tag = 'input window, operand 8, single buffered']
    #allocation9 [shape = 'u8[331776]{0}', space=vmem, size = 0x51000, scoped, tag = 'output window, operand 0, single buffered']
    %14 = vsyncpa [#allocation4], 0
    %15 = vsyncpa [#allocation7], 0
    %16 = vsyncpa [#allocation5], 0
    // Predicated region
    $region2: #{tpu_custom_call.1} parent=1 // pred_check
      _
    $region3: #{tpu_custom_call.1} parent=1 // pred_check_branch
      %18 = sbr.rel (0) target = $region5
    $region4: #{tpu_custom_call.1} parent=1 // pred_region
      _
    $region5: #{tpu_custom_call.1} parent=1 // pred_fallthru
      _
    // Predicated region
    $region6: #{tpu_custom_call.1} parent=1 // pred_check
      _
    $region7: #{tpu_custom_call.1} parent=1 // pred_check_branch
      %20 = sbr.rel (0) target = $region9
    $region8: #{tpu_custom_call.1} parent=1 // pred_region
      _
    $region9: #{tpu_custom_call.1} parent=1 // pred_fallthru
      _
    // Predicated region
    $region10: #{tpu_custom_call.1} parent=1 // pred_check
      _
    $region11: #{tpu_custom_call.1} parent=1 // pred_check_branch
      %22 = sbr.rel (0) target = $region13
    $region12: #{tpu_custom_call.1} parent=1 // pred_region
      %24 = vsyncadd [#allocation4], 0
      %s25 = sshll.u32 %s2, 4
      %s26 = int_to_ptr.hbm [resolvable:$true] %s25
      %s27 = sshll.u32 [#allocation3], 4
      %s28 = int_to_ptr.vmem [resolvable:$true] %s27
      %33 = dma.hbm_to_vmem [thread:$0]  %s26, 2048, %s28, [#allocation4], 128, 128, 8
    $region13: #{tpu_custom_call.1} parent=1 // pred_fallthru
      _
    // Predicated region
    $region14: #{tpu_custom_call.1} parent=1 // pred_check
      _
    $region15: #{tpu_custom_call.1} parent=1 // pred_check_branch
      %35 = sbr.rel (0) target = $region17
    $region16: #{tpu_custom_call.1} parent=1 // pred_region
      _
    $region17: #{tpu_custom_call.1} parent=1 // pred_fallthru
      _
    // Predicated region
    $region18: #{tpu_custom_call.1} parent=1 // pred_check
      _
    $region19: #{tpu_custom_call.1} parent=1 // pred_check_branch
      %37 = sbr.rel (0) target = $region21
    $region20: #{tpu_custom_call.1} parent=1 // pred_region
      _
    $region21: #{tpu_custom_call.1} parent=1 // pred_fallthru
      _
    // Predicated region
    $region22: #{tpu_custom_call.1} parent=1 // pred_check
      _
    $region23: #{tpu_custom_call.1} parent=1 // pred_check_branch
      %39 = sbr.rel (0) target = $region25
    $region24: #{tpu_custom_call.1} parent=1 // pred_region
      %41 = vsyncadd [#allocation7], 0
      %s42 = sshll.u32 %s5, 4
      %s43 = int_to_ptr.hbm [resolvable:$true] %s42
      %s44 = sshll.u32 [#allocation6], 4
      %s45 = int_to_ptr.vmem [resolvable:$true] %s44
      %50 = dma.hbm_to_vmem [thread:$0]  %s43, 18432, %s45, [#allocation7], 128, 128, 8
    $region25: #{tpu_custom_call.1} parent=1 // pred_fallthru
      _
    // Predicated region
    $region26: #{tpu_custom_call.1} parent=1 // pred_check
      _
    $region27: #{tpu_custom_call.1} parent=1 // pred_check_branch
      %52 = sbr.rel (0) target = $region29
    $region28: #{tpu_custom_call.1} parent=1 // pred_region
      _
    $region29: #{tpu_custom_call.1} parent=1 // pred_fallthru
      _
    // Predicated region
    $region30: #{tpu_custom_call.1} parent=1 // pred_check
      _
    $region31: #{tpu_custom_call.1} parent=1 // pred_check_branch
      %54 = sbr.rel (0) target = $region33
    $region32: #{tpu_custom_call.1} parent=1 // pred_region
      _
    $region33: #{tpu_custom_call.1} parent=1 // pred_fallthru
      _
    // Predicated region
    $region34: #{tpu_custom_call.1} parent=1 // pred_check
      _
    $region35: #{tpu_custom_call.1} parent=1 // pred_check_branch
      %56 = sbr.rel (0) target = $region37
    $region36: #{tpu_custom_call.1} parent=1 // pred_region
      %58 = vsyncadd [#allocation7], 0
      %s59 = sshll.u32 %s8, 4
      %s60 = int_to_ptr.hbm [resolvable:$true] %s59
      %s61 = sshll.u32 [#allocation8], 4
      %s62 = int_to_ptr.vmem [resolvable:$true] %s61
      %67 = dma.hbm_to_vmem [thread:$0]  %s60, 10368, %s62, [#allocation7], 128, 128, 8
    $region37: #{tpu_custom_call.1} parent=1 // pred_fallthru
      _
    // Predicated region
    $region38: #{tpu_custom_call.1} parent=1 // pred_check
      _
    $region39: #{tpu_custom_call.1} parent=1 // pred_check_branch
      %69 = sbr.rel (0) target = $region41
    $region40: #{tpu_custom_call.1} parent=1 // pred_region
      %71 = dma.done [#allocation4], 2048
    $region41: #{tpu_custom_call.1} parent=1 // pred_fallthru
      _
    // Predicated region
    $region42: #{tpu_custom_call.1} parent=1 // pred_check
      _
    $region43: #{tpu_custom_call.1} parent=1 // pred_check_branch
      %73 = sbr.rel (0) target = $region45
    $region44: #{tpu_custom_call.1} parent=1 // pred_region
      %75 = dma.done [#allocation7], 18432
    $region45: #{tpu_custom_call.1} parent=1 // pred_fallthru
      _
    // Predicated region
    $region46: #{tpu_custom_call.1} parent=1 // pred_check
      _
    $region47: #{tpu_custom_call.1} parent=1 // pred_check_branch
      %77 = sbr.rel (0) target = $region49
    $region48: #{tpu_custom_call.1} parent=1 // pred_region
      %79 = dma.done [#allocation7], 10368
    $region49: #{tpu_custom_call.1} parent=1 // pred_fallthru
      _
    %v80 = vld [vmem:[%s1] sm:$0xff]
    %v81 = vld [vmem:[%s1 + $0x8] sm:$0xff]
    %v82 = vld [vmem:[%s1 + $0x10] sm:$0xff]
    %v83 = vld [vmem:[%s1 + $0x18] sm:$0xff]
    %v84 = vld [vmem:[%s1 + $0x20] sm:$0xff]
    %v85 = vld [vmem:[%s1 + $0x28] sm:$0xff]
    %v86 = vld [vmem:[%s1 + $0x30] sm:$0xff]
    %v87 = vld [vmem:[%s1 + $0x38] sm:$0xff]
    %v88 = vld [vmem:[%s1 + $0x40] sm:$0xff]
    %v89 = vld [vmem:[%s1 + $0x48] sm:$0xff]
    %v90 = vld [vmem:[%s1 + $0x50] sm:$0xff]
    %v91 = vld [vmem:[%s1 + $0x58] sm:$0xff]
    %v92 = vld [vmem:[%s1 + $0x60] sm:$0xff]
    %v93 = vld [vmem:[%s1 + $0x68] sm:$0xff]
    %v94 = vld [vmem:[%s1 + $0x70] sm:$0xff]
    %v95 = vld [vmem:[%s1 + $0x78] sm:$0xff]
    %v96 = vld [vmem:[%s1 + $0x80] sm:$0xff]
    %v97 = vld [vmem:[%s1 + $0x88] sm:$0xff]
    %v98 = vld [vmem:[%s1 + $0x90] sm:$0xff]
    %v99 = vld [vmem:[%s1 + $0x98] sm:$0xff]
    %v100 = vld [vmem:[%s1 + $0xa0] sm:$0xff]
    %v101 = vld [vmem:[%s1 + $0xa8] sm:$0xff]
    %v102 = vld [vmem:[%s1 + $0xb0] sm:$0xff]
    %v103 = vld [vmem:[%s1 + $0xb8] sm:$0xff]
    %v104 = vld [vmem:[%s1 + $0xc0] sm:$0xff]
    %v105 = vld [vmem:[%s1 + $0xc8] sm:$0xff]
    %v106 = vld [vmem:[%s1 + $0xd0] sm:$0xff]
    %v107 = vld [vmem:[%s1 + $0xd8] sm:$0xff]
    %v108 = vld [vmem:[%s1 + $0xe0] sm:$0xff]
    %v109 = vld [vmem:[%s1 + $0xe8] sm:$0xff]
    %v110 = vld [vmem:[%s1 + $0xf0] sm:$0xff]
    %v111 = vld [vmem:[%s1 + $0xf8] sm:$0xff]
    %v112 = vld [vmem:[%s1 + $0x100] sm:$0xff]
    %v113 = vld [vmem:[%s1 + $0x108] sm:$0xff]
    %v114 = vld [vmem:[%s1 + $0x110] sm:$0xff]
    %v115 = vld [vmem:[%s1 + $0x118] sm:$0xff]
    %v116 = vld [vmem:[%s1 + $0x120] sm:$0xff]
    %v117 = vld [vmem:[%s1 + $0x128] sm:$0xff]
    %v118 = vld [vmem:[%s1 + $0x130] sm:$0xff]
    %v119 = vld [vmem:[%s1 + $0x138] sm:$0xff]
    %v120 = vld [vmem:[%s1 + $0x140] sm:$0xff]
    %v121 = vld [vmem:[%s1 + $0x148] sm:$0xff]
    %v122 = vld [vmem:[%s1 + $0x150] sm:$0xff]
    %v123 = vld [vmem:[%s1 + $0x158] sm:$0xff]
    %v124 = vld [vmem:[%s1 + $0x160] sm:$0xff]
    %v125 = vld [vmem:[%s1 + $0x168] sm:$0xff]
    %v126 = vld [vmem:[%s1 + $0x170] sm:$0xff]
    %v127 = vld [vmem:[%s1 + $0x178] sm:$0xff]
    %v128 = vld [vmem:[%s1 + $0x180] sm:$0xff]
    %v129 = vld [vmem:[%s1 + $0x188] sm:$0xff]
    %v130 = vld [vmem:[%s1 + $0x190] sm:$0xff]
    %v131 = vld [vmem:[%s1 + $0x198] sm:$0xff]
    %v132 = vld [vmem:[%s1 + $0x1a0] sm:$0xff]
    %v133 = vld [vmem:[%s1 + $0x1a8] sm:$0xff]
    %v134 = vld [vmem:[%s1 + $0x1b0] sm:$0xff]
    %v135 = vld [vmem:[%s1 + $0x1b8] sm:$0xff]
    %v136 = vld [vmem:[%s1 + $0x1c0] sm:$0xff]
    %v137 = vld [vmem:[%s1 + $0x1c8] sm:$0xff]
    %v138 = vld [vmem:[%s1 + $0x1d0] sm:$0xff]
    %v139 = vld [vmem:[%s1 + $0x1d8] sm:$0xff]
    %v140 = vld [vmem:[%s1 + $0x1e0] sm:$0xff]
    %v141 = vld [vmem:[%s1 + $0x1e8] sm:$0xff]
    %v142 = vld [vmem:[%s1 + $0x1f0] sm:$0xff]
    %v143 = vld [vmem:[%s1 + $0x1f8] sm:$0xff]
    %v144 = vld [vmem:[%s1 + $0x200] sm:$0xff]
    %v145 = vld [vmem:[%s1 + $0x208] sm:$0xff]
    %v146 = vld [vmem:[%s1 + $0x210] sm:$0xff]
    %v147 = vld [vmem:[%s1 + $0x218] sm:$0xff]
    %v148 = vld [vmem:[%s1 + $0x220] sm:$0xff]
    %v149 = vld [vmem:[%s1 + $0x228] sm:$0xff]
    %v150 = vld [vmem:[%s1 + $0x230] sm:$0xff]
    %v151 = vld [vmem:[%s1 + $0x238] sm:$0xff]
    %v152 = vld [vmem:[%s1 + $0x240] sm:$0xff]
    %v153 = vld [vmem:[%s1 + $0x248] sm:$0xff]
    %v154 = vld [vmem:[%s1 + $0x250] sm:$0xff]
    %v155 = vld [vmem:[%s1 + $0x258] sm:$0xff]
    %v156 = vld [vmem:[%s1 + $0x260] sm:$0xff]
    %v157 = vld [vmem:[%s1 + $0x268] sm:$0xff]
    %v158 = vld [vmem:[%s1 + $0x270] sm:$0xff]
    %v159 = vld [vmem:[%s1 + $0x278] sm:$0xff]
    %v160 = vld [vmem:[%s1 + $0x280] sm:$0xff]
    %v161 = vld [vmem:[%s0] sm:$0xff]
    %v162 = vld [vmem:[%s0 + $0x8] sm:$0xff]
    %v163 = vld [vmem:[%s0 + $0x10] sm:$0xff]
    %v164 = vld [vmem:[%s0 + $0x18] sm:$0xff]
    %v165 = vld [vmem:[%s0 + $0x20] sm:$0xff]
    %v166 = vld [vmem:[%s0 + $0x28] sm:$0xff]
    %v167 = vld [vmem:[%s0 + $0x30] sm:$0xff]
    %v168 = vld [vmem:[%s0 + $0x38] sm:$0xff]
    %v169 = vld [vmem:[%s0 + $0x40] sm:$0xff]
    %v170 = vld [vmem:[%s0 + $0x48] sm:$0xff]
    %v171 = vld [vmem:[%s0 + $0x50] sm:$0xff]
    %v172 = vld [vmem:[%s0 + $0x58] sm:$0xff]
    %v173 = vld [vmem:[%s0 + $0x60] sm:$0xff]
    %v174 = vld [vmem:[%s0 + $0x68] sm:$0xff]
    %v175 = vld [vmem:[%s0 + $0x70] sm:$0xff]
    %v176 = vld [vmem:[%s0 + $0x78] sm:$0xff]
    %v177 = vld [vmem:[%s0 + $0x80] sm:$0xff]
    %v178 = vld [vmem:[%s0 + $0x88] sm:$0xff]
    %v179 = vld [vmem:[%s0 + $0x90] sm:$0xff]
    %v180 = vld [vmem:[%s0 + $0x98] sm:$0xff]
    %v181 = vld [vmem:[%s0 + $0xa0] sm:$0xff]
    %v182 = vld [vmem:[%s0 + $0xa8] sm:$0xff]
    %v183 = vld [vmem:[%s0 + $0xb0] sm:$0xff]
    %v184 = vld [vmem:[%s0 + $0xb8] sm:$0xff]
    %v185 = vld [vmem:[%s0 + $0xc0] sm:$0xff]
    %v186 = vld [vmem:[%s0 + $0xc8] sm:$0xff]
    %v187 = vld [vmem:[%s0 + $0xd0] sm:$0xff]
    %v188 = vld [vmem:[%s0 + $0xd8] sm:$0xff]
    %v189 = vld [vmem:[%s0 + $0xe0] sm:$0xff]
    %v190 = vld [vmem:[%s0 + $0xe8] sm:$0xff]
    %v191 = vld [vmem:[%s0 + $0xf0] sm:$0xff]
    %v192 = vld [vmem:[%s0 + $0xf8] sm:$0xff]
    %v193 = vld [vmem:[%s0 + $0x100] sm:$0xff]
    %v194 = vld [vmem:[%s0 + $0x108] sm:$0xff]
    %v195 = vld [vmem:[%s0 + $0x110] sm:$0xff]
    %v196 = vld [vmem:[%s0 + $0x118] sm:$0xff]
    %v197 = vld [vmem:[%s0 + $0x120] sm:$0xff]
    %v198 = vld [vmem:[%s0 + $0x128] sm:$0xff]
    %v199 = vld [vmem:[%s0 + $0x130] sm:$0xff]
    %v200 = vld [vmem:[%s0 + $0x138] sm:$0xff]
    %v201 = vld [vmem:[%s0 + $0x140] sm:$0xff]
    %v202 = vld [vmem:[%s0 + $0x148] sm:$0xff]
    %v203 = vld [vmem:[%s0 + $0x150] sm:$0xff]
    %v204 = vld [vmem:[%s0 + $0x158] sm:$0xff]
    %v205 = vld [vmem:[%s0 + $0x160] sm:$0xff]
    %v206 = vld [vmem:[%s0 + $0x168] sm:$0xff]
    %v207 = vld [vmem:[%s0 + $0x170] sm:$0xff]
    %v208 = vld [vmem:[%s0 + $0x178] sm:$0xff]
    %v209 = vld [vmem:[%s0 + $0x180] sm:$0xff]
    %v210 = vld [vmem:[%s0 + $0x188] sm:$0xff]
    %v211 = vld [vmem:[%s0 + $0x190] sm:$0xff]
    %v212 = vld [vmem:[%s0 + $0x198] sm:$0xff]
    %v213 = vld [vmem:[%s0 + $0x1a0] sm:$0xff]
    %v214 = vld [vmem:[%s0 + $0x1a8] sm:$0xff]
    %v215 = vld [vmem:[%s0 + $0x1b0] sm:$0xff]
    %v216 = vld [vmem:[%s0 + $0x1b8] sm:$0xff]
    %v217 = vld [vmem:[%s0 + $0x1c0] sm:$0xff]
    %v218 = vld [vmem:[%s0 + $0x1c8] sm:$0xff]
    %v219 = vld [vmem:[%s0 + $0x1d0] sm:$0xff]
    %v220 = vld [vmem:[%s0 + $0x1d8] sm:$0xff]
    %v221 = vld [vmem:[%s0 + $0x1e0] sm:$0xff]
    %v222 = vld [vmem:[%s0 + $0x1e8] sm:$0xff]
    %v223 = vld [vmem:[%s0 + $0x1f0] sm:$0xff]
    %v224 = vld [vmem:[%s0 + $0x1f8] sm:$0xff]
    %v225 = vld [vmem:[%s0 + $0x200] sm:$0xff]
    %v226 = vld [vmem:[%s0 + $0x208] sm:$0xff]
    %v227 = vld [vmem:[%s0 + $0x210] sm:$0xff]
    %v228 = vld [vmem:[%s0 + $0x218] sm:$0xff]
    %v229 = vld [vmem:[%s0 + $0x220] sm:$0xff]
    %v230 = vld [vmem:[%s0 + $0x228] sm:$0xff]
    %v231 = vld [vmem:[%s0 + $0x230] sm:$0xff]
    %v232 = vld [vmem:[%s0 + $0x238] sm:$0xff]
    %v233 = vld [vmem:[%s0 + $0x240] sm:$0xff]
    %v234 = vld [vmem:[%s0 + $0x248] sm:$0xff]
    %v235 = vld [vmem:[%s0 + $0x250] sm:$0xff]
    %v236 = vld [vmem:[%s0 + $0x258] sm:$0xff]
    %v237 = vld [vmem:[%s0 + $0x260] sm:$0xff]
    %v238 = vld [vmem:[%s0 + $0x268] sm:$0xff]
    %v239 = vld [vmem:[%s0 + $0x270] sm:$0xff]
    %v240 = vld [vmem:[%s0 + $0x278] sm:$0xff]
    %v241 = vld [vmem:[%s0 + $0x280] sm:$0xff]
    %v242 = vld [vmem:[#allocation3] sm:$0xff]
    %v243 = vld [vmem:[#allocation3 + $0x8] sm:$0xff]
    %v244 = vld [vmem:[#allocation3 + $0x10] sm:$0xff]
    %v245 = vld [vmem:[#allocation3 + $0x18] sm:$0xff]
    %v246 = vld [vmem:[#allocation3 + $0x20] sm:$0xff]
    %v247 = vld [vmem:[#allocation3 + $0x28] sm:$0xff]
    %v248 = vld [vmem:[#allocation3 + $0x30] sm:$0xff]
    %v249 = vld [vmem:[#allocation3 + $0x38] sm:$0xff]
    %v250 = vld [vmem:[#allocation3 + $0x40] sm:$0xff]
    %v251 = vld [vmem:[#allocation3 + $0x48] sm:$0xff]
    %v252 = vld [vmem:[#allocation3 + $0x50] sm:$0xff]
    %v253 = vld [vmem:[#allocation3 + $0x58] sm:$0xff]
    %v254 = vld [vmem:[#allocation3 + $0x60] sm:$0xff]
    %v255 = vld [vmem:[#allocation3 + $0x68] sm:$0xff]
    %v256 = vld [vmem:[#allocation3 + $0x70] sm:$0xff]
    %v257 = vld [vmem:[#allocation3 + $0x78] sm:$0xff]
    %258 = vmatpush.msra.mxu0 %v257
    %259 = vmatpush.msra.mxu0 %v256
    %260 = vmatpush.msra.mxu0 %v255
    %261 = vmatpush.msra.mxu0 %v254
    %262 = vmatpush.msra.mxu0 %v253
    %263 = vmatpush.msra.mxu0 %v252
    %264 = vmatpush.msra.mxu0 %v251
    %265 = vmatpush.msra.mxu0 %v250
    %266 = vmatpush.msra.mxu0 %v249
    %267 = vmatpush.msra.mxu0 %v248
    %268 = vmatpush.msra.mxu0 %v247
    %269 = vmatpush.msra.mxu0 %v246
    %270 = vmatpush.msra.mxu0 %v245
    %271 = vmatpush.msra.mxu0 %v244
    %272 = vmatpush.msra.mxu0 %v243
    %273 = vmatpush.msra.mxu0 %v242
    %274 = vmatmul.f32.gmra.mxu0 %v161
    %v275 = vpop.f32.mrf.mxu0
    %v276 = vadd.f32 0.0, %v275
    %277 = vmatmul.f32.gmra.mxu0 %v162
    %v278 = vpop.f32.mrf.mxu0
    %v279 = vadd.f32 0.0, %v278
    %280 = vmatmul.f32.gmra.mxu0 %v163
    %v281 = vpop.f32.mrf.mxu0
    %v282 = vadd.f32 0.0, %v281
    %283 = vmatmul.f32.gmra.mxu0 %v164
    %v284 = vpop.f32.mrf.mxu0
    %v285 = vadd.f32 0.0, %v284
    %286 = vmatmul.f32.gmra.mxu0 %v165
    %v287 = vpop.f32.mrf.mxu0
    %v288 = vadd.f32 0.0, %v287
    %289 = vmatmul.f32.gmra.mxu0 %v166
    %v290 = vpop.f32.mrf.mxu0
    %v291 = vadd.f32 0.0, %v290
    %292 = vmatmul.f32.gmra.mxu0 %v167
    %v293 = vpop.f32.mrf.mxu0
    %v294 = vadd.f32 0.0, %v293
    %295 = vmatmul.f32.gmra.mxu0 %v168
    %v296 = vpop.f32.mrf.mxu0
    %v297 = vadd.f32 0.0, %v296
    %298 = vmatmul.f32.gmra.mxu0 %v169
    %v299 = vpop.f32.mrf.mxu0
    %v300 = vadd.f32 0.0, %v299
    %301 = vmatmul.f32.gmra.mxu0 %v170
    %v302 = vpop.f32.mrf.mxu0
    %v303 = vadd.f32 0.0, %v302
    %304 = vmatmul.f32.gmra.mxu0 %v171
    %v305 = vpop.f32.mrf.mxu0
    %v306 = vadd.f32 0.0, %v305
    %307 = vmatmul.f32.gmra.mxu0 %v172
    %v308 = vpop.f32.mrf.mxu0
    %v309 = vadd.f32 0.0, %v308
    %310 = vmatmul.f32.gmra.mxu0 %v173
    %v311 = vpop.f32.mrf.mxu0
    %v312 = vadd.f32 0.0, %v311
    %313 = vmatmul.f32.gmra.mxu0 %v174
    %v314 = vpop.f32.mrf.mxu0
    %v315 = vadd.f32 0.0, %v314
    %316 = vmatmul.f32.gmra.mxu0 %v175
    %v317 = vpop.f32.mrf.mxu0
    %v318 = vadd.f32 0.0, %v317
    %319 = vmatmul.f32.gmra.mxu0 %v176
    %v320 = vpop.f32.mrf.mxu0
    %v321 = vadd.f32 0.0, %v320
    %322 = vmatmul.f32.gmra.mxu0 %v177
    %v323 = vpop.f32.mrf.mxu0
    %v324 = vadd.f32 0.0, %v323
    %325 = vmatmul.f32.gmra.mxu0 %v178
    %v326 = vpop.f32.mrf.mxu0
    %v327 = vadd.f32 0.0, %v326
    %328 = vmatmul.f32.gmra.mxu0 %v179
    %v329 = vpop.f32.mrf.mxu0
    %v330 = vadd.f32 0.0, %v329
    %331 = vmatmul.f32.gmra.mxu0 %v180
    %v332 = vpop.f32.mrf.mxu0
    %v333 = vadd.f32 0.0, %v332
    %334 = vmatmul.f32.gmra.mxu0 %v181
    %v335 = vpop.f32.mrf.mxu0
    %v336 = vadd.f32 0.0, %v335
    %337 = vmatmul.f32.gmra.mxu0 %v182
    %v338 = vpop.f32.mrf.mxu0
    %v339 = vadd.f32 0.0, %v338
    %340 = vmatmul.f32.gmra.mxu0 %v183
    %v341 = vpop.f32.mrf.mxu0
    %v342 = vadd.f32 0.0, %v341
    %343 = vmatmul.f32.gmra.mxu0 %v184
    %v344 = vpop.f32.mrf.mxu0
    %v345 = vadd.f32 0.0, %v344
    %346 = vmatmul.f32.gmra.mxu0 %v185
    %v347 = vpop.f32.mrf.mxu0
    %v348 = vadd.f32 0.0, %v347
    %349 = vmatmul.f32.gmra.mxu0 %v186
    %v350 = vpop.f32.mrf.mxu0
    %v351 = vadd.f32 0.0, %v350
    %352 = vmatmul.f32.gmra.mxu0 %v187
    %v353 = vpop.f32.mrf.mxu0
    %v354 = vadd.f32 0.0, %v353
    %355 = vmatmul.f32.gmra.mxu0 %v188
    %v356 = vpop.f32.mrf.mxu0
    %v357 = vadd.f32 0.0, %v356
    %358 = vmatmul.f32.gmra.mxu0 %v189
    %v359 = vpop.f32.mrf.mxu0
    %v360 = vadd.f32 0.0, %v359
    %361 = vmatmul.f32.gmra.mxu0 %v190
    %v362 = vpop.f32.mrf.mxu0
    %v363 = vadd.f32 0.0, %v362
    %364 = vmatmul.f32.gmra.mxu0 %v191
    %v365 = vpop.f32.mrf.mxu0
    %v366 = vadd.f32 0.0, %v365
    %367 = vmatmul.f32.gmra.mxu0 %v192
    %v368 = vpop.f32.mrf.mxu0
    %v369 = vadd.f32 0.0, %v368
    %370 = vmatmul.f32.gmra.mxu0 %v193
    %v371 = vpop.f32.mrf.mxu0
    %v372 = vadd.f32 0.0, %v371
    %373 = vmatmul.f32.gmra.mxu0 %v194
    %v374 = vpop.f32.mrf.mxu0
    %v375 = vadd.f32 0.0, %v374
    %376 = vmatmul.f32.gmra.mxu0 %v195
    %v377 = vpop.f32.mrf.mxu0
    %v378 = vadd.f32 0.0, %v377
    %379 = vmatmul.f32.gmra.mxu0 %v196
    %v380 = vpop.f32.mrf.mxu0
    %v381 = vadd.f32 0.0, %v380
    %382 = vmatmul.f32.gmra.mxu0 %v197
    %v383 = vpop.f32.mrf.mxu0
    %v384 = vadd.f32 0.0, %v383
    %385 = vmatmul.f32.gmra.mxu0 %v198
    %v386 = vpop.f32.mrf.mxu0
    %v387 = vadd.f32 0.0, %v386
    %388 = vmatmul.f32.gmra.mxu0 %v199
    %v389 = vpop.f32.mrf.mxu0
    %v390 = vadd.f32 0.0, %v389
    %391 = vmatmul.f32.gmra.mxu0 %v200
    %v392 = vpop.f32.mrf.mxu0
    %v393 = vadd.f32 0.0, %v392
    %394 = vmatmul.f32.gmra.mxu0 %v201
    %v395 = vpop.f32.mrf.mxu0
    %v396 = vadd.f32 0.0, %v395
    %397 = vmatmul.f32.gmra.mxu0 %v202
    %v398 = vpop.f32.mrf.mxu0
    %v399 = vadd.f32 0.0, %v398
    %400 = vmatmul.f32.gmra.mxu0 %v203
    %v401 = vpop.f32.mrf.mxu0
    %v402 = vadd.f32 0.0, %v401
    %403 = vmatmul.f32.gmra.mxu0 %v204
    %v404 = vpop.f32.mrf.mxu0
    %v405 = vadd.f32 0.0, %v404
    %406 = vmatmul.f32.gmra.mxu0 %v205
    %v407 = vpop.f32.mrf.mxu0
    %v408 = vadd.f32 0.0, %v407
    %409 = vmatmul.f32.gmra.mxu0 %v206
    %v410 = vpop.f32.mrf.mxu0
    %v411 = vadd.f32 0.0, %v410
    %412 = vmatmul.f32.gmra.mxu0 %v207
    %v413 = vpop.f32.mrf.mxu0
    %v414 = vadd.f32 0.0, %v413
    %415 = vmatmul.f32.gmra.mxu0 %v208
    %v416 = vpop.f32.mrf.mxu0
    %v417 = vadd.f32 0.0, %v416
    %418 = vmatmul.f32.gmra.mxu0 %v209
    %v419 = vpop.f32.mrf.mxu0
    %v420 = vadd.f32 0.0, %v419
    %421 = vmatmul.f32.gmra.mxu0 %v210
    %v422 = vpop.f32.mrf.mxu0
    %v423 = vadd.f32 0.0, %v422
    %424 = vmatmul.f32.gmra.mxu0 %v211
    %v425 = vpop.f32.mrf.mxu0
    %v426 = vadd.f32 0.0, %v425
    %427 = vmatmul.f32.gmra.mxu0 %v212
    %v428 = vpop.f32.mrf.mxu0
    %v429 = vadd.f32 0.0, %v428
    %430 = vmatmul.f32.gmra.mxu0 %v213
    %v431 = vpop.f32.mrf.mxu0
    %v432 = vadd.f32 0.0, %v431
    %433 = vmatmul.f32.gmra.mxu0 %v214
    %v434 = vpop.f32.mrf.mxu0
    %v435 = vadd.f32 0.0, %v434
    %436 = vmatmul.f32.gmra.mxu0 %v215
    %v437 = vpop.f32.mrf.mxu0
    %v438 = vadd.f32 0.0, %v437
    %439 = vmatmul.f32.gmra.mxu0 %v216
    %v440 = vpop.f32.mrf.mxu0
    %v441 = vadd.f32 0.0, %v440
    %442 = vmatmul.f32.gmra.mxu0 %v217
    %v443 = vpop.f32.mrf.mxu0
    %v444 = vadd.f32 0.0, %v443
    %445 = vmatmul.f32.gmra.mxu0 %v218
    %v446 = vpop.f32.mrf.mxu0
    %v447 = vadd.f32 0.0, %v446
    %448 = vmatmul.f32.gmra.mxu0 %v219
    %v449 = vpop.f32.mrf.mxu0
    %v450 = vadd.f32 0.0, %v449
    %451 = vmatmul.f32.gmra.mxu0 %v220
    %v452 = vpop.f32.mrf.mxu0
    %v453 = vadd.f32 0.0, %v452
    %454 = vmatmul.f32.gmra.mxu0 %v221
    %v455 = vpop.f32.mrf.mxu0
    %v456 = vadd.f32 0.0, %v455
    %457 = vmatmul.f32.gmra.mxu0 %v222
    %v458 = vpop.f32.mrf.mxu0
    %v459 = vadd.f32 0.0, %v458
    %460 = vmatmul.f32.gmra.mxu0 %v223
    %v461 = vpop.f32.mrf.mxu0
    %v462 = vadd.f32 0.0, %v461
    %463 = vmatmul.f32.gmra.mxu0 %v224
    %v464 = vpop.f32.mrf.mxu0
    %v465 = vadd.f32 0.0, %v464
    %466 = vmatmul.f32.gmra.mxu0 %v225
    %v467 = vpop.f32.mrf.mxu0
    %v468 = vadd.f32 0.0, %v467
    %469 = vmatmul.f32.gmra.mxu0 %v226
    %v470 = vpop.f32.mrf.mxu0
    %v471 = vadd.f32 0.0, %v470
    %472 = vmatmul.f32.gmra.mxu0 %v227
    %v473 = vpop.f32.mrf.mxu0
    %v474 = vadd.f32 0.0, %v473
    %475 = vmatmul.f32.gmra.mxu0 %v228
    %v476 = vpop.f32.mrf.mxu0
    %v477 = vadd.f32 0.0, %v476
    %478 = vmatmul.f32.gmra.mxu0 %v229
    %v479 = vpop.f32.mrf.mxu0
    %v480 = vadd.f32 0.0, %v479
    %481 = vmatmul.f32.gmra.mxu0 %v230
    %v482 = vpop.f32.mrf.mxu0
    %v483 = vadd.f32 0.0, %v482
    %484 = vmatmul.f32.gmra.mxu0 %v231
    %v485 = vpop.f32.mrf.mxu0
    %v486 = vadd.f32 0.0, %v485
    %487 = vmatmul.f32.gmra.mxu0 %v232
    %v488 = vpop.f32.mrf.mxu0
    %v489 = vadd.f32 0.0, %v488
    %490 = vmatmul.f32.gmra.mxu0 %v233
    %v491 = vpop.f32.mrf.mxu0
    %v492 = vadd.f32 0.0, %v491
    %493 = vmatmul.f32.gmra.mxu0 %v234
    %v494 = vpop.f32.mrf.mxu0
    %v495 = vadd.f32 0.0, %v494
    %496 = vmatmul.f32.gmra.mxu0 %v235
    %v497 = vpop.f32.mrf.mxu0
    %v498 = vadd.f32 0.0, %v497
    %499 = vmatmul.f32.gmra.mxu0 %v236
    %v500 = vpop.f32.mrf.mxu0
    %v501 = vadd.f32 0.0, %v500
    %502 = vmatmul.f32.gmra.mxu0 %v237
    %v503 = vpop.f32.mrf.mxu0
    %v504 = vadd.f32 0.0, %v503
    %505 = vmatmul.f32.gmra.mxu0 %v238
    %v506 = vpop.f32.mrf.mxu0
    %v507 = vadd.f32 0.0, %v506
    %508 = vmatmul.f32.gmra.mxu0 %v239
    %v509 = vpop.f32.mrf.mxu0
    %v510 = vadd.f32 0.0, %v509
    %511 = vmatmul.f32.gmra.mxu0 %v240
    %v512 = vpop.f32.mrf.mxu0
    %v513 = vadd.f32 0.0, %v512
    %514 = vmatmul.f32.gmra.mxu0 %v241
    %v515 = vpop.f32.mrf.mxu0
    %v516 = vadd.f32 0.0, %v515
    %517 = vdwg.mxu0
    %v518 = vld [vmem:[%s3] sm:$0x1]
    %v519 = vld [vmem:[%s4] sm:$0x1]
    %521 = vset.pattern.permute.xlu0 0
    %522 = vperm.xlu0 %521, %v80
    %v523 = vpop.permute.xlu0 %522
    %526 = vset.pattern.permute.xlu0 0
    %527 = vperm.xlu0 %526, %v81
    %v528 = vpop.permute.xlu0 %527
    %531 = vset.pattern.permute.xlu0 0
    %532 = vperm.xlu0 %531, %v82
    %v533 = vpop.permute.xlu0 %532
    %536 = vset.pattern.permute.xlu0 0
    %537 = vperm.xlu0 %536, %v83
    %v538 = vpop.permute.xlu0 %537
    %541 = vset.pattern.permute.xlu0 0
    %542 = vperm.xlu0 %541, %v84
    %v543 = vpop.permute.xlu0 %542
    %546 = vset.pattern.permute.xlu0 0
    %547 = vperm.xlu0 %546, %v85
    %v548 = vpop.permute.xlu0 %547
    %551 = vset.pattern.permute.xlu0 0
    %552 = vperm.xlu0 %551, %v86
    %v553 = vpop.permute.xlu0 %552
    %556 = vset.pattern.permute.xlu0 0
    %557 = vperm.xlu0 %556, %v87
    %v558 = vpop.permute.xlu0 %557
    %561 = vset.pattern.permute.xlu0 0
    %562 = vperm.xlu0 %561, %v88
    %v563 = vpop.permute.xlu0 %562
    %566 = vset.pattern.permute.xlu0 0
    %567 = vperm.xlu0 %566, %v89
    %v568 = vpop.permute.xlu0 %567
    %571 = vset.pattern.permute.xlu0 0
    %572 = vperm.xlu0 %571, %v90
    %v573 = vpop.permute.xlu0 %572
    %576 = vset.pattern.permute.xlu0 0
    %577 = vperm.xlu0 %576, %v91
    %v578 = vpop.permute.xlu0 %577
    %581 = vset.pattern.permute.xlu0 0
    %582 = vperm.xlu0 %581, %v92
    %v583 = vpop.permute.xlu0 %582
    %586 = vset.pattern.permute.xlu0 0
    %587 = vperm.xlu0 %586, %v93
    %v588 = vpop.permute.xlu0 %587
    %591 = vset.pattern.permute.xlu0 0
    %592 = vperm.xlu0 %591, %v94
    %v593 = vpop.permute.xlu0 %592
    %596 = vset.pattern.permute.xlu0 0
    %597 = vperm.xlu0 %596, %v95
    %v598 = vpop.permute.xlu0 %597
    %601 = vset.pattern.permute.xlu0 0
    %602 = vperm.xlu0 %601, %v96
    %v603 = vpop.permute.xlu0 %602
    %606 = vset.pattern.permute.xlu0 0
    %607 = vperm.xlu0 %606, %v97
    %v608 = vpop.permute.xlu0 %607
    %611 = vset.pattern.permute.xlu0 0
    %612 = vperm.xlu0 %611, %v98
    %v613 = vpop.permute.xlu0 %612
    %616 = vset.pattern.permute.xlu0 0
    %617 = vperm.xlu0 %616, %v99
    %v618 = vpop.permute.xlu0 %617
    %621 = vset.pattern.permute.xlu0 0
    %622 = vperm.xlu0 %621, %v100
    %v623 = vpop.permute.xlu0 %622
    %626 = vset.pattern.permute.xlu0 0
    %627 = vperm.xlu0 %626, %v101
    %v628 = vpop.permute.xlu0 %627
    %631 = vset.pattern.permute.xlu0 0
    %632 = vperm.xlu0 %631, %v102
    %v633 = vpop.permute.xlu0 %632
    %636 = vset.pattern.permute.xlu0 0
    %637 = vperm.xlu0 %636, %v103
    %v638 = vpop.permute.xlu0 %637
    %641 = vset.pattern.permute.xlu0 0
    %642 = vperm.xlu0 %641, %v104
    %v643 = vpop.permute.xlu0 %642
    %646 = vset.pattern.permute.xlu0 0
    %647 = vperm.xlu0 %646, %v105
    %v648 = vpop.permute.xlu0 %647
    %651 = vset.pattern.permute.xlu0 0
    %652 = vperm.xlu0 %651, %v106
    %v653 = vpop.permute.xlu0 %652
    %656 = vset.pattern.permute.xlu0 0
    %657 = vperm.xlu0 %656, %v107
    %v658 = vpop.permute.xlu0 %657
    %661 = vset.pattern.permute.xlu0 0
    %662 = vperm.xlu0 %661, %v108
    %v663 = vpop.permute.xlu0 %662
    %666 = vset.pattern.permute.xlu0 0
    %667 = vperm.xlu0 %666, %v109
    %v668 = vpop.permute.xlu0 %667
    %671 = vset.pattern.permute.xlu0 0
    %672 = vperm.xlu0 %671, %v110
    %v673 = vpop.permute.xlu0 %672
    %676 = vset.pattern.permute.xlu0 0
    %677 = vperm.xlu0 %676, %v111
    %v678 = vpop.permute.xlu0 %677
    %681 = vset.pattern.permute.xlu0 0
    %682 = vperm.xlu0 %681, %v112
    %v683 = vpop.permute.xlu0 %682
    %686 = vset.pattern.permute.xlu0 0
    %687 = vperm.xlu0 %686, %v113
    %v688 = vpop.permute.xlu0 %687
    %691 = vset.pattern.permute.xlu0 0
    %692 = vperm.xlu0 %691, %v114
    %v693 = vpop.permute.xlu0 %692
    %696 = vset.pattern.permute.xlu0 0
    %697 = vperm.xlu0 %696, %v115
    %v698 = vpop.permute.xlu0 %697
    %701 = vset.pattern.permute.xlu0 0
    %702 = vperm.xlu0 %701, %v116
    %v703 = vpop.permute.xlu0 %702
    %706 = vset.pattern.permute.xlu0 0
    %707 = vperm.xlu0 %706, %v117
    %v708 = vpop.permute.xlu0 %707
    %711 = vset.pattern.permute.xlu0 0
    %712 = vperm.xlu0 %711, %v118
    %v713 = vpop.permute.xlu0 %712
    %716 = vset.pattern.permute.xlu0 0
    %717 = vperm.xlu0 %716, %v119
    %v718 = vpop.permute.xlu0 %717
    %721 = vset.pattern.permute.xlu0 0
    %722 = vperm.xlu0 %721, %v120
    %v723 = vpop.permute.xlu0 %722
    %726 = vset.pattern.permute.xlu0 0
    %727 = vperm.xlu0 %726, %v121
    %v728 = vpop.permute.xlu0 %727
    %731 = vset.pattern.permute.xlu0 0
    %732 = vperm.xlu0 %731, %v122
    %v733 = vpop.permute.xlu0 %732
    %736 = vset.pattern.permute.xlu0 0
    %737 = vperm.xlu0 %736, %v123
    %v738 = vpop.permute.xlu0 %737
    %741 = vset.pattern.permute.xlu0 0
    %742 = vperm.xlu0 %741, %v124
    %v743 = vpop.permute.xlu0 %742
    %746 = vset.pattern.permute.xlu0 0
    %747 = vperm.xlu0 %746, %v125
    %v748 = vpop.permute.xlu0 %747
    %751 = vset.pattern.permute.xlu0 0
    %752 = vperm.xlu0 %751, %v126
    %v753 = vpop.permute.xlu0 %752
    %756 = vset.pattern.permute.xlu0 0
    %757 = vperm.xlu0 %756, %v127
    %v758 = vpop.permute.xlu0 %757
    %761 = vset.pattern.permute.xlu0 0
    %762 = vperm.xlu0 %761, %v128
    %v763 = vpop.permute.xlu0 %762
    %766 = vset.pattern.permute.xlu0 0
    %767 = vperm.xlu0 %766, %v129
    %v768 = vpop.permute.xlu0 %767
    %771 = vset.pattern.permute.xlu0 0
    %772 = vperm.xlu0 %771, %v130
    %v773 = vpop.permute.xlu0 %772
    %776 = vset.pattern.permute.xlu0 0
    %777 = vperm.xlu0 %776, %v131
    %v778 = vpop.permute.xlu0 %777
    %781 = vset.pattern.permute.xlu0 0
    %782 = vperm.xlu0 %781, %v132
    %v783 = vpop.permute.xlu0 %782
    %786 = vset.pattern.permute.xlu0 0
    %787 = vperm.xlu0 %786, %v133
    %v788 = vpop.permute.xlu0 %787
    %791 = vset.pattern.permute.xlu0 0
    %792 = vperm.xlu0 %791, %v134
    %v793 = vpop.permute.xlu0 %792
    %796 = vset.pattern.permute.xlu0 0
    %797 = vperm.xlu0 %796, %v135
    %v798 = vpop.permute.xlu0 %797
    %801 = vset.pattern.permute.xlu0 0
    %802 = vperm.xlu0 %801, %v136
    %v803 = vpop.permute.xlu0 %802
    %806 = vset.pattern.permute.xlu0 0
    %807 = vperm.xlu0 %806, %v137
    %v808 = vpop.permute.xlu0 %807
    %811 = vset.pattern.permute.xlu0 0
    %812 = vperm.xlu0 %811, %v138
    %v813 = vpop.permute.xlu0 %812
    %816 = vset.pattern.permute.xlu0 0
    %817 = vperm.xlu0 %816, %v139
    %v818 = vpop.permute.xlu0 %817
    %821 = vset.pattern.permute.xlu0 0
    %822 = vperm.xlu0 %821, %v140
    %v823 = vpop.permute.xlu0 %822
    %826 = vset.pattern.permute.xlu0 0
    %827 = vperm.xlu0 %826, %v141
    %v828 = vpop.permute.xlu0 %827
    %831 = vset.pattern.permute.xlu0 0
    %832 = vperm.xlu0 %831, %v142
    %v833 = vpop.permute.xlu0 %832
    %836 = vset.pattern.permute.xlu0 0
    %837 = vperm.xlu0 %836, %v143
    %v838 = vpop.permute.xlu0 %837
    %841 = vset.pattern.permute.xlu0 0
    %842 = vperm.xlu0 %841, %v144
    %v843 = vpop.permute.xlu0 %842
    %846 = vset.pattern.permute.xlu0 0
    %847 = vperm.xlu0 %846, %v145
    %v848 = vpop.permute.xlu0 %847
    %851 = vset.pattern.permute.xlu0 0
    %852 = vperm.xlu0 %851, %v146
    %v853 = vpop.permute.xlu0 %852
    %856 = vset.pattern.permute.xlu0 0
    %857 = vperm.xlu0 %856, %v147
    %v858 = vpop.permute.xlu0 %857
    %861 = vset.pattern.permute.xlu0 0
    %862 = vperm.xlu0 %861, %v148
    %v863 = vpop.permute.xlu0 %862
    %866 = vset.pattern.permute.xlu0 0
    %867 = vperm.xlu0 %866, %v149
    %v868 = vpop.permute.xlu0 %867
    %871 = vset.pattern.permute.xlu0 0
    %872 = vperm.xlu0 %871, %v150
    %v873 = vpop.permute.xlu0 %872
    %876 = vset.pattern.permute.xlu0 0
    %877 = vperm.xlu0 %876, %v151
    %v878 = vpop.permute.xlu0 %877
    %881 = vset.pattern.permute.xlu0 0
    %882 = vperm.xlu0 %881, %v152
    %v883 = vpop.permute.xlu0 %882
    %886 = vset.pattern.permute.xlu0 0
    %887 = vperm.xlu0 %886, %v153
    %v888 = vpop.permute.xlu0 %887
    %891 = vset.pattern.permute.xlu0 0
    %892 = vperm.xlu0 %891, %v154
    %v893 = vpop.permute.xlu0 %892
    %896 = vset.pattern.permute.xlu0 0
    %897 = vperm.xlu0 %896, %v155
    %v898 = vpop.permute.xlu0 %897
    %901 = vset.pattern.permute.xlu0 0
    %902 = vperm.xlu0 %901, %v156
    %v903 = vpop.permute.xlu0 %902
    %906 = vset.pattern.permute.xlu0 0
    %907 = vperm.xlu0 %906, %v157
    %v908 = vpop.permute.xlu0 %907
    %911 = vset.pattern.permute.xlu0 0
    %912 = vperm.xlu0 %911, %v158
    %v913 = vpop.permute.xlu0 %912
    %916 = vset.pattern.permute.xlu0 0
    %917 = vperm.xlu0 %916, %v159
    %v918 = vpop.permute.xlu0 %917
    %921 = vset.pattern.permute.xlu0 0
    %922 = vperm.xlu0 %921, %v160
    %v923 = vpop.permute.xlu0 %922
    %v925 = vmul.f32 %v276, %v523
    %v926 = vmul.f32 %v279, %v528
    %v927 = vmul.f32 %v282, %v533
    %v928 = vmul.f32 %v285, %v538
    %v929 = vmul.f32 %v288, %v543
    %v930 = vmul.f32 %v291, %v548
    %v931 = vmul.f32 %v294, %v553
    %v932 = vmul.f32 %v297, %v558
    %v933 = vmul.f32 %v300, %v563
    %v934 = vmul.f32 %v303, %v568
    %v935 = vmul.f32 %v306, %v573
    %v936 = vmul.f32 %v309, %v578
    %v937 = vmul.f32 %v312, %v583
    %v938 = vmul.f32 %v315, %v588
    %v939 = vmul.f32 %v318, %v593
    %v940 = vmul.f32 %v321, %v598
    %v941 = vmul.f32 %v324, %v603
    %v942 = vmul.f32 %v327, %v608
    %v943 = vmul.f32 %v330, %v613
    %v944 = vmul.f32 %v333, %v618
    %v945 = vmul.f32 %v336, %v623
    %v946 = vmul.f32 %v339, %v628
    %v947 = vmul.f32 %v342, %v633
    %v948 = vmul.f32 %v345, %v638
    %v949 = vmul.f32 %v348, %v643
    %v950 = vmul.f32 %v351, %v648
    %v951 = vmul.f32 %v354, %v653
    %v952 = vmul.f32 %v357, %v658
    %v953 = vmul.f32 %v360, %v663
    %v954 = vmul.f32 %v363, %v668
    %v955 = vmul.f32 %v366, %v673
    %v956 = vmul.f32 %v369, %v678
    %v957 = vmul.f32 %v372, %v683
    %v958 = vmul.f32 %v375, %v688
    %v959 = vmul.f32 %v378, %v693
    %v960 = vmul.f32 %v381, %v698
    %v961 = vmul.f32 %v384, %v703
    %v962 = vmul.f32 %v387, %v708
    %v963 = vmul.f32 %v390, %v713
    %v964 = vmul.f32 %v393, %v718
    %v965 = vmul.f32 %v396, %v723
    %v966 = vmul.f32 %v399, %v728
    %v967 = vmul.f32 %v402, %v733
    %v968 = vmul.f32 %v405, %v738
    %v969 = vmul.f32 %v408, %v743
    %v970 = vmul.f32 %v411, %v748
    %v971 = vmul.f32 %v414, %v753
    %v972 = vmul.f32 %v417, %v758
    %v973 = vmul.f32 %v420, %v763
    %v974 = vmul.f32 %v423, %v768
    %v975 = vmul.f32 %v426, %v773
    %v976 = vmul.f32 %v429, %v778
    %v977 = vmul.f32 %v432, %v783
    %v978 = vmul.f32 %v435, %v788
    %v979 = vmul.f32 %v438, %v793
    %v980 = vmul.f32 %v441, %v798
    %v981 = vmul.f32 %v444, %v803
    %v982 = vmul.f32 %v447, %v808
    %v983 = vmul.f32 %v450, %v813
    %v984 = vmul.f32 %v453, %v818
    %v985 = vmul.f32 %v456, %v823
    %v986 = vmul.f32 %v459, %v828
    %v987 = vmul.f32 %v462, %v833
    %v988 = vmul.f32 %v465, %v838
    %v989 = vmul.f32 %v468, %v843
    %v990 = vmul.f32 %v471, %v848
    %v991 = vmul.f32 %v474, %v853
    %v992 = vmul.f32 %v477, %v858
    %v993 = vmul.f32 %v480, %v863
    %v994 = vmul.f32 %v483, %v868
    %v995 = vmul.f32 %v486, %v873
    %v996 = vmul.f32 %v489, %v878
    %v997 = vmul.f32 %v492, %v883
    %v998 = vmul.f32 %v495, %v888
    %v999 = vmul.f32 %v498, %v893
    %v1000 = vmul.f32 %v501, %v898
    %v1001 = vmul.f32 %v504, %v903
    %v1002 = vmul.f32 %v507, %v908
    %v1003 = vmul.f32 %v510, %v913
    %v1004 = vmul.f32 %v513, %v918
    %v1005 = vmul.f32 %v516, %v923
    %v1006 = vadd.f32 %v925, %v926
    %v1007 = vadd.f32 %v1006, %v927
    %v1008 = vadd.f32 %v1007, %v928
    %v1009 = vadd.f32 %v1008, %v929
    %v1010 = vadd.f32 %v1009, %v930
    %v1011 = vadd.f32 %v1010, %v931
    %v1012 = vadd.f32 %v1011, %v932
    %v1013 = vadd.f32 %v1012, %v933
    %v1014 = vadd.f32 %v1013, %v934
    %v1015 = vadd.f32 %v1014, %v935
    %v1016 = vadd.f32 %v1015, %v936
    %v1017 = vadd.f32 %v1016, %v937
    %v1018 = vadd.f32 %v1017, %v938
    %v1019 = vadd.f32 %v1018, %v939
    %v1020 = vadd.f32 %v1019, %v940
    %v1021 = vadd.f32 %v1020, %v941
    %v1022 = vadd.f32 %v1021, %v942
    %v1023 = vadd.f32 %v1022, %v943
    %v1024 = vadd.f32 %v1023, %v944
    %v1025 = vadd.f32 %v1024, %v945
    %v1026 = vadd.f32 %v1025, %v946
    %v1027 = vadd.f32 %v1026, %v947
    %v1028 = vadd.f32 %v1027, %v948
    %v1029 = vadd.f32 %v1028, %v949
    %v1030 = vadd.f32 %v1029, %v950
    %v1031 = vadd.f32 %v1030, %v951
    %v1032 = vadd.f32 %v1031, %v952
    %v1033 = vadd.f32 %v1032, %v953
    %v1034 = vadd.f32 %v1033, %v954
    %v1035 = vadd.f32 %v1034, %v955
    %v1036 = vadd.f32 %v1035, %v956
    %v1037 = vadd.f32 %v1036, %v957
    %v1038 = vadd.f32 %v1037, %v958
    %v1039 = vadd.f32 %v1038, %v959
    %v1040 = vadd.f32 %v1039, %v960
    %v1041 = vadd.f32 %v1040, %v961
    %v1042 = vadd.f32 %v1041, %v962
    %v1043 = vadd.f32 %v1042, %v963
    %v1044 = vadd.f32 %v1043, %v964
    %v1045 = vadd.f32 %v1044, %v965
    %v1046 = vadd.f32 %v1045, %v966
    %v1047 = vadd.f32 %v1046, %v967
    %v1048 = vadd.f32 %v1047, %v968
    %v1049 = vadd.f32 %v1048, %v969
    %v1050 = vadd.f32 %v1049, %v970
    %v1051 = vadd.f32 %v1050, %v971
    %v1052 = vadd.f32 %v1051, %v972
    %v1053 = vadd.f32 %v1052, %v973
    %v1054 = vadd.f32 %v1053, %v974
    %v1055 = vadd.f32 %v1054, %v975
    %v1056 = vadd.f32 %v1055, %v976
    %v1057 = vadd.f32 %v1056, %v977
    %v1058 = vadd.f32 %v1057, %v978
    %v1059 = vadd.f32 %v1058, %v979
    %v1060 = vadd.f32 %v1059, %v980
    %v1061 = vadd.f32 %v1060, %v981
    %v1062 = vadd.f32 %v1061, %v982
    %v1063 = vadd.f32 %v1062, %v983
    %v1064 = vadd.f32 %v1063, %v984
    %v1065 = vadd.f32 %v1064, %v985
    %v1066 = vadd.f32 %v1065, %v986
    %v1067 = vadd.f32 %v1066, %v987
    %v1068 = vadd.f32 %v1067, %v988
    %v1069 = vadd.f32 %v1068, %v989
    %v1070 = vadd.f32 %v1069, %v990
    %v1071 = vadd.f32 %v1070, %v991
    %v1072 = vadd.f32 %v1071, %v992
    %v1073 = vadd.f32 %v1072, %v993
    %v1074 = vadd.f32 %v1073, %v994
    %v1075 = vadd.f32 %v1074, %v995
    %v1076 = vadd.f32 %v1075, %v996
    %v1077 = vadd.f32 %v1076, %v997
    %v1078 = vadd.f32 %v1077, %v998
    %v1079 = vadd.f32 %v1078, %v999
    %v1080 = vadd.f32 %v1079, %v1000
    %v1081 = vadd.f32 %v1080, %v1001
    %v1082 = vadd.f32 %v1081, %v1002
    %v1083 = vadd.f32 %v1082, %v1003
    %v1084 = vadd.f32 %v1083, %v1004
    %v1085 = vadd.f32 %v1084, %v1005
    %v1086 = vrot.slane %v1085, 4
    %v1087 = vadd.f32 %v1085, %v1086
    %v1088 = vrot.slane %v1087, 2
    %v1089 = vadd.f32 %v1087, %v1088
    %v1090 = vrot.slane %v1089, 1
    %v1091 = vadd.f32 %v1089, %v1090
    %v1092 = vmul.f32 %v925, %v276
    %v1093 = vmul.f32 %v926, %v279
    %v1094 = vmul.f32 %v927, %v282
    %v1095 = vmul.f32 %v928, %v285
    %v1096 = vmul.f32 %v929, %v288
    %v1097 = vmul.f32 %v930, %v291
    %v1098 = vmul.f32 %v931, %v294
    %v1099 = vmul.f32 %v932, %v297
    %v1100 = vmul.f32 %v933, %v300
    %v1101 = vmul.f32 %v934, %v303
    %v1102 = vmul.f32 %v935, %v306
    %v1103 = vmul.f32 %v936, %v309
    %v1104 = vmul.f32 %v937, %v312
    %v1105 = vmul.f32 %v938, %v315
    %v1106 = vmul.f32 %v939, %v318
    %v1107 = vmul.f32 %v940, %v321
    %v1108 = vmul.f32 %v941, %v324
    %v1109 = vmul.f32 %v942, %v327
    %v1110 = vmul.f32 %v943, %v330
    %v1111 = vmul.f32 %v944, %v333
    %v1112 = vmul.f32 %v945, %v336
    %v1113 = vmul.f32 %v946, %v339
    %v1114 = vmul.f32 %v947, %v342
    %v1115 = vmul.f32 %v948, %v345
    %v1116 = vmul.f32 %v949, %v348
    %v1117 = vmul.f32 %v950, %v351
    %v1118 = vmul.f32 %v951, %v354
    %v1119 = vmul.f32 %v952, %v357
    %v1120 = vmul.f32 %v953, %v360
    %v1121 = vmul.f32 %v954, %v363
    %v1122 = vmul.f32 %v955, %v366
    %v1123 = vmul.f32 %v956, %v369
    %v1124 = vmul.f32 %v957, %v372
    %v1125 = vmul.f32 %v958, %v375
    %v1126 = vmul.f32 %v959, %v378
    %v1127 = vmul.f32 %v960, %v381
    %v1128 = vmul.f32 %v961, %v384
    %v1129 = vmul.f32 %v962, %v387
    %v1130 = vmul.f32 %v963, %v390
    %v1131 = vmul.f32 %v964, %v393
    %v1132 = vmul.f32 %v965, %v396
    %v1133 = vmul.f32 %v966, %v399
    %v1134 = vmul.f32 %v967, %v402
    %v1135 = vmul.f32 %v968, %v405
    %v1136 = vmul.f32 %v969, %v408
    %v1137 = vmul.f32 %v970, %v411
    %v1138 = vmul.f32 %v971, %v414
    %v1139 = vmul.f32 %v972, %v417
    %v1140 = vmul.f32 %v973, %v420
    %v1141 = vmul.f32 %v974, %v423
    %v1142 = vmul.f32 %v975, %v426
    %v1143 = vmul.f32 %v976, %v429
    %v1144 = vmul.f32 %v977, %v432
    %v1145 = vmul.f32 %v978, %v435
    %v1146 = vmul.f32 %v979, %v438
    %v1147 = vmul.f32 %v980, %v441
    %v1148 = vmul.f32 %v981, %v444
    %v1149 = vmul.f32 %v982, %v447
    %v1150 = vmul.f32 %v983, %v450
    %v1151 = vmul.f32 %v984, %v453
    %v1152 = vmul.f32 %v985, %v456
    %v1153 = vmul.f32 %v986, %v459
    %v1154 = vmul.f32 %v987, %v462
    %v1155 = vmul.f32 %v988, %v465
    %v1156 = vmul.f32 %v989, %v468
    %v1157 = vmul.f32 %v990, %v471
    %v1158 = vmul.f32 %v991, %v474
    %v1159 = vmul.f32 %v992, %v477
    %v1160 = vmul.f32 %v993, %v480
    %v1161 = vmul.f32 %v994, %v483
    %v1162 = vmul.f32 %v995, %v486
    %v1163 = vmul.f32 %v996, %v489
    %v1164 = vmul.f32 %v997, %v492
    %v1165 = vmul.f32 %v998, %v495
    %v1166 = vmul.f32 %v999, %v498
    %v1167 = vmul.f32 %v1000, %v501
    %v1168 = vmul.f32 %v1001, %v504
    %v1169 = vmul.f32 %v1002, %v507
    %v1170 = vmul.f32 %v1003, %v510
    %v1171 = vmul.f32 %v1004, %v513
    %v1172 = vmul.f32 %v1005, %v516
    %v1173 = vadd.f32 %v1092, %v1093
    %v1174 = vadd.f32 %v1173, %v1094
    %v1175 = vadd.f32 %v1174, %v1095
    %v1176 = vadd.f32 %v1175, %v1096
    %v1177 = vadd.f32 %v1176, %v1097
    %v1178 = vadd.f32 %v1177, %v1098
    %v1179 = vadd.f32 %v1178, %v1099
    %v1180 = vadd.f32 %v1179, %v1100
    %v1181 = vadd.f32 %v1180, %v1101
    %v1182 = vadd.f32 %v1181, %v1102
    %v1183 = vadd.f32 %v1182, %v1103
    %v1184 = vadd.f32 %v1183, %v1104
    %v1185 = vadd.f32 %v1184, %v1105
    %v1186 = vadd.f32 %v1185, %v1106
    %v1187 = vadd.f32 %v1186, %v1107
    %v1188 = vadd.f32 %v1187, %v1108
    %v1189 = vadd.f32 %v1188, %v1109
    %v1190 = vadd.f32 %v1189, %v1110
    %v1191 = vadd.f32 %v1190, %v1111
    %v1192 = vadd.f32 %v1191, %v1112
    %v1193 = vadd.f32 %v1192, %v1113
    %v1194 = vadd.f32 %v1193, %v1114
    %v1195 = vadd.f32 %v1194, %v1115
    %v1196 = vadd.f32 %v1195, %v1116
    %v1197 = vadd.f32 %v1196, %v1117
    %v1198 = vadd.f32 %v1197, %v1118
    %v1199 = vadd.f32 %v1198, %v1119
    %v1200 = vadd.f32 %v1199, %v1120
    %v1201 = vadd.f32 %v1200, %v1121
    %v1202 = vadd.f32 %v1201, %v1122
    %v1203 = vadd.f32 %v1202, %v1123
    %v1204 = vadd.f32 %v1203, %v1124
    %v1205 = vadd.f32 %v1204, %v1125
    %v1206 = vadd.f32 %v1205, %v1126
    %v1207 = vadd.f32 %v1206, %v1127
    %v1208 = vadd.f32 %v1207, %v1128
    %v1209 = vadd.f32 %v1208, %v1129
    %v1210 = vadd.f32 %v1209, %v1130
    %v1211 = vadd.f32 %v1210, %v1131
    %v1212 = vadd.f32 %v1211, %v1132
    %v1213 = vadd.f32 %v1212, %v1133
    %v1214 = vadd.f32 %v1213, %v1134
    %v1215 = vadd.f32 %v1214, %v1135
    %v1216 = vadd.f32 %v1215, %v1136
    %v1217 = vadd.f32 %v1216, %v1137
    %v1218 = vadd.f32 %v1217, %v1138
    %v1219 = vadd.f32 %v1218, %v1139
    %v1220 = vadd.f32 %v1219, %v1140
    %v1221 = vadd.f32 %v1220, %v1141
    %v1222 = vadd.f32 %v1221, %v1142
    %v1223 = vadd.f32 %v1222, %v1143
    %v1224 = vadd.f32 %v1223, %v1144
    %v1225 = vadd.f32 %v1224, %v1145
    %v1226 = vadd.f32 %v1225, %v1146
    %v1227 = vadd.f32 %v1226, %v1147
    %v1228 = vadd.f32 %v1227, %v1148
    %v1229 = vadd.f32 %v1228, %v1149
    %v1230 = vadd.f32 %v1229, %v1150
    %v1231 = vadd.f32 %v1230, %v1151
    %v1232 = vadd.f32 %v1231, %v1152
    %v1233 = vadd.f32 %v1232, %v1153
    %v1234 = vadd.f32 %v1233, %v1154
    %v1235 = vadd.f32 %v1234, %v1155
    %v1236 = vadd.f32 %v1235, %v1156
    %v1237 = vadd.f32 %v1236, %v1157
    %v1238 = vadd.f32 %v1237, %v1158
    %v1239 = vadd.f32 %v1238, %v1159
    %v1240 = vadd.f32 %v1239, %v1160
    %v1241 = vadd.f32 %v1240, %v1161
    %v1242 = vadd.f32 %v1241, %v1162
    %v1243 = vadd.f32 %v1242, %v1163
    %v1244 = vadd.f32 %v1243, %v1164
    %v1245 = vadd.f32 %v1244, %v1165
    %v1246 = vadd.f32 %v1245, %v1166
    %v1247 = vadd.f32 %v1246, %v1167
    %v1248 = vadd.f32 %v1247, %v1168
    %v1249 = vadd.f32 %v1248, %v1169
    %v1250 = vadd.f32 %v1249, %v1170
    %v1251 = vadd.f32 %v1250, %v1171
    %v1252 = vadd.f32 %v1251, %v1172
    %v1253 = vrot.slane %v1252, 4
    %v1254 = vadd.f32 %v1252, %v1253
    %v1255 = vrot.slane %v1254, 2
    %v1256 = vadd.f32 %v1254, %v1255
    %v1257 = vrot.slane %v1256, 1
    %v1258 = vadd.f32 %v1256, %v1257
    %v1259 = vmul.f32 %v1091, 0.001953125
    %v1260 = vmul.f32 %v1258, 0.001953125
    %v1261 = vmul.f32 %v1259, %v1259
    %v1262 = vsub.f32 %v1260, %v1261
    %v1263 = vadd.f32 %v1262, 1e-05
    %v1264 = vrsqrt.pop %v1263
    %v1265 = vmul.f32 %v1264, %v1263
    %v1266 = vmul.f32 %v1265, %v1264
    %v1267 = vmul.f32 0.5, %v1266
    %v1268 = vsub.f32 1.5, %v1267
    %v1269 = vmul.f32 %v1264, %v1268
    %vm1270 = vweird.f32 %v1263
    %vm1271 = vweird.f32 %v1264
    %vm1272 = vmor %vm1270, %vm1271
    %v1273 = vsel %vm1272, %v1264, %v1269
    %v1274 = vmul.f32 %v518, %v1273
    %v1275 = vmul.f32 %v1259, %v1274
    %v1276 = vsub.f32 %v519, %v1275
    %v1278 = vperm.slane %v1274, 0
    %v1280 = vmul.f32 %v276, %v1278
    %v1281 = vmul.f32 %v279, %v1278
    %v1282 = vmul.f32 %v282, %v1278
    %v1283 = vmul.f32 %v285, %v1278
    %v1284 = vmul.f32 %v288, %v1278
    %v1285 = vmul.f32 %v291, %v1278
    %v1286 = vmul.f32 %v294, %v1278
    %v1287 = vmul.f32 %v297, %v1278
    %v1288 = vmul.f32 %v300, %v1278
    %v1289 = vmul.f32 %v303, %v1278
    %v1290 = vmul.f32 %v306, %v1278
    %v1291 = vmul.f32 %v309, %v1278
    %v1292 = vmul.f32 %v312, %v1278
    %v1293 = vmul.f32 %v315, %v1278
    %v1294 = vmul.f32 %v318, %v1278
    %v1295 = vmul.f32 %v321, %v1278
    %v1296 = vmul.f32 %v324, %v1278
    %v1297 = vmul.f32 %v327, %v1278
    %v1298 = vmul.f32 %v330, %v1278
    %v1299 = vmul.f32 %v333, %v1278
    %v1300 = vmul.f32 %v336, %v1278
    %v1301 = vmul.f32 %v339, %v1278
    %v1302 = vmul.f32 %v342, %v1278
    %v1303 = vmul.f32 %v345, %v1278
    %v1304 = vmul.f32 %v348, %v1278
    %v1305 = vmul.f32 %v351, %v1278
    %v1306 = vmul.f32 %v354, %v1278
    %v1307 = vmul.f32 %v357, %v1278
    %v1308 = vmul.f32 %v360, %v1278
    %v1309 = vmul.f32 %v363, %v1278
    %v1310 = vmul.f32 %v366, %v1278
    %v1311 = vmul.f32 %v369, %v1278
    %v1312 = vmul.f32 %v372, %v1278
    %v1313 = vmul.f32 %v375, %v1278
    %v1314 = vmul.f32 %v378, %v1278
    %v1315 = vmul.f32 %v381, %v1278
    %v1316 = vmul.f32 %v384, %v1278
    %v1317 = vmul.f32 %v387, %v1278
    %v1318 = vmul.f32 %v390, %v1278
    %v1319 = vmul.f32 %v393, %v1278
    %v1320 = vmul.f32 %v396, %v1278
    %v1321 = vmul.f32 %v399, %v1278
    %v1322 = vmul.f32 %v402, %v1278
    %v1323 = vmul.f32 %v405, %v1278
    %v1324 = vmul.f32 %v408, %v1278
    %v1325 = vmul.f32 %v411, %v1278
    %v1326 = vmul.f32 %v414, %v1278
    %v1327 = vmul.f32 %v417, %v1278
    %v1328 = vmul.f32 %v420, %v1278
    %v1329 = vmul.f32 %v423, %v1278
    %v1330 = vmul.f32 %v426, %v1278
    %v1331 = vmul.f32 %v429, %v1278
    %v1332 = vmul.f32 %v432, %v1278
    %v1333 = vmul.f32 %v435, %v1278
    %v1334 = vmul.f32 %v438, %v1278
    %v1335 = vmul.f32 %v441, %v1278
    %v1336 = vmul.f32 %v444, %v1278
    %v1337 = vmul.f32 %v447, %v1278
    %v1338 = vmul.f32 %v450, %v1278
    %v1339 = vmul.f32 %v453, %v1278
    %v1340 = vmul.f32 %v456, %v1278
    %v1341 = vmul.f32 %v459, %v1278
    %v1342 = vmul.f32 %v462, %v1278
    %v1343 = vmul.f32 %v465, %v1278
    %v1344 = vmul.f32 %v468, %v1278
    %v1345 = vmul.f32 %v471, %v1278
    %v1346 = vmul.f32 %v474, %v1278
    %v1347 = vmul.f32 %v477, %v1278
    %v1348 = vmul.f32 %v480, %v1278
    %v1349 = vmul.f32 %v483, %v1278
    %v1350 = vmul.f32 %v486, %v1278
    %v1351 = vmul.f32 %v489, %v1278
    %v1352 = vmul.f32 %v492, %v1278
    %v1353 = vmul.f32 %v495, %v1278
    %v1354 = vmul.f32 %v498, %v1278
    %v1355 = vmul.f32 %v501, %v1278
    %v1356 = vmul.f32 %v504, %v1278
    %v1357 = vmul.f32 %v507, %v1278
    %v1358 = vmul.f32 %v510, %v1278
    %v1359 = vmul.f32 %v513, %v1278
    %v1360 = vmul.f32 %v516, %v1278
    %v1362 = vperm.slane %v1276, 0
    %v1364 = vadd.f32 %v1280, %v1362
    %v1365 = vadd.f32 %v1281, %v1362
    %v1366 = vadd.f32 %v1282, %v1362
    %v1367 = vadd.f32 %v1283, %v1362
    %v1368 = vadd.f32 %v1284, %v1362
    %v1369 = vadd.f32 %v1285, %v1362
    %v1370 = vadd.f32 %v1286, %v1362
    %v1371 = vadd.f32 %v1287, %v1362
    %v1372 = vadd.f32 %v1288, %v1362
    %v1373 = vadd.f32 %v1289, %v1362
    %v1374 = vadd.f32 %v1290, %v1362
    %v1375 = vadd.f32 %v1291, %v1362
    %v1376 = vadd.f32 %v1292, %v1362
    %v1377 = vadd.f32 %v1293, %v1362
    %v1378 = vadd.f32 %v1294, %v1362
    %v1379 = vadd.f32 %v1295, %v1362
    %v1380 = vadd.f32 %v1296, %v1362
    %v1381 = vadd.f32 %v1297, %v1362
    %v1382 = vadd.f32 %v1298, %v1362
    %v1383 = vadd.f32 %v1299, %v1362
    %v1384 = vadd.f32 %v1300, %v1362
    %v1385 = vadd.f32 %v1301, %v1362
    %v1386 = vadd.f32 %v1302, %v1362
    %v1387 = vadd.f32 %v1303, %v1362
    %v1388 = vadd.f32 %v1304, %v1362
    %v1389 = vadd.f32 %v1305, %v1362
    %v1390 = vadd.f32 %v1306, %v1362
    %v1391 = vadd.f32 %v1307, %v1362
    %v1392 = vadd.f32 %v1308, %v1362
    %v1393 = vadd.f32 %v1309, %v1362
    %v1394 = vadd.f32 %v1310, %v1362
    %v1395 = vadd.f32 %v1311, %v1362
    %v1396 = vadd.f32 %v1312, %v1362
    %v1397 = vadd.f32 %v1313, %v1362
    %v1398 = vadd.f32 %v1314, %v1362
    %v1399 = vadd.f32 %v1315, %v1362
    %v1400 = vadd.f32 %v1316, %v1362
    %v1401 = vadd.f32 %v1317, %v1362
    %v1402 = vadd.f32 %v1318, %v1362
    %v1403 = vadd.f32 %v1319, %v1362
    %v1404 = vadd.f32 %v1320, %v1362
    %v1405 = vadd.f32 %v1321, %v1362
    %v1406 = vadd.f32 %v1322, %v1362
    %v1407 = vadd.f32 %v1323, %v1362
    %v1408 = vadd.f32 %v1324, %v1362
    %v1409 = vadd.f32 %v1325, %v1362
    %v1410 = vadd.f32 %v1326, %v1362
    %v1411 = vadd.f32 %v1327, %v1362
    %v1412 = vadd.f32 %v1328, %v1362
    %v1413 = vadd.f32 %v1329, %v1362
    %v1414 = vadd.f32 %v1330, %v1362
    %v1415 = vadd.f32 %v1331, %v1362
    %v1416 = vadd.f32 %v1332, %v1362
    %v1417 = vadd.f32 %v1333, %v1362
    %v1418 = vadd.f32 %v1334, %v1362
    %v1419 = vadd.f32 %v1335, %v1362
    %v1420 = vadd.f32 %v1336, %v1362
    %v1421 = vadd.f32 %v1337, %v1362
    %v1422 = vadd.f32 %v1338, %v1362
    %v1423 = vadd.f32 %v1339, %v1362
    %v1424 = vadd.f32 %v1340, %v1362
    %v1425 = vadd.f32 %v1341, %v1362
    %v1426 = vadd.f32 %v1342, %v1362
    %v1427 = vadd.f32 %v1343, %v1362
    %v1428 = vadd.f32 %v1344, %v1362
    %v1429 = vadd.f32 %v1345, %v1362
    %v1430 = vadd.f32 %v1346, %v1362
    %v1431 = vadd.f32 %v1347, %v1362
    %v1432 = vadd.f32 %v1348, %v1362
    %v1433 = vadd.f32 %v1349, %v1362
    %v1434 = vadd.f32 %v1350, %v1362
    %v1435 = vadd.f32 %v1351, %v1362
    %v1436 = vadd.f32 %v1352, %v1362
    %v1437 = vadd.f32 %v1353, %v1362
    %v1438 = vadd.f32 %v1354, %v1362
    %v1439 = vadd.f32 %v1355, %v1362
    %v1440 = vadd.f32 %v1356, %v1362
    %v1441 = vadd.f32 %v1357, %v1362
    %v1442 = vadd.f32 %v1358, %v1362
    %v1443 = vadd.f32 %v1359, %v1362
    %v1444 = vadd.f32 %v1360, %v1362
    %v1445 = vmax.f32 %v1364, 0.0
    %v1446 = vmax.f32 %v1365, 0.0
    %v1447 = vmax.f32 %v1366, 0.0
    %v1448 = vmax.f32 %v1367, 0.0
    %v1449 = vmax.f32 %v1368, 0.0
    %v1450 = vmax.f32 %v1369, 0.0
    %v1451 = vmax.f32 %v1370, 0.0
    %v1452 = vmax.f32 %v1371, 0.0
    %v1453 = vmax.f32 %v1372, 0.0
    %v1454 = vmax.f32 %v1373, 0.0
    %v1455 = vmax.f32 %v1374, 0.0
    %v1456 = vmax.f32 %v1375, 0.0
    %v1457 = vmax.f32 %v1376, 0.0
    %v1458 = vmax.f32 %v1377, 0.0
    %v1459 = vmax.f32 %v1378, 0.0
    %v1460 = vmax.f32 %v1379, 0.0
    %v1461 = vmax.f32 %v1380, 0.0
    %v1462 = vmax.f32 %v1381, 0.0
    %v1463 = vmax.f32 %v1382, 0.0
    %v1464 = vmax.f32 %v1383, 0.0
    %v1465 = vmax.f32 %v1384, 0.0
    %v1466 = vmax.f32 %v1385, 0.0
    %v1467 = vmax.f32 %v1386, 0.0
    %v1468 = vmax.f32 %v1387, 0.0
    %v1469 = vmax.f32 %v1388, 0.0
    %v1470 = vmax.f32 %v1389, 0.0
    %v1471 = vmax.f32 %v1390, 0.0
    %v1472 = vmax.f32 %v1391, 0.0
    %v1473 = vmax.f32 %v1392, 0.0
    %v1474 = vmax.f32 %v1393, 0.0
    %v1475 = vmax.f32 %v1394, 0.0
    %v1476 = vmax.f32 %v1395, 0.0
    %v1477 = vmax.f32 %v1396, 0.0
    %v1478 = vmax.f32 %v1397, 0.0
    %v1479 = vmax.f32 %v1398, 0.0
    %v1480 = vmax.f32 %v1399, 0.0
    %v1481 = vmax.f32 %v1400, 0.0
    %v1482 = vmax.f32 %v1401, 0.0
    %v1483 = vmax.f32 %v1402, 0.0
    %v1484 = vmax.f32 %v1403, 0.0
    %v1485 = vmax.f32 %v1404, 0.0
    %v1486 = vmax.f32 %v1405, 0.0
    %v1487 = vmax.f32 %v1406, 0.0
    %v1488 = vmax.f32 %v1407, 0.0
    %v1489 = vmax.f32 %v1408, 0.0
    %v1490 = vmax.f32 %v1409, 0.0
    %v1491 = vmax.f32 %v1410, 0.0
    %v1492 = vmax.f32 %v1411, 0.0
    %v1493 = vmax.f32 %v1412, 0.0
    %v1494 = vmax.f32 %v1413, 0.0
    %v1495 = vmax.f32 %v1414, 0.0
    %v1496 = vmax.f32 %v1415, 0.0
    %v1497 = vmax.f32 %v1416, 0.0
    %v1498 = vmax.f32 %v1417, 0.0
    %v1499 = vmax.f32 %v1418, 0.0
    %v1500 = vmax.f32 %v1419, 0.0
    %v1501 = vmax.f32 %v1420, 0.0
    %v1502 = vmax.f32 %v1421, 0.0
    %v1503 = vmax.f32 %v1422, 0.0
    %v1504 = vmax.f32 %v1423, 0.0
    %v1505 = vmax.f32 %v1424, 0.0
    %v1506 = vmax.f32 %v1425, 0.0
    %v1507 = vmax.f32 %v1426, 0.0
    %v1508 = vmax.f32 %v1427, 0.0
    %v1509 = vmax.f32 %v1428, 0.0
    %v1510 = vmax.f32 %v1429, 0.0
    %v1511 = vmax.f32 %v1430, 0.0
    %v1512 = vmax.f32 %v1431, 0.0
    %v1513 = vmax.f32 %v1432, 0.0
    %v1514 = vmax.f32 %v1433, 0.0
    %v1515 = vmax.f32 %v1434, 0.0
    %v1516 = vmax.f32 %v1435, 0.0
    %v1517 = vmax.f32 %v1436, 0.0
    %v1518 = vmax.f32 %v1437, 0.0
    %v1519 = vmax.f32 %v1438, 0.0
    %v1520 = vmax.f32 %v1439, 0.0
    %v1521 = vmax.f32 %v1440, 0.0
    %v1522 = vmax.f32 %v1441, 0.0
    %v1523 = vmax.f32 %v1442, 0.0
    %v1524 = vmax.f32 %v1443, 0.0
    %v1525 = vmax.f32 %v1444, 0.0
    %v1526 = vmul.f32 %v1445, %v523
    %v1527 = vmul.f32 %v1446, %v528
    %v1528 = vmul.f32 %v1447, %v533
    %v1529 = vmul.f32 %v1448, %v538
    %v1530 = vmul.f32 %v1449, %v543
    %v1531 = vmul.f32 %v1450, %v548
    %v1532 = vmul.f32 %v1451, %v553
    %v1533 = vmul.f32 %v1452, %v558
    %v1534 = vmul.f32 %v1453, %v563
    %v1535 = vmul.f32 %v1454, %v568
    %v1536 = vmul.f32 %v1455, %v573
    %v1537 = vmul.f32 %v1456, %v578
    %v1538 = vmul.f32 %v1457, %v583
    %v1539 = vmul.f32 %v1458, %v588
    %v1540 = vmul.f32 %v1459, %v593
    %v1541 = vmul.f32 %v1460, %v598
    %v1542 = vmul.f32 %v1461, %v603
    %v1543 = vmul.f32 %v1462, %v608
    %v1544 = vmul.f32 %v1463, %v613
    %v1545 = vmul.f32 %v1464, %v618
    %v1546 = vmul.f32 %v1465, %v623
    %v1547 = vmul.f32 %v1466, %v628
    %v1548 = vmul.f32 %v1467, %v633
    %v1549 = vmul.f32 %v1468, %v638
    %v1550 = vmul.f32 %v1469, %v643
    %v1551 = vmul.f32 %v1470, %v648
    %v1552 = vmul.f32 %v1471, %v653
    %v1553 = vmul.f32 %v1472, %v658
    %v1554 = vmul.f32 %v1473, %v663
    %v1555 = vmul.f32 %v1474, %v668
    %v1556 = vmul.f32 %v1475, %v673
    %v1557 = vmul.f32 %v1476, %v678
    %v1558 = vmul.f32 %v1477, %v683
    %v1559 = vmul.f32 %v1478, %v688
    %v1560 = vmul.f32 %v1479, %v693
    %v1561 = vmul.f32 %v1480, %v698
    %v1562 = vmul.f32 %v1481, %v703
    %v1563 = vmul.f32 %v1482, %v708
    %v1564 = vmul.f32 %v1483, %v713
    %v1565 = vmul.f32 %v1484, %v718
    %v1566 = vmul.f32 %v1485, %v723
    %v1567 = vmul.f32 %v1486, %v728
    %v1568 = vmul.f32 %v1487, %v733
    %v1569 = vmul.f32 %v1488, %v738
    %v1570 = vmul.f32 %v1489, %v743
    %v1571 = vmul.f32 %v1490, %v748
    %v1572 = vmul.f32 %v1491, %v753
    %v1573 = vmul.f32 %v1492, %v758
    %v1574 = vmul.f32 %v1493, %v763
    %v1575 = vmul.f32 %v1494, %v768
    %v1576 = vmul.f32 %v1495, %v773
    %v1577 = vmul.f32 %v1496, %v778
    %v1578 = vmul.f32 %v1497, %v783
    %v1579 = vmul.f32 %v1498, %v788
    %v1580 = vmul.f32 %v1499, %v793
    %v1581 = vmul.f32 %v1500, %v798
    %v1582 = vmul.f32 %v1501, %v803
    %v1583 = vmul.f32 %v1502, %v808
    %v1584 = vmul.f32 %v1503, %v813
    %v1585 = vmul.f32 %v1504, %v818
    %v1586 = vmul.f32 %v1505, %v823
    %v1587 = vmul.f32 %v1506, %v828
    %v1588 = vmul.f32 %v1507, %v833
    %v1589 = vmul.f32 %v1508, %v838
    %v1590 = vmul.f32 %v1509, %v843
    %v1591 = vmul.f32 %v1510, %v848
    %v1592 = vmul.f32 %v1511, %v853
    %v1593 = vmul.f32 %v1512, %v858
    %v1594 = vmul.f32 %v1513, %v863
    %v1595 = vmul.f32 %v1514, %v868
    %v1596 = vmul.f32 %v1515, %v873
    %v1597 = vmul.f32 %v1516, %v878
    %v1598 = vmul.f32 %v1517, %v883
    %v1599 = vmul.f32 %v1518, %v888
    %v1600 = vmul.f32 %v1519, %v893
    %v1601 = vmul.f32 %v1520, %v898
    %v1602 = vmul.f32 %v1521, %v903
    %v1603 = vmul.f32 %v1522, %v908
    %v1604 = vmul.f32 %v1523, %v913
    %v1605 = vmul.f32 %v1524, %v918
    %v1606 = vmul.f32 %v1525, %v923
    %1607 = vst [vmem:[#allocation2] sm:$0xff] 0.0
    %1608 = vst [vmem:[#allocation2 + $0x8] sm:$0xff] 0.0
    %1609 = vst [vmem:[#allocation2 + $0x10] sm:$0xff] 0.0
    %1610 = vst [vmem:[#allocation2 + $0x18] sm:$0xff] 0.0
    %1611 = vst [vmem:[#allocation2 + $0x20] sm:$0xff] 0.0
    %1612 = vst [vmem:[#allocation2 + $0x28] sm:$0xff] 0.0
    %1613 = vst [vmem:[#allocation2 + $0x30] sm:$0xff] 0.0
    %1614 = vst [vmem:[#allocation2 + $0x38] sm:$0xff] 0.0
    %1615 = vst [vmem:[#allocation2 + $0x40] sm:$0xff] 0.0
    %1616 = vst [vmem:[#allocation2 + $0x48] sm:$0xff] 0.0
    %1617 = vst [vmem:[#allocation2 + $0x50] sm:$0xff] 0.0
    %1618 = vst [vmem:[#allocation2 + $0x58] sm:$0xff] 0.0
    %1619 = vst [vmem:[#allocation2 + $0x60] sm:$0xff] 0.0
    %1620 = vst [vmem:[#allocation2 + $0x68] sm:$0xff] 0.0
    %1621 = vst [vmem:[#allocation2 + $0x70] sm:$0xff] 0.0
    %1622 = vst [vmem:[#allocation2 + $0x78] sm:$0xff] 0.0
    %1623 = vst [vmem:[#allocation2 + $0x80] sm:$0xff] 0.0
    %1624 = vst [vmem:[#allocation2 + $0x88] sm:$0xff] 0.0
    %1625 = vst [vmem:[#allocation2 + $0x90] sm:$0xff] 0.0
    %1626 = vst [vmem:[#allocation2 + $0x98] sm:$0xff] 0.0
    %1627 = vst [vmem:[#allocation2 + $0xa0] sm:$0xff] 0.0
    %1628 = vst [vmem:[#allocation2 + $0xa8] sm:$0xff] 0.0
    %1629 = vst [vmem:[#allocation2 + $0xb0] sm:$0xff] 0.0
    %1630 = vst [vmem:[#allocation2 + $0xb8] sm:$0xff] 0.0
    %1631 = vst [vmem:[#allocation2 + $0xc0] sm:$0xff] 0.0
    %1632 = vst [vmem:[#allocation2 + $0xc8] sm:$0xff] 0.0
    %1633 = vst [vmem:[#allocation2 + $0xd0] sm:$0xff] 0.0
    %1634 = vst [vmem:[#allocation2 + $0xd8] sm:$0xff] 0.0
    %1635 = vst [vmem:[#allocation2 + $0xe0] sm:$0xff] 0.0
    %1636 = vst [vmem:[#allocation2 + $0xe8] sm:$0xff] 0.0
    %1637 = vst [vmem:[#allocation2 + $0xf0] sm:$0xff] 0.0
    %1638 = vst [vmem:[#allocation2 + $0xf8] sm:$0xff] 0.0
    %1639 = vst [vmem:[#allocation2 + $0x100] sm:$0xff] 0.0
    %1640 = vst [vmem:[#allocation2 + $0x108] sm:$0xff] 0.0
    %1641 = vst [vmem:[#allocation2 + $0x110] sm:$0xff] 0.0
    %1642 = vst [vmem:[#allocation2 + $0x118] sm:$0xff] 0.0
    %1643 = vst [vmem:[#allocation2 + $0x120] sm:$0xff] 0.0
    %1644 = vst [vmem:[#allocation2 + $0x128] sm:$0xff] 0.0
    %1645 = vst [vmem:[#allocation2 + $0x130] sm:$0xff] 0.0
    %1646 = vst [vmem:[#allocation2 + $0x138] sm:$0xff] 0.0
    %1647 = vst [vmem:[#allocation2 + $0x140] sm:$0xff] 0.0
    %1648 = vst [vmem:[#allocation2 + $0x148] sm:$0xff] 0.0
    %1649 = vst [vmem:[#allocation2 + $0x150] sm:$0xff] 0.0
    %1650 = vst [vmem:[#allocation2 + $0x158] sm:$0xff] 0.0
    %1651 = vst [vmem:[#allocation2 + $0x160] sm:$0xff] 0.0
    %1652 = vst [vmem:[#allocation2 + $0x168] sm:$0xff] 0.0
    %1653 = vst [vmem:[#allocation2 + $0x170] sm:$0xff] 0.0
    %1654 = vst [vmem:[#allocation2 + $0x178] sm:$0xff] 0.0
    %1655 = vst [vmem:[#allocation2 + $0x180] sm:$0xff] 0.0
    %1656 = vst [vmem:[#allocation2 + $0x188] sm:$0xff] 0.0
    %1657 = vst [vmem:[#allocation2 + $0x190] sm:$0xff] 0.0
    %1658 = vst [vmem:[#allocation2 + $0x198] sm:$0xff] 0.0
    %1659 = vst [vmem:[#allocation2 + $0x1a0] sm:$0xff] 0.0
    %1660 = vst [vmem:[#allocation2 + $0x1a8] sm:$0xff] 0.0
    %1661 = vst [vmem:[#allocation2 + $0x1b0] sm:$0xff] 0.0
    %1662 = vst [vmem:[#allocation2 + $0x1b8] sm:$0xff] 0.0
    %1663 = vst [vmem:[#allocation2 + $0x1c0] sm:$0xff] 0.0
    %1664 = vst [vmem:[#allocation2 + $0x1c8] sm:$0xff] 0.0
    %1665 = vst [vmem:[#allocation2 + $0x1d0] sm:$0xff] 0.0
    %1666 = vst [vmem:[#allocation2 + $0x1d8] sm:$0xff] 0.0
    %1667 = vst [vmem:[#allocation2 + $0x1e0] sm:$0xff] 0.0
    %1668 = vst [vmem:[#allocation2 + $0x1e8] sm:$0xff] 0.0
    %1669 = vst [vmem:[#allocation2 + $0x1f0] sm:$0xff] 0.0
    %1670 = vst [vmem:[#allocation2 + $0x1f8] sm:$0xff] 0.0
    %1671 = vst [vmem:[#allocation2 + $0x200] sm:$0xff] 0.0
    %1672 = vst [vmem:[#allocation2 + $0x208] sm:$0xff] 0.0
    %1673 = vst [vmem:[#allocation2 + $0x210] sm:$0xff] 0.0
    %1674 = vst [vmem:[#allocation2 + $0x218] sm:$0xff] 0.0
    %1675 = vst [vmem:[#allocation2 + $0x220] sm:$0xff] 0.0
    %1676 = vst [vmem:[#allocation2 + $0x228] sm:$0xff] 0.0
    %1677 = vst [vmem:[#allocation2 + $0x230] sm:$0xff] 0.0
    %1678 = vst [vmem:[#allocation2 + $0x238] sm:$0xff] 0.0
    %1679 = vst [vmem:[#allocation2 + $0x240] sm:$0xff] 0.0
    %1680 = vst [vmem:[#allocation2 + $0x248] sm:$0xff] 0.0
    %1681 = vst [vmem:[#allocation2 + $0x250] sm:$0xff] 0.0
    %1682 = vst [vmem:[#allocation2 + $0x258] sm:$0xff] 0.0
    %1683 = vst [vmem:[#allocation2 + $0x260] sm:$0xff] 0.0
    %1684 = vst [vmem:[#allocation2 + $0x268] sm:$0xff] 0.0
    %1685 = vst [vmem:[#allocation2 + $0x270] sm:$0xff] 0.0
    %1686 = vst [vmem:[#allocation2 + $0x278] sm:$0xff] 0.0
    %1687 = vst [vmem:[#allocation2 + $0x280] sm:$0xff] 0.0
    %1688 = vst [vmem:[#allocation2 + $0x288] sm:$0xff] 0.0
    %1689 = vst [vmem:[#allocation2 + $0x290] sm:$0xff] 0.0
    %1690 = vst [vmem:[#allocation2 + $0x298] sm:$0xff] 0.0
    %1691 = vst [vmem:[#allocation2 + $0x2a0] sm:$0xff] 0.0
    %1692 = vst [vmem:[#allocation2 + $0x2a8] sm:$0xff] 0.0
    %1693 = vst [vmem:[#allocation2 + $0x2b0] sm:$0xff] 0.0
    %1694 = vst [vmem:[#allocation2 + $0x18] sm:$0xff] %v1526
    %1695 = vst [vmem:[#allocation2 + $0x20] sm:$0xff] %v1527
    %1696 = vst [vmem:[#allocation2 + $0x28] sm:$0xff] %v1528
    %1697 = vst [vmem:[#allocation2 + $0x30] sm:$0xff] %v1529
    %1698 = vst [vmem:[#allocation2 + $0x38] sm:$0xff] %v1530
    %1699 = vst [vmem:[#allocation2 + $0x40] sm:$0xff] %v1531
    %1700 = vst [vmem:[#allocation2 + $0x48] sm:$0xff] %v1532
    %1701 = vst [vmem:[#allocation2 + $0x50] sm:$0xff] %v1533
    %1702 = vst [vmem:[#allocation2 + $0x58] sm:$0xff] %v1534
    %1703 = vst [vmem:[#allocation2 + $0x60] sm:$0xff] %v1535
    %1704 = vst [vmem:[#allocation2 + $0x68] sm:$0xff] %v1536
    %1705 = vst [vmem:[#allocation2 + $0x70] sm:$0xff] %v1537
    %1706 = vst [vmem:[#allocation2 + $0x78] sm:$0xff] %v1538
    %1707 = vst [vmem:[#allocation2 + $0x80] sm:$0xff] %v1539
    %1708 = vst [vmem:[#allocation2 + $0x88] sm:$0xff] %v1540
    %1709 = vst [vmem:[#allocation2 + $0x90] sm:$0xff] %v1541
    %1710 = vst [vmem:[#allocation2 + $0x98] sm:$0xff] %v1542
    %1711 = vst [vmem:[#allocation2 + $0xa0] sm:$0xff] %v1543
    %1712 = vst [vmem:[#allocation2 + $0xa8] sm:$0xff] %v1544
    %1713 = vst [vmem:[#allocation2 + $0xb0] sm:$0xff] %v1545
    %1714 = vst [vmem:[#allocation2 + $0xb8] sm:$0xff] %v1546
    %1715 = vst [vmem:[#allocation2 + $0xc0] sm:$0xff] %v1547
    %1716 = vst [vmem:[#allocation2 + $0xc8] sm:$0xff] %v1548
    %1717 = vst [vmem:[#allocation2 + $0xd0] sm:$0xff] %v1549
    %1718 = vst [vmem:[#allocation2 + $0xd8] sm:$0xff] %v1550
    %1719 = vst [vmem:[#allocation2 + $0xe0] sm:$0xff] %v1551
    %1720 = vst [vmem:[#allocation2 + $0xe8] sm:$0xff] %v1552
    %1721 = vst [vmem:[#allocation2 + $0xf0] sm:$0xff] %v1553
    %1722 = vst [vmem:[#allocation2 + $0xf8] sm:$0xff] %v1554
    %1723 = vst [vmem:[#allocation2 + $0x100] sm:$0xff] %v1555
    %1724 = vst [vmem:[#allocation2 + $0x108] sm:$0xff] %v1556
    %1725 = vst [vmem:[#allocation2 + $0x110] sm:$0xff] %v1557
    %1726 = vst [vmem:[#allocation2 + $0x118] sm:$0xff] %v1558
    %1727 = vst [vmem:[#allocation2 + $0x120] sm:$0xff] %v1559
    %1728 = vst [vmem:[#allocation2 + $0x128] sm:$0xff] %v1560
    %1729 = vst [vmem:[#allocation2 + $0x130] sm:$0xff] %v1561
    %1730 = vst [vmem:[#allocation2 + $0x138] sm:$0xff] %v1562
    %1731 = vst [vmem:[#allocation2 + $0x140] sm:$0xff] %v1563
    %1732 = vst [vmem:[#allocation2 + $0x148] sm:$0xff] %v1564
    %1733 = vst [vmem:[#allocation2 + $0x150] sm:$0xff] %v1565
    %1734 = vst [vmem:[#allocation2 + $0x158] sm:$0xff] %v1566
    %1735 = vst [vmem:[#allocation2 + $0x160] sm:$0xff] %v1567
    %1736 = vst [vmem:[#allocation2 + $0x168] sm:$0xff] %v1568
    %1737 = vst [vmem:[#allocation2 + $0x170] sm:$0xff] %v1569
    %1738 = vst [vmem:[#allocation2 + $0x178] sm:$0xff] %v1570
    %1739 = vst [vmem:[#allocation2 + $0x180] sm:$0xff] %v1571
    %1740 = vst [vmem:[#allocation2 + $0x188] sm:$0xff] %v1572
    %1741 = vst [vmem:[#allocation2 + $0x190] sm:$0xff] %v1573
    %1742 = vst [vmem:[#allocation2 + $0x198] sm:$0xff] %v1574
    %1743 = vst [vmem:[#allocation2 + $0x1a0] sm:$0xff] %v1575
    %1744 = vst [vmem:[#allocation2 + $0x1a8] sm:$0xff] %v1576
    %1745 = vst [vmem:[#allocation2 + $0x1b0] sm:$0xff] %v1577
    %1746 = vst [vmem:[#allocation2 + $0x1b8] sm:$0xff] %v1578
    %1747 = vst [vmem:[#allocation2 + $0x1c0] sm:$0xff] %v1579
    %1748 = vst [vmem:[#allocation2 + $0x1c8] sm:$0xff] %v1580
    %1749 = vst [vmem:[#allocation2 + $0x1d0] sm:$0xff] %v1581
    %1750 = vst [vmem:[#allocation2 + $0x1d8] sm:$0xff] %v1582
    %1751 = vst [vmem:[#allocation2 + $0x1e0] sm:$0xff] %v1583
    %1752 = vst [vmem:[#allocation2 + $0x1e8] sm:$0xff] %v1584
    %1753 = vst [vmem:[#allocation2 + $0x1f0] sm:$0xff] %v1585
    %1754 = vst [vmem:[#allocation2 + $0x1f8] sm:$0xff] %v1586
    %1755 = vst [vmem:[#allocation2 + $0x200] sm:$0xff] %v1587
    %1756 = vst [vmem:[#allocation2 + $0x208] sm:$0xff] %v1588
    %1757 = vst [vmem:[#allocation2 + $0x210] sm:$0xff] %v1589
    %1758 = vst [vmem:[#allocation2 + $0x218] sm:$0xff] %v1590
    %1759 = vst [vmem:[#allocation2 + $0x220] sm:$0xff] %v1591
    %1760 = vst [vmem:[#allocation2 + $0x228] sm:$0xff] %v1592
    %1761 = vst [vmem:[#allocation2 + $0x230] sm:$0xff] %v1593
    %1762 = vst [vmem:[#allocation2 + $0x238] sm:$0xff] %v1594
    %1763 = vst [vmem:[#allocation2 + $0x240] sm:$0xff] %v1595
    %1764 = vst [vmem:[#allocation2 + $0x248] sm:$0xff] %v1596
    %1765 = vst [vmem:[#allocation2 + $0x250] sm:$0xff] %v1597
    %1766 = vst [vmem:[#allocation2 + $0x258] sm:$0xff] %v1598
    %1767 = vst [vmem:[#allocation2 + $0x260] sm:$0xff] %v1599
    %1768 = vst [vmem:[#allocation2 + $0x268] sm:$0xff] %v1600
    %1769 = vst [vmem:[#allocation2 + $0x270] sm:$0xff] %v1601
    %1770 = vst [vmem:[#allocation2 + $0x278] sm:$0xff] %v1602
    %1771 = vst [vmem:[#allocation2 + $0x280] sm:$0xff] %v1603
    %1772 = vst [vmem:[#allocation2 + $0x288] sm:$0xff] %v1604
    %1773 = vst [vmem:[#allocation2 + $0x290] sm:$0xff] %v1605
    %1774 = vst [vmem:[#allocation2 + $0x298] sm:$0xff] %v1606
    %v1775 = vld [vmem:[#allocation2 + $0x5] sm:$0xff]
    %v1776 = vld [vmem:[#allocation2 + $0xd] sm:$0xff]
    %v1777 = vld [vmem:[#allocation2 + $0x15] sm:$0xff]
    %v1778 = vld [vmem:[#allocation2 + $0x1d] sm:$0xff]
    %v1779 = vld [vmem:[#allocation2 + $0x25] sm:$0xff]
    %v1780 = vld [vmem:[#allocation2 + $0x2d] sm:$0xff]
    %v1781 = vld [vmem:[#allocation2 + $0x35] sm:$0xff]
    %v1782 = vld [vmem:[#allocation2 + $0x3d] sm:$0xff]
    %v1783 = vld [vmem:[#allocation2 + $0x45] sm:$0xff]
    %v1784 = vld [vmem:[#allocation2 + $0x4d] sm:$0xff]
    %v1785 = vld [vmem:[#allocation2 + $0x55] sm:$0xff]
    %v1786 = vld [vmem:[#allocation2 + $0x5d] sm:$0xff]
    %v1787 = vld [vmem:[#allocation2 + $0x65] sm:$0xff]
    %v1788 = vld [vmem:[#allocation2 + $0x6d] sm:$0xff]
    %v1789 = vld [vmem:[#allocation2 + $0x75] sm:$0xff]
    %v1790 = vld [vmem:[#allocation2 + $0x7d] sm:$0xff]
    %v1791 = vld [vmem:[#allocation2 + $0x85] sm:$0xff]
    %v1792 = vld [vmem:[#allocation2 + $0x8d] sm:$0xff]
    %v1793 = vld [vmem:[#allocation2 + $0x95] sm:$0xff]
    %v1794 = vld [vmem:[#allocation2 + $0x9d] sm:$0xff]
    %v1795 = vld [vmem:[#allocation2 + $0xa5] sm:$0xff]
    %v1796 = vld [vmem:[#allocation2 + $0xad] sm:$0xff]
    %v1797 = vld [vmem:[#allocation2 + $0xb5] sm:$0xff]
    %v1798 = vld [vmem:[#allocation2 + $0xbd] sm:$0xff]
    %v1799 = vld [vmem:[#allocation2 + $0xc5] sm:$0xff]
    %v1800 = vld [vmem:[#allocation2 + $0xcd] sm:$0xff]
    %v1801 = vld [vmem:[#allocation2 + $0xd5] sm:$0xff]
    %v1802 = vld [vmem:[#allocation2 + $0xdd] sm:$0xff]
    %v1803 = vld [vmem:[#allocation2 + $0xe5] sm:$0xff]
    %v1804 = vld [vmem:[#allocation2 + $0xed] sm:$0xff]
    %v1805 = vld [vmem:[#allocation2 + $0xf5] sm:$0xff]
    %v1806 = vld [vmem:[#allocation2 + $0xfd] sm:$0xff]
    %v1807 = vld [vmem:[#allocation2 + $0x105] sm:$0xff]
    %v1808 = vld [vmem:[#allocation2 + $0x10d] sm:$0xff]
    %v1809 = vld [vmem:[#allocation2 + $0x115] sm:$0xff]
    %v1810 = vld [vmem:[#allocation2 + $0x11d] sm:$0xff]
    %v1811 = vld [vmem:[#allocation2 + $0x125] sm:$0xff]
    %v1812 = vld [vmem:[#allocation2 + $0x12d] sm:$0xff]
    %v1813 = vld [vmem:[#allocation2 + $0x135] sm:$0xff]
    %v1814 = vld [vmem:[#allocation2 + $0x13d] sm:$0xff]
    %v1815 = vld [vmem:[#allocation2 + $0x145] sm:$0xff]
    %v1816 = vld [vmem:[#allocation2 + $0x14d] sm:$0xff]
    %v1817 = vld [vmem:[#allocation2 + $0x155] sm:$0xff]
    %v1818 = vld [vmem:[#allocation2 + $0x15d] sm:$0xff]
    %v1819 = vld [vmem:[#allocation2 + $0x165] sm:$0xff]
    %v1820 = vld [vmem:[#allocation2 + $0x16d] sm:$0xff]
    %v1821 = vld [vmem:[#allocation2 + $0x175] sm:$0xff]
    %v1822 = vld [vmem:[#allocation2 + $0x17d] sm:$0xff]
    %v1823 = vld [vmem:[#allocation2 + $0x185] sm:$0xff]
    %v1824 = vld [vmem:[#allocation2 + $0x18d] sm:$0xff]
    %v1825 = vld [vmem:[#allocation2 + $0x195] sm:$0xff]
    %v1826 = vld [vmem:[#allocation2 + $0x19d] sm:$0xff]
    %v1827 = vld [vmem:[#allocation2 + $0x1a5] sm:$0xff]
    %v1828 = vld [vmem:[#allocation2 + $0x1ad] sm:$0xff]
    %v1829 = vld [vmem:[#allocation2 + $0x1b5] sm:$0xff]
    %v1830 = vld [vmem:[#allocation2 + $0x1bd] sm:$0xff]
    %v1831 = vld [vmem:[#allocation2 + $0x1c5] sm:$0xff]
    %v1832 = vld [vmem:[#allocation2 + $0x1cd] sm:$0xff]
    %v1833 = vld [vmem:[#allocation2 + $0x1d5] sm:$0xff]
    %v1834 = vld [vmem:[#allocation2 + $0x1dd] sm:$0xff]
    %v1835 = vld [vmem:[#allocation2 + $0x1e5] sm:$0xff]
    %v1836 = vld [vmem:[#allocation2 + $0x1ed] sm:$0xff]
    %v1837 = vld [vmem:[#allocation2 + $0x1f5] sm:$0xff]
    %v1838 = vld [vmem:[#allocation2 + $0x1fd] sm:$0xff]
    %v1839 = vld [vmem:[#allocation2 + $0x205] sm:$0xff]
    %v1840 = vld [vmem:[#allocation2 + $0x20d] sm:$0xff]
    %v1841 = vld [vmem:[#allocation2 + $0x215] sm:$0xff]
    %v1842 = vld [vmem:[#allocation2 + $0x21d] sm:$0xff]
    %v1843 = vld [vmem:[#allocation2 + $0x225] sm:$0xff]
    %v1844 = vld [vmem:[#allocation2 + $0x22d] sm:$0xff]
    %v1845 = vld [vmem:[#allocation2 + $0x235] sm:$0xff]
    %v1846 = vld [vmem:[#allocation2 + $0x23d] sm:$0xff]
    %v1847 = vld [vmem:[#allocation2 + $0x245] sm:$0xff]
    %v1848 = vld [vmem:[#allocation2 + $0x24d] sm:$0xff]
    %v1849 = vld [vmem:[#allocation2 + $0x255] sm:$0xff]
    %v1850 = vld [vmem:[#allocation2 + $0x25d] sm:$0xff]
    %v1851 = vld [vmem:[#allocation2 + $0x265] sm:$0xff]
    %v1852 = vld [vmem:[#allocation2 + $0x26d] sm:$0xff]
    %v1853 = vld [vmem:[#allocation2 + $0x275] sm:$0xff]
    %v1854 = vld [vmem:[#allocation2 + $0x27d] sm:$0xff]
    %v1855 = vld [vmem:[#allocation2 + $0x285] sm:$0xff]
    %v1856 = vld [vmem:[#allocation6] sm:$0xff]
    %v1857 = vld [vmem:[#allocation6 + $0x8] sm:$0xff]
    %v1858 = vld [vmem:[#allocation6 + $0x10] sm:$0xff]
    %v1859 = vld [vmem:[#allocation6 + $0x18] sm:$0xff]
    %v1860 = vld [vmem:[#allocation6 + $0x20] sm:$0xff]
    %v1861 = vld [vmem:[#allocation6 + $0x28] sm:$0xff]
    %v1862 = vld [vmem:[#allocation6 + $0x30] sm:$0xff]
    %v1863 = vld [vmem:[#allocation6 + $0x38] sm:$0xff]
    %v1864 = vld [vmem:[#allocation6 + $0x40] sm:$0xff]
    %v1865 = vld [vmem:[#allocation6 + $0x48] sm:$0xff]
    %v1866 = vld [vmem:[#allocation6 + $0x50] sm:$0xff]
    %v1867 = vld [vmem:[#allocation6 + $0x58] sm:$0xff]
    %v1868 = vld [vmem:[#allocation6 + $0x60] sm:$0xff]
    %v1869 = vld [vmem:[#allocation6 + $0x68] sm:$0xff]
    %v1870 = vld [vmem:[#allocation6 + $0x70] sm:$0xff]
    %v1871 = vld [vmem:[#allocation6 + $0x78] sm:$0xff]
    %v1872 = vld [vmem:[#allocation2 + $0x6] sm:$0xff]
    %v1873 = vld [vmem:[#allocation2 + $0xe] sm:$0xff]
    %v1874 = vld [vmem:[#allocation2 + $0x16] sm:$0xff]
    %v1875 = vld [vmem:[#allocation2 + $0x1e] sm:$0xff]
    %v1876 = vld [vmem:[#allocation2 + $0x26] sm:$0xff]
    %v1877 = vld [vmem:[#allocation2 + $0x2e] sm:$0xff]
    %v1878 = vld [vmem:[#allocation2 + $0x36] sm:$0xff]
    %v1879 = vld [vmem:[#allocation2 + $0x3e] sm:$0xff]
    %v1880 = vld [vmem:[#allocation2 + $0x46] sm:$0xff]
    %v1881 = vld [vmem:[#allocation2 + $0x4e] sm:$0xff]
    %v1882 = vld [vmem:[#allocation2 + $0x56] sm:$0xff]
    %v1883 = vld [vmem:[#allocation2 + $0x5e] sm:$0xff]
    %v1884 = vld [vmem:[#allocation2 + $0x66] sm:$0xff]
    %v1885 = vld [vmem:[#allocation2 + $0x6e] sm:$0xff]
    %v1886 = vld [vmem:[#allocation2 + $0x76] sm:$0xff]
    %v1887 = vld [vmem:[#allocation2 + $0x7e] sm:$0xff]
    %v1888 = vld [vmem:[#allocation2 + $0x86] sm:$0xff]
    %v1889 = vld [vmem:[#allocation2 + $0x8e] sm:$0xff]
    %v1890 = vld [vmem:[#allocation2 + $0x96] sm:$0xff]
    %v1891 = vld [vmem:[#allocation2 + $0x9e] sm:$0xff]
    %v1892 = vld [vmem:[#allocation2 + $0xa6] sm:$0xff]
    %v1893 = vld [vmem:[#allocation2 + $0xae] sm:$0xff]
    %v1894 = vld [vmem:[#allocation2 + $0xb6] sm:$0xff]
    %v1895 = vld [vmem:[#allocation2 + $0xbe] sm:$0xff]
    %v1896 = vld [vmem:[#allocation2 + $0xc6] sm:$0xff]
    %v1897 = vld [vmem:[#allocation2 + $0xce] sm:$0xff]
    %v1898 = vld [vmem:[#allocation2 + $0xd6] sm:$0xff]
    %v1899 = vld [vmem:[#allocation2 + $0xde] sm:$0xff]
    %v1900 = vld [vmem:[#allocation2 + $0xe6] sm:$0xff]
    %v1901 = vld [vmem:[#allocation2 + $0xee] sm:$0xff]
    %v1902 = vld [vmem:[#allocation2 + $0xf6] sm:$0xff]
    %v1903 = vld [vmem:[#allocation2 + $0xfe] sm:$0xff]
    %v1904 = vld [vmem:[#allocation2 + $0x106] sm:$0xff]
    %v1905 = vld [vmem:[#allocation2 + $0x10e] sm:$0xff]
    %v1906 = vld [vmem:[#allocation2 + $0x116] sm:$0xff]
    %v1907 = vld [vmem:[#allocation2 + $0x11e] sm:$0xff]
    %v1908 = vld [vmem:[#allocation2 + $0x126] sm:$0xff]
    %v1909 = vld [vmem:[#allocation2 + $0x12e] sm:$0xff]
    %v1910 = vld [vmem:[#allocation2 + $0x136] sm:$0xff]
    %v1911 = vld [vmem:[#allocation2 + $0x13e] sm:$0xff]
    %v1912 = vld [vmem:[#allocation2 + $0x146] sm:$0xff]
    %v1913 = vld [vmem:[#allocation2 + $0x14e] sm:$0xff]
    %v1914 = vld [vmem:[#allocation2 + $0x156] sm:$0xff]
    %v1915 = vld [vmem:[#allocation2 + $0x15e] sm:$0xff]
    %v1916 = vld [vmem:[#allocation2 + $0x166] sm:$0xff]
    %v1917 = vld [vmem:[#allocation2 + $0x16e] sm:$0xff]
    %v1918 = vld [vmem:[#allocation2 + $0x176] sm:$0xff]
    %v1919 = vld [vmem:[#allocation2 + $0x17e] sm:$0xff]
    %v1920 = vld [vmem:[#allocation2 + $0x186] sm:$0xff]
    %v1921 = vld [vmem:[#allocation2 + $0x18e] sm:$0xff]
    %v1922 = vld [vmem:[#allocation2 + $0x196] sm:$0xff]
    %v1923 = vld [vmem:[#allocation2 + $0x19e] sm:$0xff]
    %v1924 = vld [vmem:[#allocation2 + $0x1a6] sm:$0xff]
    %v1925 = vld [vmem:[#allocation2 + $0x1ae] sm:$0xff]
    %v1926 = vld [vmem:[#allocation2 + $0x1b6] sm:$0xff]
    %v1927 = vld [vmem:[#allocation2 + $0x1be] sm:$0xff]
    %v1928 = vld [vmem:[#allocation2 + $0x1c6] sm:$0xff]
    %v1929 = vld [vmem:[#allocation2 + $0x1ce] sm:$0xff]
    %v1930 = vld [vmem:[#allocation2 + $0x1d6] sm:$0xff]
    %v1931 = vld [vmem:[#allocation2 + $0x1de] sm:$0xff]
    %v1932 = vld [vmem:[#allocation2 + $0x1e6] sm:$0xff]
    %v1933 = vld [vmem:[#allocation2 + $0x1ee] sm:$0xff]
    %v1934 = vld [vmem:[#allocation2 + $0x1f6] sm:$0xff]
    %v1935 = vld [vmem:[#allocation2 + $0x1fe] sm:$0xff]
    %v1936 = vld [vmem:[#allocation2 + $0x206] sm:$0xff]
    %v1937 = vld [vmem:[#allocation2 + $0x20e] sm:$0xff]
    %v1938 = vld [vmem:[#allocation2 + $0x216] sm:$0xff]
    %v1939 = vld [vmem:[#allocation2 + $0x21e] sm:$0xff]
    %v1940 = vld [vmem:[#allocation2 + $0x226] sm:$0xff]
    %v1941 = vld [vmem:[#allocation2 + $0x22e] sm:$0xff]
    %v1942 = vld [vmem:[#allocation2 + $0x236] sm:$0xff]
    %v1943 = vld [vmem:[#allocation2 + $0x23e] sm:$0xff]
    %v1944 = vld [vmem:[#allocation2 + $0x246] sm:$0xff]
    %v1945 = vld [vmem:[#allocation2 + $0x24e] sm:$0xff]
    %v1946 = vld [vmem:[#allocation2 + $0x256] sm:$0xff]
    %v1947 = vld [vmem:[#allocation2 + $0x25e] sm:$0xff]
    %v1948 = vld [vmem:[#allocation2 + $0x266] sm:$0xff]
    %v1949 = vld [vmem:[#allocation2 + $0x26e] sm:$0xff]
    %v1950 = vld [vmem:[#allocation2 + $0x276] sm:$0xff]
    %v1951 = vld [vmem:[#allocation2 + $0x27e] sm:$0xff]
    %v1952 = vld [vmem:[#allocation2 + $0x286] sm:$0xff]
    %s1953 = scalar_lea.vmem [#allocation6], 128
    %v1954 = vld [vmem:[%s1953] sm:$0xff]
    %v1955 = vld [vmem:[%s1953 + $0x8] sm:$0xff]
    %v1956 = vld [vmem:[%s1953 + $0x10] sm:$0xff]
    %v1957 = vld [vmem:[%s1953 + $0x18] sm:$0xff]
    %v1958 = vld [vmem:[%s1953 + $0x20] sm:$0xff]
    %v1959 = vld [vmem:[%s1953 + $0x28] sm:$0xff]
    %v1960 = vld [vmem:[%s1953 + $0x30] sm:$0xff]
    %v1961 = vld [vmem:[%s1953 + $0x38] sm:$0xff]
    %v1962 = vld [vmem:[%s1953 + $0x40] sm:$0xff]
    %v1963 = vld [vmem:[%s1953 + $0x48] sm:$0xff]
    %v1964 = vld [vmem:[%s1953 + $0x50] sm:$0xff]
    %v1965 = vld [vmem:[%s1953 + $0x58] sm:$0xff]
    %v1966 = vld [vmem:[%s1953 + $0x60] sm:$0xff]
    %v1967 = vld [vmem:[%s1953 + $0x68] sm:$0xff]
    %v1968 = vld [vmem:[%s1953 + $0x70] sm:$0xff]
    %v1969 = vld [vmem:[%s1953 + $0x78] sm:$0xff]
    %1970 = vmatpush.msra.mxu0 %v1969
    %1971 = vmatpush.msra.mxu0 %v1968
    %1972 = vmatpush.msra.mxu0 %v1967
    %1973 = vmatpush.msra.mxu0 %v1966
    %1974 = vmatpush.msra.mxu0 %v1965
    %1975 = vmatpush.msra.mxu0 %v1964
    %1976 = vmatpush.msra.mxu0 %v1963
    %1977 = vmatpush.msra.mxu0 %v1962
    %1978 = vmatpush.msra.mxu0 %v1961
    %1979 = vmatpush.msra.mxu0 %v1960
    %1980 = vmatpush.msra.mxu0 %v1959
    %1981 = vmatpush.msra.mxu0 %v1958
    %1982 = vmatpush.msra.mxu0 %v1957
    %1983 = vmatpush.msra.mxu0 %v1956
    %1984 = vmatpush.msra.mxu0 %v1955
    %1985 = vmatpush.msra.mxu0 %v1954
    %1986 = vmatmul.f32.gmra.mxu0 %v1872
    %v1987 = vpop.f32.mrf.mxu0
    %v1988 = vadd.f32 0.0, %v1987
    %1989 = vmatmul.f32.gmra.mxu0 %v1873
    %v1990 = vpop.f32.mrf.mxu0
    %v1991 = vadd.f32 0.0, %v1990
    %1992 = vmatmul.f32.gmra.mxu0 %v1874
    %v1993 = vpop.f32.mrf.mxu0
    %v1994 = vadd.f32 0.0, %v1993
    %1995 = vmatmul.f32.gmra.mxu0 %v1875
    %v1996 = vpop.f32.mrf.mxu0
    %v1997 = vadd.f32 0.0, %v1996
    %1998 = vmatmul.f32.gmra.mxu0 %v1876
    %v1999 = vpop.f32.mrf.mxu0
    %v2000 = vadd.f32 0.0, %v1999
    %2001 = vmatmul.f32.gmra.mxu0 %v1877
    %v2002 = vpop.f32.mrf.mxu0
    %v2003 = vadd.f32 0.0, %v2002
    %2004 = vmatmul.f32.gmra.mxu0 %v1878
    %v2005 = vpop.f32.mrf.mxu0
    %v2006 = vadd.f32 0.0, %v2005
    %2007 = vmatmul.f32.gmra.mxu0 %v1879
    %v2008 = vpop.f32.mrf.mxu0
    %v2009 = vadd.f32 0.0, %v2008
    %2010 = vmatmul.f32.gmra.mxu0 %v1880
    %v2011 = vpop.f32.mrf.mxu0
    %v2012 = vadd.f32 0.0, %v2011
    %2013 = vmatmul.f32.gmra.mxu0 %v1881
    %v2014 = vpop.f32.mrf.mxu0
    %v2015 = vadd.f32 0.0, %v2014
    %2016 = vmatmul.f32.gmra.mxu0 %v1882
    %v2017 = vpop.f32.mrf.mxu0
    %v2018 = vadd.f32 0.0, %v2017
    %2019 = vmatmul.f32.gmra.mxu0 %v1883
    %v2020 = vpop.f32.mrf.mxu0
    %v2021 = vadd.f32 0.0, %v2020
    %2022 = vmatmul.f32.gmra.mxu0 %v1884
    %v2023 = vpop.f32.mrf.mxu0
    %v2024 = vadd.f32 0.0, %v2023
    %2025 = vmatmul.f32.gmra.mxu0 %v1885
    %v2026 = vpop.f32.mrf.mxu0
    %v2027 = vadd.f32 0.0, %v2026
    %2028 = vmatmul.f32.gmra.mxu0 %v1886
    %v2029 = vpop.f32.mrf.mxu0
    %v2030 = vadd.f32 0.0, %v2029
    %2031 = vmatmul.f32.gmra.mxu0 %v1887
    %v2032 = vpop.f32.mrf.mxu0
    %v2033 = vadd.f32 0.0, %v2032
    %2034 = vmatmul.f32.gmra.mxu0 %v1888
    %v2035 = vpop.f32.mrf.mxu0
    %v2036 = vadd.f32 0.0, %v2035
    %2037 = vmatmul.f32.gmra.mxu0 %v1889
    %v2038 = vpop.f32.mrf.mxu0
    %v2039 = vadd.f32 0.0, %v2038
    %2040 = vmatmul.f32.gmra.mxu0 %v1890
    %v2041 = vpop.f32.mrf.mxu0
    %v2042 = vadd.f32 0.0, %v2041
    %2043 = vmatmul.f32.gmra.mxu0 %v1891
    %v2044 = vpop.f32.mrf.mxu0
    %v2045 = vadd.f32 0.0, %v2044
    %2046 = vmatmul.f32.gmra.mxu0 %v1892
    %v2047 = vpop.f32.mrf.mxu0
    %v2048 = vadd.f32 0.0, %v2047
    %2049 = vmatmul.f32.gmra.mxu0 %v1893
    %v2050 = vpop.f32.mrf.mxu0
    %v2051 = vadd.f32 0.0, %v2050
    %2052 = vmatmul.f32.gmra.mxu0 %v1894
    %v2053 = vpop.f32.mrf.mxu0
    %v2054 = vadd.f32 0.0, %v2053
    %2055 = vmatmul.f32.gmra.mxu0 %v1895
    %v2056 = vpop.f32.mrf.mxu0
    %v2057 = vadd.f32 0.0, %v2056
    %2058 = vmatmul.f32.gmra.mxu0 %v1896
    %v2059 = vpop.f32.mrf.mxu0
    %v2060 = vadd.f32 0.0, %v2059
    %2061 = vmatmul.f32.gmra.mxu0 %v1897
    %v2062 = vpop.f32.mrf.mxu0
    %v2063 = vadd.f32 0.0, %v2062
    %2064 = vmatmul.f32.gmra.mxu0 %v1898
    %v2065 = vpop.f32.mrf.mxu0
    %v2066 = vadd.f32 0.0, %v2065
    %2067 = vmatmul.f32.gmra.mxu0 %v1899
    %v2068 = vpop.f32.mrf.mxu0
    %v2069 = vadd.f32 0.0, %v2068
    %2070 = vmatmul.f32.gmra.mxu0 %v1900
    %v2071 = vpop.f32.mrf.mxu0
    %v2072 = vadd.f32 0.0, %v2071
    %2073 = vmatmul.f32.gmra.mxu0 %v1901
    %v2074 = vpop.f32.mrf.mxu0
    %v2075 = vadd.f32 0.0, %v2074
    %2076 = vmatmul.f32.gmra.mxu0 %v1902
    %v2077 = vpop.f32.mrf.mxu0
    %v2078 = vadd.f32 0.0, %v2077
    %2079 = vmatmul.f32.gmra.mxu0 %v1903
    %v2080 = vpop.f32.mrf.mxu0
    %v2081 = vadd.f32 0.0, %v2080
    %2082 = vmatmul.f32.gmra.mxu0 %v1904
    %v2083 = vpop.f32.mrf.mxu0
    %v2084 = vadd.f32 0.0, %v2083
    %2085 = vmatmul.f32.gmra.mxu0 %v1905
    %v2086 = vpop.f32.mrf.mxu0
    %v2087 = vadd.f32 0.0, %v2086
    %2088 = vmatmul.f32.gmra.mxu0 %v1906
    %v2089 = vpop.f32.mrf.mxu0
    %v2090 = vadd.f32 0.0, %v2089
    %2091 = vmatmul.f32.gmra.mxu0 %v1907
    %v2092 = vpop.f32.mrf.mxu0
    %v2093 = vadd.f32 0.0, %v2092
    %2094 = vmatmul.f32.gmra.mxu0 %v1908
    %v2095 = vpop.f32.mrf.mxu0
    %v2096 = vadd.f32 0.0, %v2095
    %2097 = vmatmul.f32.gmra.mxu0 %v1909
    %v2098 = vpop.f32.mrf.mxu0
    %v2099 = vadd.f32 0.0, %v2098
    %2100 = vmatmul.f32.gmra.mxu0 %v1910
    %v2101 = vpop.f32.mrf.mxu0
    %v2102 = vadd.f32 0.0, %v2101
    %2103 = vmatmul.f32.gmra.mxu0 %v1911
    %v2104 = vpop.f32.mrf.mxu0
    %v2105 = vadd.f32 0.0, %v2104
    %2106 = vmatmul.f32.gmra.mxu0 %v1912
    %v2107 = vpop.f32.mrf.mxu0
    %v2108 = vadd.f32 0.0, %v2107
    %2109 = vmatmul.f32.gmra.mxu0 %v1913
    %v2110 = vpop.f32.mrf.mxu0
    %v2111 = vadd.f32 0.0, %v2110
    %2112 = vmatmul.f32.gmra.mxu0 %v1914
    %v2113 = vpop.f32.mrf.mxu0
    %v2114 = vadd.f32 0.0, %v2113
    %2115 = vmatmul.f32.gmra.mxu0 %v1915
    %v2116 = vpop.f32.mrf.mxu0
    %v2117 = vadd.f32 0.0, %v2116
    %2118 = vmatmul.f32.gmra.mxu0 %v1916
    %v2119 = vpop.f32.mrf.mxu0
    %v2120 = vadd.f32 0.0, %v2119
    %2121 = vmatmul.f32.gmra.mxu0 %v1917
    %v2122 = vpop.f32.mrf.mxu0
    %v2123 = vadd.f32 0.0, %v2122
    %2124 = vmatmul.f32.gmra.mxu0 %v1918
    %v2125 = vpop.f32.mrf.mxu0
    %v2126 = vadd.f32 0.0, %v2125
    %2127 = vmatmul.f32.gmra.mxu0 %v1919
    %v2128 = vpop.f32.mrf.mxu0
    %v2129 = vadd.f32 0.0, %v2128
    %2130 = vmatmul.f32.gmra.mxu0 %v1920
    %v2131 = vpop.f32.mrf.mxu0
    %v2132 = vadd.f32 0.0, %v2131
    %2133 = vmatmul.f32.gmra.mxu0 %v1921
    %v2134 = vpop.f32.mrf.mxu0
    %v2135 = vadd.f32 0.0, %v2134
    %2136 = vmatmul.f32.gmra.mxu0 %v1922
    %v2137 = vpop.f32.mrf.mxu0
    %v2138 = vadd.f32 0.0, %v2137
    %2139 = vmatmul.f32.gmra.mxu0 %v1923
    %v2140 = vpop.f32.mrf.mxu0
    %v2141 = vadd.f32 0.0, %v2140
    %2142 = vmatmul.f32.gmra.mxu0 %v1924
    %v2143 = vpop.f32.mrf.mxu0
    %v2144 = vadd.f32 0.0, %v2143
    %2145 = vmatmul.f32.gmra.mxu0 %v1925
    %v2146 = vpop.f32.mrf.mxu0
    %v2147 = vadd.f32 0.0, %v2146
    %2148 = vmatmul.f32.gmra.mxu0 %v1926
    %v2149 = vpop.f32.mrf.mxu0
    %v2150 = vadd.f32 0.0, %v2149
    %2151 = vmatmul.f32.gmra.mxu0 %v1927
    %v2152 = vpop.f32.mrf.mxu0
    %v2153 = vadd.f32 0.0, %v2152
    %2154 = vmatmul.f32.gmra.mxu0 %v1928
    %v2155 = vpop.f32.mrf.mxu0
    %v2156 = vadd.f32 0.0, %v2155
    %2157 = vmatmul.f32.gmra.mxu0 %v1929
    %v2158 = vpop.f32.mrf.mxu0
    %v2159 = vadd.f32 0.0, %v2158
    %2160 = vmatmul.f32.gmra.mxu0 %v1930
    %v2161 = vpop.f32.mrf.mxu0
    %v2162 = vadd.f32 0.0, %v2161
    %2163 = vmatmul.f32.gmra.mxu0 %v1931
    %v2164 = vpop.f32.mrf.mxu0
    %v2165 = vadd.f32 0.0, %v2164
    %2166 = vmatmul.f32.gmra.mxu0 %v1932
    %v2167 = vpop.f32.mrf.mxu0
    %v2168 = vadd.f32 0.0, %v2167
    %2169 = vmatmul.f32.gmra.mxu0 %v1933
    %v2170 = vpop.f32.mrf.mxu0
    %v2171 = vadd.f32 0.0, %v2170
    %2172 = vmatmul.f32.gmra.mxu0 %v1934
    %v2173 = vpop.f32.mrf.mxu0
    %v2174 = vadd.f32 0.0, %v2173
    %2175 = vmatmul.f32.gmra.mxu0 %v1935
    %v2176 = vpop.f32.mrf.mxu0
    %v2177 = vadd.f32 0.0, %v2176
    %2178 = vmatmul.f32.gmra.mxu0 %v1936
    %v2179 = vpop.f32.mrf.mxu0
    %v2180 = vadd.f32 0.0, %v2179
    %2181 = vmatmul.f32.gmra.mxu0 %v1937
    %v2182 = vpop.f32.mrf.mxu0
    %v2183 = vadd.f32 0.0, %v2182
    %2184 = vmatmul.f32.gmra.mxu0 %v1938
    %v2185 = vpop.f32.mrf.mxu0
    %v2186 = vadd.f32 0.0, %v2185
    %2187 = vmatmul.f32.gmra.mxu0 %v1939
    %v2188 = vpop.f32.mrf.mxu0
    %v2189 = vadd.f32 0.0, %v2188
    %2190 = vmatmul.f32.gmra.mxu0 %v1940
    %v2191 = vpop.f32.mrf.mxu0
    %v2192 = vadd.f32 0.0, %v2191
    %2193 = vmatmul.f32.gmra.mxu0 %v1941
    %v2194 = vpop.f32.mrf.mxu0
    %v2195 = vadd.f32 0.0, %v2194
    %2196 = vmatmul.f32.gmra.mxu0 %v1942
    %v2197 = vpop.f32.mrf.mxu0
    %v2198 = vadd.f32 0.0, %v2197
    %2199 = vmatmul.f32.gmra.mxu0 %v1943
    %v2200 = vpop.f32.mrf.mxu0
    %v2201 = vadd.f32 0.0, %v2200
    %2202 = vmatmul.f32.gmra.mxu0 %v1944
    %v2203 = vpop.f32.mrf.mxu0
    %v2204 = vadd.f32 0.0, %v2203
    %2205 = vmatmul.f32.gmra.mxu0 %v1945
    %v2206 = vpop.f32.mrf.mxu0
    %v2207 = vadd.f32 0.0, %v2206
    %2208 = vmatmul.f32.gmra.mxu0 %v1946
    %v2209 = vpop.f32.mrf.mxu0
    %v2210 = vadd.f32 0.0, %v2209
    %2211 = vmatmul.f32.gmra.mxu0 %v1947
    %v2212 = vpop.f32.mrf.mxu0
    %v2213 = vadd.f32 0.0, %v2212
    %2214 = vmatmul.f32.gmra.mxu0 %v1948
    %v2215 = vpop.f32.mrf.mxu0
    %v2216 = vadd.f32 0.0, %v2215
    %2217 = vmatmul.f32.gmra.mxu0 %v1949
    %v2218 = vpop.f32.mrf.mxu0
    %v2219 = vadd.f32 0.0, %v2218
    %2220 = vmatmul.f32.gmra.mxu0 %v1950
    %v2221 = vpop.f32.mrf.mxu0
    %v2222 = vadd.f32 0.0, %v2221
    %2223 = vmatmul.f32.gmra.mxu0 %v1951
    %v2224 = vpop.f32.mrf.mxu0
    %v2225 = vadd.f32 0.0, %v2224
    %2226 = vmatmul.f32.gmra.mxu0 %v1952
    %v2227 = vpop.f32.mrf.mxu0
    %v2228 = vadd.f32 0.0, %v2227
    %2229 = vdwg.mxu0
    %2230 = vmatpush.msra.mxu0 %v1871
    %2231 = vmatpush.msra.mxu0 %v1870
    %2232 = vmatpush.msra.mxu0 %v1869
    %2233 = vmatpush.msra.mxu0 %v1868
    %2234 = vmatpush.msra.mxu0 %v1867
    %2235 = vmatpush.msra.mxu0 %v1866
    %2236 = vmatpush.msra.mxu0 %v1865
    %2237 = vmatpush.msra.mxu0 %v1864
    %2238 = vmatpush.msra.mxu0 %v1863
    %2239 = vmatpush.msra.mxu0 %v1862
    %2240 = vmatpush.msra.mxu0 %v1861
    %2241 = vmatpush.msra.mxu0 %v1860
    %2242 = vmatpush.msra.mxu0 %v1859
    %2243 = vmatpush.msra.mxu0 %v1858
    %2244 = vmatpush.msra.mxu0 %v1857
    %2245 = vmatpush.msra.mxu0 %v1856
    %2246 = vmatmul.f32.gmra.mxu0 %v1775
    %v2247 = vpop.f32.mrf.mxu0
    %v2248 = vadd.f32 %v1988, %v2247
    %2249 = vmatmul.f32.gmra.mxu0 %v1776
    %v2250 = vpop.f32.mrf.mxu0
    %v2251 = vadd.f32 %v1991, %v2250
    %2252 = vmatmul.f32.gmra.mxu0 %v1777
    %v2253 = vpop.f32.mrf.mxu0
    %v2254 = vadd.f32 %v1994, %v2253
    %2255 = vmatmul.f32.gmra.mxu0 %v1778
    %v2256 = vpop.f32.mrf.mxu0
    %v2257 = vadd.f32 %v1997, %v2256
    %2258 = vmatmul.f32.gmra.mxu0 %v1779
    %v2259 = vpop.f32.mrf.mxu0
    %v2260 = vadd.f32 %v2000, %v2259
    %2261 = vmatmul.f32.gmra.mxu0 %v1780
    %v2262 = vpop.f32.mrf.mxu0
    %v2263 = vadd.f32 %v2003, %v2262
    %2264 = vmatmul.f32.gmra.mxu0 %v1781
    %v2265 = vpop.f32.mrf.mxu0
    %v2266 = vadd.f32 %v2006, %v2265
    %2267 = vmatmul.f32.gmra.mxu0 %v1782
    %v2268 = vpop.f32.mrf.mxu0
    %v2269 = vadd.f32 %v2009, %v2268
    %2270 = vmatmul.f32.gmra.mxu0 %v1783
    %v2271 = vpop.f32.mrf.mxu0
    %v2272 = vadd.f32 %v2012, %v2271
    %2273 = vmatmul.f32.gmra.mxu0 %v1784
    %v2274 = vpop.f32.mrf.mxu0
    %v2275 = vadd.f32 %v2015, %v2274
    %2276 = vmatmul.f32.gmra.mxu0 %v1785
    %v2277 = vpop.f32.mrf.mxu0
    %v2278 = vadd.f32 %v2018, %v2277
    %2279 = vmatmul.f32.gmra.mxu0 %v1786
    %v2280 = vpop.f32.mrf.mxu0
    %v2281 = vadd.f32 %v2021, %v2280
    %2282 = vmatmul.f32.gmra.mxu0 %v1787
    %v2283 = vpop.f32.mrf.mxu0
    %v2284 = vadd.f32 %v2024, %v2283
    %2285 = vmatmul.f32.gmra.mxu0 %v1788
    %v2286 = vpop.f32.mrf.mxu0
    %v2287 = vadd.f32 %v2027, %v2286
    %2288 = vmatmul.f32.gmra.mxu0 %v1789
    %v2289 = vpop.f32.mrf.mxu0
    %v2290 = vadd.f32 %v2030, %v2289
    %2291 = vmatmul.f32.gmra.mxu0 %v1790
    %v2292 = vpop.f32.mrf.mxu0
    %v2293 = vadd.f32 %v2033, %v2292
    %2294 = vmatmul.f32.gmra.mxu0 %v1791
    %v2295 = vpop.f32.mrf.mxu0
    %v2296 = vadd.f32 %v2036, %v2295
    %2297 = vmatmul.f32.gmra.mxu0 %v1792
    %v2298 = vpop.f32.mrf.mxu0
    %v2299 = vadd.f32 %v2039, %v2298
    %2300 = vmatmul.f32.gmra.mxu0 %v1793
    %v2301 = vpop.f32.mrf.mxu0
    %v2302 = vadd.f32 %v2042, %v2301
    %2303 = vmatmul.f32.gmra.mxu0 %v1794
    %v2304 = vpop.f32.mrf.mxu0
    %v2305 = vadd.f32 %v2045, %v2304
    %2306 = vmatmul.f32.gmra.mxu0 %v1795
    %v2307 = vpop.f32.mrf.mxu0
    %v2308 = vadd.f32 %v2048, %v2307
    %2309 = vmatmul.f32.gmra.mxu0 %v1796
    %v2310 = vpop.f32.mrf.mxu0
    %v2311 = vadd.f32 %v2051, %v2310
    %2312 = vmatmul.f32.gmra.mxu0 %v1797
    %v2313 = vpop.f32.mrf.mxu0
    %v2314 = vadd.f32 %v2054, %v2313
    %2315 = vmatmul.f32.gmra.mxu0 %v1798
    %v2316 = vpop.f32.mrf.mxu0
    %v2317 = vadd.f32 %v2057, %v2316
    %2318 = vmatmul.f32.gmra.mxu0 %v1799
    %v2319 = vpop.f32.mrf.mxu0
    %v2320 = vadd.f32 %v2060, %v2319
    %2321 = vmatmul.f32.gmra.mxu0 %v1800
    %v2322 = vpop.f32.mrf.mxu0
    %v2323 = vadd.f32 %v2063, %v2322
    %2324 = vmatmul.f32.gmra.mxu0 %v1801
    %v2325 = vpop.f32.mrf.mxu0
    %v2326 = vadd.f32 %v2066, %v2325
    %2327 = vmatmul.f32.gmra.mxu0 %v1802
    %v2328 = vpop.f32.mrf.mxu0
    %v2329 = vadd.f32 %v2069, %v2328
    %2330 = vmatmul.f32.gmra.mxu0 %v1803
    %v2331 = vpop.f32.mrf.mxu0
    %v2332 = vadd.f32 %v2072, %v2331
    %2333 = vmatmul.f32.gmra.mxu0 %v1804
    %v2334 = vpop.f32.mrf.mxu0
    %v2335 = vadd.f32 %v2075, %v2334
    %2336 = vmatmul.f32.gmra.mxu0 %v1805
    %v2337 = vpop.f32.mrf.mxu0
    %v2338 = vadd.f32 %v2078, %v2337
    %2339 = vmatmul.f32.gmra.mxu0 %v1806
    %v2340 = vpop.f32.mrf.mxu0
    %v2341 = vadd.f32 %v2081, %v2340
    %2342 = vmatmul.f32.gmra.mxu0 %v1807
    %v2343 = vpop.f32.mrf.mxu0
    %v2344 = vadd.f32 %v2084, %v2343
    %2345 = vmatmul.f32.gmra.mxu0 %v1808
    %v2346 = vpop.f32.mrf.mxu0
    %v2347 = vadd.f32 %v2087, %v2346
    %2348 = vmatmul.f32.gmra.mxu0 %v1809
    %v2349 = vpop.f32.mrf.mxu0
    %v2350 = vadd.f32 %v2090, %v2349
    %2351 = vmatmul.f32.gmra.mxu0 %v1810
    %v2352 = vpop.f32.mrf.mxu0
    %v2353 = vadd.f32 %v2093, %v2352
    %2354 = vmatmul.f32.gmra.mxu0 %v1811
    %v2355 = vpop.f32.mrf.mxu0
    %v2356 = vadd.f32 %v2096, %v2355
    %2357 = vmatmul.f32.gmra.mxu0 %v1812
    %v2358 = vpop.f32.mrf.mxu0
    %v2359 = vadd.f32 %v2099, %v2358
    %2360 = vmatmul.f32.gmra.mxu0 %v1813
    %v2361 = vpop.f32.mrf.mxu0
    %v2362 = vadd.f32 %v2102, %v2361
    %2363 = vmatmul.f32.gmra.mxu0 %v1814
    %v2364 = vpop.f32.mrf.mxu0
    %v2365 = vadd.f32 %v2105, %v2364
    %2366 = vmatmul.f32.gmra.mxu0 %v1815
    %v2367 = vpop.f32.mrf.mxu0
    %v2368 = vadd.f32 %v2108, %v2367
    %2369 = vmatmul.f32.gmra.mxu0 %v1816
    %v2370 = vpop.f32.mrf.mxu0
    %v2371 = vadd.f32 %v2111, %v2370
    %2372 = vmatmul.f32.gmra.mxu0 %v1817
    %v2373 = vpop.f32.mrf.mxu0
    %v2374 = vadd.f32 %v2114, %v2373
    %2375 = vmatmul.f32.gmra.mxu0 %v1818
    %v2376 = vpop.f32.mrf.mxu0
    %v2377 = vadd.f32 %v2117, %v2376
    %2378 = vmatmul.f32.gmra.mxu0 %v1819
    %v2379 = vpop.f32.mrf.mxu0
    %v2380 = vadd.f32 %v2120, %v2379
    %2381 = vmatmul.f32.gmra.mxu0 %v1820
    %v2382 = vpop.f32.mrf.mxu0
    %v2383 = vadd.f32 %v2123, %v2382
    %2384 = vmatmul.f32.gmra.mxu0 %v1821
    %v2385 = vpop.f32.mrf.mxu0
    %v2386 = vadd.f32 %v2126, %v2385
    %2387 = vmatmul.f32.gmra.mxu0 %v1822
    %v2388 = vpop.f32.mrf.mxu0
    %v2389 = vadd.f32 %v2129, %v2388
    %2390 = vmatmul.f32.gmra.mxu0 %v1823
    %v2391 = vpop.f32.mrf.mxu0
    %v2392 = vadd.f32 %v2132, %v2391
    %2393 = vmatmul.f32.gmra.mxu0 %v1824
    %v2394 = vpop.f32.mrf.mxu0
    %v2395 = vadd.f32 %v2135, %v2394
    %2396 = vmatmul.f32.gmra.mxu0 %v1825
    %v2397 = vpop.f32.mrf.mxu0
    %v2398 = vadd.f32 %v2138, %v2397
    %2399 = vmatmul.f32.gmra.mxu0 %v1826
    %v2400 = vpop.f32.mrf.mxu0
    %v2401 = vadd.f32 %v2141, %v2400
    %2402 = vmatmul.f32.gmra.mxu0 %v1827
    %v2403 = vpop.f32.mrf.mxu0
    %v2404 = vadd.f32 %v2144, %v2403
    %2405 = vmatmul.f32.gmra.mxu0 %v1828
    %v2406 = vpop.f32.mrf.mxu0
    %v2407 = vadd.f32 %v2147, %v2406
    %2408 = vmatmul.f32.gmra.mxu0 %v1829
    %v2409 = vpop.f32.mrf.mxu0
    %v2410 = vadd.f32 %v2150, %v2409
    %2411 = vmatmul.f32.gmra.mxu0 %v1830
    %v2412 = vpop.f32.mrf.mxu0
    %v2413 = vadd.f32 %v2153, %v2412
    %2414 = vmatmul.f32.gmra.mxu0 %v1831
    %v2415 = vpop.f32.mrf.mxu0
    %v2416 = vadd.f32 %v2156, %v2415
    %2417 = vmatmul.f32.gmra.mxu0 %v1832
    %v2418 = vpop.f32.mrf.mxu0
    %v2419 = vadd.f32 %v2159, %v2418
    %2420 = vmatmul.f32.gmra.mxu0 %v1833
    %v2421 = vpop.f32.mrf.mxu0
    %v2422 = vadd.f32 %v2162, %v2421
    %2423 = vmatmul.f32.gmra.mxu0 %v1834
    %v2424 = vpop.f32.mrf.mxu0
    %v2425 = vadd.f32 %v2165, %v2424
    %2426 = vmatmul.f32.gmra.mxu0 %v1835
    %v2427 = vpop.f32.mrf.mxu0
    %v2428 = vadd.f32 %v2168, %v2427
    %2429 = vmatmul.f32.gmra.mxu0 %v1836
    %v2430 = vpop.f32.mrf.mxu0
    %v2431 = vadd.f32 %v2171, %v2430
    %2432 = vmatmul.f32.gmra.mxu0 %v1837
    %v2433 = vpop.f32.mrf.mxu0
    %v2434 = vadd.f32 %v2174, %v2433
    %2435 = vmatmul.f32.gmra.mxu0 %v1838
    %v2436 = vpop.f32.mrf.mxu0
    %v2437 = vadd.f32 %v2177, %v2436
    %2438 = vmatmul.f32.gmra.mxu0 %v1839
    %v2439 = vpop.f32.mrf.mxu0
    %v2440 = vadd.f32 %v2180, %v2439
    %2441 = vmatmul.f32.gmra.mxu0 %v1840
    %v2442 = vpop.f32.mrf.mxu0
    %v2443 = vadd.f32 %v2183, %v2442
    %2444 = vmatmul.f32.gmra.mxu0 %v1841
    %v2445 = vpop.f32.mrf.mxu0
    %v2446 = vadd.f32 %v2186, %v2445
    %2447 = vmatmul.f32.gmra.mxu0 %v1842
    %v2448 = vpop.f32.mrf.mxu0
    %v2449 = vadd.f32 %v2189, %v2448
    %2450 = vmatmul.f32.gmra.mxu0 %v1843
    %v2451 = vpop.f32.mrf.mxu0
    %v2452 = vadd.f32 %v2192, %v2451
    %2453 = vmatmul.f32.gmra.mxu0 %v1844
    %v2454 = vpop.f32.mrf.mxu0
    %v2455 = vadd.f32 %v2195, %v2454
    %2456 = vmatmul.f32.gmra.mxu0 %v1845
    %v2457 = vpop.f32.mrf.mxu0
    %v2458 = vadd.f32 %v2198, %v2457
    %2459 = vmatmul.f32.gmra.mxu0 %v1846
    %v2460 = vpop.f32.mrf.mxu0
    %v2461 = vadd.f32 %v2201, %v2460
    %2462 = vmatmul.f32.gmra.mxu0 %v1847
    %v2463 = vpop.f32.mrf.mxu0
    %v2464 = vadd.f32 %v2204, %v2463
    %2465 = vmatmul.f32.gmra.mxu0 %v1848
    %v2466 = vpop.f32.mrf.mxu0
    %v2467 = vadd.f32 %v2207, %v2466
    %2468 = vmatmul.f32.gmra.mxu0 %v1849
    %v2469 = vpop.f32.mrf.mxu0
    %v2470 = vadd.f32 %v2210, %v2469
    %2471 = vmatmul.f32.gmra.mxu0 %v1850
    %v2472 = vpop.f32.mrf.mxu0
    %v2473 = vadd.f32 %v2213, %v2472
    %2474 = vmatmul.f32.gmra.mxu0 %v1851
    %v2475 = vpop.f32.mrf.mxu0
    %v2476 = vadd.f32 %v2216, %v2475
    %2477 = vmatmul.f32.gmra.mxu0 %v1852
    %v2478 = vpop.f32.mrf.mxu0
    %v2479 = vadd.f32 %v2219, %v2478
    %2480 = vmatmul.f32.gmra.mxu0 %v1853
    %v2481 = vpop.f32.mrf.mxu0
    %v2482 = vadd.f32 %v2222, %v2481
    %2483 = vmatmul.f32.gmra.mxu0 %v1854
    %v2484 = vpop.f32.mrf.mxu0
    %v2485 = vadd.f32 %v2225, %v2484
    %2486 = vmatmul.f32.gmra.mxu0 %v1855
    %v2487 = vpop.f32.mrf.mxu0
    %v2488 = vadd.f32 %v2228, %v2487
    %2489 = vdwg.mxu0
    %v2490 = vld [vmem:[#allocation2 + $0x7] sm:$0xff]
    %v2491 = vld [vmem:[#allocation2 + $0xf] sm:$0xff]
    %v2492 = vld [vmem:[#allocation2 + $0x17] sm:$0xff]
    %v2493 = vld [vmem:[#allocation2 + $0x1f] sm:$0xff]
    %v2494 = vld [vmem:[#allocation2 + $0x27] sm:$0xff]
    %v2495 = vld [vmem:[#allocation2 + $0x2f] sm:$0xff]
    %v2496 = vld [vmem:[#allocation2 + $0x37] sm:$0xff]
    %v2497 = vld [vmem:[#allocation2 + $0x3f] sm:$0xff]
    %v2498 = vld [vmem:[#allocation2 + $0x47] sm:$0xff]
    %v2499 = vld [vmem:[#allocation2 + $0x4f] sm:$0xff]
    %v2500 = vld [vmem:[#allocation2 + $0x57] sm:$0xff]
    %v2501 = vld [vmem:[#allocation2 + $0x5f] sm:$0xff]
    %v2502 = vld [vmem:[#allocation2 + $0x67] sm:$0xff]
    %v2503 = vld [vmem:[#allocation2 + $0x6f] sm:$0xff]
    %v2504 = vld [vmem:[#allocation2 + $0x77] sm:$0xff]
    %v2505 = vld [vmem:[#allocation2 + $0x7f] sm:$0xff]
    %v2506 = vld [vmem:[#allocation2 + $0x87] sm:$0xff]
    %v2507 = vld [vmem:[#allocation2 + $0x8f] sm:$0xff]
    %v2508 = vld [vmem:[#allocation2 + $0x97] sm:$0xff]
    %v2509 = vld [vmem:[#allocation2 + $0x9f] sm:$0xff]
    %v2510 = vld [vmem:[#allocation2 + $0xa7] sm:$0xff]
    %v2511 = vld [vmem:[#allocation2 + $0xaf] sm:$0xff]
    %v2512 = vld [vmem:[#allocation2 + $0xb7] sm:$0xff]
    %v2513 = vld [vmem:[#allocation2 + $0xbf] sm:$0xff]
    %v2514 = vld [vmem:[#allocation2 + $0xc7] sm:$0xff]
    %v2515 = vld [vmem:[#allocation2 + $0xcf] sm:$0xff]
    %v2516 = vld [vmem:[#allocation2 + $0xd7] sm:$0xff]
    %v2517 = vld [vmem:[#allocation2 + $0xdf] sm:$0xff]
    %v2518 = vld [vmem:[#allocation2 + $0xe7] sm:$0xff]
    %v2519 = vld [vmem:[#allocation2 + $0xef] sm:$0xff]
    %v2520 = vld [vmem:[#allocation2 + $0xf7] sm:$0xff]
    %v2521 = vld [vmem:[#allocation2 + $0xff] sm:$0xff]
    %v2522 = vld [vmem:[#allocation2 + $0x107] sm:$0xff]
    %v2523 = vld [vmem:[#allocation2 + $0x10f] sm:$0xff]
    %v2524 = vld [vmem:[#allocation2 + $0x117] sm:$0xff]
    %v2525 = vld [vmem:[#allocation2 + $0x11f] sm:$0xff]
    %v2526 = vld [vmem:[#allocation2 + $0x127] sm:$0xff]
    %v2527 = vld [vmem:[#allocation2 + $0x12f] sm:$0xff]
    %v2528 = vld [vmem:[#allocation2 + $0x137] sm:$0xff]
    %v2529 = vld [vmem:[#allocation2 + $0x13f] sm:$0xff]
    %v2530 = vld [vmem:[#allocation2 + $0x147] sm:$0xff]
    %v2531 = vld [vmem:[#allocation2 + $0x14f] sm:$0xff]
    %v2532 = vld [vmem:[#allocation2 + $0x157] sm:$0xff]
    %v2533 = vld [vmem:[#allocation2 + $0x15f] sm:$0xff]
    %v2534 = vld [vmem:[#allocation2 + $0x167] sm:$0xff]
    %v2535 = vld [vmem:[#allocation2 + $0x16f] sm:$0xff]
    %v2536 = vld [vmem:[#allocation2 + $0x177] sm:$0xff]
    %v2537 = vld [vmem:[#allocation2 + $0x17f] sm:$0xff]
    %v2538 = vld [vmem:[#allocation2 + $0x187] sm:$0xff]
    %v2539 = vld [vmem:[#allocation2 + $0x18f] sm:$0xff]
    %v2540 = vld [vmem:[#allocation2 + $0x197] sm:$0xff]
    %v2541 = vld [vmem:[#allocation2 + $0x19f] sm:$0xff]
    %v2542 = vld [vmem:[#allocation2 + $0x1a7] sm:$0xff]
    %v2543 = vld [vmem:[#allocation2 + $0x1af] sm:$0xff]
    %v2544 = vld [vmem:[#allocation2 + $0x1b7] sm:$0xff]
    %v2545 = vld [vmem:[#allocation2 + $0x1bf] sm:$0xff]
    %v2546 = vld [vmem:[#allocation2 + $0x1c7] sm:$0xff]
    %v2547 = vld [vmem:[#allocation2 + $0x1cf] sm:$0xff]
    %v2548 = vld [vmem:[#allocation2 + $0x1d7] sm:$0xff]
    %v2549 = vld [vmem:[#allocation2 + $0x1df] sm:$0xff]
    %v2550 = vld [vmem:[#allocation2 + $0x1e7] sm:$0xff]
    %v2551 = vld [vmem:[#allocation2 + $0x1ef] sm:$0xff]
    %v2552 = vld [vmem:[#allocation2 + $0x1f7] sm:$0xff]
    %v2553 = vld [vmem:[#allocation2 + $0x1ff] sm:$0xff]
    %v2554 = vld [vmem:[#allocation2 + $0x207] sm:$0xff]
    %v2555 = vld [vmem:[#allocation2 + $0x20f] sm:$0xff]
    %v2556 = vld [vmem:[#allocation2 + $0x217] sm:$0xff]
    %v2557 = vld [vmem:[#allocation2 + $0x21f] sm:$0xff]
    %v2558 = vld [vmem:[#allocation2 + $0x227] sm:$0xff]
    %v2559 = vld [vmem:[#allocation2 + $0x22f] sm:$0xff]
    %v2560 = vld [vmem:[#allocation2 + $0x237] sm:$0xff]
    %v2561 = vld [vmem:[#allocation2 + $0x23f] sm:$0xff]
    %v2562 = vld [vmem:[#allocation2 + $0x247] sm:$0xff]
    %v2563 = vld [vmem:[#allocation2 + $0x24f] sm:$0xff]
    %v2564 = vld [vmem:[#allocation2 + $0x257] sm:$0xff]
    %v2565 = vld [vmem:[#allocation2 + $0x25f] sm:$0xff]
    %v2566 = vld [vmem:[#allocation2 + $0x267] sm:$0xff]
    %v2567 = vld [vmem:[#allocation2 + $0x26f] sm:$0xff]
    %v2568 = vld [vmem:[#allocation2 + $0x277] sm:$0xff]
    %v2569 = vld [vmem:[#allocation2 + $0x27f] sm:$0xff]
    %v2570 = vld [vmem:[#allocation2 + $0x287] sm:$0xff]
    %s2571 = scalar_lea.vmem [#allocation6], 256
    %v2572 = vld [vmem:[%s2571] sm:$0xff]
    %v2573 = vld [vmem:[%s2571 + $0x8] sm:$0xff]
    %v2574 = vld [vmem:[%s2571 + $0x10] sm:$0xff]
    %v2575 = vld [vmem:[%s2571 + $0x18] sm:$0xff]
    %v2576 = vld [vmem:[%s2571 + $0x20] sm:$0xff]
    %v2577 = vld [vmem:[%s2571 + $0x28] sm:$0xff]
    %v2578 = vld [vmem:[%s2571 + $0x30] sm:$0xff]
    %v2579 = vld [vmem:[%s2571 + $0x38] sm:$0xff]
    %v2580 = vld [vmem:[%s2571 + $0x40] sm:$0xff]
    %v2581 = vld [vmem:[%s2571 + $0x48] sm:$0xff]
    %v2582 = vld [vmem:[%s2571 + $0x50] sm:$0xff]
    %v2583 = vld [vmem:[%s2571 + $0x58] sm:$0xff]
    %v2584 = vld [vmem:[%s2571 + $0x60] sm:$0xff]
    %v2585 = vld [vmem:[%s2571 + $0x68] sm:$0xff]
    %v2586 = vld [vmem:[%s2571 + $0x70] sm:$0xff]
    %v2587 = vld [vmem:[%s2571 + $0x78] sm:$0xff]
    %2588 = vmatpush.msra.mxu0 %v2587
    %2589 = vmatpush.msra.mxu0 %v2586
    %2590 = vmatpush.msra.mxu0 %v2585
    %2591 = vmatpush.msra.mxu0 %v2584
    %2592 = vmatpush.msra.mxu0 %v2583
    %2593 = vmatpush.msra.mxu0 %v2582
    %2594 = vmatpush.msra.mxu0 %v2581
    %2595 = vmatpush.msra.mxu0 %v2580
    %2596 = vmatpush.msra.mxu0 %v2579
    %2597 = vmatpush.msra.mxu0 %v2578
    %2598 = vmatpush.msra.mxu0 %v2577
    %2599 = vmatpush.msra.mxu0 %v2576
    %2600 = vmatpush.msra.mxu0 %v2575
    %2601 = vmatpush.msra.mxu0 %v2574
    %2602 = vmatpush.msra.mxu0 %v2573
    %2603 = vmatpush.msra.mxu0 %v2572
    %2604 = vmatmul.f32.gmra.mxu0 %v2490
    %v2605 = vpop.f32.mrf.mxu0
    %v2606 = vadd.f32 0.0, %v2605
    %2607 = vmatmul.f32.gmra.mxu0 %v2491
    %v2608 = vpop.f32.mrf.mxu0
    %v2609 = vadd.f32 0.0, %v2608
    %2610 = vmatmul.f32.gmra.mxu0 %v2492
    %v2611 = vpop.f32.mrf.mxu0
    %v2612 = vadd.f32 0.0, %v2611
    %2613 = vmatmul.f32.gmra.mxu0 %v2493
    %v2614 = vpop.f32.mrf.mxu0
    %v2615 = vadd.f32 0.0, %v2614
    %2616 = vmatmul.f32.gmra.mxu0 %v2494
    %v2617 = vpop.f32.mrf.mxu0
    %v2618 = vadd.f32 0.0, %v2617
    %2619 = vmatmul.f32.gmra.mxu0 %v2495
    %v2620 = vpop.f32.mrf.mxu0
    %v2621 = vadd.f32 0.0, %v2620
    %2622 = vmatmul.f32.gmra.mxu0 %v2496
    %v2623 = vpop.f32.mrf.mxu0
    %v2624 = vadd.f32 0.0, %v2623
    %2625 = vmatmul.f32.gmra.mxu0 %v2497
    %v2626 = vpop.f32.mrf.mxu0
    %v2627 = vadd.f32 0.0, %v2626
    %2628 = vmatmul.f32.gmra.mxu0 %v2498
    %v2629 = vpop.f32.mrf.mxu0
    %v2630 = vadd.f32 0.0, %v2629
    %2631 = vmatmul.f32.gmra.mxu0 %v2499
    %v2632 = vpop.f32.mrf.mxu0
    %v2633 = vadd.f32 0.0, %v2632
    %2634 = vmatmul.f32.gmra.mxu0 %v2500
    %v2635 = vpop.f32.mrf.mxu0
    %v2636 = vadd.f32 0.0, %v2635
    %2637 = vmatmul.f32.gmra.mxu0 %v2501
    %v2638 = vpop.f32.mrf.mxu0
    %v2639 = vadd.f32 0.0, %v2638
    %2640 = vmatmul.f32.gmra.mxu0 %v2502
    %v2641 = vpop.f32.mrf.mxu0
    %v2642 = vadd.f32 0.0, %v2641
    %2643 = vmatmul.f32.gmra.mxu0 %v2503
    %v2644 = vpop.f32.mrf.mxu0
    %v2645 = vadd.f32 0.0, %v2644
    %2646 = vmatmul.f32.gmra.mxu0 %v2504
    %v2647 = vpop.f32.mrf.mxu0
    %v2648 = vadd.f32 0.0, %v2647
    %2649 = vmatmul.f32.gmra.mxu0 %v2505
    %v2650 = vpop.f32.mrf.mxu0
    %v2651 = vadd.f32 0.0, %v2650
    %2652 = vmatmul.f32.gmra.mxu0 %v2506
    %v2653 = vpop.f32.mrf.mxu0
    %v2654 = vadd.f32 0.0, %v2653
    %2655 = vmatmul.f32.gmra.mxu0 %v2507
    %v2656 = vpop.f32.mrf.mxu0
    %v2657 = vadd.f32 0.0, %v2656
    %2658 = vmatmul.f32.gmra.mxu0 %v2508
    %v2659 = vpop.f32.mrf.mxu0
    %v2660 = vadd.f32 0.0, %v2659
    %2661 = vmatmul.f32.gmra.mxu0 %v2509
    %v2662 = vpop.f32.mrf.mxu0
    %v2663 = vadd.f32 0.0, %v2662
    %2664 = vmatmul.f32.gmra.mxu0 %v2510
    %v2665 = vpop.f32.mrf.mxu0
    %v2666 = vadd.f32 0.0, %v2665
    %2667 = vmatmul.f32.gmra.mxu0 %v2511
    %v2668 = vpop.f32.mrf.mxu0
    %v2669 = vadd.f32 0.0, %v2668
    %2670 = vmatmul.f32.gmra.mxu0 %v2512
    %v2671 = vpop.f32.mrf.mxu0
    %v2672 = vadd.f32 0.0, %v2671
    %2673 = vmatmul.f32.gmra.mxu0 %v2513
    %v2674 = vpop.f32.mrf.mxu0
    %v2675 = vadd.f32 0.0, %v2674
    %2676 = vmatmul.f32.gmra.mxu0 %v2514
    %v2677 = vpop.f32.mrf.mxu0
    %v2678 = vadd.f32 0.0, %v2677
    %2679 = vmatmul.f32.gmra.mxu0 %v2515
    %v2680 = vpop.f32.mrf.mxu0
    %v2681 = vadd.f32 0.0, %v2680
    %2682 = vmatmul.f32.gmra.mxu0 %v2516
    %v2683 = vpop.f32.mrf.mxu0
    %v2684 = vadd.f32 0.0, %v2683
    %2685 = vmatmul.f32.gmra.mxu0 %v2517
    %v2686 = vpop.f32.mrf.mxu0
    %v2687 = vadd.f32 0.0, %v2686
    %2688 = vmatmul.f32.gmra.mxu0 %v2518
    %v2689 = vpop.f32.mrf.mxu0
    %v2690 = vadd.f32 0.0, %v2689
    %2691 = vmatmul.f32.gmra.mxu0 %v2519
    %v2692 = vpop.f32.mrf.mxu0
    %v2693 = vadd.f32 0.0, %v2692
    %2694 = vmatmul.f32.gmra.mxu0 %v2520
    %v2695 = vpop.f32.mrf.mxu0
    %v2696 = vadd.f32 0.0, %v2695
    %2697 = vmatmul.f32.gmra.mxu0 %v2521
    %v2698 = vpop.f32.mrf.mxu0
    %v2699 = vadd.f32 0.0, %v2698
    %2700 = vmatmul.f32.gmra.mxu0 %v2522
    %v2701 = vpop.f32.mrf.mxu0
    %v2702 = vadd.f32 0.0, %v2701
    %2703 = vmatmul.f32.gmra.mxu0 %v2523
    %v2704 = vpop.f32.mrf.mxu0
    %v2705 = vadd.f32 0.0, %v2704
    %2706 = vmatmul.f32.gmra.mxu0 %v2524
    %v2707 = vpop.f32.mrf.mxu0
    %v2708 = vadd.f32 0.0, %v2707
    %2709 = vmatmul.f32.gmra.mxu0 %v2525
    %v2710 = vpop.f32.mrf.mxu0
    %v2711 = vadd.f32 0.0, %v2710
    %2712 = vmatmul.f32.gmra.mxu0 %v2526
    %v2713 = vpop.f32.mrf.mxu0
    %v2714 = vadd.f32 0.0, %v2713
    %2715 = vmatmul.f32.gmra.mxu0 %v2527
    %v2716 = vpop.f32.mrf.mxu0
    %v2717 = vadd.f32 0.0, %v2716
    %2718 = vmatmul.f32.gmra.mxu0 %v2528
    %v2719 = vpop.f32.mrf.mxu0
    %v2720 = vadd.f32 0.0, %v2719
    %2721 = vmatmul.f32.gmra.mxu0 %v2529
    %v2722 = vpop.f32.mrf.mxu0
    %v2723 = vadd.f32 0.0, %v2722
    %2724 = vmatmul.f32.gmra.mxu0 %v2530
    %v2725 = vpop.f32.mrf.mxu0
    %v2726 = vadd.f32 0.0, %v2725
    %2727 = vmatmul.f32.gmra.mxu0 %v2531
    %v2728 = vpop.f32.mrf.mxu0
    %v2729 = vadd.f32 0.0, %v2728
    %2730 = vmatmul.f32.gmra.mxu0 %v2532
    %v2731 = vpop.f32.mrf.mxu0
    %v2732 = vadd.f32 0.0, %v2731
    %2733 = vmatmul.f32.gmra.mxu0 %v2533
    %v2734 = vpop.f32.mrf.mxu0
    %v2735 = vadd.f32 0.0, %v2734
    %2736 = vmatmul.f32.gmra.mxu0 %v2534
    %v2737 = vpop.f32.mrf.mxu0
    %v2738 = vadd.f32 0.0, %v2737
    %2739 = vmatmul.f32.gmra.mxu0 %v2535
    %v2740 = vpop.f32.mrf.mxu0
    %v2741 = vadd.f32 0.0, %v2740
    %2742 = vmatmul.f32.gmra.mxu0 %v2536
    %v2743 = vpop.f32.mrf.mxu0
    %v2744 = vadd.f32 0.0, %v2743
    %2745 = vmatmul.f32.gmra.mxu0 %v2537
    %v2746 = vpop.f32.mrf.mxu0
    %v2747 = vadd.f32 0.0, %v2746
    %2748 = vmatmul.f32.gmra.mxu0 %v2538
    %v2749 = vpop.f32.mrf.mxu0
    %v2750 = vadd.f32 0.0, %v2749
    %2751 = vmatmul.f32.gmra.mxu0 %v2539
    %v2752 = vpop.f32.mrf.mxu0
    %v2753 = vadd.f32 0.0, %v2752
    %2754 = vmatmul.f32.gmra.mxu0 %v2540
    %v2755 = vpop.f32.mrf.mxu0
    %v2756 = vadd.f32 0.0, %v2755
    %2757 = vmatmul.f32.gmra.mxu0 %v2541
    %v2758 = vpop.f32.mrf.mxu0
    %v2759 = vadd.f32 0.0, %v2758
    %2760 = vmatmul.f32.gmra.mxu0 %v2542
    %v2761 = vpop.f32.mrf.mxu0
    %v2762 = vadd.f32 0.0, %v2761
    %2763 = vmatmul.f32.gmra.mxu0 %v2543
    %v2764 = vpop.f32.mrf.mxu0
    %v2765 = vadd.f32 0.0, %v2764
    %2766 = vmatmul.f32.gmra.mxu0 %v2544
    %v2767 = vpop.f32.mrf.mxu0
    %v2768 = vadd.f32 0.0, %v2767
    %2769 = vmatmul.f32.gmra.mxu0 %v2545
    %v2770 = vpop.f32.mrf.mxu0
    %v2771 = vadd.f32 0.0, %v2770
    %2772 = vmatmul.f32.gmra.mxu0 %v2546
    %v2773 = vpop.f32.mrf.mxu0
    %v2774 = vadd.f32 0.0, %v2773
    %2775 = vmatmul.f32.gmra.mxu0 %v2547
    %v2776 = vpop.f32.mrf.mxu0
    %v2777 = vadd.f32 0.0, %v2776
    %2778 = vmatmul.f32.gmra.mxu0 %v2548
    %v2779 = vpop.f32.mrf.mxu0
    %v2780 = vadd.f32 0.0, %v2779
    %2781 = vmatmul.f32.gmra.mxu0 %v2549
    %v2782 = vpop.f32.mrf.mxu0
    %v2783 = vadd.f32 0.0, %v2782
    %2784 = vmatmul.f32.gmra.mxu0 %v2550
    %v2785 = vpop.f32.mrf.mxu0
    %v2786 = vadd.f32 0.0, %v2785
    %2787 = vmatmul.f32.gmra.mxu0 %v2551
    %v2788 = vpop.f32.mrf.mxu0
    %v2789 = vadd.f32 0.0, %v2788
    %2790 = vmatmul.f32.gmra.mxu0 %v2552
    %v2791 = vpop.f32.mrf.mxu0
    %v2792 = vadd.f32 0.0, %v2791
    %2793 = vmatmul.f32.gmra.mxu0 %v2553
    %v2794 = vpop.f32.mrf.mxu0
    %v2795 = vadd.f32 0.0, %v2794
    %2796 = vmatmul.f32.gmra.mxu0 %v2554
    %v2797 = vpop.f32.mrf.mxu0
    %v2798 = vadd.f32 0.0, %v2797
    %2799 = vmatmul.f32.gmra.mxu0 %v2555
    %v2800 = vpop.f32.mrf.mxu0
    %v2801 = vadd.f32 0.0, %v2800
    %2802 = vmatmul.f32.gmra.mxu0 %v2556
    %v2803 = vpop.f32.mrf.mxu0
    %v2804 = vadd.f32 0.0, %v2803
    %2805 = vmatmul.f32.gmra.mxu0 %v2557
    %v2806 = vpop.f32.mrf.mxu0
    %v2807 = vadd.f32 0.0, %v2806
    %2808 = vmatmul.f32.gmra.mxu0 %v2558
    %v2809 = vpop.f32.mrf.mxu0
    %v2810 = vadd.f32 0.0, %v2809
    %2811 = vmatmul.f32.gmra.mxu0 %v2559
    %v2812 = vpop.f32.mrf.mxu0
    %v2813 = vadd.f32 0.0, %v2812
    %2814 = vmatmul.f32.gmra.mxu0 %v2560
    %v2815 = vpop.f32.mrf.mxu0
    %v2816 = vadd.f32 0.0, %v2815
    %2817 = vmatmul.f32.gmra.mxu0 %v2561
    %v2818 = vpop.f32.mrf.mxu0
    %v2819 = vadd.f32 0.0, %v2818
    %2820 = vmatmul.f32.gmra.mxu0 %v2562
    %v2821 = vpop.f32.mrf.mxu0
    %v2822 = vadd.f32 0.0, %v2821
    %2823 = vmatmul.f32.gmra.mxu0 %v2563
    %v2824 = vpop.f32.mrf.mxu0
    %v2825 = vadd.f32 0.0, %v2824
    %2826 = vmatmul.f32.gmra.mxu0 %v2564
    %v2827 = vpop.f32.mrf.mxu0
    %v2828 = vadd.f32 0.0, %v2827
    %2829 = vmatmul.f32.gmra.mxu0 %v2565
    %v2830 = vpop.f32.mrf.mxu0
    %v2831 = vadd.f32 0.0, %v2830
    %2832 = vmatmul.f32.gmra.mxu0 %v2566
    %v2833 = vpop.f32.mrf.mxu0
    %v2834 = vadd.f32 0.0, %v2833
    %2835 = vmatmul.f32.gmra.mxu0 %v2567
    %v2836 = vpop.f32.mrf.mxu0
    %v2837 = vadd.f32 0.0, %v2836
    %2838 = vmatmul.f32.gmra.mxu0 %v2568
    %v2839 = vpop.f32.mrf.mxu0
    %v2840 = vadd.f32 0.0, %v2839
    %2841 = vmatmul.f32.gmra.mxu0 %v2569
    %v2842 = vpop.f32.mrf.mxu0
    %v2843 = vadd.f32 0.0, %v2842
    %2844 = vmatmul.f32.gmra.mxu0 %v2570
    %v2845 = vpop.f32.mrf.mxu0
    %v2846 = vadd.f32 0.0, %v2845
    %2847 = vdwg.mxu0
    %v2848 = vadd.f32 %v2248, %v2606
    %v2849 = vadd.f32 %v2251, %v2609
    %v2850 = vadd.f32 %v2254, %v2612
    %v2851 = vadd.f32 %v2257, %v2615
    %v2852 = vadd.f32 %v2260, %v2618
    %v2853 = vadd.f32 %v2263, %v2621
    %v2854 = vadd.f32 %v2266, %v2624
    %v2855 = vadd.f32 %v2269, %v2627
    %v2856 = vadd.f32 %v2272, %v2630
    %v2857 = vadd.f32 %v2275, %v2633
    %v2858 = vadd.f32 %v2278, %v2636
    %v2859 = vadd.f32 %v2281, %v2639
    %v2860 = vadd.f32 %v2284, %v2642
    %v2861 = vadd.f32 %v2287, %v2645
    %v2862 = vadd.f32 %v2290, %v2648
    %v2863 = vadd.f32 %v2293, %v2651
    %v2864 = vadd.f32 %v2296, %v2654
    %v2865 = vadd.f32 %v2299, %v2657
    %v2866 = vadd.f32 %v2302, %v2660
    %v2867 = vadd.f32 %v2305, %v2663
    %v2868 = vadd.f32 %v2308, %v2666
    %v2869 = vadd.f32 %v2311, %v2669
    %v2870 = vadd.f32 %v2314, %v2672
    %v2871 = vadd.f32 %v2317, %v2675
    %v2872 = vadd.f32 %v2320, %v2678
    %v2873 = vadd.f32 %v2323, %v2681
    %v2874 = vadd.f32 %v2326, %v2684
    %v2875 = vadd.f32 %v2329, %v2687
    %v2876 = vadd.f32 %v2332, %v2690
    %v2877 = vadd.f32 %v2335, %v2693
    %v2878 = vadd.f32 %v2338, %v2696
    %v2879 = vadd.f32 %v2341, %v2699
    %v2880 = vadd.f32 %v2344, %v2702
    %v2881 = vadd.f32 %v2347, %v2705
    %v2882 = vadd.f32 %v2350, %v2708
    %v2883 = vadd.f32 %v2353, %v2711
    %v2884 = vadd.f32 %v2356, %v2714
    %v2885 = vadd.f32 %v2359, %v2717
    %v2886 = vadd.f32 %v2362, %v2720
    %v2887 = vadd.f32 %v2365, %v2723
    %v2888 = vadd.f32 %v2368, %v2726
    %v2889 = vadd.f32 %v2371, %v2729
    %v2890 = vadd.f32 %v2374, %v2732
    %v2891 = vadd.f32 %v2377, %v2735
    %v2892 = vadd.f32 %v2380, %v2738
    %v2893 = vadd.f32 %v2383, %v2741
    %v2894 = vadd.f32 %v2386, %v2744
    %v2895 = vadd.f32 %v2389, %v2747
    %v2896 = vadd.f32 %v2392, %v2750
    %v2897 = vadd.f32 %v2395, %v2753
    %v2898 = vadd.f32 %v2398, %v2756
    %v2899 = vadd.f32 %v2401, %v2759
    %v2900 = vadd.f32 %v2404, %v2762
    %v2901 = vadd.f32 %v2407, %v2765
    %v2902 = vadd.f32 %v2410, %v2768
    %v2903 = vadd.f32 %v2413, %v2771
    %v2904 = vadd.f32 %v2416, %v2774
    %v2905 = vadd.f32 %v2419, %v2777
    %v2906 = vadd.f32 %v2422, %v2780
    %v2907 = vadd.f32 %v2425, %v2783
    %v2908 = vadd.f32 %v2428, %v2786
    %v2909 = vadd.f32 %v2431, %v2789
    %v2910 = vadd.f32 %v2434, %v2792
    %v2911 = vadd.f32 %v2437, %v2795
    %v2912 = vadd.f32 %v2440, %v2798
    %v2913 = vadd.f32 %v2443, %v2801
    %v2914 = vadd.f32 %v2446, %v2804
    %v2915 = vadd.f32 %v2449, %v2807
    %v2916 = vadd.f32 %v2452, %v2810
    %v2917 = vadd.f32 %v2455, %v2813
    %v2918 = vadd.f32 %v2458, %v2816
    %v2919 = vadd.f32 %v2461, %v2819
    %v2920 = vadd.f32 %v2464, %v2822
    %v2921 = vadd.f32 %v2467, %v2825
    %v2922 = vadd.f32 %v2470, %v2828
    %v2923 = vadd.f32 %v2473, %v2831
    %v2924 = vadd.f32 %v2476, %v2834
    %v2925 = vadd.f32 %v2479, %v2837
    %v2926 = vadd.f32 %v2482, %v2840
    %v2927 = vadd.f32 %v2485, %v2843
    %v2928 = vadd.f32 %v2488, %v2846
    %v2929 = vld [vmem:[#allocation2 + $0x17] sm:$0xff]
    %v2930 = vld [vmem:[#allocation2 + $0x1f] sm:$0xff]
    %v2931 = vld [vmem:[#allocation2 + $0x27] sm:$0xff]
    %v2932 = vld [vmem:[#allocation2 + $0x2f] sm:$0xff]
    %v2933 = vld [vmem:[#allocation2 + $0x37] sm:$0xff]
    %v2934 = vld [vmem:[#allocation2 + $0x3f] sm:$0xff]
    %v2935 = vld [vmem:[#allocation2 + $0x47] sm:$0xff]
    %v2936 = vld [vmem:[#allocation2 + $0x4f] sm:$0xff]
    %v2937 = vld [vmem:[#allocation2 + $0x57] sm:$0xff]
    %v2938 = vld [vmem:[#allocation2 + $0x5f] sm:$0xff]
    %v2939 = vld [vmem:[#allocation2 + $0x67] sm:$0xff]
    %v2940 = vld [vmem:[#allocation2 + $0x6f] sm:$0xff]
    %v2941 = vld [vmem:[#allocation2 + $0x77] sm:$0xff]
    %v2942 = vld [vmem:[#allocation2 + $0x7f] sm:$0xff]
    %v2943 = vld [vmem:[#allocation2 + $0x87] sm:$0xff]
    %v2944 = vld [vmem:[#allocation2 + $0x8f] sm:$0xff]
    %v2945 = vld [vmem:[#allocation2 + $0x97] sm:$0xff]
    %v2946 = vld [vmem:[#allocation2 + $0x9f] sm:$0xff]
    %v2947 = vld [vmem:[#allocation2 + $0xa7] sm:$0xff]
    %v2948 = vld [vmem:[#allocation2 + $0xaf] sm:$0xff]
    %v2949 = vld [vmem:[#allocation2 + $0xb7] sm:$0xff]
    %v2950 = vld [vmem:[#allocation2 + $0xbf] sm:$0xff]
    %v2951 = vld [vmem:[#allocation2 + $0xc7] sm:$0xff]
    %v2952 = vld [vmem:[#allocation2 + $0xcf] sm:$0xff]
    %v2953 = vld [vmem:[#allocation2 + $0xd7] sm:$0xff]
    %v2954 = vld [vmem:[#allocation2 + $0xdf] sm:$0xff]
    %v2955 = vld [vmem:[#allocation2 + $0xe7] sm:$0xff]
    %v2956 = vld [vmem:[#allocation2 + $0xef] sm:$0xff]
    %v2957 = vld [vmem:[#allocation2 + $0xf7] sm:$0xff]
    %v2958 = vld [vmem:[#allocation2 + $0xff] sm:$0xff]
    %v2959 = vld [vmem:[#allocation2 + $0x107] sm:$0xff]
    %v2960 = vld [vmem:[#allocation2 + $0x10f] sm:$0xff]
    %v2961 = vld [vmem:[#allocation2 + $0x117] sm:$0xff]
    %v2962 = vld [vmem:[#allocation2 + $0x11f] sm:$0xff]
    %v2963 = vld [vmem:[#allocation2 + $0x127] sm:$0xff]
    %v2964 = vld [vmem:[#allocation2 + $0x12f] sm:$0xff]
    %v2965 = vld [vmem:[#allocation2 + $0x137] sm:$0xff]
    %v2966 = vld [vmem:[#allocation2 + $0x13f] sm:$0xff]
    %v2967 = vld [vmem:[#allocation2 + $0x147] sm:$0xff]
    %v2968 = vld [vmem:[#allocation2 + $0x14f] sm:$0xff]
    %v2969 = vld [vmem:[#allocation2 + $0x157] sm:$0xff]
    %v2970 = vld [vmem:[#allocation2 + $0x15f] sm:$0xff]
    %v2971 = vld [vmem:[#allocation2 + $0x167] sm:$0xff]
    %v2972 = vld [vmem:[#allocation2 + $0x16f] sm:$0xff]
    %v2973 = vld [vmem:[#allocation2 + $0x177] sm:$0xff]
    %v2974 = vld [vmem:[#allocation2 + $0x17f] sm:$0xff]
    %v2975 = vld [vmem:[#allocation2 + $0x187] sm:$0xff]
    %v2976 = vld [vmem:[#allocation2 + $0x18f] sm:$0xff]
    %v2977 = vld [vmem:[#allocation2 + $0x197] sm:$0xff]
    %v2978 = vld [vmem:[#allocation2 + $0x19f] sm:$0xff]
    %v2979 = vld [vmem:[#allocation2 + $0x1a7] sm:$0xff]
    %v2980 = vld [vmem:[#allocation2 + $0x1af] sm:$0xff]
    %v2981 = vld [vmem:[#allocation2 + $0x1b7] sm:$0xff]
    %v2982 = vld [vmem:[#allocation2 + $0x1bf] sm:$0xff]
    %v2983 = vld [vmem:[#allocation2 + $0x1c7] sm:$0xff]
    %v2984 = vld [vmem:[#allocation2 + $0x1cf] sm:$0xff]
    %v2985 = vld [vmem:[#allocation2 + $0x1d7] sm:$0xff]
    %v2986 = vld [vmem:[#allocation2 + $0x1df] sm:$0xff]
    %v2987 = vld [vmem:[#allocation2 + $0x1e7] sm:$0xff]
    %v2988 = vld [vmem:[#allocation2 + $0x1ef] sm:$0xff]
    %v2989 = vld [vmem:[#allocation2 + $0x1f7] sm:$0xff]
    %v2990 = vld [vmem:[#allocation2 + $0x1ff] sm:$0xff]
    %v2991 = vld [vmem:[#allocation2 + $0x207] sm:$0xff]
    %v2992 = vld [vmem:[#allocation2 + $0x20f] sm:$0xff]
    %v2993 = vld [vmem:[#allocation2 + $0x217] sm:$0xff]
    %v2994 = vld [vmem:[#allocation2 + $0x21f] sm:$0xff]
    %v2995 = vld [vmem:[#allocation2 + $0x227] sm:$0xff]
    %v2996 = vld [vmem:[#allocation2 + $0x22f] sm:$0xff]
    %v2997 = vld [vmem:[#allocation2 + $0x237] sm:$0xff]
    %v2998 = vld [vmem:[#allocation2 + $0x23f] sm:$0xff]
    %v2999 = vld [vmem:[#allocation2 + $0x247] sm:$0xff]
    %v3000 = vld [vmem:[#allocation2 + $0x24f] sm:$0xff]
    %v3001 = vld [vmem:[#allocation2 + $0x257] sm:$0xff]
    %v3002 = vld [vmem:[#allocation2 + $0x25f] sm:$0xff]
    %v3003 = vld [vmem:[#allocation2 + $0x267] sm:$0xff]
    %v3004 = vld [vmem:[#allocation2 + $0x26f] sm:$0xff]
    %v3005 = vld [vmem:[#allocation2 + $0x277] sm:$0xff]
    %v3006 = vld [vmem:[#allocation2 + $0x27f] sm:$0xff]
    %v3007 = vld [vmem:[#allocation2 + $0x287] sm:$0xff]
    %v3008 = vld [vmem:[#allocation2 + $0x28f] sm:$0xff]
    %v3009 = vld [vmem:[#allocation2 + $0x297] sm:$0xff]
    %s3010 = scalar_lea.vmem [#allocation6], 384
    %v3011 = vld [vmem:[%s3010] sm:$0xff]
    %v3012 = vld [vmem:[%s3010 + $0x8] sm:$0xff]
    %v3013 = vld [vmem:[%s3010 + $0x10] sm:$0xff]
    %v3014 = vld [vmem:[%s3010 + $0x18] sm:$0xff]
    %v3015 = vld [vmem:[%s3010 + $0x20] sm:$0xff]
    %v3016 = vld [vmem:[%s3010 + $0x28] sm:$0xff]
    %v3017 = vld [vmem:[%s3010 + $0x30] sm:$0xff]
    %v3018 = vld [vmem:[%s3010 + $0x38] sm:$0xff]
    %v3019 = vld [vmem:[%s3010 + $0x40] sm:$0xff]
    %v3020 = vld [vmem:[%s3010 + $0x48] sm:$0xff]
    %v3021 = vld [vmem:[%s3010 + $0x50] sm:$0xff]
    %v3022 = vld [vmem:[%s3010 + $0x58] sm:$0xff]
    %v3023 = vld [vmem:[%s3010 + $0x60] sm:$0xff]
    %v3024 = vld [vmem:[%s3010 + $0x68] sm:$0xff]
    %v3025 = vld [vmem:[%s3010 + $0x70] sm:$0xff]
    %v3026 = vld [vmem:[%s3010 + $0x78] sm:$0xff]
    %3027 = vmatpush.msra.mxu0 %v3026
    %3028 = vmatpush.msra.mxu0 %v3025
    %3029 = vmatpush.msra.mxu0 %v3024
    %3030 = vmatpush.msra.mxu0 %v3023
    %3031 = vmatpush.msra.mxu0 %v3022
    %3032 = vmatpush.msra.mxu0 %v3021
    %3033 = vmatpush.msra.mxu0 %v3020
    %3034 = vmatpush.msra.mxu0 %v3019
    %3035 = vmatpush.msra.mxu0 %v3018
    %3036 = vmatpush.msra.mxu0 %v3017
    %3037 = vmatpush.msra.mxu0 %v3016
    %3038 = vmatpush.msra.mxu0 %v3015
    %3039 = vmatpush.msra.mxu0 %v3014
    %3040 = vmatpush.msra.mxu0 %v3013
    %3041 = vmatpush.msra.mxu0 %v3012
    %3042 = vmatpush.msra.mxu0 %v3011
    %3043 = vmatmul.f32.gmra.mxu0 %v2929
    %v3044 = vpop.f32.mrf.mxu0
    %v3045 = vadd.f32 0.0, %v3044
    %3046 = vmatmul.f32.gmra.mxu0 %v2930
    %v3047 = vpop.f32.mrf.mxu0
    %v3048 = vadd.f32 0.0, %v3047
    %3049 = vmatmul.f32.gmra.mxu0 %v2931
    %v3050 = vpop.f32.mrf.mxu0
    %v3051 = vadd.f32 0.0, %v3050
    %3052 = vmatmul.f32.gmra.mxu0 %v2932
    %v3053 = vpop.f32.mrf.mxu0
    %v3054 = vadd.f32 0.0, %v3053
    %3055 = vmatmul.f32.gmra.mxu0 %v2933
    %v3056 = vpop.f32.mrf.mxu0
    %v3057 = vadd.f32 0.0, %v3056
    %3058 = vmatmul.f32.gmra.mxu0 %v2934
    %v3059 = vpop.f32.mrf.mxu0
    %v3060 = vadd.f32 0.0, %v3059
    %3061 = vmatmul.f32.gmra.mxu0 %v2935
    %v3062 = vpop.f32.mrf.mxu0
    %v3063 = vadd.f32 0.0, %v3062
    %3064 = vmatmul.f32.gmra.mxu0 %v2936
    %v3065 = vpop.f32.mrf.mxu0
    %v3066 = vadd.f32 0.0, %v3065
    %3067 = vmatmul.f32.gmra.mxu0 %v2937
    %v3068 = vpop.f32.mrf.mxu0
    %v3069 = vadd.f32 0.0, %v3068
    %3070 = vmatmul.f32.gmra.mxu0 %v2938
    %v3071 = vpop.f32.mrf.mxu0
    %v3072 = vadd.f32 0.0, %v3071
    %3073 = vmatmul.f32.gmra.mxu0 %v2939
    %v3074 = vpop.f32.mrf.mxu0
    %v3075 = vadd.f32 0.0, %v3074
    %3076 = vmatmul.f32.gmra.mxu0 %v2940
    %v3077 = vpop.f32.mrf.mxu0
    %v3078 = vadd.f32 0.0, %v3077
    %3079 = vmatmul.f32.gmra.mxu0 %v2941
    %v3080 = vpop.f32.mrf.mxu0
    %v3081 = vadd.f32 0.0, %v3080
    %3082 = vmatmul.f32.gmra.mxu0 %v2942
    %v3083 = vpop.f32.mrf.mxu0
    %v3084 = vadd.f32 0.0, %v3083
    %3085 = vmatmul.f32.gmra.mxu0 %v2943
    %v3086 = vpop.f32.mrf.mxu0
    %v3087 = vadd.f32 0.0, %v3086
    %3088 = vmatmul.f32.gmra.mxu0 %v2944
    %v3089 = vpop.f32.mrf.mxu0
    %v3090 = vadd.f32 0.0, %v3089
    %3091 = vmatmul.f32.gmra.mxu0 %v2945
    %v3092 = vpop.f32.mrf.mxu0
    %v3093 = vadd.f32 0.0, %v3092
    %3094 = vmatmul.f32.gmra.mxu0 %v2946
    %v3095 = vpop.f32.mrf.mxu0
    %v3096 = vadd.f32 0.0, %v3095
    %3097 = vmatmul.f32.gmra.mxu0 %v2947
    %v3098 = vpop.f32.mrf.mxu0
    %v3099 = vadd.f32 0.0, %v3098
    %3100 = vmatmul.f32.gmra.mxu0 %v2948
    %v3101 = vpop.f32.mrf.mxu0
    %v3102 = vadd.f32 0.0, %v3101
    %3103 = vmatmul.f32.gmra.mxu0 %v2949
    %v3104 = vpop.f32.mrf.mxu0
    %v3105 = vadd.f32 0.0, %v3104
    %3106 = vmatmul.f32.gmra.mxu0 %v2950
    %v3107 = vpop.f32.mrf.mxu0
    %v3108 = vadd.f32 0.0, %v3107
    %3109 = vmatmul.f32.gmra.mxu0 %v2951
    %v3110 = vpop.f32.mrf.mxu0
    %v3111 = vadd.f32 0.0, %v3110
    %3112 = vmatmul.f32.gmra.mxu0 %v2952
    %v3113 = vpop.f32.mrf.mxu0
    %v3114 = vadd.f32 0.0, %v3113
    %3115 = vmatmul.f32.gmra.mxu0 %v2953
    %v3116 = vpop.f32.mrf.mxu0
    %v3117 = vadd.f32 0.0, %v3116
    %3118 = vmatmul.f32.gmra.mxu0 %v2954
    %v3119 = vpop.f32.mrf.mxu0
    %v3120 = vadd.f32 0.0, %v3119
    %3121 = vmatmul.f32.gmra.mxu0 %v2955
    %v3122 = vpop.f32.mrf.mxu0
    %v3123 = vadd.f32 0.0, %v3122
    %3124 = vmatmul.f32.gmra.mxu0 %v2956
    %v3125 = vpop.f32.mrf.mxu0
    %v3126 = vadd.f32 0.0, %v3125
    %3127 = vmatmul.f32.gmra.mxu0 %v2957
    %v3128 = vpop.f32.mrf.mxu0
    %v3129 = vadd.f32 0.0, %v3128
    %3130 = vmatmul.f32.gmra.mxu0 %v2958
    %v3131 = vpop.f32.mrf.mxu0
    %v3132 = vadd.f32 0.0, %v3131
    %3133 = vmatmul.f32.gmra.mxu0 %v2959
    %v3134 = vpop.f32.mrf.mxu0
    %v3135 = vadd.f32 0.0, %v3134
    %3136 = vmatmul.f32.gmra.mxu0 %v2960
    %v3137 = vpop.f32.mrf.mxu0
    %v3138 = vadd.f32 0.0, %v3137
    %3139 = vmatmul.f32.gmra.mxu0 %v2961
    %v3140 = vpop.f32.mrf.mxu0
    %v3141 = vadd.f32 0.0, %v3140
    %3142 = vmatmul.f32.gmra.mxu0 %v2962
    %v3143 = vpop.f32.mrf.mxu0
    %v3144 = vadd.f32 0.0, %v3143
    %3145 = vmatmul.f32.gmra.mxu0 %v2963
    %v3146 = vpop.f32.mrf.mxu0
    %v3147 = vadd.f32 0.0, %v3146
    %3148 = vmatmul.f32.gmra.mxu0 %v2964
    %v3149 = vpop.f32.mrf.mxu0
    %v3150 = vadd.f32 0.0, %v3149
    %3151 = vmatmul.f32.gmra.mxu0 %v2965
    %v3152 = vpop.f32.mrf.mxu0
    %v3153 = vadd.f32 0.0, %v3152
    %3154 = vmatmul.f32.gmra.mxu0 %v2966
    %v3155 = vpop.f32.mrf.mxu0
    %v3156 = vadd.f32 0.0, %v3155
    %3157 = vmatmul.f32.gmra.mxu0 %v2967
    %v3158 = vpop.f32.mrf.mxu0
    %v3159 = vadd.f32 0.0, %v3158
    %3160 = vmatmul.f32.gmra.mxu0 %v2968
    %v3161 = vpop.f32.mrf.mxu0
    %v3162 = vadd.f32 0.0, %v3161
    %3163 = vmatmul.f32.gmra.mxu0 %v2969
    %v3164 = vpop.f32.mrf.mxu0
    %v3165 = vadd.f32 0.0, %v3164
    %3166 = vmatmul.f32.gmra.mxu0 %v2970
    %v3167 = vpop.f32.mrf.mxu0
    %v3168 = vadd.f32 0.0, %v3167
    %3169 = vmatmul.f32.gmra.mxu0 %v2971
    %v3170 = vpop.f32.mrf.mxu0
    %v3171 = vadd.f32 0.0, %v3170
    %3172 = vmatmul.f32.gmra.mxu0 %v2972
    %v3173 = vpop.f32.mrf.mxu0
    %v3174 = vadd.f32 0.0, %v3173
    %3175 = vmatmul.f32.gmra.mxu0 %v2973
    %v3176 = vpop.f32.mrf.mxu0
    %v3177 = vadd.f32 0.0, %v3176
    %3178 = vmatmul.f32.gmra.mxu0 %v2974
    %v3179 = vpop.f32.mrf.mxu0
    %v3180 = vadd.f32 0.0, %v3179
    %3181 = vmatmul.f32.gmra.mxu0 %v2975
    %v3182 = vpop.f32.mrf.mxu0
    %v3183 = vadd.f32 0.0, %v3182
    %3184 = vmatmul.f32.gmra.mxu0 %v2976
    %v3185 = vpop.f32.mrf.mxu0
    %v3186 = vadd.f32 0.0, %v3185
    %3187 = vmatmul.f32.gmra.mxu0 %v2977
    %v3188 = vpop.f32.mrf.mxu0
    %v3189 = vadd.f32 0.0, %v3188
    %3190 = vmatmul.f32.gmra.mxu0 %v2978
    %v3191 = vpop.f32.mrf.mxu0
    %v3192 = vadd.f32 0.0, %v3191
    %3193 = vmatmul.f32.gmra.mxu0 %v2979
    %v3194 = vpop.f32.mrf.mxu0
    %v3195 = vadd.f32 0.0, %v3194
    %3196 = vmatmul.f32.gmra.mxu0 %v2980
    %v3197 = vpop.f32.mrf.mxu0
    %v3198 = vadd.f32 0.0, %v3197
    %3199 = vmatmul.f32.gmra.mxu0 %v2981
    %v3200 = vpop.f32.mrf.mxu0
    %v3201 = vadd.f32 0.0, %v3200
    %3202 = vmatmul.f32.gmra.mxu0 %v2982
    %v3203 = vpop.f32.mrf.mxu0
    %v3204 = vadd.f32 0.0, %v3203
    %3205 = vmatmul.f32.gmra.mxu0 %v2983
    %v3206 = vpop.f32.mrf.mxu0
    %v3207 = vadd.f32 0.0, %v3206
    %3208 = vmatmul.f32.gmra.mxu0 %v2984
    %v3209 = vpop.f32.mrf.mxu0
    %v3210 = vadd.f32 0.0, %v3209
    %3211 = vmatmul.f32.gmra.mxu0 %v2985
    %v3212 = vpop.f32.mrf.mxu0
    %v3213 = vadd.f32 0.0, %v3212
    %3214 = vmatmul.f32.gmra.mxu0 %v2986
    %v3215 = vpop.f32.mrf.mxu0
    %v3216 = vadd.f32 0.0, %v3215
    %3217 = vmatmul.f32.gmra.mxu0 %v2987
    %v3218 = vpop.f32.mrf.mxu0
    %v3219 = vadd.f32 0.0, %v3218
    %3220 = vmatmul.f32.gmra.mxu0 %v2988
    %v3221 = vpop.f32.mrf.mxu0
    %v3222 = vadd.f32 0.0, %v3221
    %3223 = vmatmul.f32.gmra.mxu0 %v2989
    %v3224 = vpop.f32.mrf.mxu0
    %v3225 = vadd.f32 0.0, %v3224
    %3226 = vmatmul.f32.gmra.mxu0 %v2990
    %v3227 = vpop.f32.mrf.mxu0
    %v3228 = vadd.f32 0.0, %v3227
    %3229 = vmatmul.f32.gmra.mxu0 %v2991
    %v3230 = vpop.f32.mrf.mxu0
    %v3231 = vadd.f32 0.0, %v3230
    %3232 = vmatmul.f32.gmra.mxu0 %v2992
    %v3233 = vpop.f32.mrf.mxu0
    %v3234 = vadd.f32 0.0, %v3233
    %3235 = vmatmul.f32.gmra.mxu0 %v2993
    %v3236 = vpop.f32.mrf.mxu0
    %v3237 = vadd.f32 0.0, %v3236
    %3238 = vmatmul.f32.gmra.mxu0 %v2994
    %v3239 = vpop.f32.mrf.mxu0
    %v3240 = vadd.f32 0.0, %v3239
    %3241 = vmatmul.f32.gmra.mxu0 %v2995
    %v3242 = vpop.f32.mrf.mxu0
    %v3243 = vadd.f32 0.0, %v3242
    %3244 = vmatmul.f32.gmra.mxu0 %v2996
    %v3245 = vpop.f32.mrf.mxu0
    %v3246 = vadd.f32 0.0, %v3245
    %3247 = vmatmul.f32.gmra.mxu0 %v2997
    %v3248 = vpop.f32.mrf.mxu0
    %v3249 = vadd.f32 0.0, %v3248
    %3250 = vmatmul.f32.gmra.mxu0 %v2998
    %v3251 = vpop.f32.mrf.mxu0
    %v3252 = vadd.f32 0.0, %v3251
    %3253 = vmatmul.f32.gmra.mxu0 %v2999
    %v3254 = vpop.f32.mrf.mxu0
    %v3255 = vadd.f32 0.0, %v3254
    %3256 = vmatmul.f32.gmra.mxu0 %v3000
    %v3257 = vpop.f32.mrf.mxu0
    %v3258 = vadd.f32 0.0, %v3257
    %3259 = vmatmul.f32.gmra.mxu0 %v3001
    %v3260 = vpop.f32.mrf.mxu0
    %v3261 = vadd.f32 0.0, %v3260
    %3262 = vmatmul.f32.gmra.mxu0 %v3002
    %v3263 = vpop.f32.mrf.mxu0
    %v3264 = vadd.f32 0.0, %v3263
    %3265 = vmatmul.f32.gmra.mxu0 %v3003
    %v3266 = vpop.f32.mrf.mxu0
    %v3267 = vadd.f32 0.0, %v3266
    %3268 = vmatmul.f32.gmra.mxu0 %v3004
    %v3269 = vpop.f32.mrf.mxu0
    %v3270 = vadd.f32 0.0, %v3269
    %3271 = vmatmul.f32.gmra.mxu0 %v3005
    %v3272 = vpop.f32.mrf.mxu0
    %v3273 = vadd.f32 0.0, %v3272
    %3274 = vmatmul.f32.gmra.mxu0 %v3006
    %v3275 = vpop.f32.mrf.mxu0
    %v3276 = vadd.f32 0.0, %v3275
    %3277 = vmatmul.f32.gmra.mxu0 %v3007
    %v3278 = vpop.f32.mrf.mxu0
    %v3279 = vadd.f32 0.0, %v3278
    %3280 = vmatmul.f32.gmra.mxu0 %v3008
    %v3281 = vpop.f32.mrf.mxu0
    %v3282 = vadd.f32 0.0, %v3281
    %3283 = vmatmul.f32.gmra.mxu0 %v3009
    %v3284 = vpop.f32.mrf.mxu0
    %v3285 = vadd.f32 0.0, %v3284
    %3286 = vdwg.mxu0
    %v3287 = vadd.f32 %v2848, %v3045
    %v3288 = vadd.f32 %v2849, %v3048
    %v3289 = vadd.f32 %v2850, %v3051
    %v3290 = vadd.f32 %v2851, %v3054
    %v3291 = vadd.f32 %v2852, %v3057
    %v3292 = vadd.f32 %v2853, %v3060
    %v3293 = vadd.f32 %v2854, %v3063
    %v3294 = vadd.f32 %v2855, %v3066
    %v3295 = vadd.f32 %v2856, %v3069
    %v3296 = vadd.f32 %v2857, %v3072
    %v3297 = vadd.f32 %v2858, %v3075
    %v3298 = vadd.f32 %v2859, %v3078
    %v3299 = vadd.f32 %v2860, %v3081
    %v3300 = vadd.f32 %v2861, %v3084
    %v3301 = vadd.f32 %v2862, %v3087
    %v3302 = vadd.f32 %v2863, %v3090
    %v3303 = vadd.f32 %v2864, %v3093
    %v3304 = vadd.f32 %v2865, %v3096
    %v3305 = vadd.f32 %v2866, %v3099
    %v3306 = vadd.f32 %v2867, %v3102
    %v3307 = vadd.f32 %v2868, %v3105
    %v3308 = vadd.f32 %v2869, %v3108
    %v3309 = vadd.f32 %v2870, %v3111
    %v3310 = vadd.f32 %v2871, %v3114
    %v3311 = vadd.f32 %v2872, %v3117
    %v3312 = vadd.f32 %v2873, %v3120
    %v3313 = vadd.f32 %v2874, %v3123
    %v3314 = vadd.f32 %v2875, %v3126
    %v3315 = vadd.f32 %v2876, %v3129
    %v3316 = vadd.f32 %v2877, %v3132
    %v3317 = vadd.f32 %v2878, %v3135
    %v3318 = vadd.f32 %v2879, %v3138
    %v3319 = vadd.f32 %v2880, %v3141
    %v3320 = vadd.f32 %v2881, %v3144
    %v3321 = vadd.f32 %v2882, %v3147
    %v3322 = vadd.f32 %v2883, %v3150
    %v3323 = vadd.f32 %v2884, %v3153
    %v3324 = vadd.f32 %v2885, %v3156
    %v3325 = vadd.f32 %v2886, %v3159
    %v3326 = vadd.f32 %v2887, %v3162
    %v3327 = vadd.f32 %v2888, %v3165
    %v3328 = vadd.f32 %v2889, %v3168
    %v3329 = vadd.f32 %v2890, %v3171
    %v3330 = vadd.f32 %v2891, %v3174
    %v3331 = vadd.f32 %v2892, %v3177
    %v3332 = vadd.f32 %v2893, %v3180
    %v3333 = vadd.f32 %v2894, %v3183
    %v3334 = vadd.f32 %v2895, %v3186
    %v3335 = vadd.f32 %v2896, %v3189
    %v3336 = vadd.f32 %v2897, %v3192
    %v3337 = vadd.f32 %v2898, %v3195
    %v3338 = vadd.f32 %v2899, %v3198
    %v3339 = vadd.f32 %v2900, %v3201
    %v3340 = vadd.f32 %v2901, %v3204
    %v3341 = vadd.f32 %v2902, %v3207
    %v3342 = vadd.f32 %v2903, %v3210
    %v3343 = vadd.f32 %v2904, %v3213
    %v3344 = vadd.f32 %v2905, %v3216
    %v3345 = vadd.f32 %v2906, %v3219
    %v3346 = vadd.f32 %v2907, %v3222
    %v3347 = vadd.f32 %v2908, %v3225
    %v3348 = vadd.f32 %v2909, %v3228
    %v3349 = vadd.f32 %v2910, %v3231
    %v3350 = vadd.f32 %v2911, %v3234
    %v3351 = vadd.f32 %v2912, %v3237
    %v3352 = vadd.f32 %v2913, %v3240
    %v3353 = vadd.f32 %v2914, %v3243
    %v3354 = vadd.f32 %v2915, %v3246
    %v3355 = vadd.f32 %v2916, %v3249
    %v3356 = vadd.f32 %v2917, %v3252
    %v3357 = vadd.f32 %v2918, %v3255
    %v3358 = vadd.f32 %v2919, %v3258
    %v3359 = vadd.f32 %v2920, %v3261
    %v3360 = vadd.f32 %v2921, %v3264
    %v3361 = vadd.f32 %v2922, %v3267
    %v3362 = vadd.f32 %v2923, %v3270
    %v3363 = vadd.f32 %v2924, %v3273
    %v3364 = vadd.f32 %v2925, %v3276
    %v3365 = vadd.f32 %v2926, %v3279
    %v3366 = vadd.f32 %v2927, %v3282
    %v3367 = vadd.f32 %v2928, %v3285
    %v3368 = vld [vmem:[#allocation2 + $0x18] sm:$0xff]
    %v3369 = vld [vmem:[#allocation2 + $0x20] sm:$0xff]
    %v3370 = vld [vmem:[#allocation2 + $0x28] sm:$0xff]
    %v3371 = vld [vmem:[#allocation2 + $0x30] sm:$0xff]
    %v3372 = vld [vmem:[#allocation2 + $0x38] sm:$0xff]
    %v3373 = vld [vmem:[#allocation2 + $0x40] sm:$0xff]
    %v3374 = vld [vmem:[#allocation2 + $0x48] sm:$0xff]
    %v3375 = vld [vmem:[#allocation2 + $0x50] sm:$0xff]
    %v3376 = vld [vmem:[#allocation2 + $0x58] sm:$0xff]
    %v3377 = vld [vmem:[#allocation2 + $0x60] sm:$0xff]
    %v3378 = vld [vmem:[#allocation2 + $0x68] sm:$0xff]
    %v3379 = vld [vmem:[#allocation2 + $0x70] sm:$0xff]
    %v3380 = vld [vmem:[#allocation2 + $0x78] sm:$0xff]
    %v3381 = vld [vmem:[#allocation2 + $0x80] sm:$0xff]
    %v3382 = vld [vmem:[#allocation2 + $0x88] sm:$0xff]
    %v3383 = vld [vmem:[#allocation2 + $0x90] sm:$0xff]
    %v3384 = vld [vmem:[#allocation2 + $0x98] sm:$0xff]
    %v3385 = vld [vmem:[#allocation2 + $0xa0] sm:$0xff]
    %v3386 = vld [vmem:[#allocation2 + $0xa8] sm:$0xff]
    %v3387 = vld [vmem:[#allocation2 + $0xb0] sm:$0xff]
    %v3388 = vld [vmem:[#allocation2 + $0xb8] sm:$0xff]
    %v3389 = vld [vmem:[#allocation2 + $0xc0] sm:$0xff]
    %v3390 = vld [vmem:[#allocation2 + $0xc8] sm:$0xff]
    %v3391 = vld [vmem:[#allocation2 + $0xd0] sm:$0xff]
    %v3392 = vld [vmem:[#allocation2 + $0xd8] sm:$0xff]
    %v3393 = vld [vmem:[#allocation2 + $0xe0] sm:$0xff]
    %v3394 = vld [vmem:[#allocation2 + $0xe8] sm:$0xff]
    %v3395 = vld [vmem:[#allocation2 + $0xf0] sm:$0xff]
    %v3396 = vld [vmem:[#allocation2 + $0xf8] sm:$0xff]
    %v3397 = vld [vmem:[#allocation2 + $0x100] sm:$0xff]
    %v3398 = vld [vmem:[#allocation2 + $0x108] sm:$0xff]
    %v3399 = vld [vmem:[#allocation2 + $0x110] sm:$0xff]
    %v3400 = vld [vmem:[#allocation2 + $0x118] sm:$0xff]
    %v3401 = vld [vmem:[#allocation2 + $0x120] sm:$0xff]
    %v3402 = vld [vmem:[#allocation2 + $0x128] sm:$0xff]
    %v3403 = vld [vmem:[#allocation2 + $0x130] sm:$0xff]
    %v3404 = vld [vmem:[#allocation2 + $0x138] sm:$0xff]
    %v3405 = vld [vmem:[#allocation2 + $0x140] sm:$0xff]
    %v3406 = vld [vmem:[#allocation2 + $0x148] sm:$0xff]
    %v3407 = vld [vmem:[#allocation2 + $0x150] sm:$0xff]
    %v3408 = vld [vmem:[#allocation2 + $0x158] sm:$0xff]
    %v3409 = vld [vmem:[#allocation2 + $0x160] sm:$0xff]
    %v3410 = vld [vmem:[#allocation2 + $0x168] sm:$0xff]
    %v3411 = vld [vmem:[#allocation2 + $0x170] sm:$0xff]
    %v3412 = vld [vmem:[#allocation2 + $0x178] sm:$0xff]
    %v3413 = vld [vmem:[#allocation2 + $0x180] sm:$0xff]
    %v3414 = vld [vmem:[#allocation2 + $0x188] sm:$0xff]
    %v3415 = vld [vmem:[#allocation2 + $0x190] sm:$0xff]
    %v3416 = vld [vmem:[#allocation2 + $0x198] sm:$0xff]
    %v3417 = vld [vmem:[#allocation2 + $0x1a0] sm:$0xff]
    %v3418 = vld [vmem:[#allocation2 + $0x1a8] sm:$0xff]
    %v3419 = vld [vmem:[#allocation2 + $0x1b0] sm:$0xff]
    %v3420 = vld [vmem:[#allocation2 + $0x1b8] sm:$0xff]
    %v3421 = vld [vmem:[#allocation2 + $0x1c0] sm:$0xff]
    %v3422 = vld [vmem:[#allocation2 + $0x1c8] sm:$0xff]
    %v3423 = vld [vmem:[#allocation2 + $0x1d0] sm:$0xff]
    %v3424 = vld [vmem:[#allocation2 + $0x1d8] sm:$0xff]
    %v3425 = vld [vmem:[#allocation2 + $0x1e0] sm:$0xff]
    %v3426 = vld [vmem:[#allocation2 + $0x1e8] sm:$0xff]
    %v3427 = vld [vmem:[#allocation2 + $0x1f0] sm:$0xff]
    %v3428 = vld [vmem:[#allocation2 + $0x1f8] sm:$0xff]
    %v3429 = vld [vmem:[#allocation2 + $0x200] sm:$0xff]
    %v3430 = vld [vmem:[#allocation2 + $0x208] sm:$0xff]
    %v3431 = vld [vmem:[#allocation2 + $0x210] sm:$0xff]
    %v3432 = vld [vmem:[#allocation2 + $0x218] sm:$0xff]
    %v3433 = vld [vmem:[#allocation2 + $0x220] sm:$0xff]
    %v3434 = vld [vmem:[#allocation2 + $0x228] sm:$0xff]
    %v3435 = vld [vmem:[#allocation2 + $0x230] sm:$0xff]
    %v3436 = vld [vmem:[#allocation2 + $0x238] sm:$0xff]
    %v3437 = vld [vmem:[#allocation2 + $0x240] sm:$0xff]
    %v3438 = vld [vmem:[#allocation2 + $0x248] sm:$0xff]
    %v3439 = vld [vmem:[#allocation2 + $0x250] sm:$0xff]
    %v3440 = vld [vmem:[#allocation2 + $0x258] sm:$0xff]
    %v3441 = vld [vmem:[#allocation2 + $0x260] sm:$0xff]
    %v3442 = vld [vmem:[#allocation2 + $0x268] sm:$0xff]
    %v3443 = vld [vmem:[#allocation2 + $0x270] sm:$0xff]
    %v3444 = vld [vmem:[#allocation2 + $0x278] sm:$0xff]
    %v3445 = vld [vmem:[#allocation2 + $0x280] sm:$0xff]
    %v3446 = vld [vmem:[#allocation2 + $0x288] sm:$0xff]
    %v3447 = vld [vmem:[#allocation2 + $0x290] sm:$0xff]
    %v3448 = vld [vmem:[#allocation2 + $0x298] sm:$0xff]
    %s3449 = scalar_lea.vmem [#allocation6], 512
    %v3450 = vld [vmem:[%s3449] sm:$0xff]
    %v3451 = vld [vmem:[%s3449 + $0x8] sm:$0xff]
    %v3452 = vld [vmem:[%s3449 + $0x10] sm:$0xff]
    %v3453 = vld [vmem:[%s3449 + $0x18] sm:$0xff]
    %v3454 = vld [vmem:[%s3449 + $0x20] sm:$0xff]
    %v3455 = vld [vmem:[%s3449 + $0x28] sm:$0xff]
    %v3456 = vld [vmem:[%s3449 + $0x30] sm:$0xff]
    %v3457 = vld [vmem:[%s3449 + $0x38] sm:$0xff]
    %v3458 = vld [vmem:[%s3449 + $0x40] sm:$0xff]
    %v3459 = vld [vmem:[%s3449 + $0x48] sm:$0xff]
    %v3460 = vld [vmem:[%s3449 + $0x50] sm:$0xff]
    %v3461 = vld [vmem:[%s3449 + $0x58] sm:$0xff]
    %v3462 = vld [vmem:[%s3449 + $0x60] sm:$0xff]
    %v3463 = vld [vmem:[%s3449 + $0x68] sm:$0xff]
    %v3464 = vld [vmem:[%s3449 + $0x70] sm:$0xff]
    %v3465 = vld [vmem:[%s3449 + $0x78] sm:$0xff]
    %3466 = vmatpush.msra.mxu0 %v3465
    %3467 = vmatpush.msra.mxu0 %v3464
    %3468 = vmatpush.msra.mxu0 %v3463
    %3469 = vmatpush.msra.mxu0 %v3462
    %3470 = vmatpush.msra.mxu0 %v3461
    %3471 = vmatpush.msra.mxu0 %v3460
    %3472 = vmatpush.msra.mxu0 %v3459
    %3473 = vmatpush.msra.mxu0 %v3458
    %3474 = vmatpush.msra.mxu0 %v3457
    %3475 = vmatpush.msra.mxu0 %v3456
    %3476 = vmatpush.msra.mxu0 %v3455
    %3477 = vmatpush.msra.mxu0 %v3454
    %3478 = vmatpush.msra.mxu0 %v3453
    %3479 = vmatpush.msra.mxu0 %v3452
    %3480 = vmatpush.msra.mxu0 %v3451
    %3481 = vmatpush.msra.mxu0 %v3450
    %3482 = vmatmul.f32.gmra.mxu0 %v3368
    %v3483 = vpop.f32.mrf.mxu0
    %v3484 = vadd.f32 0.0, %v3483
    %3485 = vmatmul.f32.gmra.mxu0 %v3369
    %v3486 = vpop.f32.mrf.mxu0
    %v3487 = vadd.f32 0.0, %v3486
    %3488 = vmatmul.f32.gmra.mxu0 %v3370
    %v3489 = vpop.f32.mrf.mxu0
    %v3490 = vadd.f32 0.0, %v3489
    %3491 = vmatmul.f32.gmra.mxu0 %v3371
    %v3492 = vpop.f32.mrf.mxu0
    %v3493 = vadd.f32 0.0, %v3492
    %3494 = vmatmul.f32.gmra.mxu0 %v3372
    %v3495 = vpop.f32.mrf.mxu0
    %v3496 = vadd.f32 0.0, %v3495
    %3497 = vmatmul.f32.gmra.mxu0 %v3373
    %v3498 = vpop.f32.mrf.mxu0
    %v3499 = vadd.f32 0.0, %v3498
    %3500 = vmatmul.f32.gmra.mxu0 %v3374
    %v3501 = vpop.f32.mrf.mxu0
    %v3502 = vadd.f32 0.0, %v3501
    %3503 = vmatmul.f32.gmra.mxu0 %v3375
    %v3504 = vpop.f32.mrf.mxu0
    %v3505 = vadd.f32 0.0, %v3504
    %3506 = vmatmul.f32.gmra.mxu0 %v3376
    %v3507 = vpop.f32.mrf.mxu0
    %v3508 = vadd.f32 0.0, %v3507
    %3509 = vmatmul.f32.gmra.mxu0 %v3377
    %v3510 = vpop.f32.mrf.mxu0
    %v3511 = vadd.f32 0.0, %v3510
    %3512 = vmatmul.f32.gmra.mxu0 %v3378
    %v3513 = vpop.f32.mrf.mxu0
    %v3514 = vadd.f32 0.0, %v3513
    %3515 = vmatmul.f32.gmra.mxu0 %v3379
    %v3516 = vpop.f32.mrf.mxu0
    %v3517 = vadd.f32 0.0, %v3516
    %3518 = vmatmul.f32.gmra.mxu0 %v3380
    %v3519 = vpop.f32.mrf.mxu0
    %v3520 = vadd.f32 0.0, %v3519
    %3521 = vmatmul.f32.gmra.mxu0 %v3381
    %v3522 = vpop.f32.mrf.mxu0
    %v3523 = vadd.f32 0.0, %v3522
    %3524 = vmatmul.f32.gmra.mxu0 %v3382
    %v3525 = vpop.f32.mrf.mxu0
    %v3526 = vadd.f32 0.0, %v3525
    %3527 = vmatmul.f32.gmra.mxu0 %v3383
    %v3528 = vpop.f32.mrf.mxu0
    %v3529 = vadd.f32 0.0, %v3528
    %3530 = vmatmul.f32.gmra.mxu0 %v3384
    %v3531 = vpop.f32.mrf.mxu0
    %v3532 = vadd.f32 0.0, %v3531
    %3533 = vmatmul.f32.gmra.mxu0 %v3385
    %v3534 = vpop.f32.mrf.mxu0
    %v3535 = vadd.f32 0.0, %v3534
    %3536 = vmatmul.f32.gmra.mxu0 %v3386
    %v3537 = vpop.f32.mrf.mxu0
    %v3538 = vadd.f32 0.0, %v3537
    %3539 = vmatmul.f32.gmra.mxu0 %v3387
    %v3540 = vpop.f32.mrf.mxu0
    %v3541 = vadd.f32 0.0, %v3540
    %3542 = vmatmul.f32.gmra.mxu0 %v3388
    %v3543 = vpop.f32.mrf.mxu0
    %v3544 = vadd.f32 0.0, %v3543
    %3545 = vmatmul.f32.gmra.mxu0 %v3389
    %v3546 = vpop.f32.mrf.mxu0
    %v3547 = vadd.f32 0.0, %v3546
    %3548 = vmatmul.f32.gmra.mxu0 %v3390
    %v3549 = vpop.f32.mrf.mxu0
    %v3550 = vadd.f32 0.0, %v3549
    %3551 = vmatmul.f32.gmra.mxu0 %v3391
    %v3552 = vpop.f32.mrf.mxu0
    %v3553 = vadd.f32 0.0, %v3552
    %3554 = vmatmul.f32.gmra.mxu0 %v3392
    %v3555 = vpop.f32.mrf.mxu0
    %v3556 = vadd.f32 0.0, %v3555
    %3557 = vmatmul.f32.gmra.mxu0 %v3393
    %v3558 = vpop.f32.mrf.mxu0
    %v3559 = vadd.f32 0.0, %v3558
    %3560 = vmatmul.f32.gmra.mxu0 %v3394
    %v3561 = vpop.f32.mrf.mxu0
    %v3562 = vadd.f32 0.0, %v3561
    %3563 = vmatmul.f32.gmra.mxu0 %v3395
    %v3564 = vpop.f32.mrf.mxu0
    %v3565 = vadd.f32 0.0, %v3564
    %3566 = vmatmul.f32.gmra.mxu0 %v3396
    %v3567 = vpop.f32.mrf.mxu0
    %v3568 = vadd.f32 0.0, %v3567
    %3569 = vmatmul.f32.gmra.mxu0 %v3397
    %v3570 = vpop.f32.mrf.mxu0
    %v3571 = vadd.f32 0.0, %v3570
    %3572 = vmatmul.f32.gmra.mxu0 %v3398
    %v3573 = vpop.f32.mrf.mxu0
    %v3574 = vadd.f32 0.0, %v3573
    %3575 = vmatmul.f32.gmra.mxu0 %v3399
    %v3576 = vpop.f32.mrf.mxu0
    %v3577 = vadd.f32 0.0, %v3576
    %3578 = vmatmul.f32.gmra.mxu0 %v3400
    %v3579 = vpop.f32.mrf.mxu0
    %v3580 = vadd.f32 0.0, %v3579
    %3581 = vmatmul.f32.gmra.mxu0 %v3401
    %v3582 = vpop.f32.mrf.mxu0
    %v3583 = vadd.f32 0.0, %v3582
    %3584 = vmatmul.f32.gmra.mxu0 %v3402
    %v3585 = vpop.f32.mrf.mxu0
    %v3586 = vadd.f32 0.0, %v3585
    %3587 = vmatmul.f32.gmra.mxu0 %v3403
    %v3588 = vpop.f32.mrf.mxu0
    %v3589 = vadd.f32 0.0, %v3588
    %3590 = vmatmul.f32.gmra.mxu0 %v3404
    %v3591 = vpop.f32.mrf.mxu0
    %v3592 = vadd.f32 0.0, %v3591
    %3593 = vmatmul.f32.gmra.mxu0 %v3405
    %v3594 = vpop.f32.mrf.mxu0
    %v3595 = vadd.f32 0.0, %v3594
    %3596 = vmatmul.f32.gmra.mxu0 %v3406
    %v3597 = vpop.f32.mrf.mxu0
    %v3598 = vadd.f32 0.0, %v3597
    %3599 = vmatmul.f32.gmra.mxu0 %v3407
    %v3600 = vpop.f32.mrf.mxu0
    %v3601 = vadd.f32 0.0, %v3600
    %3602 = vmatmul.f32.gmra.mxu0 %v3408
    %v3603 = vpop.f32.mrf.mxu0
    %v3604 = vadd.f32 0.0, %v3603
    %3605 = vmatmul.f32.gmra.mxu0 %v3409
    %v3606 = vpop.f32.mrf.mxu0
    %v3607 = vadd.f32 0.0, %v3606
    %3608 = vmatmul.f32.gmra.mxu0 %v3410
    %v3609 = vpop.f32.mrf.mxu0
    %v3610 = vadd.f32 0.0, %v3609
    %3611 = vmatmul.f32.gmra.mxu0 %v3411
    %v3612 = vpop.f32.mrf.mxu0
    %v3613 = vadd.f32 0.0, %v3612
    %3614 = vmatmul.f32.gmra.mxu0 %v3412
    %v3615 = vpop.f32.mrf.mxu0
    %v3616 = vadd.f32 0.0, %v3615
    %3617 = vmatmul.f32.gmra.mxu0 %v3413
    %v3618 = vpop.f32.mrf.mxu0
    %v3619 = vadd.f32 0.0, %v3618
    %3620 = vmatmul.f32.gmra.mxu0 %v3414
    %v3621 = vpop.f32.mrf.mxu0
    %v3622 = vadd.f32 0.0, %v3621
    %3623 = vmatmul.f32.gmra.mxu0 %v3415
    %v3624 = vpop.f32.mrf.mxu0
    %v3625 = vadd.f32 0.0, %v3624
    %3626 = vmatmul.f32.gmra.mxu0 %v3416
    %v3627 = vpop.f32.mrf.mxu0
    %v3628 = vadd.f32 0.0, %v3627
    %3629 = vmatmul.f32.gmra.mxu0 %v3417
    %v3630 = vpop.f32.mrf.mxu0
    %v3631 = vadd.f32 0.0, %v3630
    %3632 = vmatmul.f32.gmra.mxu0 %v3418
    %v3633 = vpop.f32.mrf.mxu0
    %v3634 = vadd.f32 0.0, %v3633
    %3635 = vmatmul.f32.gmra.mxu0 %v3419
    %v3636 = vpop.f32.mrf.mxu0
    %v3637 = vadd.f32 0.0, %v3636
    %3638 = vmatmul.f32.gmra.mxu0 %v3420
    %v3639 = vpop.f32.mrf.mxu0
    %v3640 = vadd.f32 0.0, %v3639
    %3641 = vmatmul.f32.gmra.mxu0 %v3421
    %v3642 = vpop.f32.mrf.mxu0
    %v3643 = vadd.f32 0.0, %v3642
    %3644 = vmatmul.f32.gmra.mxu0 %v3422
    %v3645 = vpop.f32.mrf.mxu0
    %v3646 = vadd.f32 0.0, %v3645
    %3647 = vmatmul.f32.gmra.mxu0 %v3423
    %v3648 = vpop.f32.mrf.mxu0
    %v3649 = vadd.f32 0.0, %v3648
    %3650 = vmatmul.f32.gmra.mxu0 %v3424
    %v3651 = vpop.f32.mrf.mxu0
    %v3652 = vadd.f32 0.0, %v3651
    %3653 = vmatmul.f32.gmra.mxu0 %v3425
    %v3654 = vpop.f32.mrf.mxu0
    %v3655 = vadd.f32 0.0, %v3654
    %3656 = vmatmul.f32.gmra.mxu0 %v3426
    %v3657 = vpop.f32.mrf.mxu0
    %v3658 = vadd.f32 0.0, %v3657
    %3659 = vmatmul.f32.gmra.mxu0 %v3427
    %v3660 = vpop.f32.mrf.mxu0
    %v3661 = vadd.f32 0.0, %v3660
    %3662 = vmatmul.f32.gmra.mxu0 %v3428
    %v3663 = vpop.f32.mrf.mxu0
    %v3664 = vadd.f32 0.0, %v3663
    %3665 = vmatmul.f32.gmra.mxu0 %v3429
    %v3666 = vpop.f32.mrf.mxu0
    %v3667 = vadd.f32 0.0, %v3666
    %3668 = vmatmul.f32.gmra.mxu0 %v3430
    %v3669 = vpop.f32.mrf.mxu0
    %v3670 = vadd.f32 0.0, %v3669
    %3671 = vmatmul.f32.gmra.mxu0 %v3431
    %v3672 = vpop.f32.mrf.mxu0
    %v3673 = vadd.f32 0.0, %v3672
    %3674 = vmatmul.f32.gmra.mxu0 %v3432
    %v3675 = vpop.f32.mrf.mxu0
    %v3676 = vadd.f32 0.0, %v3675
    %3677 = vmatmul.f32.gmra.mxu0 %v3433
    %v3678 = vpop.f32.mrf.mxu0
    %v3679 = vadd.f32 0.0, %v3678
    %3680 = vmatmul.f32.gmra.mxu0 %v3434
    %v3681 = vpop.f32.mrf.mxu0
    %v3682 = vadd.f32 0.0, %v3681
    %3683 = vmatmul.f32.gmra.mxu0 %v3435
    %v3684 = vpop.f32.mrf.mxu0
    %v3685 = vadd.f32 0.0, %v3684
    %3686 = vmatmul.f32.gmra.mxu0 %v3436
    %v3687 = vpop.f32.mrf.mxu0
    %v3688 = vadd.f32 0.0, %v3687
    %3689 = vmatmul.f32.gmra.mxu0 %v3437
    %v3690 = vpop.f32.mrf.mxu0
    %v3691 = vadd.f32 0.0, %v3690
    %3692 = vmatmul.f32.gmra.mxu0 %v3438
    %v3693 = vpop.f32.mrf.mxu0
    %v3694 = vadd.f32 0.0, %v3693
    %3695 = vmatmul.f32.gmra.mxu0 %v3439
    %v3696 = vpop.f32.mrf.mxu0
    %v3697 = vadd.f32 0.0, %v3696
    %3698 = vmatmul.f32.gmra.mxu0 %v3440
    %v3699 = vpop.f32.mrf.mxu0
    %v3700 = vadd.f32 0.0, %v3699
    %3701 = vmatmul.f32.gmra.mxu0 %v3441
    %v3702 = vpop.f32.mrf.mxu0
    %v3703 = vadd.f32 0.0, %v3702
    %3704 = vmatmul.f32.gmra.mxu0 %v3442
    %v3705 = vpop.f32.mrf.mxu0
    %v3706 = vadd.f32 0.0, %v3705
    %3707 = vmatmul.f32.gmra.mxu0 %v3443
    %v3708 = vpop.f32.mrf.mxu0
    %v3709 = vadd.f32 0.0, %v3708
    %3710 = vmatmul.f32.gmra.mxu0 %v3444
    %v3711 = vpop.f32.mrf.mxu0
    %v3712 = vadd.f32 0.0, %v3711
    %3713 = vmatmul.f32.gmra.mxu0 %v3445
    %v3714 = vpop.f32.mrf.mxu0
    %v3715 = vadd.f32 0.0, %v3714
    %3716 = vmatmul.f32.gmra.mxu0 %v3446
    %v3717 = vpop.f32.mrf.mxu0
    %v3718 = vadd.f32 0.0, %v3717
    %3719 = vmatmul.f32.gmra.mxu0 %v3447
    %v3720 = vpop.f32.mrf.mxu0
    %v3721 = vadd.f32 0.0, %v3720
    %3722 = vmatmul.f32.gmra.mxu0 %v3448
    %v3723 = vpop.f32.mrf.mxu0
    %v3724 = vadd.f32 0.0, %v3723
    %3725 = vdwg.mxu0
    %v3726 = vadd.f32 %v3287, %v3484
    %v3727 = vadd.f32 %v3288, %v3487
    %v3728 = vadd.f32 %v3289, %v3490
    %v3729 = vadd.f32 %v3290, %v3493
    %v3730 = vadd.f32 %v3291, %v3496
    %v3731 = vadd.f32 %v3292, %v3499
    %v3732 = vadd.f32 %v3293, %v3502
    %v3733 = vadd.f32 %v3294, %v3505
    %v3734 = vadd.f32 %v3295, %v3508
    %v3735 = vadd.f32 %v3296, %v3511
    %v3736 = vadd.f32 %v3297, %v3514
    %v3737 = vadd.f32 %v3298, %v3517
    %v3738 = vadd.f32 %v3299, %v3520
    %v3739 = vadd.f32 %v3300, %v3523
    %v3740 = vadd.f32 %v3301, %v3526
    %v3741 = vadd.f32 %v3302, %v3529
    %v3742 = vadd.f32 %v3303, %v3532
    %v3743 = vadd.f32 %v3304, %v3535
    %v3744 = vadd.f32 %v3305, %v3538
    %v3745 = vadd.f32 %v3306, %v3541
    %v3746 = vadd.f32 %v3307, %v3544
    %v3747 = vadd.f32 %v3308, %v3547
    %v3748 = vadd.f32 %v3309, %v3550
    %v3749 = vadd.f32 %v3310, %v3553
    %v3750 = vadd.f32 %v3311, %v3556
    %v3751 = vadd.f32 %v3312, %v3559
    %v3752 = vadd.f32 %v3313, %v3562
    %v3753 = vadd.f32 %v3314, %v3565
    %v3754 = vadd.f32 %v3315, %v3568
    %v3755 = vadd.f32 %v3316, %v3571
    %v3756 = vadd.f32 %v3317, %v3574
    %v3757 = vadd.f32 %v3318, %v3577
    %v3758 = vadd.f32 %v3319, %v3580
    %v3759 = vadd.f32 %v3320, %v3583
    %v3760 = vadd.f32 %v3321, %v3586
    %v3761 = vadd.f32 %v3322, %v3589
    %v3762 = vadd.f32 %v3323, %v3592
    %v3763 = vadd.f32 %v3324, %v3595
    %v3764 = vadd.f32 %v3325, %v3598
    %v3765 = vadd.f32 %v3326, %v3601
    %v3766 = vadd.f32 %v3327, %v3604
    %v3767 = vadd.f32 %v3328, %v3607
    %v3768 = vadd.f32 %v3329, %v3610
    %v3769 = vadd.f32 %v3330, %v3613
    %v3770 = vadd.f32 %v3331, %v3616
    %v3771 = vadd.f32 %v3332, %v3619
    %v3772 = vadd.f32 %v3333, %v3622
    %v3773 = vadd.f32 %v3334, %v3625
    %v3774 = vadd.f32 %v3335, %v3628
    %v3775 = vadd.f32 %v3336, %v3631
    %v3776 = vadd.f32 %v3337, %v3634
    %v3777 = vadd.f32 %v3338, %v3637
    %v3778 = vadd.f32 %v3339, %v3640
    %v3779 = vadd.f32 %v3340, %v3643
    %v3780 = vadd.f32 %v3341, %v3646
    %v3781 = vadd.f32 %v3342, %v3649
    %v3782 = vadd.f32 %v3343, %v3652
    %v3783 = vadd.f32 %v3344, %v3655
    %v3784 = vadd.f32 %v3345, %v3658
    %v3785 = vadd.f32 %v3346, %v3661
    %v3786 = vadd.f32 %v3347, %v3664
    %v3787 = vadd.f32 %v3348, %v3667
    %v3788 = vadd.f32 %v3349, %v3670
    %v3789 = vadd.f32 %v3350, %v3673
    %v3790 = vadd.f32 %v3351, %v3676
    %v3791 = vadd.f32 %v3352, %v3679
    %v3792 = vadd.f32 %v3353, %v3682
    %v3793 = vadd.f32 %v3354, %v3685
    %v3794 = vadd.f32 %v3355, %v3688
    %v3795 = vadd.f32 %v3356, %v3691
    %v3796 = vadd.f32 %v3357, %v3694
    %v3797 = vadd.f32 %v3358, %v3697
    %v3798 = vadd.f32 %v3359, %v3700
    %v3799 = vadd.f32 %v3360, %v3703
    %v3800 = vadd.f32 %v3361, %v3706
    %v3801 = vadd.f32 %v3362, %v3709
    %v3802 = vadd.f32 %v3363, %v3712
    %v3803 = vadd.f32 %v3364, %v3715
    %v3804 = vadd.f32 %v3365, %v3718
    %v3805 = vadd.f32 %v3366, %v3721
    %v3806 = vadd.f32 %v3367, %v3724
    %v3807 = vld [vmem:[#allocation2 + $0x19] sm:$0xff]
    %v3808 = vld [vmem:[#allocation2 + $0x21] sm:$0xff]
    %v3809 = vld [vmem:[#allocation2 + $0x29] sm:$0xff]
    %v3810 = vld [vmem:[#allocation2 + $0x31] sm:$0xff]
    %v3811 = vld [vmem:[#allocation2 + $0x39] sm:$0xff]
    %v3812 = vld [vmem:[#allocation2 + $0x41] sm:$0xff]
    %v3813 = vld [vmem:[#allocation2 + $0x49] sm:$0xff]
    %v3814 = vld [vmem:[#allocation2 + $0x51] sm:$0xff]
    %v3815 = vld [vmem:[#allocation2 + $0x59] sm:$0xff]
    %v3816 = vld [vmem:[#allocation2 + $0x61] sm:$0xff]
    %v3817 = vld [vmem:[#allocation2 + $0x69] sm:$0xff]
    %v3818 = vld [vmem:[#allocation2 + $0x71] sm:$0xff]
    %v3819 = vld [vmem:[#allocation2 + $0x79] sm:$0xff]
    %v3820 = vld [vmem:[#allocation2 + $0x81] sm:$0xff]
    %v3821 = vld [vmem:[#allocation2 + $0x89] sm:$0xff]
    %v3822 = vld [vmem:[#allocation2 + $0x91] sm:$0xff]
    %v3823 = vld [vmem:[#allocation2 + $0x99] sm:$0xff]
    %v3824 = vld [vmem:[#allocation2 + $0xa1] sm:$0xff]
    %v3825 = vld [vmem:[#allocation2 + $0xa9] sm:$0xff]
    %v3826 = vld [vmem:[#allocation2 + $0xb1] sm:$0xff]
    %v3827 = vld [vmem:[#allocation2 + $0xb9] sm:$0xff]
    %v3828 = vld [vmem:[#allocation2 + $0xc1] sm:$0xff]
    %v3829 = vld [vmem:[#allocation2 + $0xc9] sm:$0xff]
    %v3830 = vld [vmem:[#allocation2 + $0xd1] sm:$0xff]
    %v3831 = vld [vmem:[#allocation2 + $0xd9] sm:$0xff]
    %v3832 = vld [vmem:[#allocation2 + $0xe1] sm:$0xff]
    %v3833 = vld [vmem:[#allocation2 + $0xe9] sm:$0xff]
    %v3834 = vld [vmem:[#allocation2 + $0xf1] sm:$0xff]
    %v3835 = vld [vmem:[#allocation2 + $0xf9] sm:$0xff]
    %v3836 = vld [vmem:[#allocation2 + $0x101] sm:$0xff]
    %v3837 = vld [vmem:[#allocation2 + $0x109] sm:$0xff]
    %v3838 = vld [vmem:[#allocation2 + $0x111] sm:$0xff]
    %v3839 = vld [vmem:[#allocation2 + $0x119] sm:$0xff]
    %v3840 = vld [vmem:[#allocation2 + $0x121] sm:$0xff]
    %v3841 = vld [vmem:[#allocation2 + $0x129] sm:$0xff]
    %v3842 = vld [vmem:[#allocation2 + $0x131] sm:$0xff]
    %v3843 = vld [vmem:[#allocation2 + $0x139] sm:$0xff]
    %v3844 = vld [vmem:[#allocation2 + $0x141] sm:$0xff]
    %v3845 = vld [vmem:[#allocation2 + $0x149] sm:$0xff]
    %v3846 = vld [vmem:[#allocation2 + $0x151] sm:$0xff]
    %v3847 = vld [vmem:[#allocation2 + $0x159] sm:$0xff]
    %v3848 = vld [vmem:[#allocation2 + $0x161] sm:$0xff]
    %v3849 = vld [vmem:[#allocation2 + $0x169] sm:$0xff]
    %v3850 = vld [vmem:[#allocation2 + $0x171] sm:$0xff]
    %v3851 = vld [vmem:[#allocation2 + $0x179] sm:$0xff]
    %v3852 = vld [vmem:[#allocation2 + $0x181] sm:$0xff]
    %v3853 = vld [vmem:[#allocation2 + $0x189] sm:$0xff]
    %v3854 = vld [vmem:[#allocation2 + $0x191] sm:$0xff]
    %v3855 = vld [vmem:[#allocation2 + $0x199] sm:$0xff]
    %v3856 = vld [vmem:[#allocation2 + $0x1a1] sm:$0xff]
    %v3857 = vld [vmem:[#allocation2 + $0x1a9] sm:$0xff]
    %v3858 = vld [vmem:[#allocation2 + $0x1b1] sm:$0xff]
    %v3859 = vld [vmem:[#allocation2 + $0x1b9] sm:$0xff]
    %v3860 = vld [vmem:[#allocation2 + $0x1c1] sm:$0xff]
    %v3861 = vld [vmem:[#allocation2 + $0x1c9] sm:$0xff]
    %v3862 = vld [vmem:[#allocation2 + $0x1d1] sm:$0xff]
    %v3863 = vld [vmem:[#allocation2 + $0x1d9] sm:$0xff]
    %v3864 = vld [vmem:[#allocation2 + $0x1e1] sm:$0xff]
    %v3865 = vld [vmem:[#allocation2 + $0x1e9] sm:$0xff]
    %v3866 = vld [vmem:[#allocation2 + $0x1f1] sm:$0xff]
    %v3867 = vld [vmem:[#allocation2 + $0x1f9] sm:$0xff]
    %v3868 = vld [vmem:[#allocation2 + $0x201] sm:$0xff]
    %v3869 = vld [vmem:[#allocation2 + $0x209] sm:$0xff]
    %v3870 = vld [vmem:[#allocation2 + $0x211] sm:$0xff]
    %v3871 = vld [vmem:[#allocation2 + $0x219] sm:$0xff]
    %v3872 = vld [vmem:[#allocation2 + $0x221] sm:$0xff]
    %v3873 = vld [vmem:[#allocation2 + $0x229] sm:$0xff]
    %v3874 = vld [vmem:[#allocation2 + $0x231] sm:$0xff]
    %v3875 = vld [vmem:[#allocation2 + $0x239] sm:$0xff]
    %v3876 = vld [vmem:[#allocation2 + $0x241] sm:$0xff]
    %v3877 = vld [vmem:[#allocation2 + $0x249] sm:$0xff]
    %v3878 = vld [vmem:[#allocation2 + $0x251] sm:$0xff]
    %v3879 = vld [vmem:[#allocation2 + $0x259] sm:$0xff]
    %v3880 = vld [vmem:[#allocation2 + $0x261] sm:$0xff]
    %v3881 = vld [vmem:[#allocation2 + $0x269] sm:$0xff]
    %v3882 = vld [vmem:[#allocation2 + $0x271] sm:$0xff]
    %v3883 = vld [vmem:[#allocation2 + $0x279] sm:$0xff]
    %v3884 = vld [vmem:[#allocation2 + $0x281] sm:$0xff]
    %v3885 = vld [vmem:[#allocation2 + $0x289] sm:$0xff]
    %v3886 = vld [vmem:[#allocation2 + $0x291] sm:$0xff]
    %v3887 = vld [vmem:[#allocation2 + $0x299] sm:$0xff]
    %s3888 = scalar_lea.vmem [#allocation6], 640
    %v3889 = vld [vmem:[%s3888] sm:$0xff]
    %v3890 = vld [vmem:[%s3888 + $0x8] sm:$0xff]
    %v3891 = vld [vmem:[%s3888 + $0x10] sm:$0xff]
    %v3892 = vld [vmem:[%s3888 + $0x18] sm:$0xff]
    %v3893 = vld [vmem:[%s3888 + $0x20] sm:$0xff]
    %v3894 = vld [vmem:[%s3888 + $0x28] sm:$0xff]
    %v3895 = vld [vmem:[%s3888 + $0x30] sm:$0xff]
    %v3896 = vld [vmem:[%s3888 + $0x38] sm:$0xff]
    %v3897 = vld [vmem:[%s3888 + $0x40] sm:$0xff]
    %v3898 = vld [vmem:[%s3888 + $0x48] sm:$0xff]
    %v3899 = vld [vmem:[%s3888 + $0x50] sm:$0xff]
    %v3900 = vld [vmem:[%s3888 + $0x58] sm:$0xff]
    %v3901 = vld [vmem:[%s3888 + $0x60] sm:$0xff]
    %v3902 = vld [vmem:[%s3888 + $0x68] sm:$0xff]
    %v3903 = vld [vmem:[%s3888 + $0x70] sm:$0xff]
    %v3904 = vld [vmem:[%s3888 + $0x78] sm:$0xff]
    %3905 = vmatpush.msra.mxu0 %v3904
    %3906 = vmatpush.msra.mxu0 %v3903
    %3907 = vmatpush.msra.mxu0 %v3902
    %3908 = vmatpush.msra.mxu0 %v3901
    %3909 = vmatpush.msra.mxu0 %v3900
    %3910 = vmatpush.msra.mxu0 %v3899
    %3911 = vmatpush.msra.mxu0 %v3898
    %3912 = vmatpush.msra.mxu0 %v3897
    %3913 = vmatpush.msra.mxu0 %v3896
    %3914 = vmatpush.msra.mxu0 %v3895
    %3915 = vmatpush.msra.mxu0 %v3894
    %3916 = vmatpush.msra.mxu0 %v3893
    %3917 = vmatpush.msra.mxu0 %v3892
    %3918 = vmatpush.msra.mxu0 %v3891
    %3919 = vmatpush.msra.mxu0 %v3890
    %3920 = vmatpush.msra.mxu0 %v3889
    %3921 = vmatmul.f32.gmra.mxu0 %v3807
    %v3922 = vpop.f32.mrf.mxu0
    %v3923 = vadd.f32 0.0, %v3922
    %3924 = vmatmul.f32.gmra.mxu0 %v3808
    %v3925 = vpop.f32.mrf.mxu0
    %v3926 = vadd.f32 0.0, %v3925
    %3927 = vmatmul.f32.gmra.mxu0 %v3809
    %v3928 = vpop.f32.mrf.mxu0
    %v3929 = vadd.f32 0.0, %v3928
    %3930 = vmatmul.f32.gmra.mxu0 %v3810
    %v3931 = vpop.f32.mrf.mxu0
    %v3932 = vadd.f32 0.0, %v3931
    %3933 = vmatmul.f32.gmra.mxu0 %v3811
    %v3934 = vpop.f32.mrf.mxu0
    %v3935 = vadd.f32 0.0, %v3934
    %3936 = vmatmul.f32.gmra.mxu0 %v3812
    %v3937 = vpop.f32.mrf.mxu0
    %v3938 = vadd.f32 0.0, %v3937
    %3939 = vmatmul.f32.gmra.mxu0 %v3813
    %v3940 = vpop.f32.mrf.mxu0
    %v3941 = vadd.f32 0.0, %v3940
    %3942 = vmatmul.f32.gmra.mxu0 %v3814
    %v3943 = vpop.f32.mrf.mxu0
    %v3944 = vadd.f32 0.0, %v3943
    %3945 = vmatmul.f32.gmra.mxu0 %v3815
    %v3946 = vpop.f32.mrf.mxu0
    %v3947 = vadd.f32 0.0, %v3946
    %3948 = vmatmul.f32.gmra.mxu0 %v3816
    %v3949 = vpop.f32.mrf.mxu0
    %v3950 = vadd.f32 0.0, %v3949
    %3951 = vmatmul.f32.gmra.mxu0 %v3817
    %v3952 = vpop.f32.mrf.mxu0
    %v3953 = vadd.f32 0.0, %v3952
    %3954 = vmatmul.f32.gmra.mxu0 %v3818
    %v3955 = vpop.f32.mrf.mxu0
    %v3956 = vadd.f32 0.0, %v3955
    %3957 = vmatmul.f32.gmra.mxu0 %v3819
    %v3958 = vpop.f32.mrf.mxu0
    %v3959 = vadd.f32 0.0, %v3958
    %3960 = vmatmul.f32.gmra.mxu0 %v3820
    %v3961 = vpop.f32.mrf.mxu0
    %v3962 = vadd.f32 0.0, %v3961
    %3963 = vmatmul.f32.gmra.mxu0 %v3821
    %v3964 = vpop.f32.mrf.mxu0
    %v3965 = vadd.f32 0.0, %v3964
    %3966 = vmatmul.f32.gmra.mxu0 %v3822
    %v3967 = vpop.f32.mrf.mxu0
    %v3968 = vadd.f32 0.0, %v3967
    %3969 = vmatmul.f32.gmra.mxu0 %v3823
    %v3970 = vpop.f32.mrf.mxu0
    %v3971 = vadd.f32 0.0, %v3970
    %3972 = vmatmul.f32.gmra.mxu0 %v3824
    %v3973 = vpop.f32.mrf.mxu0
    %v3974 = vadd.f32 0.0, %v3973
    %3975 = vmatmul.f32.gmra.mxu0 %v3825
    %v3976 = vpop.f32.mrf.mxu0
    %v3977 = vadd.f32 0.0, %v3976
    %3978 = vmatmul.f32.gmra.mxu0 %v3826
    %v3979 = vpop.f32.mrf.mxu0
    %v3980 = vadd.f32 0.0, %v3979
    %3981 = vmatmul.f32.gmra.mxu0 %v3827
    %v3982 = vpop.f32.mrf.mxu0
    %v3983 = vadd.f32 0.0, %v3982
    %3984 = vmatmul.f32.gmra.mxu0 %v3828
    %v3985 = vpop.f32.mrf.mxu0
    %v3986 = vadd.f32 0.0, %v3985
    %3987 = vmatmul.f32.gmra.mxu0 %v3829
    %v3988 = vpop.f32.mrf.mxu0
    %v3989 = vadd.f32 0.0, %v3988
    %3990 = vmatmul.f32.gmra.mxu0 %v3830
    %v3991 = vpop.f32.mrf.mxu0
    %v3992 = vadd.f32 0.0, %v3991
    %3993 = vmatmul.f32.gmra.mxu0 %v3831
    %v3994 = vpop.f32.mrf.mxu0
    %v3995 = vadd.f32 0.0, %v3994
    %3996 = vmatmul.f32.gmra.mxu0 %v3832
    %v3997 = vpop.f32.mrf.mxu0
    %v3998 = vadd.f32 0.0, %v3997
    %3999 = vmatmul.f32.gmra.mxu0 %v3833
    %v4000 = vpop.f32.mrf.mxu0
    %v4001 = vadd.f32 0.0, %v4000
    %4002 = vmatmul.f32.gmra.mxu0 %v3834
    %v4003 = vpop.f32.mrf.mxu0
    %v4004 = vadd.f32 0.0, %v4003
    %4005 = vmatmul.f32.gmra.mxu0 %v3835
    %v4006 = vpop.f32.mrf.mxu0
    %v4007 = vadd.f32 0.0, %v4006
    %4008 = vmatmul.f32.gmra.mxu0 %v3836
    %v4009 = vpop.f32.mrf.mxu0
    %v4010 = vadd.f32 0.0, %v4009
    %4011 = vmatmul.f32.gmra.mxu0 %v3837
    %v4012 = vpop.f32.mrf.mxu0
    %v4013 = vadd.f32 0.0, %v4012
    %4014 = vmatmul.f32.gmra.mxu0 %v3838
    %v4015 = vpop.f32.mrf.mxu0
    %v4016 = vadd.f32 0.0, %v4015
    %4017 = vmatmul.f32.gmra.mxu0 %v3839
    %v4018 = vpop.f32.mrf.mxu0
    %v4019 = vadd.f32 0.0, %v4018
    %4020 = vmatmul.f32.gmra.mxu0 %v3840
    %v4021 = vpop.f32.mrf.mxu0
    %v4022 = vadd.f32 0.0, %v4021
    %4023 = vmatmul.f32.gmra.mxu0 %v3841
    %v4024 = vpop.f32.mrf.mxu0
    %v4025 = vadd.f32 0.0, %v4024
    %4026 = vmatmul.f32.gmra.mxu0 %v3842
    %v4027 = vpop.f32.mrf.mxu0
    %v4028 = vadd.f32 0.0, %v4027
    %4029 = vmatmul.f32.gmra.mxu0 %v3843
    %v4030 = vpop.f32.mrf.mxu0
    %v4031 = vadd.f32 0.0, %v4030
    %4032 = vmatmul.f32.gmra.mxu0 %v3844
    %v4033 = vpop.f32.mrf.mxu0
    %v4034 = vadd.f32 0.0, %v4033
    %4035 = vmatmul.f32.gmra.mxu0 %v3845
    %v4036 = vpop.f32.mrf.mxu0
    %v4037 = vadd.f32 0.0, %v4036
    %4038 = vmatmul.f32.gmra.mxu0 %v3846
    %v4039 = vpop.f32.mrf.mxu0
    %v4040 = vadd.f32 0.0, %v4039
    %4041 = vmatmul.f32.gmra.mxu0 %v3847
    %v4042 = vpop.f32.mrf.mxu0
    %v4043 = vadd.f32 0.0, %v4042
    %4044 = vmatmul.f32.gmra.mxu0 %v3848
    %v4045 = vpop.f32.mrf.mxu0
    %v4046 = vadd.f32 0.0, %v4045
    %4047 = vmatmul.f32.gmra.mxu0 %v3849
    %v4048 = vpop.f32.mrf.mxu0
    %v4049 = vadd.f32 0.0, %v4048
    %4050 = vmatmul.f32.gmra.mxu0 %v3850
    %v4051 = vpop.f32.mrf.mxu0
    %v4052 = vadd.f32 0.0, %v4051
    %4053 = vmatmul.f32.gmra.mxu0 %v3851
    %v4054 = vpop.f32.mrf.mxu0
    %v4055 = vadd.f32 0.0, %v4054
    %4056 = vmatmul.f32.gmra.mxu0 %v3852
    %v4057 = vpop.f32.mrf.mxu0
    %v4058 = vadd.f32 0.0, %v4057
    %4059 = vmatmul.f32.gmra.mxu0 %v3853
    %v4060 = vpop.f32.mrf.mxu0
    %v4061 = vadd.f32 0.0, %v4060
    %4062 = vmatmul.f32.gmra.mxu0 %v3854
    %v4063 = vpop.f32.mrf.mxu0
    %v4064 = vadd.f32 0.0, %v4063
    %4065 = vmatmul.f32.gmra.mxu0 %v3855
    %v4066 = vpop.f32.mrf.mxu0
    %v4067 = vadd.f32 0.0, %v4066
    %4068 = vmatmul.f32.gmra.mxu0 %v3856
    %v4069 = vpop.f32.mrf.mxu0
    %v4070 = vadd.f32 0.0, %v4069
    %4071 = vmatmul.f32.gmra.mxu0 %v3857
    %v4072 = vpop.f32.mrf.mxu0
    %v4073 = vadd.f32 0.0, %v4072
    %4074 = vmatmul.f32.gmra.mxu0 %v3858
    %v4075 = vpop.f32.mrf.mxu0
    %v4076 = vadd.f32 0.0, %v4075
    %4077 = vmatmul.f32.gmra.mxu0 %v3859
    %v4078 = vpop.f32.mrf.mxu0
    %v4079 = vadd.f32 0.0, %v4078
    %4080 = vmatmul.f32.gmra.mxu0 %v3860
    %v4081 = vpop.f32.mrf.mxu0
    %v4082 = vadd.f32 0.0, %v4081
    %4083 = vmatmul.f32.gmra.mxu0 %v3861
    %v4084 = vpop.f32.mrf.mxu0
    %v4085 = vadd.f32 0.0, %v4084
    %4086 = vmatmul.f32.gmra.mxu0 %v3862
    %v4087 = vpop.f32.mrf.mxu0
    %v4088 = vadd.f32 0.0, %v4087
    %4089 = vmatmul.f32.gmra.mxu0 %v3863
    %v4090 = vpop.f32.mrf.mxu0
    %v4091 = vadd.f32 0.0, %v4090
    %4092 = vmatmul.f32.gmra.mxu0 %v3864
    %v4093 = vpop.f32.mrf.mxu0
    %v4094 = vadd.f32 0.0, %v4093
    %4095 = vmatmul.f32.gmra.mxu0 %v3865
    %v4096 = vpop.f32.mrf.mxu0
    %v4097 = vadd.f32 0.0, %v4096
    %4098 = vmatmul.f32.gmra.mxu0 %v3866
    %v4099 = vpop.f32.mrf.mxu0
    %v4100 = vadd.f32 0.0, %v4099
    %4101 = vmatmul.f32.gmra.mxu0 %v3867
    %v4102 = vpop.f32.mrf.mxu0
    %v4103 = vadd.f32 0.0, %v4102
    %4104 = vmatmul.f32.gmra.mxu0 %v3868
    %v4105 = vpop.f32.mrf.mxu0
    %v4106 = vadd.f32 0.0, %v4105
    %4107 = vmatmul.f32.gmra.mxu0 %v3869
    %v4108 = vpop.f32.mrf.mxu0
    %v4109 = vadd.f32 0.0, %v4108
    %4110 = vmatmul.f32.gmra.mxu0 %v3870
    %v4111 = vpop.f32.mrf.mxu0
    %v4112 = vadd.f32 0.0, %v4111
    %4113 = vmatmul.f32.gmra.mxu0 %v3871
    %v4114 = vpop.f32.mrf.mxu0
    %v4115 = vadd.f32 0.0, %v4114
    %4116 = vmatmul.f32.gmra.mxu0 %v3872
    %v4117 = vpop.f32.mrf.mxu0
    %v4118 = vadd.f32 0.0, %v4117
    %4119 = vmatmul.f32.gmra.mxu0 %v3873
    %v4120 = vpop.f32.mrf.mxu0
    %v4121 = vadd.f32 0.0, %v4120
    %4122 = vmatmul.f32.gmra.mxu0 %v3874
    %v4123 = vpop.f32.mrf.mxu0
    %v4124 = vadd.f32 0.0, %v4123
    %4125 = vmatmul.f32.gmra.mxu0 %v3875
    %v4126 = vpop.f32.mrf.mxu0
    %v4127 = vadd.f32 0.0, %v4126
    %4128 = vmatmul.f32.gmra.mxu0 %v3876
    %v4129 = vpop.f32.mrf.mxu0
    %v4130 = vadd.f32 0.0, %v4129
    %4131 = vmatmul.f32.gmra.mxu0 %v3877
    %v4132 = vpop.f32.mrf.mxu0
    %v4133 = vadd.f32 0.0, %v4132
    %4134 = vmatmul.f32.gmra.mxu0 %v3878
    %v4135 = vpop.f32.mrf.mxu0
    %v4136 = vadd.f32 0.0, %v4135
    %4137 = vmatmul.f32.gmra.mxu0 %v3879
    %v4138 = vpop.f32.mrf.mxu0
    %v4139 = vadd.f32 0.0, %v4138
    %4140 = vmatmul.f32.gmra.mxu0 %v3880
    %v4141 = vpop.f32.mrf.mxu0
    %v4142 = vadd.f32 0.0, %v4141
    %4143 = vmatmul.f32.gmra.mxu0 %v3881
    %v4144 = vpop.f32.mrf.mxu0
    %v4145 = vadd.f32 0.0, %v4144
    %4146 = vmatmul.f32.gmra.mxu0 %v3882
    %v4147 = vpop.f32.mrf.mxu0
    %v4148 = vadd.f32 0.0, %v4147
    %4149 = vmatmul.f32.gmra.mxu0 %v3883
    %v4150 = vpop.f32.mrf.mxu0
    %v4151 = vadd.f32 0.0, %v4150
    %4152 = vmatmul.f32.gmra.mxu0 %v3884
    %v4153 = vpop.f32.mrf.mxu0
    %v4154 = vadd.f32 0.0, %v4153
    %4155 = vmatmul.f32.gmra.mxu0 %v3885
    %v4156 = vpop.f32.mrf.mxu0
    %v4157 = vadd.f32 0.0, %v4156
    %4158 = vmatmul.f32.gmra.mxu0 %v3886
    %v4159 = vpop.f32.mrf.mxu0
    %v4160 = vadd.f32 0.0, %v4159
    %4161 = vmatmul.f32.gmra.mxu0 %v3887
    %v4162 = vpop.f32.mrf.mxu0
    %v4163 = vadd.f32 0.0, %v4162
    %4164 = vdwg.mxu0
    %v4165 = vadd.f32 %v3726, %v3923
    %v4166 = vadd.f32 %v3727, %v3926
    %v4167 = vadd.f32 %v3728, %v3929
    %v4168 = vadd.f32 %v3729, %v3932
    %v4169 = vadd.f32 %v3730, %v3935
    %v4170 = vadd.f32 %v3731, %v3938
    %v4171 = vadd.f32 %v3732, %v3941
    %v4172 = vadd.f32 %v3733, %v3944
    %v4173 = vadd.f32 %v3734, %v3947
    %v4174 = vadd.f32 %v3735, %v3950
    %v4175 = vadd.f32 %v3736, %v3953
    %v4176 = vadd.f32 %v3737, %v3956
    %v4177 = vadd.f32 %v3738, %v3959
    %v4178 = vadd.f32 %v3739, %v3962
    %v4179 = vadd.f32 %v3740, %v3965
    %v4180 = vadd.f32 %v3741, %v3968
    %v4181 = vadd.f32 %v3742, %v3971
    %v4182 = vadd.f32 %v3743, %v3974
    %v4183 = vadd.f32 %v3744, %v3977
    %v4184 = vadd.f32 %v3745, %v3980
    %v4185 = vadd.f32 %v3746, %v3983
    %v4186 = vadd.f32 %v3747, %v3986
    %v4187 = vadd.f32 %v3748, %v3989
    %v4188 = vadd.f32 %v3749, %v3992
    %v4189 = vadd.f32 %v3750, %v3995
    %v4190 = vadd.f32 %v3751, %v3998
    %v4191 = vadd.f32 %v3752, %v4001
    %v4192 = vadd.f32 %v3753, %v4004
    %v4193 = vadd.f32 %v3754, %v4007
    %v4194 = vadd.f32 %v3755, %v4010
    %v4195 = vadd.f32 %v3756, %v4013
    %v4196 = vadd.f32 %v3757, %v4016
    %v4197 = vadd.f32 %v3758, %v4019
    %v4198 = vadd.f32 %v3759, %v4022
    %v4199 = vadd.f32 %v3760, %v4025
    %v4200 = vadd.f32 %v3761, %v4028
    %v4201 = vadd.f32 %v3762, %v4031
    %v4202 = vadd.f32 %v3763, %v4034
    %v4203 = vadd.f32 %v3764, %v4037
    %v4204 = vadd.f32 %v3765, %v4040
    %v4205 = vadd.f32 %v3766, %v4043
    %v4206 = vadd.f32 %v3767, %v4046
    %v4207 = vadd.f32 %v3768, %v4049
    %v4208 = vadd.f32 %v3769, %v4052
    %v4209 = vadd.f32 %v3770, %v4055
    %v4210 = vadd.f32 %v3771, %v4058
    %v4211 = vadd.f32 %v3772, %v4061
    %v4212 = vadd.f32 %v3773, %v4064
    %v4213 = vadd.f32 %v3774, %v4067
    %v4214 = vadd.f32 %v3775, %v4070
    %v4215 = vadd.f32 %v3776, %v4073
    %v4216 = vadd.f32 %v3777, %v4076
    %v4217 = vadd.f32 %v3778, %v4079
    %v4218 = vadd.f32 %v3779, %v4082
    %v4219 = vadd.f32 %v3780, %v4085
    %v4220 = vadd.f32 %v3781, %v4088
    %v4221 = vadd.f32 %v3782, %v4091
    %v4222 = vadd.f32 %v3783, %v4094
    %v4223 = vadd.f32 %v3784, %v4097
    %v4224 = vadd.f32 %v3785, %v4100
    %v4225 = vadd.f32 %v3786, %v4103
    %v4226 = vadd.f32 %v3787, %v4106
    %v4227 = vadd.f32 %v3788, %v4109
    %v4228 = vadd.f32 %v3789, %v4112
    %v4229 = vadd.f32 %v3790, %v4115
    %v4230 = vadd.f32 %v3791, %v4118
    %v4231 = vadd.f32 %v3792, %v4121
    %v4232 = vadd.f32 %v3793, %v4124
    %v4233 = vadd.f32 %v3794, %v4127
    %v4234 = vadd.f32 %v3795, %v4130
    %v4235 = vadd.f32 %v3796, %v4133
    %v4236 = vadd.f32 %v3797, %v4136
    %v4237 = vadd.f32 %v3798, %v4139
    %v4238 = vadd.f32 %v3799, %v4142
    %v4239 = vadd.f32 %v3800, %v4145
    %v4240 = vadd.f32 %v3801, %v4148
    %v4241 = vadd.f32 %v3802, %v4151
    %v4242 = vadd.f32 %v3803, %v4154
    %v4243 = vadd.f32 %v3804, %v4157
    %v4244 = vadd.f32 %v3805, %v4160
    %v4245 = vadd.f32 %v3806, %v4163
    %v4246 = vld [vmem:[#allocation2 + $0x29] sm:$0xff]
    %v4247 = vld [vmem:[#allocation2 + $0x31] sm:$0xff]
    %v4248 = vld [vmem:[#allocation2 + $0x39] sm:$0xff]
    %v4249 = vld [vmem:[#allocation2 + $0x41] sm:$0xff]
    %v4250 = vld [vmem:[#allocation2 + $0x49] sm:$0xff]
    %v4251 = vld [vmem:[#allocation2 + $0x51] sm:$0xff]
    %v4252 = vld [vmem:[#allocation2 + $0x59] sm:$0xff]
    %v4253 = vld [vmem:[#allocation2 + $0x61] sm:$0xff]
    %v4254 = vld [vmem:[#allocation2 + $0x69] sm:$0xff]
    %v4255 = vld [vmem:[#allocation2 + $0x71] sm:$0xff]
    %v4256 = vld [vmem:[#allocation2 + $0x79] sm:$0xff]
    %v4257 = vld [vmem:[#allocation2 + $0x81] sm:$0xff]
    %v4258 = vld [vmem:[#allocation2 + $0x89] sm:$0xff]
    %v4259 = vld [vmem:[#allocation2 + $0x91] sm:$0xff]
    %v4260 = vld [vmem:[#allocation2 + $0x99] sm:$0xff]
    %v4261 = vld [vmem:[#allocation2 + $0xa1] sm:$0xff]
    %v4262 = vld [vmem:[#allocation2 + $0xa9] sm:$0xff]
    %v4263 = vld [vmem:[#allocation2 + $0xb1] sm:$0xff]
    %v4264 = vld [vmem:[#allocation2 + $0xb9] sm:$0xff]
    %v4265 = vld [vmem:[#allocation2 + $0xc1] sm:$0xff]
    %v4266 = vld [vmem:[#allocation2 + $0xc9] sm:$0xff]
    %v4267 = vld [vmem:[#allocation2 + $0xd1] sm:$0xff]
    %v4268 = vld [vmem:[#allocation2 + $0xd9] sm:$0xff]
    %v4269 = vld [vmem:[#allocation2 + $0xe1] sm:$0xff]
    %v4270 = vld [vmem:[#allocation2 + $0xe9] sm:$0xff]
    %v4271 = vld [vmem:[#allocation2 + $0xf1] sm:$0xff]
    %v4272 = vld [vmem:[#allocation2 + $0xf9] sm:$0xff]
    %v4273 = vld [vmem:[#allocation2 + $0x101] sm:$0xff]
    %v4274 = vld [vmem:[#allocation2 + $0x109] sm:$0xff]
    %v4275 = vld [vmem:[#allocation2 + $0x111] sm:$0xff]
    %v4276 = vld [vmem:[#allocation2 + $0x119] sm:$0xff]
    %v4277 = vld [vmem:[#allocation2 + $0x121] sm:$0xff]
    %v4278 = vld [vmem:[#allocation2 + $0x129] sm:$0xff]
    %v4279 = vld [vmem:[#allocation2 + $0x131] sm:$0xff]
    %v4280 = vld [vmem:[#allocation2 + $0x139] sm:$0xff]
    %v4281 = vld [vmem:[#allocation2 + $0x141] sm:$0xff]
    %v4282 = vld [vmem:[#allocation2 + $0x149] sm:$0xff]
    %v4283 = vld [vmem:[#allocation2 + $0x151] sm:$0xff]
    %v4284 = vld [vmem:[#allocation2 + $0x159] sm:$0xff]
    %v4285 = vld [vmem:[#allocation2 + $0x161] sm:$0xff]
    %v4286 = vld [vmem:[#allocation2 + $0x169] sm:$0xff]
    %v4287 = vld [vmem:[#allocation2 + $0x171] sm:$0xff]
    %v4288 = vld [vmem:[#allocation2 + $0x179] sm:$0xff]
    %v4289 = vld [vmem:[#allocation2 + $0x181] sm:$0xff]
    %v4290 = vld [vmem:[#allocation2 + $0x189] sm:$0xff]
    %v4291 = vld [vmem:[#allocation2 + $0x191] sm:$0xff]
    %v4292 = vld [vmem:[#allocation2 + $0x199] sm:$0xff]
    %v4293 = vld [vmem:[#allocation2 + $0x1a1] sm:$0xff]
    %v4294 = vld [vmem:[#allocation2 + $0x1a9] sm:$0xff]
    %v4295 = vld [vmem:[#allocation2 + $0x1b1] sm:$0xff]
    %v4296 = vld [vmem:[#allocation2 + $0x1b9] sm:$0xff]
    %v4297 = vld [vmem:[#allocation2 + $0x1c1] sm:$0xff]
    %v4298 = vld [vmem:[#allocation2 + $0x1c9] sm:$0xff]
    %v4299 = vld [vmem:[#allocation2 + $0x1d1] sm:$0xff]
    %v4300 = vld [vmem:[#allocation2 + $0x1d9] sm:$0xff]
    %v4301 = vld [vmem:[#allocation2 + $0x1e1] sm:$0xff]
    %v4302 = vld [vmem:[#allocation2 + $0x1e9] sm:$0xff]
    %v4303 = vld [vmem:[#allocation2 + $0x1f1] sm:$0xff]
    %v4304 = vld [vmem:[#allocation2 + $0x1f9] sm:$0xff]
    %v4305 = vld [vmem:[#allocation2 + $0x201] sm:$0xff]
    %v4306 = vld [vmem:[#allocation2 + $0x209] sm:$0xff]
    %v4307 = vld [vmem:[#allocation2 + $0x211] sm:$0xff]
    %v4308 = vld [vmem:[#allocation2 + $0x219] sm:$0xff]
    %v4309 = vld [vmem:[#allocation2 + $0x221] sm:$0xff]
    %v4310 = vld [vmem:[#allocation2 + $0x229] sm:$0xff]
    %v4311 = vld [vmem:[#allocation2 + $0x231] sm:$0xff]
    %v4312 = vld [vmem:[#allocation2 + $0x239] sm:$0xff]
    %v4313 = vld [vmem:[#allocation2 + $0x241] sm:$0xff]
    %v4314 = vld [vmem:[#allocation2 + $0x249] sm:$0xff]
    %v4315 = vld [vmem:[#allocation2 + $0x251] sm:$0xff]
    %v4316 = vld [vmem:[#allocation2 + $0x259] sm:$0xff]
    %v4317 = vld [vmem:[#allocation2 + $0x261] sm:$0xff]
    %v4318 = vld [vmem:[#allocation2 + $0x269] sm:$0xff]
    %v4319 = vld [vmem:[#allocation2 + $0x271] sm:$0xff]
    %v4320 = vld [vmem:[#allocation2 + $0x279] sm:$0xff]
    %v4321 = vld [vmem:[#allocation2 + $0x281] sm:$0xff]
    %v4322 = vld [vmem:[#allocation2 + $0x289] sm:$0xff]
    %v4323 = vld [vmem:[#allocation2 + $0x291] sm:$0xff]
    %v4324 = vld [vmem:[#allocation2 + $0x299] sm:$0xff]
    %v4325 = vld [vmem:[#allocation2 + $0x2a1] sm:$0xff]
    %v4326 = vld [vmem:[#allocation2 + $0x2a9] sm:$0xff]
    %s4327 = scalar_lea.vmem [#allocation6], 768
    %v4328 = vld [vmem:[%s4327] sm:$0xff]
    %v4329 = vld [vmem:[%s4327 + $0x8] sm:$0xff]
    %v4330 = vld [vmem:[%s4327 + $0x10] sm:$0xff]
    %v4331 = vld [vmem:[%s4327 + $0x18] sm:$0xff]
    %v4332 = vld [vmem:[%s4327 + $0x20] sm:$0xff]
    %v4333 = vld [vmem:[%s4327 + $0x28] sm:$0xff]
    %v4334 = vld [vmem:[%s4327 + $0x30] sm:$0xff]
    %v4335 = vld [vmem:[%s4327 + $0x38] sm:$0xff]
    %v4336 = vld [vmem:[%s4327 + $0x40] sm:$0xff]
    %v4337 = vld [vmem:[%s4327 + $0x48] sm:$0xff]
    %v4338 = vld [vmem:[%s4327 + $0x50] sm:$0xff]
    %v4339 = vld [vmem:[%s4327 + $0x58] sm:$0xff]
    %v4340 = vld [vmem:[%s4327 + $0x60] sm:$0xff]
    %v4341 = vld [vmem:[%s4327 + $0x68] sm:$0xff]
    %v4342 = vld [vmem:[%s4327 + $0x70] sm:$0xff]
    %v4343 = vld [vmem:[%s4327 + $0x78] sm:$0xff]
    %4344 = vmatpush.msra.mxu0 %v4343
    %4345 = vmatpush.msra.mxu0 %v4342
    %4346 = vmatpush.msra.mxu0 %v4341
    %4347 = vmatpush.msra.mxu0 %v4340
    %4348 = vmatpush.msra.mxu0 %v4339
    %4349 = vmatpush.msra.mxu0 %v4338
    %4350 = vmatpush.msra.mxu0 %v4337
    %4351 = vmatpush.msra.mxu0 %v4336
    %4352 = vmatpush.msra.mxu0 %v4335
    %4353 = vmatpush.msra.mxu0 %v4334
    %4354 = vmatpush.msra.mxu0 %v4333
    %4355 = vmatpush.msra.mxu0 %v4332
    %4356 = vmatpush.msra.mxu0 %v4331
    %4357 = vmatpush.msra.mxu0 %v4330
    %4358 = vmatpush.msra.mxu0 %v4329
    %4359 = vmatpush.msra.mxu0 %v4328
    %4360 = vmatmul.f32.gmra.mxu0 %v4246
    %v4361 = vpop.f32.mrf.mxu0
    %v4362 = vadd.f32 0.0, %v4361
    %4363 = vmatmul.f32.gmra.mxu0 %v4247
    %v4364 = vpop.f32.mrf.mxu0
    %v4365 = vadd.f32 0.0, %v4364
    %4366 = vmatmul.f32.gmra.mxu0 %v4248
    %v4367 = vpop.f32.mrf.mxu0
    %v4368 = vadd.f32 0.0, %v4367
    %4369 = vmatmul.f32.gmra.mxu0 %v4249
    %v4370 = vpop.f32.mrf.mxu0
    %v4371 = vadd.f32 0.0, %v4370
    %4372 = vmatmul.f32.gmra.mxu0 %v4250
    %v4373 = vpop.f32.mrf.mxu0
    %v4374 = vadd.f32 0.0, %v4373
    %4375 = vmatmul.f32.gmra.mxu0 %v4251
    %v4376 = vpop.f32.mrf.mxu0
    %v4377 = vadd.f32 0.0, %v4376
    %4378 = vmatmul.f32.gmra.mxu0 %v4252
    %v4379 = vpop.f32.mrf.mxu0
    %v4380 = vadd.f32 0.0, %v4379
    %4381 = vmatmul.f32.gmra.mxu0 %v4253
    %v4382 = vpop.f32.mrf.mxu0
    %v4383 = vadd.f32 0.0, %v4382
    %4384 = vmatmul.f32.gmra.mxu0 %v4254
    %v4385 = vpop.f32.mrf.mxu0
    %v4386 = vadd.f32 0.0, %v4385
    %4387 = vmatmul.f32.gmra.mxu0 %v4255
    %v4388 = vpop.f32.mrf.mxu0
    %v4389 = vadd.f32 0.0, %v4388
    %4390 = vmatmul.f32.gmra.mxu0 %v4256
    %v4391 = vpop.f32.mrf.mxu0
    %v4392 = vadd.f32 0.0, %v4391
    %4393 = vmatmul.f32.gmra.mxu0 %v4257
    %v4394 = vpop.f32.mrf.mxu0
    %v4395 = vadd.f32 0.0, %v4394
    %4396 = vmatmul.f32.gmra.mxu0 %v4258
    %v4397 = vpop.f32.mrf.mxu0
    %v4398 = vadd.f32 0.0, %v4397
    %4399 = vmatmul.f32.gmra.mxu0 %v4259
    %v4400 = vpop.f32.mrf.mxu0
    %v4401 = vadd.f32 0.0, %v4400
    %4402 = vmatmul.f32.gmra.mxu0 %v4260
    %v4403 = vpop.f32.mrf.mxu0
    %v4404 = vadd.f32 0.0, %v4403
    %4405 = vmatmul.f32.gmra.mxu0 %v4261
    %v4406 = vpop.f32.mrf.mxu0
    %v4407 = vadd.f32 0.0, %v4406
    %4408 = vmatmul.f32.gmra.mxu0 %v4262
    %v4409 = vpop.f32.mrf.mxu0
    %v4410 = vadd.f32 0.0, %v4409
    %4411 = vmatmul.f32.gmra.mxu0 %v4263
    %v4412 = vpop.f32.mrf.mxu0
    %v4413 = vadd.f32 0.0, %v4412
    %4414 = vmatmul.f32.gmra.mxu0 %v4264
    %v4415 = vpop.f32.mrf.mxu0
    %v4416 = vadd.f32 0.0, %v4415
    %4417 = vmatmul.f32.gmra.mxu0 %v4265
    %v4418 = vpop.f32.mrf.mxu0
    %v4419 = vadd.f32 0.0, %v4418
    %4420 = vmatmul.f32.gmra.mxu0 %v4266
    %v4421 = vpop.f32.mrf.mxu0
    %v4422 = vadd.f32 0.0, %v4421
    %4423 = vmatmul.f32.gmra.mxu0 %v4267
    %v4424 = vpop.f32.mrf.mxu0
    %v4425 = vadd.f32 0.0, %v4424
    %4426 = vmatmul.f32.gmra.mxu0 %v4268
    %v4427 = vpop.f32.mrf.mxu0
    %v4428 = vadd.f32 0.0, %v4427
    %4429 = vmatmul.f32.gmra.mxu0 %v4269
    %v4430 = vpop.f32.mrf.mxu0
    %v4431 = vadd.f32 0.0, %v4430
    %4432 = vmatmul.f32.gmra.mxu0 %v4270
    %v4433 = vpop.f32.mrf.mxu0
    %v4434 = vadd.f32 0.0, %v4433
    %4435 = vmatmul.f32.gmra.mxu0 %v4271
    %v4436 = vpop.f32.mrf.mxu0
    %v4437 = vadd.f32 0.0, %v4436
    %4438 = vmatmul.f32.gmra.mxu0 %v4272
    %v4439 = vpop.f32.mrf.mxu0
    %v4440 = vadd.f32 0.0, %v4439
    %4441 = vmatmul.f32.gmra.mxu0 %v4273
    %v4442 = vpop.f32.mrf.mxu0
    %v4443 = vadd.f32 0.0, %v4442
    %4444 = vmatmul.f32.gmra.mxu0 %v4274
    %v4445 = vpop.f32.mrf.mxu0
    %v4446 = vadd.f32 0.0, %v4445
    %4447 = vmatmul.f32.gmra.mxu0 %v4275
    %v4448 = vpop.f32.mrf.mxu0
    %v4449 = vadd.f32 0.0, %v4448
    %4450 = vmatmul.f32.gmra.mxu0 %v4276
    %v4451 = vpop.f32.mrf.mxu0
    %v4452 = vadd.f32 0.0, %v4451
    %4453 = vmatmul.f32.gmra.mxu0 %v4277
    %v4454 = vpop.f32.mrf.mxu0
    %v4455 = vadd.f32 0.0, %v4454
    %4456 = vmatmul.f32.gmra.mxu0 %v4278
    %v4457 = vpop.f32.mrf.mxu0
    %v4458 = vadd.f32 0.0, %v4457
    %4459 = vmatmul.f32.gmra.mxu0 %v4279
    %v4460 = vpop.f32.mrf.mxu0
    %v4461 = vadd.f32 0.0, %v4460
    %4462 = vmatmul.f32.gmra.mxu0 %v4280
    %v4463 = vpop.f32.mrf.mxu0
    %v4464 = vadd.f32 0.0, %v4463
    %4465 = vmatmul.f32.gmra.mxu0 %v4281
    %v4466 = vpop.f32.mrf.mxu0
    %v4467 = vadd.f32 0.0, %v4466
    %4468 = vmatmul.f32.gmra.mxu0 %v4282
    %v4469 = vpop.f32.mrf.mxu0
    %v4470 = vadd.f32 0.0, %v4469
    %4471 = vmatmul.f32.gmra.mxu0 %v4283
    %v4472 = vpop.f32.mrf.mxu0
    %v4473 = vadd.f32 0.0, %v4472
    %4474 = vmatmul.f32.gmra.mxu0 %v4284
    %v4475 = vpop.f32.mrf.mxu0
    %v4476 = vadd.f32 0.0, %v4475
    %4477 = vmatmul.f32.gmra.mxu0 %v4285
    %v4478 = vpop.f32.mrf.mxu0
    %v4479 = vadd.f32 0.0, %v4478
    %4480 = vmatmul.f32.gmra.mxu0 %v4286
    %v4481 = vpop.f32.mrf.mxu0
    %v4482 = vadd.f32 0.0, %v4481
    %4483 = vmatmul.f32.gmra.mxu0 %v4287
    %v4484 = vpop.f32.mrf.mxu0
    %v4485 = vadd.f32 0.0, %v4484
    %4486 = vmatmul.f32.gmra.mxu0 %v4288
    %v4487 = vpop.f32.mrf.mxu0
    %v4488 = vadd.f32 0.0, %v4487
    %4489 = vmatmul.f32.gmra.mxu0 %v4289
    %v4490 = vpop.f32.mrf.mxu0
    %v4491 = vadd.f32 0.0, %v4490
    %4492 = vmatmul.f32.gmra.mxu0 %v4290
    %v4493 = vpop.f32.mrf.mxu0
    %v4494 = vadd.f32 0.0, %v4493
    %4495 = vmatmul.f32.gmra.mxu0 %v4291
    %v4496 = vpop.f32.mrf.mxu0
    %v4497 = vadd.f32 0.0, %v4496
    %4498 = vmatmul.f32.gmra.mxu0 %v4292
    %v4499 = vpop.f32.mrf.mxu0
    %v4500 = vadd.f32 0.0, %v4499
    %4501 = vmatmul.f32.gmra.mxu0 %v4293
    %v4502 = vpop.f32.mrf.mxu0
    %v4503 = vadd.f32 0.0, %v4502
    %4504 = vmatmul.f32.gmra.mxu0 %v4294
    %v4505 = vpop.f32.mrf.mxu0
    %v4506 = vadd.f32 0.0, %v4505
    %4507 = vmatmul.f32.gmra.mxu0 %v4295
    %v4508 = vpop.f32.mrf.mxu0
    %v4509 = vadd.f32 0.0, %v4508
    %4510 = vmatmul.f32.gmra.mxu0 %v4296
    %v4511 = vpop.f32.mrf.mxu0
    %v4512 = vadd.f32 0.0, %v4511
    %4513 = vmatmul.f32.gmra.mxu0 %v4297
    %v4514 = vpop.f32.mrf.mxu0
    %v4515 = vadd.f32 0.0, %v4514
    %4516 = vmatmul.f32.gmra.mxu0 %v4298
    %v4517 = vpop.f32.mrf.mxu0
    %v4518 = vadd.f32 0.0, %v4517
    %4519 = vmatmul.f32.gmra.mxu0 %v4299
    %v4520 = vpop.f32.mrf.mxu0
    %v4521 = vadd.f32 0.0, %v4520
    %4522 = vmatmul.f32.gmra.mxu0 %v4300
    %v4523 = vpop.f32.mrf.mxu0
    %v4524 = vadd.f32 0.0, %v4523
    %4525 = vmatmul.f32.gmra.mxu0 %v4301
    %v4526 = vpop.f32.mrf.mxu0
    %v4527 = vadd.f32 0.0, %v4526
    %4528 = vmatmul.f32.gmra.mxu0 %v4302
    %v4529 = vpop.f32.mrf.mxu0
    %v4530 = vadd.f32 0.0, %v4529
    %4531 = vmatmul.f32.gmra.mxu0 %v4303
    %v4532 = vpop.f32.mrf.mxu0
    %v4533 = vadd.f32 0.0, %v4532
    %4534 = vmatmul.f32.gmra.mxu0 %v4304
    %v4535 = vpop.f32.mrf.mxu0
    %v4536 = vadd.f32 0.0, %v4535
    %4537 = vmatmul.f32.gmra.mxu0 %v4305
    %v4538 = vpop.f32.mrf.mxu0
    %v4539 = vadd.f32 0.0, %v4538
    %4540 = vmatmul.f32.gmra.mxu0 %v4306
    %v4541 = vpop.f32.mrf.mxu0
    %v4542 = vadd.f32 0.0, %v4541
    %4543 = vmatmul.f32.gmra.mxu0 %v4307
    %v4544 = vpop.f32.mrf.mxu0
    %v4545 = vadd.f32 0.0, %v4544
    %4546 = vmatmul.f32.gmra.mxu0 %v4308
    %v4547 = vpop.f32.mrf.mxu0
    %v4548 = vadd.f32 0.0, %v4547
    %4549 = vmatmul.f32.gmra.mxu0 %v4309
    %v4550 = vpop.f32.mrf.mxu0
    %v4551 = vadd.f32 0.0, %v4550
    %4552 = vmatmul.f32.gmra.mxu0 %v4310
    %v4553 = vpop.f32.mrf.mxu0
    %v4554 = vadd.f32 0.0, %v4553
    %4555 = vmatmul.f32.gmra.mxu0 %v4311
    %v4556 = vpop.f32.mrf.mxu0
    %v4557 = vadd.f32 0.0, %v4556
    %4558 = vmatmul.f32.gmra.mxu0 %v4312
    %v4559 = vpop.f32.mrf.mxu0
    %v4560 = vadd.f32 0.0, %v4559
    %4561 = vmatmul.f32.gmra.mxu0 %v4313
    %v4562 = vpop.f32.mrf.mxu0
    %v4563 = vadd.f32 0.0, %v4562
    %4564 = vmatmul.f32.gmra.mxu0 %v4314
    %v4565 = vpop.f32.mrf.mxu0
    %v4566 = vadd.f32 0.0, %v4565
    %4567 = vmatmul.f32.gmra.mxu0 %v4315
    %v4568 = vpop.f32.mrf.mxu0
    %v4569 = vadd.f32 0.0, %v4568
    %4570 = vmatmul.f32.gmra.mxu0 %v4316
    %v4571 = vpop.f32.mrf.mxu0
    %v4572 = vadd.f32 0.0, %v4571
    %4573 = vmatmul.f32.gmra.mxu0 %v4317
    %v4574 = vpop.f32.mrf.mxu0
    %v4575 = vadd.f32 0.0, %v4574
    %4576 = vmatmul.f32.gmra.mxu0 %v4318
    %v4577 = vpop.f32.mrf.mxu0
    %v4578 = vadd.f32 0.0, %v4577
    %4579 = vmatmul.f32.gmra.mxu0 %v4319
    %v4580 = vpop.f32.mrf.mxu0
    %v4581 = vadd.f32 0.0, %v4580
    %4582 = vmatmul.f32.gmra.mxu0 %v4320
    %v4583 = vpop.f32.mrf.mxu0
    %v4584 = vadd.f32 0.0, %v4583
    %4585 = vmatmul.f32.gmra.mxu0 %v4321
    %v4586 = vpop.f32.mrf.mxu0
    %v4587 = vadd.f32 0.0, %v4586
    %4588 = vmatmul.f32.gmra.mxu0 %v4322
    %v4589 = vpop.f32.mrf.mxu0
    %v4590 = vadd.f32 0.0, %v4589
    %4591 = vmatmul.f32.gmra.mxu0 %v4323
    %v4592 = vpop.f32.mrf.mxu0
    %v4593 = vadd.f32 0.0, %v4592
    %4594 = vmatmul.f32.gmra.mxu0 %v4324
    %v4595 = vpop.f32.mrf.mxu0
    %v4596 = vadd.f32 0.0, %v4595
    %4597 = vmatmul.f32.gmra.mxu0 %v4325
    %v4598 = vpop.f32.mrf.mxu0
    %v4599 = vadd.f32 0.0, %v4598
    %4600 = vmatmul.f32.gmra.mxu0 %v4326
    %v4601 = vpop.f32.mrf.mxu0
    %v4602 = vadd.f32 0.0, %v4601
    %4603 = vdwg.mxu0
    %v4604 = vadd.f32 %v4165, %v4362
    %v4605 = vadd.f32 %v4166, %v4365
    %v4606 = vadd.f32 %v4167, %v4368
    %v4607 = vadd.f32 %v4168, %v4371
    %v4608 = vadd.f32 %v4169, %v4374
    %v4609 = vadd.f32 %v4170, %v4377
    %v4610 = vadd.f32 %v4171, %v4380
    %v4611 = vadd.f32 %v4172, %v4383
    %v4612 = vadd.f32 %v4173, %v4386
    %v4613 = vadd.f32 %v4174, %v4389
    %v4614 = vadd.f32 %v4175, %v4392
    %v4615 = vadd.f32 %v4176, %v4395
    %v4616 = vadd.f32 %v4177, %v4398
    %v4617 = vadd.f32 %v4178, %v4401
    %v4618 = vadd.f32 %v4179, %v4404
    %v4619 = vadd.f32 %v4180, %v4407
    %v4620 = vadd.f32 %v4181, %v4410
    %v4621 = vadd.f32 %v4182, %v4413
    %v4622 = vadd.f32 %v4183, %v4416
    %v4623 = vadd.f32 %v4184, %v4419
    %v4624 = vadd.f32 %v4185, %v4422
    %v4625 = vadd.f32 %v4186, %v4425
    %v4626 = vadd.f32 %v4187, %v4428
    %v4627 = vadd.f32 %v4188, %v4431
    %v4628 = vadd.f32 %v4189, %v4434
    %v4629 = vadd.f32 %v4190, %v4437
    %v4630 = vadd.f32 %v4191, %v4440
    %v4631 = vadd.f32 %v4192, %v4443
    %v4632 = vadd.f32 %v4193, %v4446
    %v4633 = vadd.f32 %v4194, %v4449
    %v4634 = vadd.f32 %v4195, %v4452
    %v4635 = vadd.f32 %v4196, %v4455
    %v4636 = vadd.f32 %v4197, %v4458
    %v4637 = vadd.f32 %v4198, %v4461
    %v4638 = vadd.f32 %v4199, %v4464
    %v4639 = vadd.f32 %v4200, %v4467
    %v4640 = vadd.f32 %v4201, %v4470
    %v4641 = vadd.f32 %v4202, %v4473
    %v4642 = vadd.f32 %v4203, %v4476
    %v4643 = vadd.f32 %v4204, %v4479
    %v4644 = vadd.f32 %v4205, %v4482
    %v4645 = vadd.f32 %v4206, %v4485
    %v4646 = vadd.f32 %v4207, %v4488
    %v4647 = vadd.f32 %v4208, %v4491
    %v4648 = vadd.f32 %v4209, %v4494
    %v4649 = vadd.f32 %v4210, %v4497
    %v4650 = vadd.f32 %v4211, %v4500
    %v4651 = vadd.f32 %v4212, %v4503
    %v4652 = vadd.f32 %v4213, %v4506
    %v4653 = vadd.f32 %v4214, %v4509
    %v4654 = vadd.f32 %v4215, %v4512
    %v4655 = vadd.f32 %v4216, %v4515
    %v4656 = vadd.f32 %v4217, %v4518
    %v4657 = vadd.f32 %v4218, %v4521
    %v4658 = vadd.f32 %v4219, %v4524
    %v4659 = vadd.f32 %v4220, %v4527
    %v4660 = vadd.f32 %v4221, %v4530
    %v4661 = vadd.f32 %v4222, %v4533
    %v4662 = vadd.f32 %v4223, %v4536
    %v4663 = vadd.f32 %v4224, %v4539
    %v4664 = vadd.f32 %v4225, %v4542
    %v4665 = vadd.f32 %v4226, %v4545
    %v4666 = vadd.f32 %v4227, %v4548
    %v4667 = vadd.f32 %v4228, %v4551
    %v4668 = vadd.f32 %v4229, %v4554
    %v4669 = vadd.f32 %v4230, %v4557
    %v4670 = vadd.f32 %v4231, %v4560
    %v4671 = vadd.f32 %v4232, %v4563
    %v4672 = vadd.f32 %v4233, %v4566
    %v4673 = vadd.f32 %v4234, %v4569
    %v4674 = vadd.f32 %v4235, %v4572
    %v4675 = vadd.f32 %v4236, %v4575
    %v4676 = vadd.f32 %v4237, %v4578
    %v4677 = vadd.f32 %v4238, %v4581
    %v4678 = vadd.f32 %v4239, %v4584
    %v4679 = vadd.f32 %v4240, %v4587
    %v4680 = vadd.f32 %v4241, %v4590
    %v4681 = vadd.f32 %v4242, %v4593
    %v4682 = vadd.f32 %v4243, %v4596
    %v4683 = vadd.f32 %v4244, %v4599
    %v4684 = vadd.f32 %v4245, %v4602
    %v4685 = vld [vmem:[#allocation2 + $0x2a] sm:$0xff]
    %v4686 = vld [vmem:[#allocation2 + $0x32] sm:$0xff]
    %v4687 = vld [vmem:[#allocation2 + $0x3a] sm:$0xff]
    %v4688 = vld [vmem:[#allocation2 + $0x42] sm:$0xff]
    %v4689 = vld [vmem:[#allocation2 + $0x4a] sm:$0xff]
    %v4690 = vld [vmem:[#allocation2 + $0x52] sm:$0xff]
    %v4691 = vld [vmem:[#allocation2 + $0x5a] sm:$0xff]
    %v4692 = vld [vmem:[#allocation2 + $0x62] sm:$0xff]
    %v4693 = vld [vmem:[#allocation2 + $0x6a] sm:$0xff]
    %v4694 = vld [vmem:[#allocation2 + $0x72] sm:$0xff]
    %v4695 = vld [vmem:[#allocation2 + $0x7a] sm:$0xff]
    %v4696 = vld [vmem:[#allocation2 + $0x82] sm:$0xff]
    %v4697 = vld [vmem:[#allocation2 + $0x8a] sm:$0xff]
    %v4698 = vld [vmem:[#allocation2 + $0x92] sm:$0xff]
    %v4699 = vld [vmem:[#allocation2 + $0x9a] sm:$0xff]
    %v4700 = vld [vmem:[#allocation2 + $0xa2] sm:$0xff]
    %v4701 = vld [vmem:[#allocation2 + $0xaa] sm:$0xff]
    %v4702 = vld [vmem:[#allocation2 + $0xb2] sm:$0xff]
    %v4703 = vld [vmem:[#allocation2 + $0xba] sm:$0xff]
    %v4704 = vld [vmem:[#allocation2 + $0xc2] sm:$0xff]
    %v4705 = vld [vmem:[#allocation2 + $0xca] sm:$0xff]
    %v4706 = vld [vmem:[#allocation2 + $0xd2] sm:$0xff]
    %v4707 = vld [vmem:[#allocation2 + $0xda] sm:$0xff]
    %v4708 = vld [vmem:[#allocation2 + $0xe2] sm:$0xff]
    %v4709 = vld [vmem:[#allocation2 + $0xea] sm:$0xff]
    %v4710 = vld [vmem:[#allocation2 + $0xf2] sm:$0xff]
    %v4711 = vld [vmem:[#allocation2 + $0xfa] sm:$0xff]
    %v4712 = vld [vmem:[#allocation2 + $0x102] sm:$0xff]
    %v4713 = vld [vmem:[#allocation2 + $0x10a] sm:$0xff]
    %v4714 = vld [vmem:[#allocation2 + $0x112] sm:$0xff]
    %v4715 = vld [vmem:[#allocation2 + $0x11a] sm:$0xff]
    %v4716 = vld [vmem:[#allocation2 + $0x122] sm:$0xff]
    %v4717 = vld [vmem:[#allocation2 + $0x12a] sm:$0xff]
    %v4718 = vld [vmem:[#allocation2 + $0x132] sm:$0xff]
    %v4719 = vld [vmem:[#allocation2 + $0x13a] sm:$0xff]
    %v4720 = vld [vmem:[#allocation2 + $0x142] sm:$0xff]
    %v4721 = vld [vmem:[#allocation2 + $0x14a] sm:$0xff]
    %v4722 = vld [vmem:[#allocation2 + $0x152] sm:$0xff]
    %v4723 = vld [vmem:[#allocation2 + $0x15a] sm:$0xff]
    %v4724 = vld [vmem:[#allocation2 + $0x162] sm:$0xff]
    %v4725 = vld [vmem:[#allocation2 + $0x16a] sm:$0xff]
    %v4726 = vld [vmem:[#allocation2 + $0x172] sm:$0xff]
    %v4727 = vld [vmem:[#allocation2 + $0x17a] sm:$0xff]
    %v4728 = vld [vmem:[#allocation2 + $0x182] sm:$0xff]
    %v4729 = vld [vmem:[#allocation2 + $0x18a] sm:$0xff]
    %v4730 = vld [vmem:[#allocation2 + $0x192] sm:$0xff]
    %v4731 = vld [vmem:[#allocation2 + $0x19a] sm:$0xff]
    %v4732 = vld [vmem:[#allocation2 + $0x1a2] sm:$0xff]
    %v4733 = vld [vmem:[#allocation2 + $0x1aa] sm:$0xff]
    %v4734 = vld [vmem:[#allocation2 + $0x1b2] sm:$0xff]
    %v4735 = vld [vmem:[#allocation2 + $0x1ba] sm:$0xff]
    %v4736 = vld [vmem:[#allocation2 + $0x1c2] sm:$0xff]
    %v4737 = vld [vmem:[#allocation2 + $0x1ca] sm:$0xff]
    %v4738 = vld [vmem:[#allocation2 + $0x1d2] sm:$0xff]
    %v4739 = vld [vmem:[#allocation2 + $0x1da] sm:$0xff]
    %v4740 = vld [vmem:[#allocation2 + $0x1e2] sm:$0xff]
    %v4741 = vld [vmem:[#allocation2 + $0x1ea] sm:$0xff]
    %v4742 = vld [vmem:[#allocation2 + $0x1f2] sm:$0xff]
    %v4743 = vld [vmem:[#allocation2 + $0x1fa] sm:$0xff]
    %v4744 = vld [vmem:[#allocation2 + $0x202] sm:$0xff]
    %v4745 = vld [vmem:[#allocation2 + $0x20a] sm:$0xff]
    %v4746 = vld [vmem:[#allocation2 + $0x212] sm:$0xff]
    %v4747 = vld [vmem:[#allocation2 + $0x21a] sm:$0xff]
    %v4748 = vld [vmem:[#allocation2 + $0x222] sm:$0xff]
    %v4749 = vld [vmem:[#allocation2 + $0x22a] sm:$0xff]
    %v4750 = vld [vmem:[#allocation2 + $0x232] sm:$0xff]
    %v4751 = vld [vmem:[#allocation2 + $0x23a] sm:$0xff]
    %v4752 = vld [vmem:[#allocation2 + $0x242] sm:$0xff]
    %v4753 = vld [vmem:[#allocation2 + $0x24a] sm:$0xff]
    %v4754 = vld [vmem:[#allocation2 + $0x252] sm:$0xff]
    %v4755 = vld [vmem:[#allocation2 + $0x25a] sm:$0xff]
    %v4756 = vld [vmem:[#allocation2 + $0x262] sm:$0xff]
    %v4757 = vld [vmem:[#allocation2 + $0x26a] sm:$0xff]
    %v4758 = vld [vmem:[#allocation2 + $0x272] sm:$0xff]
    %v4759 = vld [vmem:[#allocation2 + $0x27a] sm:$0xff]
    %v4760 = vld [vmem:[#allocation2 + $0x282] sm:$0xff]
    %v4761 = vld [vmem:[#allocation2 + $0x28a] sm:$0xff]
    %v4762 = vld [vmem:[#allocation2 + $0x292] sm:$0xff]
    %v4763 = vld [vmem:[#allocation2 + $0x29a] sm:$0xff]
    %v4764 = vld [vmem:[#allocation2 + $0x2a2] sm:$0xff]
    %v4765 = vld [vmem:[#allocation2 + $0x2aa] sm:$0xff]
    %s4766 = scalar_lea.vmem [#allocation6], 896
    %v4767 = vld [vmem:[%s4766] sm:$0xff]
    %v4768 = vld [vmem:[%s4766 + $0x8] sm:$0xff]
    %v4769 = vld [vmem:[%s4766 + $0x10] sm:$0xff]
    %v4770 = vld [vmem:[%s4766 + $0x18] sm:$0xff]
    %v4771 = vld [vmem:[%s4766 + $0x20] sm:$0xff]
    %v4772 = vld [vmem:[%s4766 + $0x28] sm:$0xff]
    %v4773 = vld [vmem:[%s4766 + $0x30] sm:$0xff]
    %v4774 = vld [vmem:[%s4766 + $0x38] sm:$0xff]
    %v4775 = vld [vmem:[%s4766 + $0x40] sm:$0xff]
    %v4776 = vld [vmem:[%s4766 + $0x48] sm:$0xff]
    %v4777 = vld [vmem:[%s4766 + $0x50] sm:$0xff]
    %v4778 = vld [vmem:[%s4766 + $0x58] sm:$0xff]
    %v4779 = vld [vmem:[%s4766 + $0x60] sm:$0xff]
    %v4780 = vld [vmem:[%s4766 + $0x68] sm:$0xff]
    %v4781 = vld [vmem:[%s4766 + $0x70] sm:$0xff]
    %v4782 = vld [vmem:[%s4766 + $0x78] sm:$0xff]
    %4783 = vmatpush.msra.mxu0 %v4782
    %4784 = vmatpush.msra.mxu0 %v4781
    %4785 = vmatpush.msra.mxu0 %v4780
    %4786 = vmatpush.msra.mxu0 %v4779
    %4787 = vmatpush.msra.mxu0 %v4778
    %4788 = vmatpush.msra.mxu0 %v4777
    %4789 = vmatpush.msra.mxu0 %v4776
    %4790 = vmatpush.msra.mxu0 %v4775
    %4791 = vmatpush.msra.mxu0 %v4774
    %4792 = vmatpush.msra.mxu0 %v4773
    %4793 = vmatpush.msra.mxu0 %v4772
    %4794 = vmatpush.msra.mxu0 %v4771
    %4795 = vmatpush.msra.mxu0 %v4770
    %4796 = vmatpush.msra.mxu0 %v4769
    %4797 = vmatpush.msra.mxu0 %v4768
    %4798 = vmatpush.msra.mxu0 %v4767
    %4799 = vmatmul.f32.gmra.mxu0 %v4685
    %v4800 = vpop.f32.mrf.mxu0
    %v4801 = vadd.f32 0.0, %v4800
    %4802 = vmatmul.f32.gmra.mxu0 %v4686
    %v4803 = vpop.f32.mrf.mxu0
    %v4804 = vadd.f32 0.0, %v4803
    %4805 = vmatmul.f32.gmra.mxu0 %v4687
    %v4806 = vpop.f32.mrf.mxu0
    %v4807 = vadd.f32 0.0, %v4806
    %4808 = vmatmul.f32.gmra.mxu0 %v4688
    %v4809 = vpop.f32.mrf.mxu0
    %v4810 = vadd.f32 0.0, %v4809
    %4811 = vmatmul.f32.gmra.mxu0 %v4689
    %v4812 = vpop.f32.mrf.mxu0
    %v4813 = vadd.f32 0.0, %v4812
    %4814 = vmatmul.f32.gmra.mxu0 %v4690
    %v4815 = vpop.f32.mrf.mxu0
    %v4816 = vadd.f32 0.0, %v4815
    %4817 = vmatmul.f32.gmra.mxu0 %v4691
    %v4818 = vpop.f32.mrf.mxu0
    %v4819 = vadd.f32 0.0, %v4818
    %4820 = vmatmul.f32.gmra.mxu0 %v4692
    %v4821 = vpop.f32.mrf.mxu0
    %v4822 = vadd.f32 0.0, %v4821
    %4823 = vmatmul.f32.gmra.mxu0 %v4693
    %v4824 = vpop.f32.mrf.mxu0
    %v4825 = vadd.f32 0.0, %v4824
    %4826 = vmatmul.f32.gmra.mxu0 %v4694
    %v4827 = vpop.f32.mrf.mxu0
    %v4828 = vadd.f32 0.0, %v4827
    %4829 = vmatmul.f32.gmra.mxu0 %v4695
    %v4830 = vpop.f32.mrf.mxu0
    %v4831 = vadd.f32 0.0, %v4830
    %4832 = vmatmul.f32.gmra.mxu0 %v4696
    %v4833 = vpop.f32.mrf.mxu0
    %v4834 = vadd.f32 0.0, %v4833
    %4835 = vmatmul.f32.gmra.mxu0 %v4697
    %v4836 = vpop.f32.mrf.mxu0
    %v4837 = vadd.f32 0.0, %v4836
    %4838 = vmatmul.f32.gmra.mxu0 %v4698
    %v4839 = vpop.f32.mrf.mxu0
    %v4840 = vadd.f32 0.0, %v4839
    %4841 = vmatmul.f32.gmra.mxu0 %v4699
    %v4842 = vpop.f32.mrf.mxu0
    %v4843 = vadd.f32 0.0, %v4842
    %4844 = vmatmul.f32.gmra.mxu0 %v4700
    %v4845 = vpop.f32.mrf.mxu0
    %v4846 = vadd.f32 0.0, %v4845
    %4847 = vmatmul.f32.gmra.mxu0 %v4701
    %v4848 = vpop.f32.mrf.mxu0
    %v4849 = vadd.f32 0.0, %v4848
    %4850 = vmatmul.f32.gmra.mxu0 %v4702
    %v4851 = vpop.f32.mrf.mxu0
    %v4852 = vadd.f32 0.0, %v4851
    %4853 = vmatmul.f32.gmra.mxu0 %v4703
    %v4854 = vpop.f32.mrf.mxu0
    %v4855 = vadd.f32 0.0, %v4854
    %4856 = vmatmul.f32.gmra.mxu0 %v4704
    %v4857 = vpop.f32.mrf.mxu0
    %v4858 = vadd.f32 0.0, %v4857
    %4859 = vmatmul.f32.gmra.mxu0 %v4705
    %v4860 = vpop.f32.mrf.mxu0
    %v4861 = vadd.f32 0.0, %v4860
    %4862 = vmatmul.f32.gmra.mxu0 %v4706
    %v4863 = vpop.f32.mrf.mxu0
    %v4864 = vadd.f32 0.0, %v4863
    %4865 = vmatmul.f32.gmra.mxu0 %v4707
    %v4866 = vpop.f32.mrf.mxu0
    %v4867 = vadd.f32 0.0, %v4866
    %4868 = vmatmul.f32.gmra.mxu0 %v4708
    %v4869 = vpop.f32.mrf.mxu0
    %v4870 = vadd.f32 0.0, %v4869
    %4871 = vmatmul.f32.gmra.mxu0 %v4709
    %v4872 = vpop.f32.mrf.mxu0
    %v4873 = vadd.f32 0.0, %v4872
    %4874 = vmatmul.f32.gmra.mxu0 %v4710
    %v4875 = vpop.f32.mrf.mxu0
    %v4876 = vadd.f32 0.0, %v4875
    %4877 = vmatmul.f32.gmra.mxu0 %v4711
    %v4878 = vpop.f32.mrf.mxu0
    %v4879 = vadd.f32 0.0, %v4878
    %4880 = vmatmul.f32.gmra.mxu0 %v4712
    %v4881 = vpop.f32.mrf.mxu0
    %v4882 = vadd.f32 0.0, %v4881
    %4883 = vmatmul.f32.gmra.mxu0 %v4713
    %v4884 = vpop.f32.mrf.mxu0
    %v4885 = vadd.f32 0.0, %v4884
    %4886 = vmatmul.f32.gmra.mxu0 %v4714
    %v4887 = vpop.f32.mrf.mxu0
    %v4888 = vadd.f32 0.0, %v4887
    %4889 = vmatmul.f32.gmra.mxu0 %v4715
    %v4890 = vpop.f32.mrf.mxu0
    %v4891 = vadd.f32 0.0, %v4890
    %4892 = vmatmul.f32.gmra.mxu0 %v4716
    %v4893 = vpop.f32.mrf.mxu0
    %v4894 = vadd.f32 0.0, %v4893
    %4895 = vmatmul.f32.gmra.mxu0 %v4717
    %v4896 = vpop.f32.mrf.mxu0
    %v4897 = vadd.f32 0.0, %v4896
    %4898 = vmatmul.f32.gmra.mxu0 %v4718
    %v4899 = vpop.f32.mrf.mxu0
    %v4900 = vadd.f32 0.0, %v4899
    %4901 = vmatmul.f32.gmra.mxu0 %v4719
    %v4902 = vpop.f32.mrf.mxu0
    %v4903 = vadd.f32 0.0, %v4902
    %4904 = vmatmul.f32.gmra.mxu0 %v4720
    %v4905 = vpop.f32.mrf.mxu0
    %v4906 = vadd.f32 0.0, %v4905
    %4907 = vmatmul.f32.gmra.mxu0 %v4721
    %v4908 = vpop.f32.mrf.mxu0
    %v4909 = vadd.f32 0.0, %v4908
    %4910 = vmatmul.f32.gmra.mxu0 %v4722
    %v4911 = vpop.f32.mrf.mxu0
    %v4912 = vadd.f32 0.0, %v4911
    %4913 = vmatmul.f32.gmra.mxu0 %v4723
    %v4914 = vpop.f32.mrf.mxu0
    %v4915 = vadd.f32 0.0, %v4914
    %4916 = vmatmul.f32.gmra.mxu0 %v4724
    %v4917 = vpop.f32.mrf.mxu0
    %v4918 = vadd.f32 0.0, %v4917
    %4919 = vmatmul.f32.gmra.mxu0 %v4725
    %v4920 = vpop.f32.mrf.mxu0
    %v4921 = vadd.f32 0.0, %v4920
    %4922 = vmatmul.f32.gmra.mxu0 %v4726
    %v4923 = vpop.f32.mrf.mxu0
    %v4924 = vadd.f32 0.0, %v4923
    %4925 = vmatmul.f32.gmra.mxu0 %v4727
    %v4926 = vpop.f32.mrf.mxu0
    %v4927 = vadd.f32 0.0, %v4926
    %4928 = vmatmul.f32.gmra.mxu0 %v4728
    %v4929 = vpop.f32.mrf.mxu0
    %v4930 = vadd.f32 0.0, %v4929
    %4931 = vmatmul.f32.gmra.mxu0 %v4729
    %v4932 = vpop.f32.mrf.mxu0
    %v4933 = vadd.f32 0.0, %v4932
    %4934 = vmatmul.f32.gmra.mxu0 %v4730
    %v4935 = vpop.f32.mrf.mxu0
    %v4936 = vadd.f32 0.0, %v4935
    %4937 = vmatmul.f32.gmra.mxu0 %v4731
    %v4938 = vpop.f32.mrf.mxu0
    %v4939 = vadd.f32 0.0, %v4938
    %4940 = vmatmul.f32.gmra.mxu0 %v4732
    %v4941 = vpop.f32.mrf.mxu0
    %v4942 = vadd.f32 0.0, %v4941
    %4943 = vmatmul.f32.gmra.mxu0 %v4733
    %v4944 = vpop.f32.mrf.mxu0
    %v4945 = vadd.f32 0.0, %v4944
    %4946 = vmatmul.f32.gmra.mxu0 %v4734
    %v4947 = vpop.f32.mrf.mxu0
    %v4948 = vadd.f32 0.0, %v4947
    %4949 = vmatmul.f32.gmra.mxu0 %v4735
    %v4950 = vpop.f32.mrf.mxu0
    %v4951 = vadd.f32 0.0, %v4950
    %4952 = vmatmul.f32.gmra.mxu0 %v4736
    %v4953 = vpop.f32.mrf.mxu0
    %v4954 = vadd.f32 0.0, %v4953
    %4955 = vmatmul.f32.gmra.mxu0 %v4737
    %v4956 = vpop.f32.mrf.mxu0
    %v4957 = vadd.f32 0.0, %v4956
    %4958 = vmatmul.f32.gmra.mxu0 %v4738
    %v4959 = vpop.f32.mrf.mxu0
    %v4960 = vadd.f32 0.0, %v4959
    %4961 = vmatmul.f32.gmra.mxu0 %v4739
    %v4962 = vpop.f32.mrf.mxu0
    %v4963 = vadd.f32 0.0, %v4962
    %4964 = vmatmul.f32.gmra.mxu0 %v4740
    %v4965 = vpop.f32.mrf.mxu0
    %v4966 = vadd.f32 0.0, %v4965
    %4967 = vmatmul.f32.gmra.mxu0 %v4741
    %v4968 = vpop.f32.mrf.mxu0
    %v4969 = vadd.f32 0.0, %v4968
    %4970 = vmatmul.f32.gmra.mxu0 %v4742
    %v4971 = vpop.f32.mrf.mxu0
    %v4972 = vadd.f32 0.0, %v4971
    %4973 = vmatmul.f32.gmra.mxu0 %v4743
    %v4974 = vpop.f32.mrf.mxu0
    %v4975 = vadd.f32 0.0, %v4974
    %4976 = vmatmul.f32.gmra.mxu0 %v4744
    %v4977 = vpop.f32.mrf.mxu0
    %v4978 = vadd.f32 0.0, %v4977
    %4979 = vmatmul.f32.gmra.mxu0 %v4745
    %v4980 = vpop.f32.mrf.mxu0
    %v4981 = vadd.f32 0.0, %v4980
    %4982 = vmatmul.f32.gmra.mxu0 %v4746
    %v4983 = vpop.f32.mrf.mxu0
    %v4984 = vadd.f32 0.0, %v4983
    %4985 = vmatmul.f32.gmra.mxu0 %v4747
    %v4986 = vpop.f32.mrf.mxu0
    %v4987 = vadd.f32 0.0, %v4986
    %4988 = vmatmul.f32.gmra.mxu0 %v4748
    %v4989 = vpop.f32.mrf.mxu0
    %v4990 = vadd.f32 0.0, %v4989
    %4991 = vmatmul.f32.gmra.mxu0 %v4749
    %v4992 = vpop.f32.mrf.mxu0
    %v4993 = vadd.f32 0.0, %v4992
    %4994 = vmatmul.f32.gmra.mxu0 %v4750
    %v4995 = vpop.f32.mrf.mxu0
    %v4996 = vadd.f32 0.0, %v4995
    %4997 = vmatmul.f32.gmra.mxu0 %v4751
    %v4998 = vpop.f32.mrf.mxu0
    %v4999 = vadd.f32 0.0, %v4998
    %5000 = vmatmul.f32.gmra.mxu0 %v4752
    %v5001 = vpop.f32.mrf.mxu0
    %v5002 = vadd.f32 0.0, %v5001
    %5003 = vmatmul.f32.gmra.mxu0 %v4753
    %v5004 = vpop.f32.mrf.mxu0
    %v5005 = vadd.f32 0.0, %v5004
    %5006 = vmatmul.f32.gmra.mxu0 %v4754
    %v5007 = vpop.f32.mrf.mxu0
    %v5008 = vadd.f32 0.0, %v5007
    %5009 = vmatmul.f32.gmra.mxu0 %v4755
    %v5010 = vpop.f32.mrf.mxu0
    %v5011 = vadd.f32 0.0, %v5010
    %5012 = vmatmul.f32.gmra.mxu0 %v4756
    %v5013 = vpop.f32.mrf.mxu0
    %v5014 = vadd.f32 0.0, %v5013
    %5015 = vmatmul.f32.gmra.mxu0 %v4757
    %v5016 = vpop.f32.mrf.mxu0
    %v5017 = vadd.f32 0.0, %v5016
    %5018 = vmatmul.f32.gmra.mxu0 %v4758
    %v5019 = vpop.f32.mrf.mxu0
    %v5020 = vadd.f32 0.0, %v5019
    %5021 = vmatmul.f32.gmra.mxu0 %v4759
    %v5022 = vpop.f32.mrf.mxu0
    %v5023 = vadd.f32 0.0, %v5022
    %5024 = vmatmul.f32.gmra.mxu0 %v4760
    %v5025 = vpop.f32.mrf.mxu0
    %v5026 = vadd.f32 0.0, %v5025
    %5027 = vmatmul.f32.gmra.mxu0 %v4761
    %v5028 = vpop.f32.mrf.mxu0
    %v5029 = vadd.f32 0.0, %v5028
    %5030 = vmatmul.f32.gmra.mxu0 %v4762
    %v5031 = vpop.f32.mrf.mxu0
    %v5032 = vadd.f32 0.0, %v5031
    %5033 = vmatmul.f32.gmra.mxu0 %v4763
    %v5034 = vpop.f32.mrf.mxu0
    %v5035 = vadd.f32 0.0, %v5034
    %5036 = vmatmul.f32.gmra.mxu0 %v4764
    %v5037 = vpop.f32.mrf.mxu0
    %v5038 = vadd.f32 0.0, %v5037
    %5039 = vmatmul.f32.gmra.mxu0 %v4765
    %v5040 = vpop.f32.mrf.mxu0
    %v5041 = vadd.f32 0.0, %v5040
    %5042 = vdwg.mxu0
    %v5043 = vadd.f32 %v4604, %v4801
    %v5044 = vadd.f32 %v4605, %v4804
    %v5045 = vadd.f32 %v4606, %v4807
    %v5046 = vadd.f32 %v4607, %v4810
    %v5047 = vadd.f32 %v4608, %v4813
    %v5048 = vadd.f32 %v4609, %v4816
    %v5049 = vadd.f32 %v4610, %v4819
    %v5050 = vadd.f32 %v4611, %v4822
    %v5051 = vadd.f32 %v4612, %v4825
    %v5052 = vadd.f32 %v4613, %v4828
    %v5053 = vadd.f32 %v4614, %v4831
    %v5054 = vadd.f32 %v4615, %v4834
    %v5055 = vadd.f32 %v4616, %v4837
    %v5056 = vadd.f32 %v4617, %v4840
    %v5057 = vadd.f32 %v4618, %v4843
    %v5058 = vadd.f32 %v4619, %v4846
    %v5059 = vadd.f32 %v4620, %v4849
    %v5060 = vadd.f32 %v4621, %v4852
    %v5061 = vadd.f32 %v4622, %v4855
    %v5062 = vadd.f32 %v4623, %v4858
    %v5063 = vadd.f32 %v4624, %v4861
    %v5064 = vadd.f32 %v4625, %v4864
    %v5065 = vadd.f32 %v4626, %v4867
    %v5066 = vadd.f32 %v4627, %v4870
    %v5067 = vadd.f32 %v4628, %v4873
    %v5068 = vadd.f32 %v4629, %v4876
    %v5069 = vadd.f32 %v4630, %v4879
    %v5070 = vadd.f32 %v4631, %v4882
    %v5071 = vadd.f32 %v4632, %v4885
    %v5072 = vadd.f32 %v4633, %v4888
    %v5073 = vadd.f32 %v4634, %v4891
    %v5074 = vadd.f32 %v4635, %v4894
    %v5075 = vadd.f32 %v4636, %v4897
    %v5076 = vadd.f32 %v4637, %v4900
    %v5077 = vadd.f32 %v4638, %v4903
    %v5078 = vadd.f32 %v4639, %v4906
    %v5079 = vadd.f32 %v4640, %v4909
    %v5080 = vadd.f32 %v4641, %v4912
    %v5081 = vadd.f32 %v4642, %v4915
    %v5082 = vadd.f32 %v4643, %v4918
    %v5083 = vadd.f32 %v4644, %v4921
    %v5084 = vadd.f32 %v4645, %v4924
    %v5085 = vadd.f32 %v4646, %v4927
    %v5086 = vadd.f32 %v4647, %v4930
    %v5087 = vadd.f32 %v4648, %v4933
    %v5088 = vadd.f32 %v4649, %v4936
    %v5089 = vadd.f32 %v4650, %v4939
    %v5090 = vadd.f32 %v4651, %v4942
    %v5091 = vadd.f32 %v4652, %v4945
    %v5092 = vadd.f32 %v4653, %v4948
    %v5093 = vadd.f32 %v4654, %v4951
    %v5094 = vadd.f32 %v4655, %v4954
    %v5095 = vadd.f32 %v4656, %v4957
    %v5096 = vadd.f32 %v4657, %v4960
    %v5097 = vadd.f32 %v4658, %v4963
    %v5098 = vadd.f32 %v4659, %v4966
    %v5099 = vadd.f32 %v4660, %v4969
    %v5100 = vadd.f32 %v4661, %v4972
    %v5101 = vadd.f32 %v4662, %v4975
    %v5102 = vadd.f32 %v4663, %v4978
    %v5103 = vadd.f32 %v4664, %v4981
    %v5104 = vadd.f32 %v4665, %v4984
    %v5105 = vadd.f32 %v4666, %v4987
    %v5106 = vadd.f32 %v4667, %v4990
    %v5107 = vadd.f32 %v4668, %v4993
    %v5108 = vadd.f32 %v4669, %v4996
    %v5109 = vadd.f32 %v4670, %v4999
    %v5110 = vadd.f32 %v4671, %v5002
    %v5111 = vadd.f32 %v4672, %v5005
    %v5112 = vadd.f32 %v4673, %v5008
    %v5113 = vadd.f32 %v4674, %v5011
    %v5114 = vadd.f32 %v4675, %v5014
    %v5115 = vadd.f32 %v4676, %v5017
    %v5116 = vadd.f32 %v4677, %v5020
    %v5117 = vadd.f32 %v4678, %v5023
    %v5118 = vadd.f32 %v4679, %v5026
    %v5119 = vadd.f32 %v4680, %v5029
    %v5120 = vadd.f32 %v4681, %v5032
    %v5121 = vadd.f32 %v4682, %v5035
    %v5122 = vadd.f32 %v4683, %v5038
    %v5123 = vadd.f32 %v4684, %v5041
    %v5124 = vld [vmem:[#allocation2 + $0x2b] sm:$0xff]
    %v5125 = vld [vmem:[#allocation2 + $0x33] sm:$0xff]
    %v5126 = vld [vmem:[#allocation2 + $0x3b] sm:$0xff]
    %v5127 = vld [vmem:[#allocation2 + $0x43] sm:$0xff]
    %v5128 = vld [vmem:[#allocation2 + $0x4b] sm:$0xff]
    %v5129 = vld [vmem:[#allocation2 + $0x53] sm:$0xff]
    %v5130 = vld [vmem:[#allocation2 + $0x5b] sm:$0xff]
    %v5131 = vld [vmem:[#allocation2 + $0x63] sm:$0xff]
    %v5132 = vld [vmem:[#allocation2 + $0x6b] sm:$0xff]
    %v5133 = vld [vmem:[#allocation2 + $0x73] sm:$0xff]
    %v5134 = vld [vmem:[#allocation2 + $0x7b] sm:$0xff]
    %v5135 = vld [vmem:[#allocation2 + $0x83] sm:$0xff]
    %v5136 = vld [vmem:[#allocation2 + $0x8b] sm:$0xff]
    %v5137 = vld [vmem:[#allocation2 + $0x93] sm:$0xff]
    %v5138 = vld [vmem:[#allocation2 + $0x9b] sm:$0xff]
    %v5139 = vld [vmem:[#allocation2 + $0xa3] sm:$0xff]
    %v5140 = vld [vmem:[#allocation2 + $0xab] sm:$0xff]
    %v5141 = vld [vmem:[#allocation2 + $0xb3] sm:$0xff]
    %v5142 = vld [vmem:[#allocation2 + $0xbb] sm:$0xff]
    %v5143 = vld [vmem:[#allocation2 + $0xc3] sm:$0xff]
    %v5144 = vld [vmem:[#allocation2 + $0xcb] sm:$0xff]
    %v5145 = vld [vmem:[#allocation2 + $0xd3] sm:$0xff]
    %v5146 = vld [vmem:[#allocation2 + $0xdb] sm:$0xff]
    %v5147 = vld [vmem:[#allocation2 + $0xe3] sm:$0xff]
    %v5148 = vld [vmem:[#allocation2 + $0xeb] sm:$0xff]
    %v5149 = vld [vmem:[#allocation2 + $0xf3] sm:$0xff]
    %v5150 = vld [vmem:[#allocation2 + $0xfb] sm:$0xff]
    %v5151 = vld [vmem:[#allocation2 + $0x103] sm:$0xff]
    %v5152 = vld [vmem:[#allocation2 + $0x10b] sm:$0xff]
    %v5153 = vld [vmem:[#allocation2 + $0x113] sm:$0xff]
    %v5154 = vld [vmem:[#allocation2 + $0x11b] sm:$0xff]
    %v5155 = vld [vmem:[#allocation2 + $0x123] sm:$0xff]
    %v5156 = vld [vmem:[#allocation2 + $0x12b] sm:$0xff]
    %v5157 = vld [vmem:[#allocation2 + $0x133] sm:$0xff]
    %v5158 = vld [vmem:[#allocation2 + $0x13b] sm:$0xff]
    %v5159 = vld [vmem:[#allocation2 + $0x143] sm:$0xff]
    %v5160 = vld [vmem:[#allocation2 + $0x14b] sm:$0xff]
    %v5161 = vld [vmem:[#allocation2 + $0x153] sm:$0xff]
    %v5162 = vld [vmem:[#allocation2 + $0x15b] sm:$0xff]
    %v5163 = vld [vmem:[#allocation2 + $0x163] sm:$0xff]
    %v5164 = vld [vmem:[#allocation2 + $0x16b] sm:$0xff]
    %v5165 = vld [vmem:[#allocation2 + $0x173] sm:$0xff]
    %v5166 = vld [vmem:[#allocation2 + $0x17b] sm:$0xff]
    %v5167 = vld [vmem:[#allocation2 + $0x183] sm:$0xff]
    %v5168 = vld [vmem:[#allocation2 + $0x18b] sm:$0xff]
    %v5169 = vld [vmem:[#allocation2 + $0x193] sm:$0xff]
    %v5170 = vld [vmem:[#allocation2 + $0x19b] sm:$0xff]
    %v5171 = vld [vmem:[#allocation2 + $0x1a3] sm:$0xff]
    %v5172 = vld [vmem:[#allocation2 + $0x1ab] sm:$0xff]
    %v5173 = vld [vmem:[#allocation2 + $0x1b3] sm:$0xff]
    %v5174 = vld [vmem:[#allocation2 + $0x1bb] sm:$0xff]
    %v5175 = vld [vmem:[#allocation2 + $0x1c3] sm:$0xff]
    %v5176 = vld [vmem:[#allocation2 + $0x1cb] sm:$0xff]
    %v5177 = vld [vmem:[#allocation2 + $0x1d3] sm:$0xff]
    %v5178 = vld [vmem:[#allocation2 + $0x1db] sm:$0xff]
    %v5179 = vld [vmem:[#allocation2 + $0x1e3] sm:$0xff]
    %v5180 = vld [vmem:[#allocation2 + $0x1eb] sm:$0xff]
    %v5181 = vld [vmem:[#allocation2 + $0x1f3] sm:$0xff]
    %v5182 = vld [vmem:[#allocation2 + $0x1fb] sm:$0xff]
    %v5183 = vld [vmem:[#allocation2 + $0x203] sm:$0xff]
    %v5184 = vld [vmem:[#allocation2 + $0x20b] sm:$0xff]
    %v5185 = vld [vmem:[#allocation2 + $0x213] sm:$0xff]
    %v5186 = vld [vmem:[#allocation2 + $0x21b] sm:$0xff]
    %v5187 = vld [vmem:[#allocation2 + $0x223] sm:$0xff]
    %v5188 = vld [vmem:[#allocation2 + $0x22b] sm:$0xff]
    %v5189 = vld [vmem:[#allocation2 + $0x233] sm:$0xff]
    %v5190 = vld [vmem:[#allocation2 + $0x23b] sm:$0xff]
    %v5191 = vld [vmem:[#allocation2 + $0x243] sm:$0xff]
    %v5192 = vld [vmem:[#allocation2 + $0x24b] sm:$0xff]
    %v5193 = vld [vmem:[#allocation2 + $0x253] sm:$0xff]
    %v5194 = vld [vmem:[#allocation2 + $0x25b] sm:$0xff]
    %v5195 = vld [vmem:[#allocation2 + $0x263] sm:$0xff]
    %v5196 = vld [vmem:[#allocation2 + $0x26b] sm:$0xff]
    %v5197 = vld [vmem:[#allocation2 + $0x273] sm:$0xff]
    %v5198 = vld [vmem:[#allocation2 + $0x27b] sm:$0xff]
    %v5199 = vld [vmem:[#allocation2 + $0x283] sm:$0xff]
    %v5200 = vld [vmem:[#allocation2 + $0x28b] sm:$0xff]
    %v5201 = vld [vmem:[#allocation2 + $0x293] sm:$0xff]
    %v5202 = vld [vmem:[#allocation2 + $0x29b] sm:$0xff]
    %v5203 = vld [vmem:[#allocation2 + $0x2a3] sm:$0xff]
    %v5204 = vld [vmem:[#allocation2 + $0x2ab] sm:$0xff]
    %s5205 = scalar_lea.vmem [#allocation6], 1024
    %v5206 = vld [vmem:[%s5205] sm:$0xff]
    %v5207 = vld [vmem:[%s5205 + $0x8] sm:$0xff]
    %v5208 = vld [vmem:[%s5205 + $0x10] sm:$0xff]
    %v5209 = vld [vmem:[%s5205 + $0x18] sm:$0xff]
    %v5210 = vld [vmem:[%s5205 + $0x20] sm:$0xff]
    %v5211 = vld [vmem:[%s5205 + $0x28] sm:$0xff]
    %v5212 = vld [vmem:[%s5205 + $0x30] sm:$0xff]
    %v5213 = vld [vmem:[%s5205 + $0x38] sm:$0xff]
    %v5214 = vld [vmem:[%s5205 + $0x40] sm:$0xff]
    %v5215 = vld [vmem:[%s5205 + $0x48] sm:$0xff]
    %v5216 = vld [vmem:[%s5205 + $0x50] sm:$0xff]
    %v5217 = vld [vmem:[%s5205 + $0x58] sm:$0xff]
    %v5218 = vld [vmem:[%s5205 + $0x60] sm:$0xff]
    %v5219 = vld [vmem:[%s5205 + $0x68] sm:$0xff]
    %v5220 = vld [vmem:[%s5205 + $0x70] sm:$0xff]
    %v5221 = vld [vmem:[%s5205 + $0x78] sm:$0xff]
    %5222 = vmatpush.msra.mxu0 %v5221
    %5223 = vmatpush.msra.mxu0 %v5220
    %5224 = vmatpush.msra.mxu0 %v5219
    %5225 = vmatpush.msra.mxu0 %v5218
    %5226 = vmatpush.msra.mxu0 %v5217
    %5227 = vmatpush.msra.mxu0 %v5216
    %5228 = vmatpush.msra.mxu0 %v5215
    %5229 = vmatpush.msra.mxu0 %v5214
    %5230 = vmatpush.msra.mxu0 %v5213
    %5231 = vmatpush.msra.mxu0 %v5212
    %5232 = vmatpush.msra.mxu0 %v5211
    %5233 = vmatpush.msra.mxu0 %v5210
    %5234 = vmatpush.msra.mxu0 %v5209
    %5235 = vmatpush.msra.mxu0 %v5208
    %5236 = vmatpush.msra.mxu0 %v5207
    %5237 = vmatpush.msra.mxu0 %v5206
    %5238 = vmatmul.f32.gmra.mxu0 %v5124
    %v5239 = vpop.f32.mrf.mxu0
    %v5240 = vadd.f32 0.0, %v5239
    %5241 = vmatmul.f32.gmra.mxu0 %v5125
    %v5242 = vpop.f32.mrf.mxu0
    %v5243 = vadd.f32 0.0, %v5242
    %5244 = vmatmul.f32.gmra.mxu0 %v5126
    %v5245 = vpop.f32.mrf.mxu0
    %v5246 = vadd.f32 0.0, %v5245
    %5247 = vmatmul.f32.gmra.mxu0 %v5127
    %v5248 = vpop.f32.mrf.mxu0
    %v5249 = vadd.f32 0.0, %v5248
    %5250 = vmatmul.f32.gmra.mxu0 %v5128
    %v5251 = vpop.f32.mrf.mxu0
    %v5252 = vadd.f32 0.0, %v5251
    %5253 = vmatmul.f32.gmra.mxu0 %v5129
    %v5254 = vpop.f32.mrf.mxu0
    %v5255 = vadd.f32 0.0, %v5254
    %5256 = vmatmul.f32.gmra.mxu0 %v5130
    %v5257 = vpop.f32.mrf.mxu0
    %v5258 = vadd.f32 0.0, %v5257
    %5259 = vmatmul.f32.gmra.mxu0 %v5131
    %v5260 = vpop.f32.mrf.mxu0
    %v5261 = vadd.f32 0.0, %v5260
    %5262 = vmatmul.f32.gmra.mxu0 %v5132
    %v5263 = vpop.f32.mrf.mxu0
    %v5264 = vadd.f32 0.0, %v5263
    %5265 = vmatmul.f32.gmra.mxu0 %v5133
    %v5266 = vpop.f32.mrf.mxu0
    %v5267 = vadd.f32 0.0, %v5266
    %5268 = vmatmul.f32.gmra.mxu0 %v5134
    %v5269 = vpop.f32.mrf.mxu0
    %v5270 = vadd.f32 0.0, %v5269
    %5271 = vmatmul.f32.gmra.mxu0 %v5135
    %v5272 = vpop.f32.mrf.mxu0
    %v5273 = vadd.f32 0.0, %v5272
    %5274 = vmatmul.f32.gmra.mxu0 %v5136
    %v5275 = vpop.f32.mrf.mxu0
    %v5276 = vadd.f32 0.0, %v5275
    %5277 = vmatmul.f32.gmra.mxu0 %v5137
    %v5278 = vpop.f32.mrf.mxu0
    %v5279 = vadd.f32 0.0, %v5278
    %5280 = vmatmul.f32.gmra.mxu0 %v5138
    %v5281 = vpop.f32.mrf.mxu0
    %v5282 = vadd.f32 0.0, %v5281
    %5283 = vmatmul.f32.gmra.mxu0 %v5139
    %v5284 = vpop.f32.mrf.mxu0
    %v5285 = vadd.f32 0.0, %v5284
    %5286 = vmatmul.f32.gmra.mxu0 %v5140
    %v5287 = vpop.f32.mrf.mxu0
    %v5288 = vadd.f32 0.0, %v5287
    %5289 = vmatmul.f32.gmra.mxu0 %v5141
    %v5290 = vpop.f32.mrf.mxu0
    %v5291 = vadd.f32 0.0, %v5290
    %5292 = vmatmul.f32.gmra.mxu0 %v5142
    %v5293 = vpop.f32.mrf.mxu0
    %v5294 = vadd.f32 0.0, %v5293
    %5295 = vmatmul.f32.gmra.mxu0 %v5143
    %v5296 = vpop.f32.mrf.mxu0
    %v5297 = vadd.f32 0.0, %v5296
    %5298 = vmatmul.f32.gmra.mxu0 %v5144
    %v5299 = vpop.f32.mrf.mxu0
    %v5300 = vadd.f32 0.0, %v5299
    %5301 = vmatmul.f32.gmra.mxu0 %v5145
    %v5302 = vpop.f32.mrf.mxu0
    %v5303 = vadd.f32 0.0, %v5302
    %5304 = vmatmul.f32.gmra.mxu0 %v5146
    %v5305 = vpop.f32.mrf.mxu0
    %v5306 = vadd.f32 0.0, %v5305
    %5307 = vmatmul.f32.gmra.mxu0 %v5147
    %v5308 = vpop.f32.mrf.mxu0
    %v5309 = vadd.f32 0.0, %v5308
    %5310 = vmatmul.f32.gmra.mxu0 %v5148
    %v5311 = vpop.f32.mrf.mxu0
    %v5312 = vadd.f32 0.0, %v5311
    %5313 = vmatmul.f32.gmra.mxu0 %v5149
    %v5314 = vpop.f32.mrf.mxu0
    %v5315 = vadd.f32 0.0, %v5314
    %5316 = vmatmul.f32.gmra.mxu0 %v5150
    %v5317 = vpop.f32.mrf.mxu0
    %v5318 = vadd.f32 0.0, %v5317
    %5319 = vmatmul.f32.gmra.mxu0 %v5151
    %v5320 = vpop.f32.mrf.mxu0
    %v5321 = vadd.f32 0.0, %v5320
    %5322 = vmatmul.f32.gmra.mxu0 %v5152
    %v5323 = vpop.f32.mrf.mxu0
    %v5324 = vadd.f32 0.0, %v5323
    %5325 = vmatmul.f32.gmra.mxu0 %v5153
    %v5326 = vpop.f32.mrf.mxu0
    %v5327 = vadd.f32 0.0, %v5326
    %5328 = vmatmul.f32.gmra.mxu0 %v5154
    %v5329 = vpop.f32.mrf.mxu0
    %v5330 = vadd.f32 0.0, %v5329
    %5331 = vmatmul.f32.gmra.mxu0 %v5155
    %v5332 = vpop.f32.mrf.mxu0
    %v5333 = vadd.f32 0.0, %v5332
    %5334 = vmatmul.f32.gmra.mxu0 %v5156
    %v5335 = vpop.f32.mrf.mxu0
    %v5336 = vadd.f32 0.0, %v5335
    %5337 = vmatmul.f32.gmra.mxu0 %v5157
    %v5338 = vpop.f32.mrf.mxu0
    %v5339 = vadd.f32 0.0, %v5338
    %5340 = vmatmul.f32.gmra.mxu0 %v5158
    %v5341 = vpop.f32.mrf.mxu0
    %v5342 = vadd.f32 0.0, %v5341
    %5343 = vmatmul.f32.gmra.mxu0 %v5159
    %v5344 = vpop.f32.mrf.mxu0
    %v5345 = vadd.f32 0.0, %v5344
    %5346 = vmatmul.f32.gmra.mxu0 %v5160
    %v5347 = vpop.f32.mrf.mxu0
    %v5348 = vadd.f32 0.0, %v5347
    %5349 = vmatmul.f32.gmra.mxu0 %v5161
    %v5350 = vpop.f32.mrf.mxu0
    %v5351 = vadd.f32 0.0, %v5350
    %5352 = vmatmul.f32.gmra.mxu0 %v5162
    %v5353 = vpop.f32.mrf.mxu0
    %v5354 = vadd.f32 0.0, %v5353
    %5355 = vmatmul.f32.gmra.mxu0 %v5163
    %v5356 = vpop.f32.mrf.mxu0
    %v5357 = vadd.f32 0.0, %v5356
    %5358 = vmatmul.f32.gmra.mxu0 %v5164
    %v5359 = vpop.f32.mrf.mxu0
    %v5360 = vadd.f32 0.0, %v5359
    %5361 = vmatmul.f32.gmra.mxu0 %v5165
    %v5362 = vpop.f32.mrf.mxu0
    %v5363 = vadd.f32 0.0, %v5362
    %5364 = vmatmul.f32.gmra.mxu0 %v5166
    %v5365 = vpop.f32.mrf.mxu0
    %v5366 = vadd.f32 0.0, %v5365
    %5367 = vmatmul.f32.gmra.mxu0 %v5167
    %v5368 = vpop.f32.mrf.mxu0
    %v5369 = vadd.f32 0.0, %v5368
    %5370 = vmatmul.f32.gmra.mxu0 %v5168
    %v5371 = vpop.f32.mrf.mxu0
    %v5372 = vadd.f32 0.0, %v5371
    %5373 = vmatmul.f32.gmra.mxu0 %v5169
    %v5374 = vpop.f32.mrf.mxu0
    %v5375 = vadd.f32 0.0, %v5374
    %5376 = vmatmul.f32.gmra.mxu0 %v5170
    %v5377 = vpop.f32.mrf.mxu0
    %v5378 = vadd.f32 0.0, %v5377
    %5379 = vmatmul.f32.gmra.mxu0 %v5171
    %v5380 = vpop.f32.mrf.mxu0
    %v5381 = vadd.f32 0.0, %v5380
    %5382 = vmatmul.f32.gmra.mxu0 %v5172
    %v5383 = vpop.f32.mrf.mxu0
    %v5384 = vadd.f32 0.0, %v5383
    %5385 = vmatmul.f32.gmra.mxu0 %v5173
    %v5386 = vpop.f32.mrf.mxu0
    %v5387 = vadd.f32 0.0, %v5386
    %5388 = vmatmul.f32.gmra.mxu0 %v5174
    %v5389 = vpop.f32.mrf.mxu0
    %v5390 = vadd.f32 0.0, %v5389
    %5391 = vmatmul.f32.gmra.mxu0 %v5175
    %v5392 = vpop.f32.mrf.mxu0
    %v5393 = vadd.f32 0.0, %v5392
    %5394 = vmatmul.f32.gmra.mxu0 %v5176
    %v5395 = vpop.f32.mrf.mxu0
    %v5396 = vadd.f32 0.0, %v5395
    %5397 = vmatmul.f32.gmra.mxu0 %v5177
    %v5398 = vpop.f32.mrf.mxu0
    %v5399 = vadd.f32 0.0, %v5398
    %5400 = vmatmul.f32.gmra.mxu0 %v5178
    %v5401 = vpop.f32.mrf.mxu0
    %v5402 = vadd.f32 0.0, %v5401
    %5403 = vmatmul.f32.gmra.mxu0 %v5179
    %v5404 = vpop.f32.mrf.mxu0
    %v5405 = vadd.f32 0.0, %v5404
    %5406 = vmatmul.f32.gmra.mxu0 %v5180
    %v5407 = vpop.f32.mrf.mxu0
    %v5408 = vadd.f32 0.0, %v5407
    %5409 = vmatmul.f32.gmra.mxu0 %v5181
    %v5410 = vpop.f32.mrf.mxu0
    %v5411 = vadd.f32 0.0, %v5410
    %5412 = vmatmul.f32.gmra.mxu0 %v5182
    %v5413 = vpop.f32.mrf.mxu0
    %v5414 = vadd.f32 0.0, %v5413
    %5415 = vmatmul.f32.gmra.mxu0 %v5183
    %v5416 = vpop.f32.mrf.mxu0
    %v5417 = vadd.f32 0.0, %v5416
    %5418 = vmatmul.f32.gmra.mxu0 %v5184
    %v5419 = vpop.f32.mrf.mxu0
    %v5420 = vadd.f32 0.0, %v5419
    %5421 = vmatmul.f32.gmra.mxu0 %v5185
    %v5422 = vpop.f32.mrf.mxu0
    %v5423 = vadd.f32 0.0, %v5422
    %5424 = vmatmul.f32.gmra.mxu0 %v5186
    %v5425 = vpop.f32.mrf.mxu0
    %v5426 = vadd.f32 0.0, %v5425
    %5427 = vmatmul.f32.gmra.mxu0 %v5187
    %v5428 = vpop.f32.mrf.mxu0
    %v5429 = vadd.f32 0.0, %v5428
    %5430 = vmatmul.f32.gmra.mxu0 %v5188
    %v5431 = vpop.f32.mrf.mxu0
    %v5432 = vadd.f32 0.0, %v5431
    %5433 = vmatmul.f32.gmra.mxu0 %v5189
    %v5434 = vpop.f32.mrf.mxu0
    %v5435 = vadd.f32 0.0, %v5434
    %5436 = vmatmul.f32.gmra.mxu0 %v5190
    %v5437 = vpop.f32.mrf.mxu0
    %v5438 = vadd.f32 0.0, %v5437
    %5439 = vmatmul.f32.gmra.mxu0 %v5191
    %v5440 = vpop.f32.mrf.mxu0
    %v5441 = vadd.f32 0.0, %v5440
    %5442 = vmatmul.f32.gmra.mxu0 %v5192
    %v5443 = vpop.f32.mrf.mxu0
    %v5444 = vadd.f32 0.0, %v5443
    %5445 = vmatmul.f32.gmra.mxu0 %v5193
    %v5446 = vpop.f32.mrf.mxu0
    %v5447 = vadd.f32 0.0, %v5446
    %5448 = vmatmul.f32.gmra.mxu0 %v5194
    %v5449 = vpop.f32.mrf.mxu0
    %v5450 = vadd.f32 0.0, %v5449
    %5451 = vmatmul.f32.gmra.mxu0 %v5195
    %v5452 = vpop.f32.mrf.mxu0
    %v5453 = vadd.f32 0.0, %v5452
    %5454 = vmatmul.f32.gmra.mxu0 %v5196
    %v5455 = vpop.f32.mrf.mxu0
    %v5456 = vadd.f32 0.0, %v5455
    %5457 = vmatmul.f32.gmra.mxu0 %v5197
    %v5458 = vpop.f32.mrf.mxu0
    %v5459 = vadd.f32 0.0, %v5458
    %5460 = vmatmul.f32.gmra.mxu0 %v5198
    %v5461 = vpop.f32.mrf.mxu0
    %v5462 = vadd.f32 0.0, %v5461
    %5463 = vmatmul.f32.gmra.mxu0 %v5199
    %v5464 = vpop.f32.mrf.mxu0
    %v5465 = vadd.f32 0.0, %v5464
    %5466 = vmatmul.f32.gmra.mxu0 %v5200
    %v5467 = vpop.f32.mrf.mxu0
    %v5468 = vadd.f32 0.0, %v5467
    %5469 = vmatmul.f32.gmra.mxu0 %v5201
    %v5470 = vpop.f32.mrf.mxu0
    %v5471 = vadd.f32 0.0, %v5470
    %5472 = vmatmul.f32.gmra.mxu0 %v5202
    %v5473 = vpop.f32.mrf.mxu0
    %v5474 = vadd.f32 0.0, %v5473
    %5475 = vmatmul.f32.gmra.mxu0 %v5203
    %v5476 = vpop.f32.mrf.mxu0
    %v5477 = vadd.f32 0.0, %v5476
    %5478 = vmatmul.f32.gmra.mxu0 %v5204
    %v5479 = vpop.f32.mrf.mxu0
    %v5480 = vadd.f32 0.0, %v5479
    %5481 = vdwg.mxu0
    %v5482 = vadd.f32 %v5043, %v5240
    %v5483 = vadd.f32 %v5044, %v5243
    %v5484 = vadd.f32 %v5045, %v5246
    %v5485 = vadd.f32 %v5046, %v5249
    %v5486 = vadd.f32 %v5047, %v5252
    %v5487 = vadd.f32 %v5048, %v5255
    %v5488 = vadd.f32 %v5049, %v5258
    %v5489 = vadd.f32 %v5050, %v5261
    %v5490 = vadd.f32 %v5051, %v5264
    %v5491 = vadd.f32 %v5052, %v5267
    %v5492 = vadd.f32 %v5053, %v5270
    %v5493 = vadd.f32 %v5054, %v5273
    %v5494 = vadd.f32 %v5055, %v5276
    %v5495 = vadd.f32 %v5056, %v5279
    %v5496 = vadd.f32 %v5057, %v5282
    %v5497 = vadd.f32 %v5058, %v5285
    %v5498 = vadd.f32 %v5059, %v5288
    %v5499 = vadd.f32 %v5060, %v5291
    %v5500 = vadd.f32 %v5061, %v5294
    %v5501 = vadd.f32 %v5062, %v5297
    %v5502 = vadd.f32 %v5063, %v5300
    %v5503 = vadd.f32 %v5064, %v5303
    %v5504 = vadd.f32 %v5065, %v5306
    %v5505 = vadd.f32 %v5066, %v5309
    %v5506 = vadd.f32 %v5067, %v5312
    %v5507 = vadd.f32 %v5068, %v5315
    %v5508 = vadd.f32 %v5069, %v5318
    %v5509 = vadd.f32 %v5070, %v5321
    %v5510 = vadd.f32 %v5071, %v5324
    %v5511 = vadd.f32 %v5072, %v5327
    %v5512 = vadd.f32 %v5073, %v5330
    %v5513 = vadd.f32 %v5074, %v5333
    %v5514 = vadd.f32 %v5075, %v5336
    %v5515 = vadd.f32 %v5076, %v5339
    %v5516 = vadd.f32 %v5077, %v5342
    %v5517 = vadd.f32 %v5078, %v5345
    %v5518 = vadd.f32 %v5079, %v5348
    %v5519 = vadd.f32 %v5080, %v5351
    %v5520 = vadd.f32 %v5081, %v5354
    %v5521 = vadd.f32 %v5082, %v5357
    %v5522 = vadd.f32 %v5083, %v5360
    %v5523 = vadd.f32 %v5084, %v5363
    %v5524 = vadd.f32 %v5085, %v5366
    %v5525 = vadd.f32 %v5086, %v5369
    %v5526 = vadd.f32 %v5087, %v5372
    %v5527 = vadd.f32 %v5088, %v5375
    %v5528 = vadd.f32 %v5089, %v5378
    %v5529 = vadd.f32 %v5090, %v5381
    %v5530 = vadd.f32 %v5091, %v5384
    %v5531 = vadd.f32 %v5092, %v5387
    %v5532 = vadd.f32 %v5093, %v5390
    %v5533 = vadd.f32 %v5094, %v5393
    %v5534 = vadd.f32 %v5095, %v5396
    %v5535 = vadd.f32 %v5096, %v5399
    %v5536 = vadd.f32 %v5097, %v5402
    %v5537 = vadd.f32 %v5098, %v5405
    %v5538 = vadd.f32 %v5099, %v5408
    %v5539 = vadd.f32 %v5100, %v5411
    %v5540 = vadd.f32 %v5101, %v5414
    %v5541 = vadd.f32 %v5102, %v5417
    %v5542 = vadd.f32 %v5103, %v5420
    %v5543 = vadd.f32 %v5104, %v5423
    %v5544 = vadd.f32 %v5105, %v5426
    %v5545 = vadd.f32 %v5106, %v5429
    %v5546 = vadd.f32 %v5107, %v5432
    %v5547 = vadd.f32 %v5108, %v5435
    %v5548 = vadd.f32 %v5109, %v5438
    %v5549 = vadd.f32 %v5110, %v5441
    %v5550 = vadd.f32 %v5111, %v5444
    %v5551 = vadd.f32 %v5112, %v5447
    %v5552 = vadd.f32 %v5113, %v5450
    %v5553 = vadd.f32 %v5114, %v5453
    %v5554 = vadd.f32 %v5115, %v5456
    %v5555 = vadd.f32 %v5116, %v5459
    %v5556 = vadd.f32 %v5117, %v5462
    %v5557 = vadd.f32 %v5118, %v5465
    %v5558 = vadd.f32 %v5119, %v5468
    %v5559 = vadd.f32 %v5120, %v5471
    %v5560 = vadd.f32 %v5121, %v5474
    %v5561 = vadd.f32 %v5122, %v5477
    %v5562 = vadd.f32 %v5123, %v5480
    %v5563 = vld [vmem:[%s6] sm:$0x1]
    %v5564 = vld [vmem:[%s7] sm:$0x1]
    %v5565 = vmul.f32 %v5482, %v523
    %v5566 = vmul.f32 %v5483, %v528
    %v5567 = vmul.f32 %v5484, %v533
    %v5568 = vmul.f32 %v5485, %v538
    %v5569 = vmul.f32 %v5486, %v543
    %v5570 = vmul.f32 %v5487, %v548
    %v5571 = vmul.f32 %v5488, %v553
    %v5572 = vmul.f32 %v5489, %v558
    %v5573 = vmul.f32 %v5490, %v563
    %v5574 = vmul.f32 %v5491, %v568
    %v5575 = vmul.f32 %v5492, %v573
    %v5576 = vmul.f32 %v5493, %v578
    %v5577 = vmul.f32 %v5494, %v583
    %v5578 = vmul.f32 %v5495, %v588
    %v5579 = vmul.f32 %v5496, %v593
    %v5580 = vmul.f32 %v5497, %v598
    %v5581 = vmul.f32 %v5498, %v603
    %v5582 = vmul.f32 %v5499, %v608
    %v5583 = vmul.f32 %v5500, %v613
    %v5584 = vmul.f32 %v5501, %v618
    %v5585 = vmul.f32 %v5502, %v623
    %v5586 = vmul.f32 %v5503, %v628
    %v5587 = vmul.f32 %v5504, %v633
    %v5588 = vmul.f32 %v5505, %v638
    %v5589 = vmul.f32 %v5506, %v643
    %v5590 = vmul.f32 %v5507, %v648
    %v5591 = vmul.f32 %v5508, %v653
    %v5592 = vmul.f32 %v5509, %v658
    %v5593 = vmul.f32 %v5510, %v663
    %v5594 = vmul.f32 %v5511, %v668
    %v5595 = vmul.f32 %v5512, %v673
    %v5596 = vmul.f32 %v5513, %v678
    %v5597 = vmul.f32 %v5514, %v683
    %v5598 = vmul.f32 %v5515, %v688
    %v5599 = vmul.f32 %v5516, %v693
    %v5600 = vmul.f32 %v5517, %v698
    %v5601 = vmul.f32 %v5518, %v703
    %v5602 = vmul.f32 %v5519, %v708
    %v5603 = vmul.f32 %v5520, %v713
    %v5604 = vmul.f32 %v5521, %v718
    %v5605 = vmul.f32 %v5522, %v723
    %v5606 = vmul.f32 %v5523, %v728
    %v5607 = vmul.f32 %v5524, %v733
    %v5608 = vmul.f32 %v5525, %v738
    %v5609 = vmul.f32 %v5526, %v743
    %v5610 = vmul.f32 %v5527, %v748
    %v5611 = vmul.f32 %v5528, %v753
    %v5612 = vmul.f32 %v5529, %v758
    %v5613 = vmul.f32 %v5530, %v763
    %v5614 = vmul.f32 %v5531, %v768
    %v5615 = vmul.f32 %v5532, %v773
    %v5616 = vmul.f32 %v5533, %v778
    %v5617 = vmul.f32 %v5534, %v783
    %v5618 = vmul.f32 %v5535, %v788
    %v5619 = vmul.f32 %v5536, %v793
    %v5620 = vmul.f32 %v5537, %v798
    %v5621 = vmul.f32 %v5538, %v803
    %v5622 = vmul.f32 %v5539, %v808
    %v5623 = vmul.f32 %v5540, %v813
    %v5624 = vmul.f32 %v5541, %v818
    %v5625 = vmul.f32 %v5542, %v823
    %v5626 = vmul.f32 %v5543, %v828
    %v5627 = vmul.f32 %v5544, %v833
    %v5628 = vmul.f32 %v5545, %v838
    %v5629 = vmul.f32 %v5546, %v843
    %v5630 = vmul.f32 %v5547, %v848
    %v5631 = vmul.f32 %v5548, %v853
    %v5632 = vmul.f32 %v5549, %v858
    %v5633 = vmul.f32 %v5550, %v863
    %v5634 = vmul.f32 %v5551, %v868
    %v5635 = vmul.f32 %v5552, %v873
    %v5636 = vmul.f32 %v5553, %v878
    %v5637 = vmul.f32 %v5554, %v883
    %v5638 = vmul.f32 %v5555, %v888
    %v5639 = vmul.f32 %v5556, %v893
    %v5640 = vmul.f32 %v5557, %v898
    %v5641 = vmul.f32 %v5558, %v903
    %v5642 = vmul.f32 %v5559, %v908
    %v5643 = vmul.f32 %v5560, %v913
    %v5644 = vmul.f32 %v5561, %v918
    %v5645 = vmul.f32 %v5562, %v923
    %v5646 = vadd.f32 %v5565, %v5566
    %v5647 = vadd.f32 %v5646, %v5567
    %v5648 = vadd.f32 %v5647, %v5568
    %v5649 = vadd.f32 %v5648, %v5569
    %v5650 = vadd.f32 %v5649, %v5570
    %v5651 = vadd.f32 %v5650, %v5571
    %v5652 = vadd.f32 %v5651, %v5572
    %v5653 = vadd.f32 %v5652, %v5573
    %v5654 = vadd.f32 %v5653, %v5574
    %v5655 = vadd.f32 %v5654, %v5575
    %v5656 = vadd.f32 %v5655, %v5576
    %v5657 = vadd.f32 %v5656, %v5577
    %v5658 = vadd.f32 %v5657, %v5578
    %v5659 = vadd.f32 %v5658, %v5579
    %v5660 = vadd.f32 %v5659, %v5580
    %v5661 = vadd.f32 %v5660, %v5581
    %v5662 = vadd.f32 %v5661, %v5582
    %v5663 = vadd.f32 %v5662, %v5583
    %v5664 = vadd.f32 %v5663, %v5584
    %v5665 = vadd.f32 %v5664, %v5585
    %v5666 = vadd.f32 %v5665, %v5586
    %v5667 = vadd.f32 %v5666, %v5587
    %v5668 = vadd.f32 %v5667, %v5588
    %v5669 = vadd.f32 %v5668, %v5589
    %v5670 = vadd.f32 %v5669, %v5590
    %v5671 = vadd.f32 %v5670, %v5591
    %v5672 = vadd.f32 %v5671, %v5592
    %v5673 = vadd.f32 %v5672, %v5593
    %v5674 = vadd.f32 %v5673, %v5594
    %v5675 = vadd.f32 %v5674, %v5595
    %v5676 = vadd.f32 %v5675, %v5596
    %v5677 = vadd.f32 %v5676, %v5597
    %v5678 = vadd.f32 %v5677, %v5598
    %v5679 = vadd.f32 %v5678, %v5599
    %v5680 = vadd.f32 %v5679, %v5600
    %v5681 = vadd.f32 %v5680, %v5601
    %v5682 = vadd.f32 %v5681, %v5602
    %v5683 = vadd.f32 %v5682, %v5603
    %v5684 = vadd.f32 %v5683, %v5604
    %v5685 = vadd.f32 %v5684, %v5605
    %v5686 = vadd.f32 %v5685, %v5606
    %v5687 = vadd.f32 %v5686, %v5607
    %v5688 = vadd.f32 %v5687, %v5608
    %v5689 = vadd.f32 %v5688, %v5609
    %v5690 = vadd.f32 %v5689, %v5610
    %v5691 = vadd.f32 %v5690, %v5611
    %v5692 = vadd.f32 %v5691, %v5612
    %v5693 = vadd.f32 %v5692, %v5613
    %v5694 = vadd.f32 %v5693, %v5614
    %v5695 = vadd.f32 %v5694, %v5615
    %v5696 = vadd.f32 %v5695, %v5616
    %v5697 = vadd.f32 %v5696, %v5617
    %v5698 = vadd.f32 %v5697, %v5618
    %v5699 = vadd.f32 %v5698, %v5619
    %v5700 = vadd.f32 %v5699, %v5620
    %v5701 = vadd.f32 %v5700, %v5621
    %v5702 = vadd.f32 %v5701, %v5622
    %v5703 = vadd.f32 %v5702, %v5623
    %v5704 = vadd.f32 %v5703, %v5624
    %v5705 = vadd.f32 %v5704, %v5625
    %v5706 = vadd.f32 %v5705, %v5626
    %v5707 = vadd.f32 %v5706, %v5627
    %v5708 = vadd.f32 %v5707, %v5628
    %v5709 = vadd.f32 %v5708, %v5629
    %v5710 = vadd.f32 %v5709, %v5630
    %v5711 = vadd.f32 %v5710, %v5631
    %v5712 = vadd.f32 %v5711, %v5632
    %v5713 = vadd.f32 %v5712, %v5633
    %v5714 = vadd.f32 %v5713, %v5634
    %v5715 = vadd.f32 %v5714, %v5635
    %v5716 = vadd.f32 %v5715, %v5636
    %v5717 = vadd.f32 %v5716, %v5637
    %v5718 = vadd.f32 %v5717, %v5638
    %v5719 = vadd.f32 %v5718, %v5639
    %v5720 = vadd.f32 %v5719, %v5640
    %v5721 = vadd.f32 %v5720, %v5641
    %v5722 = vadd.f32 %v5721, %v5642
    %v5723 = vadd.f32 %v5722, %v5643
    %v5724 = vadd.f32 %v5723, %v5644
    %v5725 = vadd.f32 %v5724, %v5645
    %v5726 = vrot.slane %v5725, 4
    %v5727 = vadd.f32 %v5725, %v5726
    %v5728 = vrot.slane %v5727, 2
    %v5729 = vadd.f32 %v5727, %v5728
    %v5730 = vrot.slane %v5729, 1
    %v5731 = vadd.f32 %v5729, %v5730
    %v5732 = vmul.f32 %v5565, %v5482
    %v5733 = vmul.f32 %v5566, %v5483
    %v5734 = vmul.f32 %v5567, %v5484
    %v5735 = vmul.f32 %v5568, %v5485
    %v5736 = vmul.f32 %v5569, %v5486
    %v5737 = vmul.f32 %v5570, %v5487
    %v5738 = vmul.f32 %v5571, %v5488
    %v5739 = vmul.f32 %v5572, %v5489
    %v5740 = vmul.f32 %v5573, %v5490
    %v5741 = vmul.f32 %v5574, %v5491
    %v5742 = vmul.f32 %v5575, %v5492
    %v5743 = vmul.f32 %v5576, %v5493
    %v5744 = vmul.f32 %v5577, %v5494
    %v5745 = vmul.f32 %v5578, %v5495
    %v5746 = vmul.f32 %v5579, %v5496
    %v5747 = vmul.f32 %v5580, %v5497
    %v5748 = vmul.f32 %v5581, %v5498
    %v5749 = vmul.f32 %v5582, %v5499
    %v5750 = vmul.f32 %v5583, %v5500
    %v5751 = vmul.f32 %v5584, %v5501
    %v5752 = vmul.f32 %v5585, %v5502
    %v5753 = vmul.f32 %v5586, %v5503
    %v5754 = vmul.f32 %v5587, %v5504
    %v5755 = vmul.f32 %v5588, %v5505
    %v5756 = vmul.f32 %v5589, %v5506
    %v5757 = vmul.f32 %v5590, %v5507
    %v5758 = vmul.f32 %v5591, %v5508
    %v5759 = vmul.f32 %v5592, %v5509
    %v5760 = vmul.f32 %v5593, %v5510
    %v5761 = vmul.f32 %v5594, %v5511
    %v5762 = vmul.f32 %v5595, %v5512
    %v5763 = vmul.f32 %v5596, %v5513
    %v5764 = vmul.f32 %v5597, %v5514
    %v5765 = vmul.f32 %v5598, %v5515
    %v5766 = vmul.f32 %v5599, %v5516
    %v5767 = vmul.f32 %v5600, %v5517
    %v5768 = vmul.f32 %v5601, %v5518
    %v5769 = vmul.f32 %v5602, %v5519
    %v5770 = vmul.f32 %v5603, %v5520
    %v5771 = vmul.f32 %v5604, %v5521
    %v5772 = vmul.f32 %v5605, %v5522
    %v5773 = vmul.f32 %v5606, %v5523
    %v5774 = vmul.f32 %v5607, %v5524
    %v5775 = vmul.f32 %v5608, %v5525
    %v5776 = vmul.f32 %v5609, %v5526
    %v5777 = vmul.f32 %v5610, %v5527
    %v5778 = vmul.f32 %v5611, %v5528
    %v5779 = vmul.f32 %v5612, %v5529
    %v5780 = vmul.f32 %v5613, %v5530
    %v5781 = vmul.f32 %v5614, %v5531
    %v5782 = vmul.f32 %v5615, %v5532
    %v5783 = vmul.f32 %v5616, %v5533
    %v5784 = vmul.f32 %v5617, %v5534
    %v5785 = vmul.f32 %v5618, %v5535
    %v5786 = vmul.f32 %v5619, %v5536
    %v5787 = vmul.f32 %v5620, %v5537
    %v5788 = vmul.f32 %v5621, %v5538
    %v5789 = vmul.f32 %v5622, %v5539
    %v5790 = vmul.f32 %v5623, %v5540
    %v5791 = vmul.f32 %v5624, %v5541
    %v5792 = vmul.f32 %v5625, %v5542
    %v5793 = vmul.f32 %v5626, %v5543
    %v5794 = vmul.f32 %v5627, %v5544
    %v5795 = vmul.f32 %v5628, %v5545
    %v5796 = vmul.f32 %v5629, %v5546
    %v5797 = vmul.f32 %v5630, %v5547
    %v5798 = vmul.f32 %v5631, %v5548
    %v5799 = vmul.f32 %v5632, %v5549
    %v5800 = vmul.f32 %v5633, %v5550
    %v5801 = vmul.f32 %v5634, %v5551
    %v5802 = vmul.f32 %v5635, %v5552
    %v5803 = vmul.f32 %v5636, %v5553
    %v5804 = vmul.f32 %v5637, %v5554
    %v5805 = vmul.f32 %v5638, %v5555
    %v5806 = vmul.f32 %v5639, %v5556
    %v5807 = vmul.f32 %v5640, %v5557
    %v5808 = vmul.f32 %v5641, %v5558
    %v5809 = vmul.f32 %v5642, %v5559
    %v5810 = vmul.f32 %v5643, %v5560
    %v5811 = vmul.f32 %v5644, %v5561
    %v5812 = vmul.f32 %v5645, %v5562
    %v5813 = vadd.f32 %v5732, %v5733
    %v5814 = vadd.f32 %v5813, %v5734
    %v5815 = vadd.f32 %v5814, %v5735
    %v5816 = vadd.f32 %v5815, %v5736
    %v5817 = vadd.f32 %v5816, %v5737
    %v5818 = vadd.f32 %v5817, %v5738
    %v5819 = vadd.f32 %v5818, %v5739
    %v5820 = vadd.f32 %v5819, %v5740
    %v5821 = vadd.f32 %v5820, %v5741
    %v5822 = vadd.f32 %v5821, %v5742
    %v5823 = vadd.f32 %v5822, %v5743
    %v5824 = vadd.f32 %v5823, %v5744
    %v5825 = vadd.f32 %v5824, %v5745
    %v5826 = vadd.f32 %v5825, %v5746
    %v5827 = vadd.f32 %v5826, %v5747
    %v5828 = vadd.f32 %v5827, %v5748
    %v5829 = vadd.f32 %v5828, %v5749
    %v5830 = vadd.f32 %v5829, %v5750
    %v5831 = vadd.f32 %v5830, %v5751
    %v5832 = vadd.f32 %v5831, %v5752
    %v5833 = vadd.f32 %v5832, %v5753
    %v5834 = vadd.f32 %v5833, %v5754
    %v5835 = vadd.f32 %v5834, %v5755
    %v5836 = vadd.f32 %v5835, %v5756
    %v5837 = vadd.f32 %v5836, %v5757
    %v5838 = vadd.f32 %v5837, %v5758
    %v5839 = vadd.f32 %v5838, %v5759
    %v5840 = vadd.f32 %v5839, %v5760
    %v5841 = vadd.f32 %v5840, %v5761
    %v5842 = vadd.f32 %v5841, %v5762
    %v5843 = vadd.f32 %v5842, %v5763
    %v5844 = vadd.f32 %v5843, %v5764
    %v5845 = vadd.f32 %v5844, %v5765
    %v5846 = vadd.f32 %v5845, %v5766
    %v5847 = vadd.f32 %v5846, %v5767
    %v5848 = vadd.f32 %v5847, %v5768
    %v5849 = vadd.f32 %v5848, %v5769
    %v5850 = vadd.f32 %v5849, %v5770
    %v5851 = vadd.f32 %v5850, %v5771
    %v5852 = vadd.f32 %v5851, %v5772
    %v5853 = vadd.f32 %v5852, %v5773
    %v5854 = vadd.f32 %v5853, %v5774
    %v5855 = vadd.f32 %v5854, %v5775
    %v5856 = vadd.f32 %v5855, %v5776
    %v5857 = vadd.f32 %v5856, %v5777
    %v5858 = vadd.f32 %v5857, %v5778
    %v5859 = vadd.f32 %v5858, %v5779
    %v5860 = vadd.f32 %v5859, %v5780
    %v5861 = vadd.f32 %v5860, %v5781
    %v5862 = vadd.f32 %v5861, %v5782
    %v5863 = vadd.f32 %v5862, %v5783
    %v5864 = vadd.f32 %v5863, %v5784
    %v5865 = vadd.f32 %v5864, %v5785
    %v5866 = vadd.f32 %v5865, %v5786
    %v5867 = vadd.f32 %v5866, %v5787
    %v5868 = vadd.f32 %v5867, %v5788
    %v5869 = vadd.f32 %v5868, %v5789
    %v5870 = vadd.f32 %v5869, %v5790
    %v5871 = vadd.f32 %v5870, %v5791
    %v5872 = vadd.f32 %v5871, %v5792
    %v5873 = vadd.f32 %v5872, %v5793
    %v5874 = vadd.f32 %v5873, %v5794
    %v5875 = vadd.f32 %v5874, %v5795
    %v5876 = vadd.f32 %v5875, %v5796
    %v5877 = vadd.f32 %v5876, %v5797
    %v5878 = vadd.f32 %v5877, %v5798
    %v5879 = vadd.f32 %v5878, %v5799
    %v5880 = vadd.f32 %v5879, %v5800
    %v5881 = vadd.f32 %v5880, %v5801
    %v5882 = vadd.f32 %v5881, %v5802
    %v5883 = vadd.f32 %v5882, %v5803
    %v5884 = vadd.f32 %v5883, %v5804
    %v5885 = vadd.f32 %v5884, %v5805
    %v5886 = vadd.f32 %v5885, %v5806
    %v5887 = vadd.f32 %v5886, %v5807
    %v5888 = vadd.f32 %v5887, %v5808
    %v5889 = vadd.f32 %v5888, %v5809
    %v5890 = vadd.f32 %v5889, %v5810
    %v5891 = vadd.f32 %v5890, %v5811
    %v5892 = vadd.f32 %v5891, %v5812
    %v5893 = vrot.slane %v5892, 4
    %v5894 = vadd.f32 %v5892, %v5893
    %v5895 = vrot.slane %v5894, 2
    %v5896 = vadd.f32 %v5894, %v5895
    %v5897 = vrot.slane %v5896, 1
    %v5898 = vadd.f32 %v5896, %v5897
    %v5899 = vmul.f32 %v5731, 0.001953125
    %v5900 = vmul.f32 %v5898, 0.001953125
    %v5901 = vmul.f32 %v5899, %v5899
    %v5902 = vsub.f32 %v5900, %v5901
    %v5903 = vadd.f32 %v5902, 1e-05
    %v5904 = vrsqrt.pop %v5903
    %v5905 = vmul.f32 %v5904, %v5903
    %v5906 = vmul.f32 %v5905, %v5904
    %v5907 = vmul.f32 0.5, %v5906
    %v5908 = vsub.f32 1.5, %v5907
    %v5909 = vmul.f32 %v5904, %v5908
    %vm5910 = vweird.f32 %v5903
    %vm5911 = vweird.f32 %v5904
    %vm5912 = vmor %vm5910, %vm5911
    %v5913 = vsel %vm5912, %v5904, %v5909
    %v5914 = vmul.f32 %v5563, %v5913
    %v5915 = vmul.f32 %v5899, %v5914
    %v5916 = vsub.f32 %v5564, %v5915
    %v5917 = vld [vmem:[#allocation8] sm:$0xff]
    %v5918 = vld [vmem:[#allocation8 + $0x8] sm:$0xff]
    %v5919 = vld [vmem:[#allocation8 + $0x10] sm:$0xff]
    %v5920 = vld [vmem:[#allocation8 + $0x18] sm:$0xff]
    %v5921 = vld [vmem:[#allocation8 + $0x20] sm:$0xff]
    %v5922 = vld [vmem:[#allocation8 + $0x28] sm:$0xff]
    %v5923 = vld [vmem:[#allocation8 + $0x30] sm:$0xff]
    %v5924 = vld [vmem:[#allocation8 + $0x38] sm:$0xff]
    %v5925 = vld [vmem:[#allocation8 + $0x40] sm:$0xff]
    %v5926 = vld [vmem:[#allocation8 + $0x48] sm:$0xff]
    %v5927 = vld [vmem:[#allocation8 + $0x50] sm:$0xff]
    %v5928 = vld [vmem:[#allocation8 + $0x58] sm:$0xff]
    %v5929 = vld [vmem:[#allocation8 + $0x60] sm:$0xff]
    %v5930 = vld [vmem:[#allocation8 + $0x68] sm:$0xff]
    %v5931 = vld [vmem:[#allocation8 + $0x70] sm:$0xff]
    %v5932 = vld [vmem:[#allocation8 + $0x78] sm:$0xff]
    %v5933 = vld [vmem:[#allocation8 + $0x80] sm:$0xff]
    %v5934 = vld [vmem:[#allocation8 + $0x88] sm:$0xff]
    %v5935 = vld [vmem:[#allocation8 + $0x90] sm:$0xff]
    %v5936 = vld [vmem:[#allocation8 + $0x98] sm:$0xff]
    %v5937 = vld [vmem:[#allocation8 + $0xa0] sm:$0xff]
    %v5938 = vld [vmem:[#allocation8 + $0xa8] sm:$0xff]
    %v5939 = vld [vmem:[#allocation8 + $0xb0] sm:$0xff]
    %v5940 = vld [vmem:[#allocation8 + $0xb8] sm:$0xff]
    %v5941 = vld [vmem:[#allocation8 + $0xc0] sm:$0xff]
    %v5942 = vld [vmem:[#allocation8 + $0xc8] sm:$0xff]
    %v5943 = vld [vmem:[#allocation8 + $0xd0] sm:$0xff]
    %v5944 = vld [vmem:[#allocation8 + $0xd8] sm:$0xff]
    %v5945 = vld [vmem:[#allocation8 + $0xe0] sm:$0xff]
    %v5946 = vld [vmem:[#allocation8 + $0xe8] sm:$0xff]
    %v5947 = vld [vmem:[#allocation8 + $0xf0] sm:$0xff]
    %v5948 = vld [vmem:[#allocation8 + $0xf8] sm:$0xff]
    %v5949 = vld [vmem:[#allocation8 + $0x100] sm:$0xff]
    %v5950 = vld [vmem:[#allocation8 + $0x108] sm:$0xff]
    %v5951 = vld [vmem:[#allocation8 + $0x110] sm:$0xff]
    %v5952 = vld [vmem:[#allocation8 + $0x118] sm:$0xff]
    %v5953 = vld [vmem:[#allocation8 + $0x120] sm:$0xff]
    %v5954 = vld [vmem:[#allocation8 + $0x128] sm:$0xff]
    %v5955 = vld [vmem:[#allocation8 + $0x130] sm:$0xff]
    %v5956 = vld [vmem:[#allocation8 + $0x138] sm:$0xff]
    %v5957 = vld [vmem:[#allocation8 + $0x140] sm:$0xff]
    %v5958 = vld [vmem:[#allocation8 + $0x148] sm:$0xff]
    %v5959 = vld [vmem:[#allocation8 + $0x150] sm:$0xff]
    %v5960 = vld [vmem:[#allocation8 + $0x158] sm:$0xff]
    %v5961 = vld [vmem:[#allocation8 + $0x160] sm:$0xff]
    %v5962 = vld [vmem:[#allocation8 + $0x168] sm:$0xff]
    %v5963 = vld [vmem:[#allocation8 + $0x170] sm:$0xff]
    %v5964 = vld [vmem:[#allocation8 + $0x178] sm:$0xff]
    %v5965 = vld [vmem:[#allocation8 + $0x180] sm:$0xff]
    %v5966 = vld [vmem:[#allocation8 + $0x188] sm:$0xff]
    %v5967 = vld [vmem:[#allocation8 + $0x190] sm:$0xff]
    %v5968 = vld [vmem:[#allocation8 + $0x198] sm:$0xff]
    %v5969 = vld [vmem:[#allocation8 + $0x1a0] sm:$0xff]
    %v5970 = vld [vmem:[#allocation8 + $0x1a8] sm:$0xff]
    %v5971 = vld [vmem:[#allocation8 + $0x1b0] sm:$0xff]
    %v5972 = vld [vmem:[#allocation8 + $0x1b8] sm:$0xff]
    %v5973 = vld [vmem:[#allocation8 + $0x1c0] sm:$0xff]
    %v5974 = vld [vmem:[#allocation8 + $0x1c8] sm:$0xff]
    %v5975 = vld [vmem:[#allocation8 + $0x1d0] sm:$0xff]
    %v5976 = vld [vmem:[#allocation8 + $0x1d8] sm:$0xff]
    %v5977 = vld [vmem:[#allocation8 + $0x1e0] sm:$0xff]
    %v5978 = vld [vmem:[#allocation8 + $0x1e8] sm:$0xff]
    %v5979 = vld [vmem:[#allocation8 + $0x1f0] sm:$0xff]
    %v5980 = vld [vmem:[#allocation8 + $0x1f8] sm:$0xff]
    %v5981 = vld [vmem:[#allocation8 + $0x200] sm:$0xff]
    %v5982 = vld [vmem:[#allocation8 + $0x208] sm:$0xff]
    %v5983 = vld [vmem:[#allocation8 + $0x210] sm:$0xff]
    %v5984 = vld [vmem:[#allocation8 + $0x218] sm:$0xff]
    %v5985 = vld [vmem:[#allocation8 + $0x220] sm:$0xff]
    %v5986 = vld [vmem:[#allocation8 + $0x228] sm:$0xff]
    %v5987 = vld [vmem:[#allocation8 + $0x230] sm:$0xff]
    %v5988 = vld [vmem:[#allocation8 + $0x238] sm:$0xff]
    %v5989 = vld [vmem:[#allocation8 + $0x240] sm:$0xff]
    %v5990 = vld [vmem:[#allocation8 + $0x248] sm:$0xff]
    %v5991 = vld [vmem:[#allocation8 + $0x250] sm:$0xff]
    %v5992 = vld [vmem:[#allocation8 + $0x258] sm:$0xff]
    %v5993 = vld [vmem:[#allocation8 + $0x260] sm:$0xff]
    %v5994 = vld [vmem:[#allocation8 + $0x268] sm:$0xff]
    %v5995 = vld [vmem:[#allocation8 + $0x270] sm:$0xff]
    %v5996 = vld [vmem:[#allocation8 + $0x278] sm:$0xff]
    %v5997 = vld [vmem:[#allocation8 + $0x280] sm:$0xff]
    %v5999 = vperm.slane %v5914, 0
    %v6001 = vmul.f32 %v5482, %v5999
    %v6002 = vmul.f32 %v5483, %v5999
    %v6003 = vmul.f32 %v5484, %v5999
    %v6004 = vmul.f32 %v5485, %v5999
    %v6005 = vmul.f32 %v5486, %v5999
    %v6006 = vmul.f32 %v5487, %v5999
    %v6007 = vmul.f32 %v5488, %v5999
    %v6008 = vmul.f32 %v5489, %v5999
    %v6009 = vmul.f32 %v5490, %v5999
    %v6010 = vmul.f32 %v5491, %v5999
    %v6011 = vmul.f32 %v5492, %v5999
    %v6012 = vmul.f32 %v5493, %v5999
    %v6013 = vmul.f32 %v5494, %v5999
    %v6014 = vmul.f32 %v5495, %v5999
    %v6015 = vmul.f32 %v5496, %v5999
    %v6016 = vmul.f32 %v5497, %v5999
    %v6017 = vmul.f32 %v5498, %v5999
    %v6018 = vmul.f32 %v5499, %v5999
    %v6019 = vmul.f32 %v5500, %v5999
    %v6020 = vmul.f32 %v5501, %v5999
    %v6021 = vmul.f32 %v5502, %v5999
    %v6022 = vmul.f32 %v5503, %v5999
    %v6023 = vmul.f32 %v5504, %v5999
    %v6024 = vmul.f32 %v5505, %v5999
    %v6025 = vmul.f32 %v5506, %v5999
    %v6026 = vmul.f32 %v5507, %v5999
    %v6027 = vmul.f32 %v5508, %v5999
    %v6028 = vmul.f32 %v5509, %v5999
    %v6029 = vmul.f32 %v5510, %v5999
    %v6030 = vmul.f32 %v5511, %v5999
    %v6031 = vmul.f32 %v5512, %v5999
    %v6032 = vmul.f32 %v5513, %v5999
    %v6033 = vmul.f32 %v5514, %v5999
    %v6034 = vmul.f32 %v5515, %v5999
    %v6035 = vmul.f32 %v5516, %v5999
    %v6036 = vmul.f32 %v5517, %v5999
    %v6037 = vmul.f32 %v5518, %v5999
    %v6038 = vmul.f32 %v5519, %v5999
    %v6039 = vmul.f32 %v5520, %v5999
    %v6040 = vmul.f32 %v5521, %v5999
    %v6041 = vmul.f32 %v5522, %v5999
    %v6042 = vmul.f32 %v5523, %v5999
    %v6043 = vmul.f32 %v5524, %v5999
    %v6044 = vmul.f32 %v5525, %v5999
    %v6045 = vmul.f32 %v5526, %v5999
    %v6046 = vmul.f32 %v5527, %v5999
    %v6047 = vmul.f32 %v5528, %v5999
    %v6048 = vmul.f32 %v5529, %v5999
    %v6049 = vmul.f32 %v5530, %v5999
    %v6050 = vmul.f32 %v5531, %v5999
    %v6051 = vmul.f32 %v5532, %v5999
    %v6052 = vmul.f32 %v5533, %v5999
    %v6053 = vmul.f32 %v5534, %v5999
    %v6054 = vmul.f32 %v5535, %v5999
    %v6055 = vmul.f32 %v5536, %v5999
    %v6056 = vmul.f32 %v5537, %v5999
    %v6057 = vmul.f32 %v5538, %v5999
    %v6058 = vmul.f32 %v5539, %v5999
    %v6059 = vmul.f32 %v5540, %v5999
    %v6060 = vmul.f32 %v5541, %v5999
    %v6061 = vmul.f32 %v5542, %v5999
    %v6062 = vmul.f32 %v5543, %v5999
    %v6063 = vmul.f32 %v5544, %v5999
    %v6064 = vmul.f32 %v5545, %v5999
    %v6065 = vmul.f32 %v5546, %v5999
    %v6066 = vmul.f32 %v5547, %v5999
    %v6067 = vmul.f32 %v5548, %v5999
    %v6068 = vmul.f32 %v5549, %v5999
    %v6069 = vmul.f32 %v5550, %v5999
    %v6070 = vmul.f32 %v5551, %v5999
    %v6071 = vmul.f32 %v5552, %v5999
    %v6072 = vmul.f32 %v5553, %v5999
    %v6073 = vmul.f32 %v5554, %v5999
    %v6074 = vmul.f32 %v5555, %v5999
    %v6075 = vmul.f32 %v5556, %v5999
    %v6076 = vmul.f32 %v5557, %v5999
    %v6077 = vmul.f32 %v5558, %v5999
    %v6078 = vmul.f32 %v5559, %v5999
    %v6079 = vmul.f32 %v5560, %v5999
    %v6080 = vmul.f32 %v5561, %v5999
    %v6081 = vmul.f32 %v5562, %v5999
    %v6083 = vperm.slane %v5916, 0
    %v6085 = vadd.f32 %v6001, %v6083
    %v6086 = vadd.f32 %v6002, %v6083
    %v6087 = vadd.f32 %v6003, %v6083
    %v6088 = vadd.f32 %v6004, %v6083
    %v6089 = vadd.f32 %v6005, %v6083
    %v6090 = vadd.f32 %v6006, %v6083
    %v6091 = vadd.f32 %v6007, %v6083
    %v6092 = vadd.f32 %v6008, %v6083
    %v6093 = vadd.f32 %v6009, %v6083
    %v6094 = vadd.f32 %v6010, %v6083
    %v6095 = vadd.f32 %v6011, %v6083
    %v6096 = vadd.f32 %v6012, %v6083
    %v6097 = vadd.f32 %v6013, %v6083
    %v6098 = vadd.f32 %v6014, %v6083
    %v6099 = vadd.f32 %v6015, %v6083
    %v6100 = vadd.f32 %v6016, %v6083
    %v6101 = vadd.f32 %v6017, %v6083
    %v6102 = vadd.f32 %v6018, %v6083
    %v6103 = vadd.f32 %v6019, %v6083
    %v6104 = vadd.f32 %v6020, %v6083
    %v6105 = vadd.f32 %v6021, %v6083
    %v6106 = vadd.f32 %v6022, %v6083
    %v6107 = vadd.f32 %v6023, %v6083
    %v6108 = vadd.f32 %v6024, %v6083
    %v6109 = vadd.f32 %v6025, %v6083
    %v6110 = vadd.f32 %v6026, %v6083
    %v6111 = vadd.f32 %v6027, %v6083
    %v6112 = vadd.f32 %v6028, %v6083
    %v6113 = vadd.f32 %v6029, %v6083
    %v6114 = vadd.f32 %v6030, %v6083
    %v6115 = vadd.f32 %v6031, %v6083
    %v6116 = vadd.f32 %v6032, %v6083
    %v6117 = vadd.f32 %v6033, %v6083
    %v6118 = vadd.f32 %v6034, %v6083
    %v6119 = vadd.f32 %v6035, %v6083
    %v6120 = vadd.f32 %v6036, %v6083
    %v6121 = vadd.f32 %v6037, %v6083
    %v6122 = vadd.f32 %v6038, %v6083
    %v6123 = vadd.f32 %v6039, %v6083
    %v6124 = vadd.f32 %v6040, %v6083
    %v6125 = vadd.f32 %v6041, %v6083
    %v6126 = vadd.f32 %v6042, %v6083
    %v6127 = vadd.f32 %v6043, %v6083
    %v6128 = vadd.f32 %v6044, %v6083
    %v6129 = vadd.f32 %v6045, %v6083
    %v6130 = vadd.f32 %v6046, %v6083
    %v6131 = vadd.f32 %v6047, %v6083
    %v6132 = vadd.f32 %v6048, %v6083
    %v6133 = vadd.f32 %v6049, %v6083
    %v6134 = vadd.f32 %v6050, %v6083
    %v6135 = vadd.f32 %v6051, %v6083
    %v6136 = vadd.f32 %v6052, %v6083
    %v6137 = vadd.f32 %v6053, %v6083
    %v6138 = vadd.f32 %v6054, %v6083
    %v6139 = vadd.f32 %v6055, %v6083
    %v6140 = vadd.f32 %v6056, %v6083
    %v6141 = vadd.f32 %v6057, %v6083
    %v6142 = vadd.f32 %v6058, %v6083
    %v6143 = vadd.f32 %v6059, %v6083
    %v6144 = vadd.f32 %v6060, %v6083
    %v6145 = vadd.f32 %v6061, %v6083
    %v6146 = vadd.f32 %v6062, %v6083
    %v6147 = vadd.f32 %v6063, %v6083
    %v6148 = vadd.f32 %v6064, %v6083
    %v6149 = vadd.f32 %v6065, %v6083
    %v6150 = vadd.f32 %v6066, %v6083
    %v6151 = vadd.f32 %v6067, %v6083
    %v6152 = vadd.f32 %v6068, %v6083
    %v6153 = vadd.f32 %v6069, %v6083
    %v6154 = vadd.f32 %v6070, %v6083
    %v6155 = vadd.f32 %v6071, %v6083
    %v6156 = vadd.f32 %v6072, %v6083
    %v6157 = vadd.f32 %v6073, %v6083
    %v6158 = vadd.f32 %v6074, %v6083
    %v6159 = vadd.f32 %v6075, %v6083
    %v6160 = vadd.f32 %v6076, %v6083
    %v6161 = vadd.f32 %v6077, %v6083
    %v6162 = vadd.f32 %v6078, %v6083
    %v6163 = vadd.f32 %v6079, %v6083
    %v6164 = vadd.f32 %v6080, %v6083
    %v6165 = vadd.f32 %v6081, %v6083
    %v6166 = vadd.f32 %v6085, %v5917
    %v6167 = vadd.f32 %v6086, %v5918
    %v6168 = vadd.f32 %v6087, %v5919
    %v6169 = vadd.f32 %v6088, %v5920
    %v6170 = vadd.f32 %v6089, %v5921
    %v6171 = vadd.f32 %v6090, %v5922
    %v6172 = vadd.f32 %v6091, %v5923
    %v6173 = vadd.f32 %v6092, %v5924
    %v6174 = vadd.f32 %v6093, %v5925
    %v6175 = vadd.f32 %v6094, %v5926
    %v6176 = vadd.f32 %v6095, %v5927
    %v6177 = vadd.f32 %v6096, %v5928
    %v6178 = vadd.f32 %v6097, %v5929
    %v6179 = vadd.f32 %v6098, %v5930
    %v6180 = vadd.f32 %v6099, %v5931
    %v6181 = vadd.f32 %v6100, %v5932
    %v6182 = vadd.f32 %v6101, %v5933
    %v6183 = vadd.f32 %v6102, %v5934
    %v6184 = vadd.f32 %v6103, %v5935
    %v6185 = vadd.f32 %v6104, %v5936
    %v6186 = vadd.f32 %v6105, %v5937
    %v6187 = vadd.f32 %v6106, %v5938
    %v6188 = vadd.f32 %v6107, %v5939
    %v6189 = vadd.f32 %v6108, %v5940
    %v6190 = vadd.f32 %v6109, %v5941
    %v6191 = vadd.f32 %v6110, %v5942
    %v6192 = vadd.f32 %v6111, %v5943
    %v6193 = vadd.f32 %v6112, %v5944
    %v6194 = vadd.f32 %v6113, %v5945
    %v6195 = vadd.f32 %v6114, %v5946
    %v6196 = vadd.f32 %v6115, %v5947
    %v6197 = vadd.f32 %v6116, %v5948
    %v6198 = vadd.f32 %v6117, %v5949
    %v6199 = vadd.f32 %v6118, %v5950
    %v6200 = vadd.f32 %v6119, %v5951
    %v6201 = vadd.f32 %v6120, %v5952
    %v6202 = vadd.f32 %v6121, %v5953
    %v6203 = vadd.f32 %v6122, %v5954
    %v6204 = vadd.f32 %v6123, %v5955
    %v6205 = vadd.f32 %v6124, %v5956
    %v6206 = vadd.f32 %v6125, %v5957
    %v6207 = vadd.f32 %v6126, %v5958
    %v6208 = vadd.f32 %v6127, %v5959
    %v6209 = vadd.f32 %v6128, %v5960
    %v6210 = vadd.f32 %v6129, %v5961
    %v6211 = vadd.f32 %v6130, %v5962
    %v6212 = vadd.f32 %v6131, %v5963
    %v6213 = vadd.f32 %v6132, %v5964
    %v6214 = vadd.f32 %v6133, %v5965
    %v6215 = vadd.f32 %v6134, %v5966
    %v6216 = vadd.f32 %v6135, %v5967
    %v6217 = vadd.f32 %v6136, %v5968
    %v6218 = vadd.f32 %v6137, %v5969
    %v6219 = vadd.f32 %v6138, %v5970
    %v6220 = vadd.f32 %v6139, %v5971
    %v6221 = vadd.f32 %v6140, %v5972
    %v6222 = vadd.f32 %v6141, %v5973
    %v6223 = vadd.f32 %v6142, %v5974
    %v6224 = vadd.f32 %v6143, %v5975
    %v6225 = vadd.f32 %v6144, %v5976
    %v6226 = vadd.f32 %v6145, %v5977
    %v6227 = vadd.f32 %v6146, %v5978
    %v6228 = vadd.f32 %v6147, %v5979
    %v6229 = vadd.f32 %v6148, %v5980
    %v6230 = vadd.f32 %v6149, %v5981
    %v6231 = vadd.f32 %v6150, %v5982
    %v6232 = vadd.f32 %v6151, %v5983
    %v6233 = vadd.f32 %v6152, %v5984
    %v6234 = vadd.f32 %v6153, %v5985
    %v6235 = vadd.f32 %v6154, %v5986
    %v6236 = vadd.f32 %v6155, %v5987
    %v6237 = vadd.f32 %v6156, %v5988
    %v6238 = vadd.f32 %v6157, %v5989
    %v6239 = vadd.f32 %v6158, %v5990
    %v6240 = vadd.f32 %v6159, %v5991
    %v6241 = vadd.f32 %v6160, %v5992
    %v6242 = vadd.f32 %v6161, %v5993
    %v6243 = vadd.f32 %v6162, %v5994
    %v6244 = vadd.f32 %v6163, %v5995
    %v6245 = vadd.f32 %v6164, %v5996
    %v6246 = vadd.f32 %v6165, %v5997
    %v6247 = vmax.f32 %v6166, 0.0
    %v6248 = vmax.f32 %v6167, 0.0
    %v6249 = vmax.f32 %v6168, 0.0
    %v6250 = vmax.f32 %v6169, 0.0
    %v6251 = vmax.f32 %v6170, 0.0
    %v6252 = vmax.f32 %v6171, 0.0
    %v6253 = vmax.f32 %v6172, 0.0
    %v6254 = vmax.f32 %v6173, 0.0
    %v6255 = vmax.f32 %v6174, 0.0
    %v6256 = vmax.f32 %v6175, 0.0
    %v6257 = vmax.f32 %v6176, 0.0
    %v6258 = vmax.f32 %v6177, 0.0
    %v6259 = vmax.f32 %v6178, 0.0
    %v6260 = vmax.f32 %v6179, 0.0
    %v6261 = vmax.f32 %v6180, 0.0
    %v6262 = vmax.f32 %v6181, 0.0
    %v6263 = vmax.f32 %v6182, 0.0
    %v6264 = vmax.f32 %v6183, 0.0
    %v6265 = vmax.f32 %v6184, 0.0
    %v6266 = vmax.f32 %v6185, 0.0
    %v6267 = vmax.f32 %v6186, 0.0
    %v6268 = vmax.f32 %v6187, 0.0
    %v6269 = vmax.f32 %v6188, 0.0
    %v6270 = vmax.f32 %v6189, 0.0
    %v6271 = vmax.f32 %v6190, 0.0
    %v6272 = vmax.f32 %v6191, 0.0
    %v6273 = vmax.f32 %v6192, 0.0
    %v6274 = vmax.f32 %v6193, 0.0
    %v6275 = vmax.f32 %v6194, 0.0
    %v6276 = vmax.f32 %v6195, 0.0
    %v6277 = vmax.f32 %v6196, 0.0
    %v6278 = vmax.f32 %v6197, 0.0
    %v6279 = vmax.f32 %v6198, 0.0
    %v6280 = vmax.f32 %v6199, 0.0
    %v6281 = vmax.f32 %v6200, 0.0
    %v6282 = vmax.f32 %v6201, 0.0
    %v6283 = vmax.f32 %v6202, 0.0
    %v6284 = vmax.f32 %v6203, 0.0
    %v6285 = vmax.f32 %v6204, 0.0
    %v6286 = vmax.f32 %v6205, 0.0
    %v6287 = vmax.f32 %v6206, 0.0
    %v6288 = vmax.f32 %v6207, 0.0
    %v6289 = vmax.f32 %v6208, 0.0
    %v6290 = vmax.f32 %v6209, 0.0
    %v6291 = vmax.f32 %v6210, 0.0
    %v6292 = vmax.f32 %v6211, 0.0
    %v6293 = vmax.f32 %v6212, 0.0
    %v6294 = vmax.f32 %v6213, 0.0
    %v6295 = vmax.f32 %v6214, 0.0
    %v6296 = vmax.f32 %v6215, 0.0
    %v6297 = vmax.f32 %v6216, 0.0
    %v6298 = vmax.f32 %v6217, 0.0
    %v6299 = vmax.f32 %v6218, 0.0
    %v6300 = vmax.f32 %v6219, 0.0
    %v6301 = vmax.f32 %v6220, 0.0
    %v6302 = vmax.f32 %v6221, 0.0
    %v6303 = vmax.f32 %v6222, 0.0
    %v6304 = vmax.f32 %v6223, 0.0
    %v6305 = vmax.f32 %v6224, 0.0
    %v6306 = vmax.f32 %v6225, 0.0
    %v6307 = vmax.f32 %v6226, 0.0
    %v6308 = vmax.f32 %v6227, 0.0
    %v6309 = vmax.f32 %v6228, 0.0
    %v6310 = vmax.f32 %v6229, 0.0
    %v6311 = vmax.f32 %v6230, 0.0
    %v6312 = vmax.f32 %v6231, 0.0
    %v6313 = vmax.f32 %v6232, 0.0
    %v6314 = vmax.f32 %v6233, 0.0
    %v6315 = vmax.f32 %v6234, 0.0
    %v6316 = vmax.f32 %v6235, 0.0
    %v6317 = vmax.f32 %v6236, 0.0
    %v6318 = vmax.f32 %v6237, 0.0
    %v6319 = vmax.f32 %v6238, 0.0
    %v6320 = vmax.f32 %v6239, 0.0
    %v6321 = vmax.f32 %v6240, 0.0
    %v6322 = vmax.f32 %v6241, 0.0
    %v6323 = vmax.f32 %v6242, 0.0
    %v6324 = vmax.f32 %v6243, 0.0
    %v6325 = vmax.f32 %v6244, 0.0
    %v6326 = vmax.f32 %v6245, 0.0
    %v6327 = vmax.f32 %v6246, 0.0
    %6328 = vst [vmem:[#allocation9] sm:$0xff] %v6247
    %6329 = vst [vmem:[#allocation9 + $0x8] sm:$0xff] %v6248
    %6330 = vst [vmem:[#allocation9 + $0x10] sm:$0xff] %v6249
    %6331 = vst [vmem:[#allocation9 + $0x18] sm:$0xff] %v6250
    %6332 = vst [vmem:[#allocation9 + $0x20] sm:$0xff] %v6251
    %6333 = vst [vmem:[#allocation9 + $0x28] sm:$0xff] %v6252
    %6334 = vst [vmem:[#allocation9 + $0x30] sm:$0xff] %v6253
    %6335 = vst [vmem:[#allocation9 + $0x38] sm:$0xff] %v6254
    %6336 = vst [vmem:[#allocation9 + $0x40] sm:$0xff] %v6255
    %6337 = vst [vmem:[#allocation9 + $0x48] sm:$0xff] %v6256
    %6338 = vst [vmem:[#allocation9 + $0x50] sm:$0xff] %v6257
    %6339 = vst [vmem:[#allocation9 + $0x58] sm:$0xff] %v6258
    %6340 = vst [vmem:[#allocation9 + $0x60] sm:$0xff] %v6259
    %6341 = vst [vmem:[#allocation9 + $0x68] sm:$0xff] %v6260
    %6342 = vst [vmem:[#allocation9 + $0x70] sm:$0xff] %v6261
    %6343 = vst [vmem:[#allocation9 + $0x78] sm:$0xff] %v6262
    %6344 = vst [vmem:[#allocation9 + $0x80] sm:$0xff] %v6263
    %6345 = vst [vmem:[#allocation9 + $0x88] sm:$0xff] %v6264
    %6346 = vst [vmem:[#allocation9 + $0x90] sm:$0xff] %v6265
    %6347 = vst [vmem:[#allocation9 + $0x98] sm:$0xff] %v6266
    %6348 = vst [vmem:[#allocation9 + $0xa0] sm:$0xff] %v6267
    %6349 = vst [vmem:[#allocation9 + $0xa8] sm:$0xff] %v6268
    %6350 = vst [vmem:[#allocation9 + $0xb0] sm:$0xff] %v6269
    %6351 = vst [vmem:[#allocation9 + $0xb8] sm:$0xff] %v6270
    %6352 = vst [vmem:[#allocation9 + $0xc0] sm:$0xff] %v6271
    %6353 = vst [vmem:[#allocation9 + $0xc8] sm:$0xff] %v6272
    %6354 = vst [vmem:[#allocation9 + $0xd0] sm:$0xff] %v6273
    %6355 = vst [vmem:[#allocation9 + $0xd8] sm:$0xff] %v6274
    %6356 = vst [vmem:[#allocation9 + $0xe0] sm:$0xff] %v6275
    %6357 = vst [vmem:[#allocation9 + $0xe8] sm:$0xff] %v6276
    %6358 = vst [vmem:[#allocation9 + $0xf0] sm:$0xff] %v6277
    %6359 = vst [vmem:[#allocation9 + $0xf8] sm:$0xff] %v6278
    %6360 = vst [vmem:[#allocation9 + $0x100] sm:$0xff] %v6279
    %6361 = vst [vmem:[#allocation9 + $0x108] sm:$0xff] %v6280
    %6362 = vst [vmem:[#allocation9 + $0x110] sm:$0xff] %v6281
    %6363 = vst [vmem:[#allocation9 + $0x118] sm:$0xff] %v6282
    %6364 = vst [vmem:[#allocation9 + $0x120] sm:$0xff] %v6283
    %6365 = vst [vmem:[#allocation9 + $0x128] sm:$0xff] %v6284
    %6366 = vst [vmem:[#allocation9 + $0x130] sm:$0xff] %v6285
    %6367 = vst [vmem:[#allocation9 + $0x138] sm:$0xff] %v6286
    %6368 = vst [vmem:[#allocation9 + $0x140] sm:$0xff] %v6287
    %6369 = vst [vmem:[#allocation9 + $0x148] sm:$0xff] %v6288
    %6370 = vst [vmem:[#allocation9 + $0x150] sm:$0xff] %v6289
    %6371 = vst [vmem:[#allocation9 + $0x158] sm:$0xff] %v6290
    %6372 = vst [vmem:[#allocation9 + $0x160] sm:$0xff] %v6291
    %6373 = vst [vmem:[#allocation9 + $0x168] sm:$0xff] %v6292
    %6374 = vst [vmem:[#allocation9 + $0x170] sm:$0xff] %v6293
    %6375 = vst [vmem:[#allocation9 + $0x178] sm:$0xff] %v6294
    %6376 = vst [vmem:[#allocation9 + $0x180] sm:$0xff] %v6295
    %6377 = vst [vmem:[#allocation9 + $0x188] sm:$0xff] %v6296
    %6378 = vst [vmem:[#allocation9 + $0x190] sm:$0xff] %v6297
    %6379 = vst [vmem:[#allocation9 + $0x198] sm:$0xff] %v6298
    %6380 = vst [vmem:[#allocation9 + $0x1a0] sm:$0xff] %v6299
    %6381 = vst [vmem:[#allocation9 + $0x1a8] sm:$0xff] %v6300
    %6382 = vst [vmem:[#allocation9 + $0x1b0] sm:$0xff] %v6301
    %6383 = vst [vmem:[#allocation9 + $0x1b8] sm:$0xff] %v6302
    %6384 = vst [vmem:[#allocation9 + $0x1c0] sm:$0xff] %v6303
    %6385 = vst [vmem:[#allocation9 + $0x1c8] sm:$0xff] %v6304
    %6386 = vst [vmem:[#allocation9 + $0x1d0] sm:$0xff] %v6305
    %6387 = vst [vmem:[#allocation9 + $0x1d8] sm:$0xff] %v6306
    %6388 = vst [vmem:[#allocation9 + $0x1e0] sm:$0xff] %v6307
    %6389 = vst [vmem:[#allocation9 + $0x1e8] sm:$0xff] %v6308
    %6390 = vst [vmem:[#allocation9 + $0x1f0] sm:$0xff] %v6309
    %6391 = vst [vmem:[#allocation9 + $0x1f8] sm:$0xff] %v6310
    %6392 = vst [vmem:[#allocation9 + $0x200] sm:$0xff] %v6311
    %6393 = vst [vmem:[#allocation9 + $0x208] sm:$0xff] %v6312
    %6394 = vst [vmem:[#allocation9 + $0x210] sm:$0xff] %v6313
    %6395 = vst [vmem:[#allocation9 + $0x218] sm:$0xff] %v6314
    %6396 = vst [vmem:[#allocation9 + $0x220] sm:$0xff] %v6315
    %6397 = vst [vmem:[#allocation9 + $0x228] sm:$0xff] %v6316
    %6398 = vst [vmem:[#allocation9 + $0x230] sm:$0xff] %v6317
    %6399 = vst [vmem:[#allocation9 + $0x238] sm:$0xff] %v6318
    %6400 = vst [vmem:[#allocation9 + $0x240] sm:$0xff] %v6319
    %6401 = vst [vmem:[#allocation9 + $0x248] sm:$0xff] %v6320
    %6402 = vst [vmem:[#allocation9 + $0x250] sm:$0xff] %v6321
    %6403 = vst [vmem:[#allocation9 + $0x258] sm:$0xff] %v6322
    %6404 = vst [vmem:[#allocation9 + $0x260] sm:$0xff] %v6323
    %6405 = vst [vmem:[#allocation9 + $0x268] sm:$0xff] %v6324
    %6406 = vst [vmem:[#allocation9 + $0x270] sm:$0xff] %v6325
    %6407 = vst [vmem:[#allocation9 + $0x278] sm:$0xff] %v6326
    %6408 = vst [vmem:[#allocation9 + $0x280] sm:$0xff] %v6327
    // Predicated region
    $region50: #{tpu_custom_call.1} parent=1 // pred_check
      _
    $region51: #{tpu_custom_call.1} parent=1 // pred_check_branch
      %6410 = sbr.rel (0) target = $region53
    $region52: #{tpu_custom_call.1} parent=1 // pred_region
      %6412 = vsyncadd [#allocation5], 0
      %s6413 = sshll.u32 [#allocation9], 4
      %s6414 = int_to_ptr.vmem [resolvable:$true] %s6413
      %s6415 = sshll.u32 %s9, 4
      %s6416 = int_to_ptr.hbm [resolvable:$true] %s6415
      %6421 = dma.vmem_to_hbm [thread:$0]  %s6414, 10368, %s6416, [#allocation5], 128, 128, 8
    $region53: #{tpu_custom_call.1} parent=1 // pred_fallthru
      _
    // Predicated region
    $region54: #{tpu_custom_call.1} parent=1 // pred_check
      _
    $region55: #{tpu_custom_call.1} parent=1 // pred_check_branch
      %6423 = sbr.rel (0) target = $region57
    $region56: #{tpu_custom_call.1} parent=1 // pred_region
      %6425 = dma.done [#allocation5], 10368
    $region57: #{tpu_custom_call.1} parent=1 // pred_fallthru
      _
    %6426 = vsyncpa [#allocation4], 1
    %6427 = vsyncpa [#allocation7], 1
    %6428 = vsyncpa [#allocation5], 1

</llo_original>
